<compile_context>
chip_gen: v7x
topology: tpu7x:2x2x1
jax: 0.10.0
libtpu: 0.0.40
codegen_flags: <defaults>
</compile_context>

<pallas_src>
import functools

import jax
import jax.numpy as jnp
from jax.experimental import pallas as pl
from jax.experimental.pallas import tpu as pltpu


# -----------------------------------------------------------------------------
# Pallas kernel: out = [relu]( X @ W + b )   (bf16 MXU operands, f32 epilogue)
# -----------------------------------------------------------------------------
def _matmul_bias_kernel(x_ref, w_ref, b_ref, o_ref, *, relu):
    acc = jnp.dot(x_ref[...], w_ref[...], preferred_element_type=jnp.float32)
    acc = acc + b_ref[...]
    if relu:
        acc = jnp.maximum(acc, 0.0)
    o_ref[...] = acc.astype(o_ref.dtype)


def _vmem_limit(total_block_bytes):
    # Headroom for double-buffering + f32 intermediates, clamped well under the
    # v7x 64 MiB physical VMEM (and within v5e/v6e physical VMEM).
    return int(min(48 * 1024 * 1024, max(16 * 1024 * 1024, 6 * total_block_bytes)))


def fused_matmul_bias(x, w, b, *, relu, out_dtype, tm=512):
    """x: (M, K) bf16, w: (K, N) bf16, b: (1, N) f32 -> (M, N) out_dtype."""
    M, K = x.shape
    K2, N = w.shape
    assert K == K2 and b.shape == (1, N)
    TM = M if M <= tm else tm                 # full-dim block when M is small
    grid_m = pl.cdiv(M, TM)                   # ragged last block handled by Pallas

    blk_bytes = (TM * K * 2) + (K * N * 2) + (N * 4) + (TM * N * 4) * 2
    return pl.pallas_call(
        functools.partial(_matmul_bias_kernel, relu=relu),
        out_shape=jax.ShapeDtypeStruct((M, N), out_dtype),
        grid=(grid_m,),
        in_specs=[
            pl.BlockSpec((TM, K), lambda i: (i, 0)),
            pl.BlockSpec((K, N), lambda i: (0, 0)),   # weight resident across M tiles
            pl.BlockSpec((1, N), lambda i: (0, 0)),
        ],
        out_specs=pl.BlockSpec((TM, N), lambda i: (i, 0)),
        compiler_params=pltpu.CompilerParams(
            dimension_semantics=("parallel",),
            vmem_limit_bytes=_vmem_limit(blk_bytes),
        ),
    )(x, w, b)


# -----------------------------------------------------------------------------
# Pallas kernel: fused FC head  (fc1 -> ReLU -> fc2 -> ReLU -> fc3)
# Weights stay VMEM-resident across M tiles (constant index_map), so the three
# linears cost one launch and one HBM read/write of the activation.
# -----------------------------------------------------------------------------
def _fc_head_kernel(x_ref, w1_ref, b1_ref, w2_ref, b2_ref, w3_ref, b3_ref, o_ref):
    h = jnp.dot(x_ref[...], w1_ref[...], preferred_element_type=jnp.float32)
    h = jnp.maximum(h + b1_ref[...], 0.0).astype(jnp.bfloat16)
    h = jnp.dot(h, w2_ref[...], preferred_element_type=jnp.float32)
    h = jnp.maximum(h + b2_ref[...], 0.0).astype(jnp.bfloat16)
    h = jnp.dot(h, w3_ref[...], preferred_element_type=jnp.float32)
    o_ref[...] = (h + b3_ref[...]).astype(o_ref.dtype)


def fc_head(x, fc, *, tm=128):
    B, K = x.shape
    N1 = fc["w1"].shape[1]
    N2 = fc["w2"].shape[1]
    N3 = fc["w3"].shape[1]
    TM = B if B <= tm else tm
    grid_m = pl.cdiv(B, TM)

    blk_bytes = (TM * K * 2 + K * N1 * 2 + N1 * N2 * 2 + N2 * N3 * 2
                 + 4 * (N1 + N2 + N3)
                 + TM * N1 * 4 + TM * N2 * 4 + TM * N3 * 4)
    return pl.pallas_call(
        _fc_head_kernel,
        out_shape=jax.ShapeDtypeStruct((B, N3), jnp.float32),
        grid=(grid_m,),
        in_specs=[
            pl.BlockSpec((TM, K), lambda i: (i, 0)),
            pl.BlockSpec((K, N1), lambda i: (0, 0)),
            pl.BlockSpec((1, N1), lambda i: (0, 0)),
            pl.BlockSpec((N1, N2), lambda i: (0, 0)),
            pl.BlockSpec((1, N2), lambda i: (0, 0)),
            pl.BlockSpec((N2, N3), lambda i: (0, 0)),
            pl.BlockSpec((1, N3), lambda i: (0, 0)),
        ],
        out_specs=pl.BlockSpec((TM, N3), lambda i: (i, 0)),
        compiler_params=pltpu.CompilerParams(
            dimension_semantics=("parallel",),
            vmem_limit_bytes=_vmem_limit(blk_bytes),
        ),
    )(x, fc["w1"], fc["b1"], fc["w2"], fc["b2"], fc["w3"], fc["b3"])


# -----------------------------------------------------------------------------
# JAX glue: im2col (3x3, stride 1, valid) and 2x2 max-pool, NHWC, bf16.
# TODO(synk): fuse the 9 conv taps (and the 2x2 maxpool epilogue) directly into
# the matmul kernel to remove the 9x im2col read amplification; kept as glue.
# -----------------------------------------------------------------------------
def _im2col3x3(x):
    B, H, W, C = x.shape
    OH, OW = H - 2, W - 2
    patches = [x[:, i:i + OH, j:j + OW, :] for i in range(3) for j in range(3)]
    p = jnp.stack(patches, axis=3)                       # (B, OH, OW, 9, C)
    return p.reshape(B * OH * OW, 9 * C), (B, OH, OW)


def _maxpool2x2(x):
    B, H, W, C = x.shape
    return jnp.max(x.reshape(B, H // 2, 2, W // 2, 2, C), axis=(2, 4))


def _conv_bn_relu(x_nhwc, layer):
    patches, (B, OH, OW) = _im2col3x3(x_nhwc)            # (M, 9*IC) bf16
    out = fused_matmul_bias(patches, layer["w"], layer["b"],
                            relu=True, out_dtype=jnp.bfloat16)
    return out.reshape(B, OH, OW, -1)


# -----------------------------------------------------------------------------
# Parameter init (deterministic, synthetic; PyTorch layouts) + one-time prep
# -----------------------------------------------------------------------------
def init_params(key):
    params = {}

    def conv_block(key, name, ic, oc):
        k1, k2, k3, k4, k5, k6 = jax.random.split(key, 6)
        params[name] = dict(
            w=0.1 * jax.random.normal(k1, (oc, ic, 3, 3), jnp.float32),
            b=0.05 * jax.random.normal(k2, (oc,), jnp.float32),
            gamma=1.0 + 0.1 * jax.random.normal(k3, (oc,), jnp.float32),
            beta=0.05 * jax.random.normal(k4, (oc,), jnp.float32),
            mean=0.05 * jax.random.normal(k5, (oc,), jnp.float32),
            var=0.5 + jax.random.uniform(k6, (oc,), jnp.float32),
        )

    def fc_block(key, name, in_f, out_f):
        k1, k2 = jax.random.split(key, 2)
        params[name] = dict(
            w=(1.0 / jnp.sqrt(in_f)) * jax.random.normal(k1, (out_f, in_f), jnp.float32),
            b=0.05 * jax.random.normal(k2, (out_f,), jnp.float32),
        )

    keys = jax.random.split(key, 7)
    conv_block(keys[0], "layer1", 1, 16)
    conv_block(keys[1], "layer2", 16, 32)
    conv_block(keys[2], "layer3", 32, 64)
    conv_block(keys[3], "layer4", 64, 128)
    fc_block(keys[4], "fc1", 128 * 4 * 4, 1024)
    fc_block(keys[5], "fc2", 1024, 128)
    fc_block(keys[6], "fc3", 128, 10)
    return params


def prepare_params(params, eps=1e-5):
    """One-time weight prep: BN fold into W columns, (kh,kw,ic,oc) reshape,
    bf16 cast, fc weight transposes, and fc1 row permutation to NHWC order."""
    prep = {}
    for name in ("layer1", "layer2", "layer3", "layer4"):
        p = params[name]
        oc, ic = p["w"].shape[0], p["w"].shape[1]
        scale = p["gamma"] / jnp.sqrt(p["var"] + eps)
        shift = (p["b"] - p["mean"]) * scale + p["beta"]
        w2d = jnp.transpose(p["w"], (2, 3, 1, 0)).reshape(9 * ic, oc)  # (kh,kw,ic) x oc
        prep[name] = dict(
            w=(w2d * scale[None, :]).astype(jnp.bfloat16),             # BN scale folded
            b=shift.reshape(1, oc).astype(jnp.float32),
        )

    # fc1: permute input columns from NCHW-flatten (c*16+h*4+w) to NHWC-flatten
    # (h*512+w*128+c) so the forward can flatten the NHWC activation directly.
    w1 = params["fc1"]["w"].reshape(1024, 128, 4, 4)       # (out, c, h, w)
    w1 = jnp.transpose(w1, (0, 2, 3, 1)).reshape(1024, 128 * 4 * 4)
    prep["fc"] = dict(
        w1=w1.T.astype(jnp.bfloat16),
        b1=params["fc1"]["b"].reshape(1, -1).astype(jnp.float32),
        w2=params["fc2"]["w"].T.astype(jnp.bfloat16),
        b2=params["fc2"]["b"].reshape(1, -1).astype(jnp.float32),
        w3=params["fc3"]["w"].T.astype(jnp.bfloat16),
        b3=params["fc3"]["b"].reshape(1, -1).astype(jnp.float32),
    )
    return prep


# -----------------------------------------------------------------------------
# Forward pass
# -----------------------------------------------------------------------------
def dcnn_forward(prep, x_nchw):
    # NCHW (PyTorch) -> NHWC bf16 (kernel layout)
    x = jnp.transpose(x_nchw, (0, 2, 3, 1)).astype(jnp.bfloat16)   # (B, 28, 28, 1)

    x = _conv_bn_relu(x, prep["layer1"])    # (B, 26, 26, 16)
    x = _conv_bn_relu(x, prep["layer2"])    # (B, 24, 24, 32)
    x = _maxpool2x2(x)                      # (B, 12, 12, 32)
    x = _conv_bn_relu(x, prep["layer3"])    # (B, 10, 10, 64)
    x = _conv_bn_relu(x, prep["layer4"])    # (B, 8, 8, 128)
    x = _maxpool2x2(x)                      # (B, 4, 4, 128)

    # NHWC flatten (fc1 weight rows were pre-permuted to match this order).
    B = x.shape[0]
    x = x.reshape(B, 4 * 4 * 128)

    return fc_head(x, prep["fc"])           # (B, 10) float32


if __name__ == "__main__":
    key = jax.random.PRNGKey(0)
    k_param, k_input = jax.random.split(key)

    params = init_params(k_param)
    prep = prepare_params(params)           # one-time weight prep (outside the step)

    # Input consistent with the module: fc expects 128*4*4 => H=W=28, C=1.
    x = jax.random.normal(k_input, (2, 1, 28, 28), jnp.float32)

    out = jax.jit(dcnn_forward)(prep, x)
    out = jax.block_until_ready(out)

    assert out.shape == (2, 10), out.shape
    assert bool(jnp.all(jnp.isfinite(out)))
    print("KERNEL_OK")
</pallas_src>

<mosaic_0001>
module attributes {stable_mosaic.version = 11 : i64} {
  func.func @_matmul_bias_kernel(%arg0: i32, %arg1: memref<512x9xbf16, #tpu.memory_space<vmem>>, %arg2: memref<9x16xbf16, #tpu.memory_space<vmem>>, %arg3: memref<1x16xf32, #tpu.memory_space<vmem>>, %arg4: memref<512x16xbf16, #tpu.memory_space<vmem>>) attributes {dimension_semantics = [#tpu.dimension_semantics<parallel>], iteration_bounds = array<i64: 3>, scalar_prefetch = 0 : i64, scratch_operands = 0 : i64, tpu.core_type = #tpu.core_type<tc>, window_params = [{transform_indices = @transform_0, window_bounds = array<i64: 512, 9>}, {pipeline_mode = #tpu.pipeline_mode<synchronous>, transform_indices = @transform_1, window_bounds = array<i64: 9, 16>}, {pipeline_mode = #tpu.pipeline_mode<synchronous>, transform_indices = @transform_2, window_bounds = array<i64: 1, 16>}, {transform_indices = @transform_3, window_bounds = array<i64: 512, 16>}]} {
    %c0 = arith.constant 0 : index
    %c0_0 = arith.constant 0 : index
    %0 = vector.load %arg1[%c0, %c0_0] : memref<512x9xbf16, #tpu.memory_space<vmem>>, vector<512x9xbf16>
    %c0_1 = arith.constant 0 : index
    %c0_2 = arith.constant 0 : index
    %1 = vector.load %arg2[%c0_1, %c0_2] : memref<9x16xbf16, #tpu.memory_space<vmem>>, vector<9x16xbf16>
    %cst = arith.constant dense<0.000000e+00> : vector<512x16xf32>
    %2 = tpu.matmul %0, %1, %cst {dimension_numbers = #tpu.dot_dimension_numbers<[1], [0], [0], [1], [0, 0, 1, 1], [], []>} : vector<512x9xbf16>, vector<9x16xbf16>, vector<512x16xf32> -> vector<512x16xf32>
    %c0_3 = arith.constant 0 : index
    %c0_4 = arith.constant 0 : index
    %3 = vector.load %arg3[%c0_3, %c0_4] : memref<1x16xf32, #tpu.memory_space<vmem>>, vector<1x16xf32>
    %4 = vector.broadcast %3 : vector<1x16xf32> to vector<512x16xf32>
    %5 = arith.addf %2, %4 : vector<512x16xf32>
    %cst_5 = arith.constant 0.000000e+00 : f32
    %6 = vector.broadcast %cst_5 : f32 to vector<512x16xf32>
    %7 = arith.maximumf %5, %6 : vector<512x16xf32>
    %8 = arith.truncf %7 : vector<512x16xf32> to vector<512x16xbf16>
    %c0_6 = arith.constant 0 : index
    %c0_7 = arith.constant 0 : index
    %9 = vector.load %arg4[%c0_6, %c0_7] : memref<512x16xbf16, #tpu.memory_space<vmem>>, vector<512x16xbf16>
    tpu.vector_store %arg4[%c0_6, %c0_7], %8 {strides = array<i32>} : memref<512x16xbf16, #tpu.memory_space<vmem>>, vector<512x16xbf16>,
    return
  }
  func.func @transform_0(%arg0: i32) -> (i32, i32) {
    %c0_i32 = arith.constant 0 : i32
    %c0_i32_0 = arith.constant 0 : i32
    return %arg0, %c0_i32 : i32, i32
  }
  func.func @transform_1(%arg0: i32) -> (i32, i32) {
    %c0_i32 = arith.constant 0 : i32
    %c0_i32_0 = arith.constant 0 : i32
    %c0_i32_1 = arith.constant 0 : i32
    return %c0_i32, %c0_i32_0 : i32, i32
  }
  func.func @transform_2(%arg0: i32) -> (i32, i32) {
    %c0_i32 = arith.constant 0 : i32
    %c0_i32_0 = arith.constant 0 : i32
    %c0_i32_1 = arith.constant 0 : i32
    return %c0_i32, %c0_i32_0 : i32, i32
  }
  func.func @transform_3(%arg0: i32) -> (i32, i32) {
    %c0_i32 = arith.constant 0 : i32
    %c0_i32_0 = arith.constant 0 : i32
    return %arg0, %c0_i32 : i32, i32
  }
}

module attributes {stable_mosaic.version = 11 : i64} {
  func.func @_matmul_bias_kernel(%arg0: i32, %arg1: memref<512x144xbf16, #tpu.memory_space<vmem>>, %arg2: memref<144x32xbf16, #tpu.memory_space<vmem>>, %arg3: memref<1x32xf32, #tpu.memory_space<vmem>>, %arg4: memref<512x32xbf16, #tpu.memory_space<vmem>>) attributes {dimension_semantics = [#tpu.dimension_semantics<parallel>], iteration_bounds = array<i64: 3>, scalar_prefetch = 0 : i64, scratch_operands = 0 : i64, tpu.core_type = #tpu.core_type<tc>, window_params = [{transform_indices = @transform_0, window_bounds = array<i64: 512, 144>}, {pipeline_mode = #tpu.pipeline_mode<synchronous>, transform_indices = @transform_1, window_bounds = array<i64: 144, 32>}, {pipeline_mode = #tpu.pipeline_mode<synchronous>, transform_indices = @transform_2, window_bounds = array<i64: 1, 32>}, {transform_indices = @transform_3, window_bounds = array<i64: 512, 32>}]} {
    %c0 = arith.constant 0 : index
    %c0_0 = arith.constant 0 : index
    %0 = vector.load %arg1[%c0, %c0_0] : memref<512x144xbf16, #tpu.memory_space<vmem>>, vector<512x144xbf16>
    %c0_1 = arith.constant 0 : index
    %c0_2 = arith.constant 0 : index
    %1 = vector.load %arg2[%c0_1, %c0_2] : memref<144x32xbf16, #tpu.memory_space<vmem>>, vector<144x32xbf16>
    %cst = arith.constant dense<0.000000e+00> : vector<512x32xf32>
    %2 = tpu.matmul %0, %1, %cst {dimension_numbers = #tpu.dot_dimension_numbers<[1], [0], [0], [1], [0, 0, 1, 1], [], []>} : vector<512x144xbf16>, vector<144x32xbf16>, vector<512x32xf32> -> vector<512x32xf32>
    %c0_3 = arith.constant 0 : index
    %c0_4 = arith.constant 0 : index
    %3 = vector.load %arg3[%c0_3, %c0_4] : memref<1x32xf32, #tpu.memory_space<vmem>>, vector<1x32xf32>
    %4 = vector.broadcast %3 : vector<1x32xf32> to vector<512x32xf32>
    %5 = arith.addf %2, %4 : vector<512x32xf32>
    %cst_5 = arith.constant 0.000000e+00 : f32
    %6 = vector.broadcast %cst_5 : f32 to vector<512x32xf32>
    %7 = arith.maximumf %5, %6 : vector<512x32xf32>
    %8 = arith.truncf %7 : vector<512x32xf32> to vector<512x32xbf16>
    %c0_6 = arith.constant 0 : index
    %c0_7 = arith.constant 0 : index
    %9 = vector.load %arg4[%c0_6, %c0_7] : memref<512x32xbf16, #tpu.memory_space<vmem>>, vector<512x32xbf16>
    tpu.vector_store %arg4[%c0_6, %c0_7], %8 {strides = array<i32>} : memref<512x32xbf16, #tpu.memory_space<vmem>>, vector<512x32xbf16>,
    return
  }
  func.func @transform_0(%arg0: i32) -> (i32, i32) {
    %c0_i32 = arith.constant 0 : i32
    %c0_i32_0 = arith.constant 0 : i32
    return %arg0, %c0_i32 : i32, i32
  }
  func.func @transform_1(%arg0: i32) -> (i32, i32) {
    %c0_i32 = arith.constant 0 : i32
    %c0_i32_0 = arith.constant 0 : i32
    %c0_i32_1 = arith.constant 0 : i32
    return %c0_i32, %c0_i32_0 : i32, i32
  }
  func.func @transform_2(%arg0: i32) -> (i32, i32) {
    %c0_i32 = arith.constant 0 : i32
    %c0_i32_0 = arith.constant 0 : i32
    %c0_i32_1 = arith.constant 0 : i32
    return %c0_i32, %c0_i32_0 : i32, i32
  }
  func.func @transform_3(%arg0: i32) -> (i32, i32) {
    %c0_i32 = arith.constant 0 : i32
    %c0_i32_0 = arith.constant 0 : i32
    return %arg0, %c0_i32 : i32, i32
  }
}

module attributes {stable_mosaic.version = 11 : i64} {
  func.func @_matmul_bias_kernel(%arg0: i32, %arg1: memref<200x288xbf16, #tpu.memory_space<vmem>>, %arg2: memref<288x64xbf16, #tpu.memory_space<vmem>>, %arg3: memref<1x64xf32, #tpu.memory_space<vmem>>, %arg4: memref<200x64xbf16, #tpu.memory_space<vmem>>) attributes {dimension_semantics = [#tpu.dimension_semantics<parallel>], iteration_bounds = array<i64: 1>, scalar_prefetch = 0 : i64, scratch_operands = 0 : i64, tpu.core_type = #tpu.core_type<tc>, window_params = [{transform_indices = @transform_0, window_bounds = array<i64: 200, 288>}, {pipeline_mode = #tpu.pipeline_mode<synchronous>, transform_indices = @transform_1, window_bounds = array<i64: 288, 64>}, {pipeline_mode = #tpu.pipeline_mode<synchronous>, transform_indices = @transform_2, window_bounds = array<i64: 1, 64>}, {transform_indices = @transform_3, window_bounds = array<i64: 200, 64>}]} {
    %c0 = arith.constant 0 : index
    %c0_0 = arith.constant 0 : index
    %0 = vector.load %arg1[%c0, %c0_0] : memref<200x288xbf16, #tpu.memory_space<vmem>>, vector<200x288xbf16>
    %c0_1 = arith.constant 0 : index
    %c0_2 = arith.constant 0 : index
    %1 = vector.load %arg2[%c0_1, %c0_2] : memref<288x64xbf16, #tpu.memory_space<vmem>>, vector<288x64xbf16>
    %cst = arith.constant dense<0.000000e+00> : vector<200x64xf32>
    %2 = tpu.matmul %0, %1, %cst {dimension_numbers = #tpu.dot_dimension_numbers<[1], [0], [0], [1], [0, 0, 1, 1], [], []>} : vector<200x288xbf16>, vector<288x64xbf16>, vector<200x64xf32> -> vector<200x64xf32>
    %c0_3 = arith.constant 0 : index
    %c0_4 = arith.constant 0 : index
    %3 = vector.load %arg3[%c0_3, %c0_4] : memref<1x64xf32, #tpu.memory_space<vmem>>, vector<1x64xf32>
    %4 = vector.broadcast %3 : vector<1x64xf32> to vector<200x64xf32>
    %5 = arith.addf %2, %4 : vector<200x64xf32>
    %cst_5 = arith.constant 0.000000e+00 : f32
    %6 = vector.broadcast %cst_5 : f32 to vector<200x64xf32>
    %7 = arith.maximumf %5, %6 : vector<200x64xf32>
    %8 = arith.truncf %7 : vector<200x64xf32> to vector<200x64xbf16>
    %c0_6 = arith.constant 0 : index
    %c0_7 = arith.constant 0 : index
    %9 = vector.load %arg4[%c0_6, %c0_7] : memref<200x64xbf16, #tpu.memory_space<vmem>>, vector<200x64xbf16>
    tpu.vector_store %arg4[%c0_6, %c0_7], %8 {strides = array<i32>} : memref<200x64xbf16, #tpu.memory_space<vmem>>, vector<200x64xbf16>,
    return
  }
  func.func @transform_0(%arg0: i32) -> (i32, i32) {
    %c0_i32 = arith.constant 0 : i32
    %c0_i32_0 = arith.constant 0 : i32
    return %arg0, %c0_i32 : i32, i32
  }
  func.func @transform_1(%arg0: i32) -> (i32, i32) {
    %c0_i32 = arith.constant 0 : i32
    %c0_i32_0 = arith.constant 0 : i32
    %c0_i32_1 = arith.constant 0 : i32
    return %c0_i32, %c0_i32_0 : i32, i32
  }
  func.func @transform_2(%arg0: i32) -> (i32, i32) {
    %c0_i32 = arith.constant 0 : i32
    %c0_i32_0 = arith.constant 0 : i32
    %c0_i32_1 = arith.constant 0 : i32
    return %c0_i32, %c0_i32_0 : i32, i32
  }
  func.func @transform_3(%arg0: i32) -> (i32, i32) {
    %c0_i32 = arith.constant 0 : i32
    %c0_i32_0 = arith.constant 0 : i32
    return %arg0, %c0_i32 : i32, i32
  }
}

module attributes {stable_mosaic.version = 11 : i64} {
  func.func @_matmul_bias_kernel(%arg0: i32, %arg1: memref<128x576xbf16, #tpu.memory_space<vmem>>, %arg2: memref<576x128xbf16, #tpu.memory_space<vmem>>, %arg3: memref<1x128xf32, #tpu.memory_space<vmem>>, %arg4: memref<128x128xbf16, #tpu.memory_space<vmem>>) attributes {dimension_semantics = [#tpu.dimension_semantics<parallel>], iteration_bounds = array<i64: 1>, scalar_prefetch = 0 : i64, scratch_operands = 0 : i64, tpu.core_type = #tpu.core_type<tc>, window_params = [{transform_indices = @transform_0, window_bounds = array<i64: 128, 576>}, {pipeline_mode = #tpu.pipeline_mode<synchronous>, transform_indices = @transform_1, window_bounds = array<i64: 576, 128>}, {pipeline_mode = #tpu.pipeline_mode<synchronous>, transform_indices = @transform_2, window_bounds = array<i64: 1, 128>}, {transform_indices = @transform_3, window_bounds = array<i64: 128, 128>}]} {
    %c0 = arith.constant 0 : index
    %c0_0 = arith.constant 0 : index
    %0 = vector.load %arg1[%c0, %c0_0] : memref<128x576xbf16, #tpu.memory_space<vmem>>, vector<128x576xbf16>
    %c0_1 = arith.constant 0 : index
    %c0_2 = arith.constant 0 : index
    %1 = vector.load %arg2[%c0_1, %c0_2] : memref<576x128xbf16, #tpu.memory_space<vmem>>, vector<576x128xbf16>
    %cst = arith.constant dense<0.000000e+00> : vector<128x128xf32>
    %2 = tpu.matmul %0, %1, %cst {dimension_numbers = #tpu.dot_dimension_numbers<[1], [0], [0], [1], [0, 0, 1, 1], [], []>} : vector<128x576xbf16>, vector<576x128xbf16>, vector<128x128xf32> -> vector<128x128xf32>
    %c0_3 = arith.constant 0 : index
    %c0_4 = arith.constant 0 : index
    %3 = vector.load %arg3[%c0_3, %c0_4] : memref<1x128xf32, #tpu.memory_space<vmem>>, vector<1x128xf32>
    %4 = vector.broadcast %3 : vector<1x128xf32> to vector<128x128xf32>
    %5 = arith.addf %2, %4 : vector<128x128xf32>
    %cst_5 = arith.constant 0.000000e+00 : f32
    %6 = vector.broadcast %cst_5 : f32 to vector<128x128xf32>
    %7 = arith.maximumf %5, %6 : vector<128x128xf32>
    %8 = arith.truncf %7 : vector<128x128xf32> to vector<128x128xbf16>
    %c0_6 = arith.constant 0 : index
    %c0_7 = arith.constant 0 : index
    %9 = vector.load %arg4[%c0_6, %c0_7] : memref<128x128xbf16, #tpu.memory_space<vmem>>, vector<128x128xbf16>
    tpu.vector_store %arg4[%c0_6, %c0_7], %8 {strides = array<i32>} : memref<128x128xbf16, #tpu.memory_space<vmem>>, vector<128x128xbf16>,
    return
  }
  func.func @transform_0(%arg0: i32) -> (i32, i32) {
    %c0_i32 = arith.constant 0 : i32
    %c0_i32_0 = arith.constant 0 : i32
    return %arg0, %c0_i32 : i32, i32
  }
  func.func @transform_1(%arg0: i32) -> (i32, i32) {
    %c0_i32 = arith.constant 0 : i32
    %c0_i32_0 = arith.constant 0 : i32
    %c0_i32_1 = arith.constant 0 : i32
    return %c0_i32, %c0_i32_0 : i32, i32
  }
  func.func @transform_2(%arg0: i32) -> (i32, i32) {
    %c0_i32 = arith.constant 0 : i32
    %c0_i32_0 = arith.constant 0 : i32
    %c0_i32_1 = arith.constant 0 : i32
    return %c0_i32, %c0_i32_0 : i32, i32
  }
  func.func @transform_3(%arg0: i32) -> (i32, i32) {
    %c0_i32 = arith.constant 0 : i32
    %c0_i32_0 = arith.constant 0 : i32
    return %arg0, %c0_i32 : i32, i32
  }
}

module attributes {stable_mosaic.version = 11 : i64} {
  func.func @_fc_head_kernel(%arg0: i32, %arg1: memref<2x2048xbf16, #tpu.memory_space<vmem>>, %arg2: memref<2048x1024xbf16, #tpu.memory_space<vmem>>, %arg3: memref<1x1024xf32, #tpu.memory_space<vmem>>, %arg4: memref<1024x128xbf16, #tpu.memory_space<vmem>>, %arg5: memref<1x128xf32, #tpu.memory_space<vmem>>, %arg6: memref<128x10xbf16, #tpu.memory_space<vmem>>, %arg7: memref<1x10xf32, #tpu.memory_space<vmem>>, %arg8: memref<2x10xf32, #tpu.memory_space<vmem>>) attributes {dimension_semantics = [#tpu.dimension_semantics<parallel>], iteration_bounds = array<i64: 1>, scalar_prefetch = 0 : i64, scratch_operands = 0 : i64, tpu.core_type = #tpu.core_type<tc>, window_params = [{transform_indices = @transform_0, window_bounds = array<i64: 2, 2048>}, {pipeline_mode = #tpu.pipeline_mode<synchronous>, transform_indices = @transform_1, window_bounds = array<i64: 2048, 1024>}, {pipeline_mode = #tpu.pipeline_mode<synchronous>, transform_indices = @transform_2, window_bounds = array<i64: 1, 1024>}, {pipeline_mode = #tpu.pipeline_mode<synchronous>, transform_indices = @transform_3, window_bounds = array<i64: 1024, 128>}, {pipeline_mode = #tpu.pipeline_mode<synchronous>, transform_indices = @transform_4, window_bounds = array<i64: 1, 128>}, {pipeline_mode = #tpu.pipeline_mode<synchronous>, transform_indices = @transform_5, window_bounds = array<i64: 128, 10>}, {pipeline_mode = #tpu.pipeline_mode<synchronous>, transform_indices = @transform_6, window_bounds = array<i64: 1, 10>}, {transform_indices = @transform_7, window_bounds = array<i64: 2, 10>}]} {
    %c0 = arith.constant 0 : index
    %c0_0 = arith.constant 0 : index
    %0 = vector.load %arg1[%c0, %c0_0] : memref<2x2048xbf16, #tpu.memory_space<vmem>>, vector<2x2048xbf16>
    %c0_1 = arith.constant 0 : index
    %c0_2 = arith.constant 0 : index
    %1 = vector.load %arg2[%c0_1, %c0_2] : memref<2048x1024xbf16, #tpu.memory_space<vmem>>, vector<2048x1024xbf16>
    %cst = arith.constant dense<0.000000e+00> : vector<2x1024xf32>
    %2 = tpu.matmul %0, %1, %cst {dimension_numbers = #tpu.dot_dimension_numbers<[1], [0], [0], [1], [0, 0, 1, 1], [], []>} : vector<2x2048xbf16>, vector<2048x1024xbf16>, vector<2x1024xf32> -> vector<2x1024xf32>
    %c0_3 = arith.constant 0 : index
    %c0_4 = arith.constant 0 : index
    %3 = vector.load %arg3[%c0_3, %c0_4] : memref<1x1024xf32, #tpu.memory_space<vmem>>, vector<1x1024xf32>
    %4 = vector.broadcast %3 : vector<1x1024xf32> to vector<2x1024xf32>
    %5 = arith.addf %2, %4 : vector<2x1024xf32>
    %cst_5 = arith.constant 0.000000e+00 : f32
    %6 = vector.broadcast %cst_5 : f32 to vector<2x1024xf32>
    %7 = arith.maximumf %5, %6 : vector<2x1024xf32>
    %8 = arith.truncf %7 : vector<2x1024xf32> to vector<2x1024xbf16>
    %c0_6 = arith.constant 0 : index
    %c0_7 = arith.constant 0 : index
    %9 = vector.load %arg4[%c0_6, %c0_7] : memref<1024x128xbf16, #tpu.memory_space<vmem>>, vector<1024x128xbf16>
    %cst_8 = arith.constant dense<0.000000e+00> : vector<2x128xf32>
    %10 = tpu.matmul %8, %9, %cst_8 {dimension_numbers = #tpu.dot_dimension_numbers<[1], [0], [0], [1], [0, 0, 1, 1], [], []>} : vector<2x1024xbf16>, vector<1024x128xbf16>, vector<2x128xf32> -> vector<2x128xf32>
    %c0_9 = arith.constant 0 : index
    %c0_10 = arith.constant 0 : index
    %11 = vector.load %arg5[%c0_9, %c0_10] : memref<1x128xf32, #tpu.memory_space<vmem>>, vector<1x128xf32>
    %12 = vector.broadcast %11 : vector<1x128xf32> to vector<2x128xf32>
    %13 = arith.addf %10, %12 : vector<2x128xf32>
    %cst_11 = arith.constant 0.000000e+00 : f32
    %14 = vector.broadcast %cst_11 : f32 to vector<2x128xf32>
    %15 = arith.maximumf %13, %14 : vector<2x128xf32>
    %16 = arith.truncf %15 : vector<2x128xf32> to vector<2x128xbf16>
    %c0_12 = arith.constant 0 : index
    %c0_13 = arith.constant 0 : index
    %17 = vector.load %arg6[%c0_12, %c0_13] : memref<128x10xbf16, #tpu.memory_space<vmem>>, vector<128x10xbf16>
    %cst_14 = arith.constant dense<0.000000e+00> : vector<2x10xf32>
    %18 = tpu.matmul %16, %17, %cst_14 {dimension_numbers = #tpu.dot_dimension_numbers<[1], [0], [0], [1], [0, 0, 1, 1], [], []>} : vector<2x128xbf16>, vector<128x10xbf16>, vector<2x10xf32> -> vector<2x10xf32>
    %c0_15 = arith.constant 0 : index
    %c0_16 = arith.constant 0 : index
    %19 = vector.load %arg7[%c0_15, %c0_16] : memref<1x10xf32, #tpu.memory_space<vmem>>, vector<1x10xf32>
    %20 = vector.broadcast %19 : vector<1x10xf32> to vector<2x10xf32>
    %21 = arith.addf %18, %20 : vector<2x10xf32>
    %c0_17 = arith.constant 0 : index
    %c0_18 = arith.constant 0 : index
    %22 = vector.load %arg8[%c0_17, %c0_18] : memref<2x10xf32, #tpu.memory_space<vmem>>, vector<2x10xf32>
    tpu.vector_store %arg8[%c0_17, %c0_18], %21 {strides = array<i32>} : memref<2x10xf32, #tpu.memory_space<vmem>>, vector<2x10xf32>,
    return
  }
  func.func @transform_0(%arg0: i32) -> (i32, i32) {
    %c0_i32 = arith.constant 0 : i32
    %c0_i32_0 = arith.constant 0 : i32
    return %arg0, %c0_i32 : i32, i32
  }
  func.func @transform_1(%arg0: i32) -> (i32, i32) {
    %c0_i32 = arith.constant 0 : i32
    %c0_i32_0 = arith.constant 0 : i32
    %c0_i32_1 = arith.constant 0 : i32
    return %c0_i32, %c0_i32_0 : i32, i32
  }
  func.func @transform_2(%arg0: i32) -> (i32, i32) {
    %c0_i32 = arith.constant 0 : i32
    %c0_i32_0 = arith.constant 0 : i32
    %c0_i32_1 = arith.constant 0 : i32
    return %c0_i32, %c0_i32_0 : i32, i32
  }
  func.func @transform_3(%arg0: i32) -> (i32, i32) {
    %c0_i32 = arith.constant 0 : i32
    %c0_i32_0 = arith.constant 0 : i32
    %c0_i32_1 = arith.constant 0 : i32
    return %c0_i32, %c0_i32_0 : i32, i32
  }
  func.func @transform_4(%arg0: i32) -> (i32, i32) {
    %c0_i32 = arith.constant 0 : i32
    %c0_i32_0 = arith.constant 0 : i32
    %c0_i32_1 = arith.constant 0 : i32
    return %c0_i32, %c0_i32_0 : i32, i32
  }
  func.func @transform_5(%arg0: i32) -> (i32, i32) {
    %c0_i32 = arith.constant 0 : i32
    %c0_i32_0 = arith.constant 0 : i32
    %c0_i32_1 = arith.constant 0 : i32
    return %c0_i32, %c0_i32_0 : i32, i32
  }
  func.func @transform_6(%arg0: i32) -> (i32, i32) {
    %c0_i32 = arith.constant 0 : i32
    %c0_i32_0 = arith.constant 0 : i32
    %c0_i32_1 = arith.constant 0 : i32
    return %c0_i32, %c0_i32_0 : i32, i32
  }
  func.func @transform_7(%arg0: i32) -> (i32, i32) {
    %c0_i32 = arith.constant 0 : i32
    %c0_i32_0 = arith.constant 0 : i32
    return %arg0, %c0_i32 : i32, i32
  }
}

</mosaic_0001>

<llo_original>
// kernel: dcnn_forward.5
$region0: #{dcnn_forward.5}
  #allocation0 [shape = 'u32[]', space=smem, size = 0x4, offset = 0x4, fixed_abs, tag = 'smem constant byte address 0x4 - core index']
  #allocation1 [shape = 'u32[144,128]{1,0:T(1,128)}', space=vmem, size = 0x12000, scoped, tag = 'internal scratch']
  %s0 = inlined_call_operand.vmem [shape: bf16[1352,9], index: 0, kind: input, shape index: {}]
  %s1 = inlined_call_operand.hbm [shape: bf16[9,16], index: 1, kind: input, shape index: {}]
  %s2 = inlined_call_operand.hbm [shape: f32[1,16], index: 2, kind: input, shape index: {}]
  %s3 = inlined_call_operand.vmem [shape: bf16[1352,16], index: 3, kind: output, shape index: {}]
  %s4 = sld [smem:[#allocation0]]
  $region97: #{dcnn_forward.5} parent=0
    _
  %s6 = ssub.s32 1, %s4
  %s7 = scalar_select 0, %s6, %s4
  $region1: #{dcnn_forward.5} parent=0
    #allocation2 [shape = 'u8[4096]{0}', space=vmem, size = 0x1000, scoped, tag = 'input window, operand 1, single buffered']
    #allocation3 [shape = 's32[2]{0}', space=sflag, size = 0x8, scoped, tag = 'scoped memory for dcnn_forward.5']
    #allocation4 [shape = 'u8[512]{0}', space=vmem, size = 0x400, scoped, tag = 'input window, operand 2, single buffered']
    #allocation5 [shape = 's32[1]{0}', space=sflag, size = 0x4, scoped, tag = 'scoped memory for dcnn_forward.5']
    #allocation6 [shape = 'u8[262144]{0}', space=vmem, size = 0x40000, scoped, tag = 'output window, operand 0']
    %8 = vsyncpa [#allocation3], 0
    %9 = vsyncpa [#allocation5], 0
    loop: start=0, step=1, limit=5
    $region2: #{dcnn_forward.5} parent=1 // loop_pre_header
      _
    $region3: #{dcnn_forward.5} parent=1 // loop_header
      %s11 = sphi 0, %s15
      %p12 = scmp.ge.s32.totalorder %s11, 5
      %s21 = sphi 0, %s23
      %s24 = sphi 0, %s21
      %s25 = sphi 0, %s24
      %s41 = sphi 0, %s25
      %s45 = sphi 0, %s45
      %s47 = sphi 0, %s45
      %s48 = sphi 0, %s47
      %s62 = sphi 0, %s48
      %s66 = sphi 0, %s66
      %s68 = sphi 0, %s66
      %s69 = sphi 0, %s68
      %s83 = sphi 0, %s69
      %s89 = sphi 0, %s91
      %s92 = sphi 0, %s89
      %s93 = sphi 0, %s92
      %s109 = sphi 0, %s93
    $region4: #{dcnn_forward.5} parent=1 // loop_header_branch
      %14 = sbr.rel (%p12) target = $region8
    $region5: #{dcnn_forward.5} parent=1 // loop_body
      %s16 = ssub.s32 %s11, 1
      %s17 = ssub.s32 %s11, 2
      %s18 = sadd.s32 %s11, 1
      %s19 = ssub.s32 %s11, %s18
      %p20 = scmp.eq.s32.totalorder %s19, 0
      %s22 = sadd.s32 %s21, 1
      %s23 = scalar_select %p20, %s21, %s22
      %p26 = pneg %p20
      %p27 = scmp.eq.s32.totalorder %s11, 2
      %p28 = por %p26, %p27
      %p29 = scmp.ne.s32.totalorder %s21, %s24
      %p30 = scmp.eq.s32.totalorder %s11, 0
      %p31 = por %p29, %p30
      %p32 = scmp.ne.s32.totalorder %s21, %s24
      %p33 = scmp.eq.s32.totalorder %s16, 2
      %p34 = por %p32, %p33
      %p35 = scmp.ne.s32.totalorder %s24, %s25
      %p36 = scmp.eq.s32.totalorder %s16, 0
      %p37 = por %p35, %p36
      %p38 = scmp.ne.s32.totalorder %s24, %s25
      %p39 = scmp.eq.s32.totalorder %s17, 2
      %p40 = por %p38, %p39
      %p42 = scmp.ne.s32.totalorder %s25, %s41
      %p43 = scmp.eq.s32.totalorder %s17, 0
      %p44 = por %p42, %p43
      %s46 = sadd.s32 %s45, 1
      %p49 = scmp.eq.s32.totalorder %s11, 2
      %p50 = scmp.ne.s32.totalorder %s45, %s47
      %p51 = scmp.eq.s32.totalorder %s11, 0
      %p52 = por %p50, %p51
      %p53 = scmp.ne.s32.totalorder %s45, %s47
      %p54 = scmp.eq.s32.totalorder %s16, 2
      %p55 = por %p53, %p54
      %p56 = scmp.ne.s32.totalorder %s47, %s48
      %p57 = scmp.eq.s32.totalorder %s16, 0
      %p58 = por %p56, %p57
      %p59 = scmp.ne.s32.totalorder %s47, %s48
      %p60 = scmp.eq.s32.totalorder %s17, 2
      %p61 = por %p59, %p60
      %p63 = scmp.ne.s32.totalorder %s48, %s62
      %p64 = scmp.eq.s32.totalorder %s17, 0
      %p65 = por %p63, %p64
      %s67 = sadd.s32 %s66, 1
      %p70 = scmp.eq.s32.totalorder %s11, 2
      %p71 = scmp.ne.s32.totalorder %s66, %s68
      %p72 = scmp.eq.s32.totalorder %s11, 0
      %p73 = por %p71, %p72
      %p74 = scmp.ne.s32.totalorder %s66, %s68
      %p75 = scmp.eq.s32.totalorder %s16, 2
      %p76 = por %p74, %p75
      %p77 = scmp.ne.s32.totalorder %s68, %s69
      %p78 = scmp.eq.s32.totalorder %s16, 0
      %p79 = por %p77, %p78
      %p80 = scmp.ne.s32.totalorder %s68, %s69
      %p81 = scmp.eq.s32.totalorder %s17, 2
      %p82 = por %p80, %p81
      %p84 = scmp.ne.s32.totalorder %s69, %s83
      %p85 = scmp.eq.s32.totalorder %s17, 0
      %p86 = por %p84, %p85
      %s87 = ssub.s32 %s11, %s18
      %p88 = scmp.eq.s32.totalorder %s87, 0
      %s90 = sadd.s32 %s89, 1
      %s91 = scalar_select %p88, %s89, %s90
      %p94 = pneg %p88
      %p95 = scmp.eq.s32.totalorder %s11, 2
      %p96 = por %p94, %p95
      %p97 = scmp.ne.s32.totalorder %s89, %s92
      %p98 = scmp.eq.s32.totalorder %s11, 0
      %p99 = por %p97, %p98
      %p100 = scmp.ne.s32.totalorder %s89, %s92
      %p101 = scmp.eq.s32.totalorder %s16, 2
      %p102 = por %p100, %p101
      %p103 = scmp.ne.s32.totalorder %s92, %s93
      %p104 = scmp.eq.s32.totalorder %s16, 0
      %p105 = por %p103, %p104
      %p106 = scmp.ne.s32.totalorder %s92, %s93
      %p107 = scmp.eq.s32.totalorder %s17, 2
      %p108 = por %p106, %p107
      %p110 = scmp.ne.s32.totalorder %s93, %s109
      %p111 = scmp.eq.s32.totalorder %s17, 0
      %p112 = por %p110, %p111
      %p113 = scmp.le.s32.totalorder 1, %s11
      %p114 = scmp.lt.s32.totalorder %s11, 4
      %p115 = pnand %p113, %p114
      %p116 = pneg %p115
      // Predicated region
      $region9: #{dcnn_forward.5} parent=5 // pred_check
        _
      $region10: #{dcnn_forward.5} parent=5 // pred_check_branch
        %118 = sbr.rel (%p115) target = $region12
      $region11: #{dcnn_forward.5} parent=5 // pred_region
        %s119 = ssub.s32 %s11, 1
        // Predicated region
        $region13: #{dcnn_forward.5} parent=11 // pred_check
          %p120 = pneg %p58
        $region14: #{dcnn_forward.5} parent=11 // pred_check_branch
          %122 = sbr.rel (%p120) target = $region16
        $region15: #{dcnn_forward.5} parent=11 // pred_region
          %s124 = ssub.s32 128, 128
          %125 = vsyncadd [#allocation3], %s124
          %s126 = sshll.u32 [#allocation2], 4
          %s127 = int_to_ptr.vmem [resolvable:$true] %s126
          %132 = dma.hbm_to_vmem [thread:$0]  %s1, 128, %s127, [#allocation3], 64, 64, 4
        $region16: #{dcnn_forward.5} parent=11 // pred_fallthru
          _
        // Predicated region
        $region17: #{dcnn_forward.5} parent=11 // pred_check
          %p133 = pneg %p79
        $region18: #{dcnn_forward.5} parent=11 // pred_check_branch
          %135 = sbr.rel (%p133) target = $region20
        $region19: #{dcnn_forward.5} parent=11 // pred_region
          %s137 = ssub.s32 16, 16
          %138 = vsyncadd [#allocation5], %s137
          %s140 = sshll.u32 [#allocation4], 4
          %s141 = int_to_ptr.vmem [resolvable:$true] %s140
          %143 = dma.hbm_to_vmem [thread:$0]  %s2, 16, %s141, [#allocation5]
        $region20: #{dcnn_forward.5} parent=11 // pred_fallthru
          _
      $region12: #{dcnn_forward.5} parent=5 // pred_fallthru
        _
      %p144 = scmp.lt.s32.totalorder %s11, 3
      // Predicated region
      $region21: #{dcnn_forward.5} parent=5 // pred_check
        %p145 = pneg %p144
      $region22: #{dcnn_forward.5} parent=5 // pred_check_branch
        %147 = sbr.rel (%p145) target = $region24
      $region23: #{dcnn_forward.5} parent=5 // pred_region
        // Predicated region
        $region25: #{dcnn_forward.5} parent=23 // pred_check
          %p148 = pneg %p31
        $region26: #{dcnn_forward.5} parent=23 // pred_check_branch
          %150 = sbr.rel (%p148) target = $region28
        $region27: #{dcnn_forward.5} parent=23 // pred_region
          %s151 = smul.u32 64, %s11
          %s152 = ssub.s32 169, %s151
          %p153 = scmp.lt.s32.totalorder %s152, 64
          %s154 = scalar_select %p153, %s152, 64
          %s155 = smul.u32 64, %s154
          %p156 = scmp.lt.s32.totalorder %s151, 168
          %s157 = scalar_select %p156, %s151, 168
          %s158 = smul.addr %s157, 4
          %s159 = scalar_lea.vmem %s0, %s158
          %s160 = smul.u32 64, %s11
          %s161 = ssub.s32 169, %s160
          %p162 = scmp.lt.s32.totalorder %s161, 64
          %s163 = scalar_select %p162, %s161, 64
          %s164 = smul.u32 64, %s163
        $region28: #{dcnn_forward.5} parent=23 // pred_fallthru
          _
      $region24: #{dcnn_forward.5} parent=5 // pred_fallthru
        _
      %p165 = scmp.le.s32.totalorder 1, %s11
      %p166 = scmp.lt.s32.totalorder %s11, 4
      %p167 = pnand %p165, %p166
      %p168 = pneg %p167
      // Predicated region
      $region29: #{dcnn_forward.5} parent=5 // pred_check
        _
      $region30: #{dcnn_forward.5} parent=5 // pred_check_branch
        %170 = sbr.rel (%p167) target = $region32
      $region31: #{dcnn_forward.5} parent=5 // pred_region
        %s171 = ssub.s32 %s11, 1
        // Predicated region
        $region33: #{dcnn_forward.5} parent=31 // pred_check
          %p172 = pneg %p58
        $region34: #{dcnn_forward.5} parent=31 // pred_check_branch
          %174 = sbr.rel (%p172) target = $region36
        $region35: #{dcnn_forward.5} parent=31 // pred_region
          %175 = dma.done [#allocation3], 128
        $region36: #{dcnn_forward.5} parent=31 // pred_fallthru
          _
        // Predicated region
        $region37: #{dcnn_forward.5} parent=31 // pred_check
          %p176 = pneg %p79
        $region38: #{dcnn_forward.5} parent=31 // pred_check_branch
          %178 = sbr.rel (%p176) target = $region40
        $region39: #{dcnn_forward.5} parent=31 // pred_region
          %179 = dma.done [#allocation5], 16
        $region40: #{dcnn_forward.5} parent=31 // pred_fallthru
          _
        %s180 = smul.u32 64, %s16
        %s181 = ssub.s32 169, %s180
        %p182 = scmp.lt.s32.totalorder %s181, 64
        %s183 = scalar_select %p182, %s181, 64
        %s184 = smul.u32 64, %s183
        %p185 = scmp.lt.s32.totalorder %s180, 168
        %s186 = scalar_select %p185, %s180, 168
        %s187 = smul.addr %s186, 4
        %s188 = scalar_lea.vmem %s0, %s187
        %p189 = pneg %p37
        %p190 = pneg %p34
        %p191 = pneg %p58
        %p192 = pneg %p55
        %p193 = pneg %p79
        %p194 = pneg %p76
        %p195 = pneg %p105
        %p196 = pneg %p102
        %s197 = sand.u32 %s92, 1
        %s198 = sand.u32 %s92, 1
        %s199 = smul.addr %s198, 256
        %s200 = scalar_lea.vmem [#allocation6], %s199
        %s201 = smul.u32 64, %s16
        %s202 = ssub.s32 169, %s201
        %p203 = scmp.lt.s32.totalorder %s202, 64
        %s204 = scalar_select %p203, %s202, 64
        %s205 = smul.u32 64, %s204
        %p206 = scmp.lt.s32.totalorder %s201, 168
        %s207 = scalar_select %p206, %s201, 168
        %s208 = smul.addr %s207, 4
        %s209 = scalar_lea.vmem %s0, %s208
        %s210 = smul.u32 64, %s16
        %s211 = ssub.s32 169, %s210
        %p212 = scmp.lt.s32.totalorder %s211, 64
        %s213 = scalar_select %p212, %s211, 64
        %s214 = smul.u32 64, %s213
        %s215 = smul.u32 64, %s16
        %s216 = ssub.s32 169, %s215
        %p217 = scmp.lt.s32.totalorder %s216, 64
        %s218 = scalar_select %p217, %s216, 64
        %s219 = smul.u32 64, %s218
        %v221 = vld [vmem:[%s209] sm:$0xf]
        %v222 = vld [vmem:[%s209 + $0x4] sm:$0xf]
        %v223 = vld [vmem:[%s209 + $0x8] sm:$0xf]
        %v224 = vld [vmem:[%s209 + $0xc] sm:$0xf]
        %v225 = vld [vmem:[%s209 + $0x10] sm:$0xf]
        %v226 = vld [vmem:[%s209 + $0x14] sm:$0xf]
        %v227 = vld [vmem:[%s209 + $0x18] sm:$0xf]
        %v228 = vld [vmem:[%s209 + $0x1c] sm:$0xf]
        %v229 = vld [vmem:[%s209 + $0x20] sm:$0xf]
        %v230 = vld [vmem:[%s209 + $0x24] sm:$0xf]
        %v231 = vld [vmem:[%s209 + $0x28] sm:$0xf]
        %v232 = vld [vmem:[%s209 + $0x2c] sm:$0xf]
        %v233 = vld [vmem:[%s209 + $0x30] sm:$0xf]
        %v234 = vld [vmem:[%s209 + $0x34] sm:$0xf]
        %v235 = vld [vmem:[%s209 + $0x38] sm:$0xf]
        %v236 = vld [vmem:[%s209 + $0x3c] sm:$0xf]
        %v237 = vld [vmem:[%s209 + $0x40] sm:$0xf]
        %v238 = vld [vmem:[%s209 + $0x44] sm:$0xf]
        %v239 = vld [vmem:[%s209 + $0x48] sm:$0xf]
        %v240 = vld [vmem:[%s209 + $0x4c] sm:$0xf]
        %v241 = vld [vmem:[%s209 + $0x50] sm:$0xf]
        %v242 = vld [vmem:[%s209 + $0x54] sm:$0xf]
        %v243 = vld [vmem:[%s209 + $0x58] sm:$0xf]
        %v244 = vld [vmem:[%s209 + $0x5c] sm:$0xf]
        %v245 = vld [vmem:[%s209 + $0x60] sm:$0xf]
        %v246 = vld [vmem:[%s209 + $0x64] sm:$0xf]
        %v247 = vld [vmem:[%s209 + $0x68] sm:$0xf]
        %v248 = vld [vmem:[%s209 + $0x6c] sm:$0xf]
        %v249 = vld [vmem:[%s209 + $0x70] sm:$0xf]
        %v250 = vld [vmem:[%s209 + $0x74] sm:$0xf]
        %v251 = vld [vmem:[%s209 + $0x78] sm:$0xf]
        %v252 = vld [vmem:[%s209 + $0x7c] sm:$0xf]
        %v253 = vld [vmem:[%s209 + $0x80] sm:$0xf]
        %v254 = vld [vmem:[%s209 + $0x84] sm:$0xf]
        %v255 = vld [vmem:[%s209 + $0x88] sm:$0xf]
        %v256 = vld [vmem:[%s209 + $0x8c] sm:$0xf]
        %v257 = vld [vmem:[%s209 + $0x90] sm:$0xf]
        %v258 = vld [vmem:[%s209 + $0x94] sm:$0xf]
        %v259 = vld [vmem:[%s209 + $0x98] sm:$0xf]
        %v260 = vld [vmem:[%s209 + $0x9c] sm:$0xf]
        %v261 = vld [vmem:[%s209 + $0xa0] sm:$0xf]
        %v262 = vld [vmem:[%s209 + $0xa4] sm:$0xf]
        %v263 = vld [vmem:[%s209 + $0xa8] sm:$0xf]
        %v264 = vld [vmem:[%s209 + $0xac] sm:$0xf]
        %v265 = vld [vmem:[%s209 + $0xb0] sm:$0xf]
        %v266 = vld [vmem:[%s209 + $0xb4] sm:$0xf]
        %v267 = vld [vmem:[%s209 + $0xb8] sm:$0xf]
        %v268 = vld [vmem:[%s209 + $0xbc] sm:$0xf]
        %v269 = vld [vmem:[%s209 + $0xc0] sm:$0xf]
        %v270 = vld [vmem:[%s209 + $0xc4] sm:$0xf]
        %v271 = vld [vmem:[%s209 + $0xc8] sm:$0xf]
        %v272 = vld [vmem:[%s209 + $0xcc] sm:$0xf]
        %v273 = vld [vmem:[%s209 + $0xd0] sm:$0xf]
        %v274 = vld [vmem:[%s209 + $0xd4] sm:$0xf]
        %v275 = vld [vmem:[%s209 + $0xd8] sm:$0xf]
        %v276 = vld [vmem:[%s209 + $0xdc] sm:$0xf]
        %v277 = vld [vmem:[%s209 + $0xe0] sm:$0xf]
        %v278 = vld [vmem:[%s209 + $0xe4] sm:$0xf]
        %v279 = vld [vmem:[%s209 + $0xe8] sm:$0xf]
        %v280 = vld [vmem:[%s209 + $0xec] sm:$0xf]
        %v281 = vld [vmem:[%s209 + $0xf0] sm:$0xf]
        %v282 = vld [vmem:[%s209 + $0xf4] sm:$0xf]
        %v283 = vld [vmem:[%s209 + $0xf8] sm:$0xf]
        %v284 = vld [vmem:[%s209 + $0xfc] sm:$0xf]
        %v285 = vld [vmem:[#allocation2] sm:$0xf]
        %v286 = vld [vmem:[#allocation2 + $0x4] sm:$0x1]
        %v287 = vld [vmem:[#allocation4] sm:$0x1]
        %v289 = vlaneseq
        %v290 = vshrl.u32 %v289, 7
        %v291 = vsub.s32 0, %v290
        %v292 = vrot.slane %v287, %v291
        %v358 = vunpack.c.l.b16 %v221
        %v359 = vunpack.c.l.b16 %v222
        %v360 = vunpack.c.l.b16 %v223
        %v361 = vunpack.c.l.b16 %v224
        %v362 = vunpack.c.l.b16 %v225
        %v363 = vunpack.c.l.b16 %v226
        %v364 = vunpack.c.l.b16 %v227
        %v365 = vunpack.c.l.b16 %v228
        %v366 = vunpack.c.l.b16 %v229
        %v367 = vunpack.c.l.b16 %v230
        %v368 = vunpack.c.l.b16 %v231
        %v369 = vunpack.c.l.b16 %v232
        %v370 = vunpack.c.l.b16 %v233
        %v371 = vunpack.c.l.b16 %v234
        %v372 = vunpack.c.l.b16 %v235
        %v373 = vunpack.c.l.b16 %v236
        %v374 = vunpack.c.l.b16 %v237
        %v375 = vunpack.c.l.b16 %v238
        %v376 = vunpack.c.l.b16 %v239
        %v377 = vunpack.c.l.b16 %v240
        %v378 = vunpack.c.l.b16 %v241
        %v379 = vunpack.c.l.b16 %v242
        %v380 = vunpack.c.l.b16 %v243
        %v381 = vunpack.c.l.b16 %v244
        %v382 = vunpack.c.l.b16 %v245
        %v383 = vunpack.c.l.b16 %v246
        %v384 = vunpack.c.l.b16 %v247
        %v385 = vunpack.c.l.b16 %v248
        %v386 = vunpack.c.l.b16 %v249
        %v387 = vunpack.c.l.b16 %v250
        %v388 = vunpack.c.l.b16 %v251
        %v389 = vunpack.c.l.b16 %v252
        %v390 = vunpack.c.l.b16 %v253
        %v391 = vunpack.c.l.b16 %v254
        %v392 = vunpack.c.l.b16 %v255
        %v393 = vunpack.c.l.b16 %v256
        %v394 = vunpack.c.l.b16 %v257
        %v395 = vunpack.c.l.b16 %v258
        %v396 = vunpack.c.l.b16 %v259
        %v397 = vunpack.c.l.b16 %v260
        %v398 = vunpack.c.l.b16 %v261
        %v399 = vunpack.c.l.b16 %v262
        %v400 = vunpack.c.l.b16 %v263
        %v401 = vunpack.c.l.b16 %v264
        %v402 = vunpack.c.l.b16 %v265
        %v403 = vunpack.c.l.b16 %v266
        %v404 = vunpack.c.l.b16 %v267
        %v405 = vunpack.c.l.b16 %v268
        %v406 = vunpack.c.l.b16 %v269
        %v407 = vunpack.c.l.b16 %v270
        %v408 = vunpack.c.l.b16 %v271
        %v409 = vunpack.c.l.b16 %v272
        %v410 = vunpack.c.l.b16 %v273
        %v411 = vunpack.c.l.b16 %v274
        %v412 = vunpack.c.l.b16 %v275
        %v413 = vunpack.c.l.b16 %v276
        %v414 = vunpack.c.l.b16 %v277
        %v415 = vunpack.c.l.b16 %v278
        %v416 = vunpack.c.l.b16 %v279
        %v417 = vunpack.c.l.b16 %v280
        %v418 = vunpack.c.l.b16 %v281
        %v419 = vunpack.c.l.b16 %v282
        %v420 = vunpack.c.l.b16 %v283
        %v421 = vunpack.c.l.b16 %v284
        %v422 = vpack.c.b16 %v359, %v358
        %v423 = vpack.c.b16 %v361, %v360
        %v424 = vpack.c.b16 %v363, %v362
        %v425 = vpack.c.b16 %v365, %v364
        %v426 = vpack.c.b16 %v367, %v366
        %v427 = vpack.c.b16 %v369, %v368
        %v428 = vpack.c.b16 %v371, %v370
        %v429 = vpack.c.b16 %v373, %v372
        %v430 = vpack.c.b16 %v375, %v374
        %v431 = vpack.c.b16 %v377, %v376
        %v432 = vpack.c.b16 %v379, %v378
        %v433 = vpack.c.b16 %v381, %v380
        %v434 = vpack.c.b16 %v383, %v382
        %v435 = vpack.c.b16 %v385, %v384
        %v436 = vpack.c.b16 %v387, %v386
        %v437 = vpack.c.b16 %v389, %v388
        %v438 = vpack.c.b16 %v391, %v390
        %v439 = vpack.c.b16 %v393, %v392
        %v440 = vpack.c.b16 %v395, %v394
        %v441 = vpack.c.b16 %v397, %v396
        %v442 = vpack.c.b16 %v399, %v398
        %v443 = vpack.c.b16 %v401, %v400
        %v444 = vpack.c.b16 %v403, %v402
        %v445 = vpack.c.b16 %v405, %v404
        %v446 = vpack.c.b16 %v407, %v406
        %v447 = vpack.c.b16 %v409, %v408
        %v448 = vpack.c.b16 %v411, %v410
        %v449 = vpack.c.b16 %v413, %v412
        %v450 = vpack.c.b16 %v415, %v414
        %v451 = vpack.c.b16 %v417, %v416
        %v452 = vpack.c.b16 %v419, %v418
        %v453 = vpack.c.b16 %v421, %v420
        %v456 = vunpack.c.l.b16 %v285
        %v457 = vunpack.c.l.b16 %v286
        %v458 = vpack.c.b16 %v457, %v456
        %vm459 = vcmask 72704
        %v461 = vsel %vm459, %v422, 0
        %v464 = vsel %vm459, %v423, 0
        %v467 = vsel %vm459, %v424, 0
        %v470 = vsel %vm459, %v425, 0
        %v473 = vsel %vm459, %v426, 0
        %v476 = vsel %vm459, %v427, 0
        %v479 = vsel %vm459, %v428, 0
        %v482 = vsel %vm459, %v429, 0
        %v485 = vsel %vm459, %v430, 0
        %v488 = vsel %vm459, %v431, 0
        %v491 = vsel %vm459, %v432, 0
        %v494 = vsel %vm459, %v433, 0
        %v497 = vsel %vm459, %v434, 0
        %v500 = vsel %vm459, %v435, 0
        %v503 = vsel %vm459, %v436, 0
        %v506 = vsel %vm459, %v437, 0
        %v509 = vsel %vm459, %v438, 0
        %v512 = vsel %vm459, %v439, 0
        %v515 = vsel %vm459, %v440, 0
        %v518 = vsel %vm459, %v441, 0
        %v521 = vsel %vm459, %v442, 0
        %v524 = vsel %vm459, %v443, 0
        %v527 = vsel %vm459, %v444, 0
        %v530 = vsel %vm459, %v445, 0
        %v533 = vsel %vm459, %v446, 0
        %v536 = vsel %vm459, %v447, 0
        %v539 = vsel %vm459, %v448, 0
        %v542 = vsel %vm459, %v449, 0
        %v545 = vsel %vm459, %v450, 0
        %v548 = vsel %vm459, %v451, 0
        %v551 = vsel %vm459, %v452, 0
        %v554 = vsel %vm459, %v453, 0
        %vm556 = vcmask 1043456
        %vm557 = vcmask 1044480
        %v558 = vsel %vm556, 4294967295, 65535
        %v559 = vsel %vm557, %v558, 0
        %v561 = vand.u32 %v458, %v559
        %563 = vmatprep.subr.bf16.mxu0 0
        %564 = vmatpush1.bf16.msra.mxu0 %v561
        %565 = vmatprep.subr.bf16.mxu0 0
        %566 = vmatpush1.bf16.msra.mxu0 0
        %567 = vmatprep.subr.bf16.mxu0 0
        %568 = vmatpush1.bf16.msra.mxu0 0
        %569 = vmatprep.subr.bf16.mxu0 0
        %570 = vmatpush1.bf16.msra.mxu0 0
        %571 = vmatprep.subr.bf16.mxu0 0
        %572 = vmatpush1.bf16.msra.mxu0 0
        %573 = vmatprep.subr.bf16.mxu0 0
        %574 = vmatpush1.bf16.msra.mxu0 0
        %575 = vmatprep.subr.bf16.mxu0 0
        %576 = vmatpush1.bf16.msra.mxu0 0
        %577 = vmatprep.subr.bf16.mxu0 0
        %578 = vmatpush1.bf16.msra.mxu0 0
        %579 = vmatprep.subr.bf16.mxu0 0
        %580 = vmatpush1.bf16.msra.mxu0 0
        %581 = vmatprep.subr.bf16.mxu0 0
        %582 = vmatpush1.bf16.msra.mxu0 0
        %583 = vmatprep.subr.bf16.mxu0 0
        %584 = vmatpush1.bf16.msra.mxu0 0
        %585 = vmatprep.subr.bf16.mxu0 0
        %586 = vmatpush1.bf16.msra.mxu0 0
        %587 = vmatprep.subr.bf16.mxu0 0
        %588 = vmatpush1.bf16.msra.mxu0 0
        %589 = vmatprep.subr.bf16.mxu0 0
        %590 = vmatpush1.bf16.msra.mxu0 0
        %591 = vmatprep.subr.bf16.mxu0 0
        %592 = vmatpush1.bf16.msra.mxu0 0
        %593 = vmatprep.subr.bf16.mxu0 0
        %594 = vmatpush1.bf16.msra.mxu0 0
        %595 = vmatprep.mubr.bf16.mxu0 0
        %596 = vmatmul.mubr.bf16.gmra.mrb[0].mxu0 %v461
        %v597 = vpop.f32.mrb[0].mxu0
        %v598 = vadd.f32 %v292, %v597
        %v599 = vpop.f32.mrb[0].mxu0
        %v600 = vpop.f32.mrb[0].mxu0
        %v601 = vadd.f32 %v292, %v600
        %v602 = vpop.f32.mrb[0].mxu0
        %603 = vmatprep.mubr.bf16.mxu0 0
        %604 = vmatmul.mubr.bf16.gmra.mrb[0].mxu0 %v464
        %v605 = vpop.f32.mrb[0].mxu0
        %v606 = vadd.f32 %v292, %v605
        %v607 = vpop.f32.mrb[0].mxu0
        %v608 = vpop.f32.mrb[0].mxu0
        %v609 = vadd.f32 %v292, %v608
        %v610 = vpop.f32.mrb[0].mxu0
        %611 = vmatprep.mubr.bf16.mxu0 0
        %612 = vmatmul.mubr.bf16.gmra.mrb[0].mxu0 %v467
        %v613 = vpop.f32.mrb[0].mxu0
        %v614 = vadd.f32 %v292, %v613
        %v615 = vpop.f32.mrb[0].mxu0
        %v616 = vpop.f32.mrb[0].mxu0
        %v617 = vadd.f32 %v292, %v616
        %v618 = vpop.f32.mrb[0].mxu0
        %619 = vmatprep.mubr.bf16.mxu0 0
        %620 = vmatmul.mubr.bf16.gmra.mrb[0].mxu0 %v470
        %v621 = vpop.f32.mrb[0].mxu0
        %v622 = vadd.f32 %v292, %v621
        %v623 = vpop.f32.mrb[0].mxu0
        %v624 = vpop.f32.mrb[0].mxu0
        %v625 = vadd.f32 %v292, %v624
        %v626 = vpop.f32.mrb[0].mxu0
        %627 = vmatprep.mubr.bf16.mxu0 0
        %628 = vmatmul.mubr.bf16.gmra.mrb[0].mxu0 %v473
        %v629 = vpop.f32.mrb[0].mxu0
        %v630 = vadd.f32 %v292, %v629
        %v631 = vpop.f32.mrb[0].mxu0
        %v632 = vpop.f32.mrb[0].mxu0
        %v633 = vadd.f32 %v292, %v632
        %v634 = vpop.f32.mrb[0].mxu0
        %635 = vmatprep.mubr.bf16.mxu0 0
        %636 = vmatmul.mubr.bf16.gmra.mrb[0].mxu0 %v476
        %v637 = vpop.f32.mrb[0].mxu0
        %v638 = vadd.f32 %v292, %v637
        %v639 = vpop.f32.mrb[0].mxu0
        %v640 = vpop.f32.mrb[0].mxu0
        %v641 = vadd.f32 %v292, %v640
        %v642 = vpop.f32.mrb[0].mxu0
        %643 = vmatprep.mubr.bf16.mxu0 0
        %644 = vmatmul.mubr.bf16.gmra.mrb[0].mxu0 %v479
        %v645 = vpop.f32.mrb[0].mxu0
        %v646 = vadd.f32 %v292, %v645
        %v647 = vpop.f32.mrb[0].mxu0
        %v648 = vpop.f32.mrb[0].mxu0
        %v649 = vadd.f32 %v292, %v648
        %v650 = vpop.f32.mrb[0].mxu0
        %651 = vmatprep.mubr.bf16.mxu0 0
        %652 = vmatmul.mubr.bf16.gmra.mrb[0].mxu0 %v482
        %v653 = vpop.f32.mrb[0].mxu0
        %v654 = vadd.f32 %v292, %v653
        %v655 = vpop.f32.mrb[0].mxu0
        %v656 = vpop.f32.mrb[0].mxu0
        %v657 = vadd.f32 %v292, %v656
        %v658 = vpop.f32.mrb[0].mxu0
        %659 = vmatprep.mubr.bf16.mxu0 0
        %660 = vmatmul.mubr.bf16.gmra.mrb[0].mxu0 %v485
        %v661 = vpop.f32.mrb[0].mxu0
        %v662 = vadd.f32 %v292, %v661
        %v663 = vpop.f32.mrb[0].mxu0
        %v664 = vpop.f32.mrb[0].mxu0
        %v665 = vadd.f32 %v292, %v664
        %v666 = vpop.f32.mrb[0].mxu0
        %667 = vmatprep.mubr.bf16.mxu0 0
        %668 = vmatmul.mubr.bf16.gmra.mrb[0].mxu0 %v488
        %v669 = vpop.f32.mrb[0].mxu0
        %v670 = vadd.f32 %v292, %v669
        %v671 = vpop.f32.mrb[0].mxu0
        %v672 = vpop.f32.mrb[0].mxu0
        %v673 = vadd.f32 %v292, %v672
        %v674 = vpop.f32.mrb[0].mxu0
        %675 = vmatprep.mubr.bf16.mxu0 0
        %676 = vmatmul.mubr.bf16.gmra.mrb[0].mxu0 %v491
        %v677 = vpop.f32.mrb[0].mxu0
        %v678 = vadd.f32 %v292, %v677
        %v679 = vpop.f32.mrb[0].mxu0
        %v680 = vpop.f32.mrb[0].mxu0
        %v681 = vadd.f32 %v292, %v680
        %v682 = vpop.f32.mrb[0].mxu0
        %683 = vmatprep.mubr.bf16.mxu0 0
        %684 = vmatmul.mubr.bf16.gmra.mrb[0].mxu0 %v494
        %v685 = vpop.f32.mrb[0].mxu0
        %v686 = vadd.f32 %v292, %v685
        %v687 = vpop.f32.mrb[0].mxu0
        %v688 = vpop.f32.mrb[0].mxu0
        %v689 = vadd.f32 %v292, %v688
        %v690 = vpop.f32.mrb[0].mxu0
        %691 = vmatprep.mubr.bf16.mxu0 0
        %692 = vmatmul.mubr.bf16.gmra.mrb[0].mxu0 %v497
        %v693 = vpop.f32.mrb[0].mxu0
        %v694 = vadd.f32 %v292, %v693
        %v695 = vpop.f32.mrb[0].mxu0
        %v696 = vpop.f32.mrb[0].mxu0
        %v697 = vadd.f32 %v292, %v696
        %v698 = vpop.f32.mrb[0].mxu0
        %699 = vmatprep.mubr.bf16.mxu0 0
        %700 = vmatmul.mubr.bf16.gmra.mrb[0].mxu0 %v500
        %v701 = vpop.f32.mrb[0].mxu0
        %v702 = vadd.f32 %v292, %v701
        %v703 = vpop.f32.mrb[0].mxu0
        %v704 = vpop.f32.mrb[0].mxu0
        %v705 = vadd.f32 %v292, %v704
        %v706 = vpop.f32.mrb[0].mxu0
        %707 = vmatprep.mubr.bf16.mxu0 0
        %708 = vmatmul.mubr.bf16.gmra.mrb[0].mxu0 %v503
        %v709 = vpop.f32.mrb[0].mxu0
        %v710 = vadd.f32 %v292, %v709
        %v711 = vpop.f32.mrb[0].mxu0
        %v712 = vpop.f32.mrb[0].mxu0
        %v713 = vadd.f32 %v292, %v712
        %v714 = vpop.f32.mrb[0].mxu0
        %715 = vmatprep.mubr.bf16.mxu0 0
        %716 = vmatmul.mubr.bf16.gmra.mrb[0].mxu0 %v506
        %v717 = vpop.f32.mrb[0].mxu0
        %v718 = vadd.f32 %v292, %v717
        %v719 = vpop.f32.mrb[0].mxu0
        %v720 = vpop.f32.mrb[0].mxu0
        %v721 = vadd.f32 %v292, %v720
        %v722 = vpop.f32.mrb[0].mxu0
        %723 = vmatprep.mubr.bf16.mxu0 0
        %724 = vmatmul.mubr.bf16.gmra.mrb[0].mxu0 %v509
        %v725 = vpop.f32.mrb[0].mxu0
        %v726 = vadd.f32 %v292, %v725
        %v727 = vpop.f32.mrb[0].mxu0
        %v728 = vpop.f32.mrb[0].mxu0
        %v729 = vadd.f32 %v292, %v728
        %v730 = vpop.f32.mrb[0].mxu0
        %731 = vmatprep.mubr.bf16.mxu0 0
        %732 = vmatmul.mubr.bf16.gmra.mrb[0].mxu0 %v512
        %v733 = vpop.f32.mrb[0].mxu0
        %v734 = vadd.f32 %v292, %v733
        %v735 = vpop.f32.mrb[0].mxu0
        %v736 = vpop.f32.mrb[0].mxu0
        %v737 = vadd.f32 %v292, %v736
        %v738 = vpop.f32.mrb[0].mxu0
        %739 = vmatprep.mubr.bf16.mxu0 0
        %740 = vmatmul.mubr.bf16.gmra.mrb[0].mxu0 %v515
        %v741 = vpop.f32.mrb[0].mxu0
        %v742 = vadd.f32 %v292, %v741
        %v743 = vpop.f32.mrb[0].mxu0
        %v744 = vpop.f32.mrb[0].mxu0
        %v745 = vadd.f32 %v292, %v744
        %v746 = vpop.f32.mrb[0].mxu0
        %747 = vmatprep.mubr.bf16.mxu0 0
        %748 = vmatmul.mubr.bf16.gmra.mrb[0].mxu0 %v518
        %v749 = vpop.f32.mrb[0].mxu0
        %v750 = vadd.f32 %v292, %v749
        %v751 = vpop.f32.mrb[0].mxu0
        %v752 = vpop.f32.mrb[0].mxu0
        %v753 = vadd.f32 %v292, %v752
        %v754 = vpop.f32.mrb[0].mxu0
        %755 = vmatprep.mubr.bf16.mxu0 0
        %756 = vmatmul.mubr.bf16.gmra.mrb[0].mxu0 %v521
        %v757 = vpop.f32.mrb[0].mxu0
        %v758 = vadd.f32 %v292, %v757
        %v759 = vpop.f32.mrb[0].mxu0
        %v760 = vpop.f32.mrb[0].mxu0
        %v761 = vadd.f32 %v292, %v760
        %v762 = vpop.f32.mrb[0].mxu0
        %763 = vmatprep.mubr.bf16.mxu0 0
        %764 = vmatmul.mubr.bf16.gmra.mrb[0].mxu0 %v524
        %v765 = vpop.f32.mrb[0].mxu0
        %v766 = vadd.f32 %v292, %v765
        %v767 = vpop.f32.mrb[0].mxu0
        %v768 = vpop.f32.mrb[0].mxu0
        %v769 = vadd.f32 %v292, %v768
        %v770 = vpop.f32.mrb[0].mxu0
        %771 = vmatprep.mubr.bf16.mxu0 0
        %772 = vmatmul.mubr.bf16.gmra.mrb[0].mxu0 %v527
        %v773 = vpop.f32.mrb[0].mxu0
        %v774 = vadd.f32 %v292, %v773
        %v775 = vpop.f32.mrb[0].mxu0
        %v776 = vpop.f32.mrb[0].mxu0
        %v777 = vadd.f32 %v292, %v776
        %v778 = vpop.f32.mrb[0].mxu0
        %779 = vmatprep.mubr.bf16.mxu0 0
        %780 = vmatmul.mubr.bf16.gmra.mrb[0].mxu0 %v530
        %v781 = vpop.f32.mrb[0].mxu0
        %v782 = vadd.f32 %v292, %v781
        %v783 = vpop.f32.mrb[0].mxu0
        %v784 = vpop.f32.mrb[0].mxu0
        %v785 = vadd.f32 %v292, %v784
        %v786 = vpop.f32.mrb[0].mxu0
        %787 = vmatprep.mubr.bf16.mxu0 0
        %788 = vmatmul.mubr.bf16.gmra.mrb[0].mxu0 %v533
        %v789 = vpop.f32.mrb[0].mxu0
        %v790 = vadd.f32 %v292, %v789
        %v791 = vpop.f32.mrb[0].mxu0
        %v792 = vpop.f32.mrb[0].mxu0
        %v793 = vadd.f32 %v292, %v792
        %v794 = vpop.f32.mrb[0].mxu0
        %795 = vmatprep.mubr.bf16.mxu0 0
        %796 = vmatmul.mubr.bf16.gmra.mrb[0].mxu0 %v536
        %v797 = vpop.f32.mrb[0].mxu0
        %v798 = vadd.f32 %v292, %v797
        %v799 = vpop.f32.mrb[0].mxu0
        %v800 = vpop.f32.mrb[0].mxu0
        %v801 = vadd.f32 %v292, %v800
        %v802 = vpop.f32.mrb[0].mxu0
        %803 = vmatprep.mubr.bf16.mxu0 0
        %804 = vmatmul.mubr.bf16.gmra.mrb[0].mxu0 %v539
        %v805 = vpop.f32.mrb[0].mxu0
        %v806 = vadd.f32 %v292, %v805
        %v807 = vpop.f32.mrb[0].mxu0
        %v808 = vpop.f32.mrb[0].mxu0
        %v809 = vadd.f32 %v292, %v808
        %v810 = vpop.f32.mrb[0].mxu0
        %811 = vmatprep.mubr.bf16.mxu0 0
        %812 = vmatmul.mubr.bf16.gmra.mrb[0].mxu0 %v542
        %v813 = vpop.f32.mrb[0].mxu0
        %v814 = vadd.f32 %v292, %v813
        %v815 = vpop.f32.mrb[0].mxu0
        %v816 = vpop.f32.mrb[0].mxu0
        %v817 = vadd.f32 %v292, %v816
        %v818 = vpop.f32.mrb[0].mxu0
        %819 = vmatprep.mubr.bf16.mxu0 0
        %820 = vmatmul.mubr.bf16.gmra.mrb[0].mxu0 %v545
        %v821 = vpop.f32.mrb[0].mxu0
        %v822 = vadd.f32 %v292, %v821
        %v823 = vpop.f32.mrb[0].mxu0
        %v824 = vpop.f32.mrb[0].mxu0
        %v825 = vadd.f32 %v292, %v824
        %v826 = vpop.f32.mrb[0].mxu0
        %827 = vmatprep.mubr.bf16.mxu0 0
        %828 = vmatmul.mubr.bf16.gmra.mrb[0].mxu0 %v548
        %v829 = vpop.f32.mrb[0].mxu0
        %v830 = vadd.f32 %v292, %v829
        %v831 = vpop.f32.mrb[0].mxu0
        %v832 = vpop.f32.mrb[0].mxu0
        %v833 = vadd.f32 %v292, %v832
        %v834 = vpop.f32.mrb[0].mxu0
        %835 = vmatprep.mubr.bf16.mxu0 0
        %836 = vmatmul.mubr.bf16.gmra.mrb[0].mxu0 %v551
        %v837 = vpop.f32.mrb[0].mxu0
        %v838 = vadd.f32 %v292, %v837
        %v839 = vpop.f32.mrb[0].mxu0
        %v840 = vpop.f32.mrb[0].mxu0
        %v841 = vadd.f32 %v292, %v840
        %v842 = vpop.f32.mrb[0].mxu0
        %843 = vmatprep.mubr.bf16.mxu0 0
        %844 = vmatmul.mubr.bf16.gmra.mrb[0].mxu0 %v554
        %v845 = vpop.f32.mrb[0].mxu0
        %v846 = vadd.f32 %v292, %v845
        %v847 = vpop.f32.mrb[0].mxu0
        %v848 = vpop.f32.mrb[0].mxu0
        %v849 = vadd.f32 %v292, %v848
        %v850 = vpop.f32.mrb[0].mxu0
        %851 = vdwg.mxu0
        %v852 = vmax.f32 %v598, 0.0
        %v853 = vmax.f32 %v601, 0.0
        %v854 = vmax.f32 %v606, 0.0
        %v855 = vmax.f32 %v609, 0.0
        %v856 = vmax.f32 %v614, 0.0
        %v857 = vmax.f32 %v617, 0.0
        %v858 = vmax.f32 %v622, 0.0
        %v859 = vmax.f32 %v625, 0.0
        %v860 = vmax.f32 %v630, 0.0
        %v861 = vmax.f32 %v633, 0.0
        %v862 = vmax.f32 %v638, 0.0
        %v863 = vmax.f32 %v641, 0.0
        %v864 = vmax.f32 %v646, 0.0
        %v865 = vmax.f32 %v649, 0.0
        %v866 = vmax.f32 %v654, 0.0
        %v867 = vmax.f32 %v657, 0.0
        %v868 = vmax.f32 %v662, 0.0
        %v869 = vmax.f32 %v665, 0.0
        %v870 = vmax.f32 %v670, 0.0
        %v871 = vmax.f32 %v673, 0.0
        %v872 = vmax.f32 %v678, 0.0
        %v873 = vmax.f32 %v681, 0.0
        %v874 = vmax.f32 %v686, 0.0
        %v875 = vmax.f32 %v689, 0.0
        %v876 = vmax.f32 %v694, 0.0
        %v877 = vmax.f32 %v697, 0.0
        %v878 = vmax.f32 %v702, 0.0
        %v879 = vmax.f32 %v705, 0.0
        %v880 = vmax.f32 %v710, 0.0
        %v881 = vmax.f32 %v713, 0.0
        %v882 = vmax.f32 %v718, 0.0
        %v883 = vmax.f32 %v721, 0.0
        %v884 = vmax.f32 %v726, 0.0
        %v885 = vmax.f32 %v729, 0.0
        %v886 = vmax.f32 %v734, 0.0
        %v887 = vmax.f32 %v737, 0.0
        %v888 = vmax.f32 %v742, 0.0
        %v889 = vmax.f32 %v745, 0.0
        %v890 = vmax.f32 %v750, 0.0
        %v891 = vmax.f32 %v753, 0.0
        %v892 = vmax.f32 %v758, 0.0
        %v893 = vmax.f32 %v761, 0.0
        %v894 = vmax.f32 %v766, 0.0
        %v895 = vmax.f32 %v769, 0.0
        %v896 = vmax.f32 %v774, 0.0
        %v897 = vmax.f32 %v777, 0.0
        %v898 = vmax.f32 %v782, 0.0
        %v899 = vmax.f32 %v785, 0.0
        %v900 = vmax.f32 %v790, 0.0
        %v901 = vmax.f32 %v793, 0.0
        %v902 = vmax.f32 %v798, 0.0
        %v903 = vmax.f32 %v801, 0.0
        %v904 = vmax.f32 %v806, 0.0
        %v905 = vmax.f32 %v809, 0.0
        %v906 = vmax.f32 %v814, 0.0
        %v907 = vmax.f32 %v817, 0.0
        %v908 = vmax.f32 %v822, 0.0
        %v909 = vmax.f32 %v825, 0.0
        %v910 = vmax.f32 %v830, 0.0
        %v911 = vmax.f32 %v833, 0.0
        %v912 = vmax.f32 %v838, 0.0
        %v913 = vmax.f32 %v841, 0.0
        %v914 = vmax.f32 %v846, 0.0
        %v915 = vmax.f32 %v849, 0.0
        %v916 = vpack.c.bf16 %v853, %v852
        %v917 = vpack.c.bf16 %v855, %v854
        %v918 = vpack.c.bf16 %v857, %v856
        %v919 = vpack.c.bf16 %v859, %v858
        %v920 = vpack.c.bf16 %v861, %v860
        %v921 = vpack.c.bf16 %v863, %v862
        %v922 = vpack.c.bf16 %v865, %v864
        %v923 = vpack.c.bf16 %v867, %v866
        %v924 = vpack.c.bf16 %v869, %v868
        %v925 = vpack.c.bf16 %v871, %v870
        %v926 = vpack.c.bf16 %v873, %v872
        %v927 = vpack.c.bf16 %v875, %v874
        %v928 = vpack.c.bf16 %v877, %v876
        %v929 = vpack.c.bf16 %v879, %v878
        %v930 = vpack.c.bf16 %v881, %v880
        %v931 = vpack.c.bf16 %v883, %v882
        %v932 = vpack.c.bf16 %v885, %v884
        %v933 = vpack.c.bf16 %v887, %v886
        %v934 = vpack.c.bf16 %v889, %v888
        %v935 = vpack.c.bf16 %v891, %v890
        %v936 = vpack.c.bf16 %v893, %v892
        %v937 = vpack.c.bf16 %v895, %v894
        %v938 = vpack.c.bf16 %v897, %v896
        %v939 = vpack.c.bf16 %v899, %v898
        %v940 = vpack.c.bf16 %v901, %v900
        %v941 = vpack.c.bf16 %v903, %v902
        %v942 = vpack.c.bf16 %v905, %v904
        %v943 = vpack.c.bf16 %v907, %v906
        %v944 = vpack.c.bf16 %v909, %v908
        %v945 = vpack.c.bf16 %v911, %v910
        %v946 = vpack.c.bf16 %v913, %v912
        %v947 = vpack.c.bf16 %v915, %v914
        %v980 = vunpack.c.l.b16 %v916
        %v981 = vunpack.c.h.b16 %v916
        %v982 = vunpack.c.l.b16 %v917
        %v983 = vunpack.c.h.b16 %v917
        %v984 = vunpack.c.l.b16 %v918
        %v985 = vunpack.c.h.b16 %v918
        %v986 = vunpack.c.l.b16 %v919
        %v987 = vunpack.c.h.b16 %v919
        %v988 = vunpack.c.l.b16 %v920
        %v989 = vunpack.c.h.b16 %v920
        %v990 = vunpack.c.l.b16 %v921
        %v991 = vunpack.c.h.b16 %v921
        %v992 = vunpack.c.l.b16 %v922
        %v993 = vunpack.c.h.b16 %v922
        %v994 = vunpack.c.l.b16 %v923
        %v995 = vunpack.c.h.b16 %v923
        %v996 = vunpack.c.l.b16 %v924
        %v997 = vunpack.c.h.b16 %v924
        %v998 = vunpack.c.l.b16 %v925
        %v999 = vunpack.c.h.b16 %v925
        %v1000 = vunpack.c.l.b16 %v926
        %v1001 = vunpack.c.h.b16 %v926
        %v1002 = vunpack.c.l.b16 %v927
        %v1003 = vunpack.c.h.b16 %v927
        %v1004 = vunpack.c.l.b16 %v928
        %v1005 = vunpack.c.h.b16 %v928
        %v1006 = vunpack.c.l.b16 %v929
        %v1007 = vunpack.c.h.b16 %v929
        %v1008 = vunpack.c.l.b16 %v930
        %v1009 = vunpack.c.h.b16 %v930
        %v1010 = vunpack.c.l.b16 %v931
        %v1011 = vunpack.c.h.b16 %v931
        %v1012 = vunpack.c.l.b16 %v932
        %v1013 = vunpack.c.h.b16 %v932
        %v1014 = vunpack.c.l.b16 %v933
        %v1015 = vunpack.c.h.b16 %v933
        %v1016 = vunpack.c.l.b16 %v934
        %v1017 = vunpack.c.h.b16 %v934
        %v1018 = vunpack.c.l.b16 %v935
        %v1019 = vunpack.c.h.b16 %v935
        %v1020 = vunpack.c.l.b16 %v936
        %v1021 = vunpack.c.h.b16 %v936
        %v1022 = vunpack.c.l.b16 %v937
        %v1023 = vunpack.c.h.b16 %v937
        %v1024 = vunpack.c.l.b16 %v938
        %v1025 = vunpack.c.h.b16 %v938
        %v1026 = vunpack.c.l.b16 %v939
        %v1027 = vunpack.c.h.b16 %v939
        %v1028 = vunpack.c.l.b16 %v940
        %v1029 = vunpack.c.h.b16 %v940
        %v1030 = vunpack.c.l.b16 %v941
        %v1031 = vunpack.c.h.b16 %v941
        %v1032 = vunpack.c.l.b16 %v942
        %v1033 = vunpack.c.h.b16 %v942
        %v1034 = vunpack.c.l.b16 %v943
        %v1035 = vunpack.c.h.b16 %v943
        %v1036 = vunpack.c.l.b16 %v944
        %v1037 = vunpack.c.h.b16 %v944
        %v1038 = vunpack.c.l.b16 %v945
        %v1039 = vunpack.c.h.b16 %v945
        %v1040 = vunpack.c.l.b16 %v946
        %v1041 = vunpack.c.h.b16 %v946
        %v1042 = vunpack.c.l.b16 %v947
        %v1043 = vunpack.c.h.b16 %v947
        %v1044 = vpack.c.b16 %v980, %v980
        %v1045 = vpack.c.b16 %v981, %v981
        %v1046 = vpack.c.b16 %v982, %v982
        %v1047 = vpack.c.b16 %v983, %v983
        %v1048 = vpack.c.b16 %v984, %v984
        %v1049 = vpack.c.b16 %v985, %v985
        %v1050 = vpack.c.b16 %v986, %v986
        %v1051 = vpack.c.b16 %v987, %v987
        %v1052 = vpack.c.b16 %v988, %v988
        %v1053 = vpack.c.b16 %v989, %v989
        %v1054 = vpack.c.b16 %v990, %v990
        %v1055 = vpack.c.b16 %v991, %v991
        %v1056 = vpack.c.b16 %v992, %v992
        %v1057 = vpack.c.b16 %v993, %v993
        %v1058 = vpack.c.b16 %v994, %v994
        %v1059 = vpack.c.b16 %v995, %v995
        %v1060 = vpack.c.b16 %v996, %v996
        %v1061 = vpack.c.b16 %v997, %v997
        %v1062 = vpack.c.b16 %v998, %v998
        %v1063 = vpack.c.b16 %v999, %v999
        %v1064 = vpack.c.b16 %v1000, %v1000
        %v1065 = vpack.c.b16 %v1001, %v1001
        %v1066 = vpack.c.b16 %v1002, %v1002
        %v1067 = vpack.c.b16 %v1003, %v1003
        %v1068 = vpack.c.b16 %v1004, %v1004
        %v1069 = vpack.c.b16 %v1005, %v1005
        %v1070 = vpack.c.b16 %v1006, %v1006
        %v1071 = vpack.c.b16 %v1007, %v1007
        %v1072 = vpack.c.b16 %v1008, %v1008
        %v1073 = vpack.c.b16 %v1009, %v1009
        %v1074 = vpack.c.b16 %v1010, %v1010
        %v1075 = vpack.c.b16 %v1011, %v1011
        %v1076 = vpack.c.b16 %v1012, %v1012
        %v1077 = vpack.c.b16 %v1013, %v1013
        %v1078 = vpack.c.b16 %v1014, %v1014
        %v1079 = vpack.c.b16 %v1015, %v1015
        %v1080 = vpack.c.b16 %v1016, %v1016
        %v1081 = vpack.c.b16 %v1017, %v1017
        %v1082 = vpack.c.b16 %v1018, %v1018
        %v1083 = vpack.c.b16 %v1019, %v1019
        %v1084 = vpack.c.b16 %v1020, %v1020
        %v1085 = vpack.c.b16 %v1021, %v1021
        %v1086 = vpack.c.b16 %v1022, %v1022
        %v1087 = vpack.c.b16 %v1023, %v1023
        %v1088 = vpack.c.b16 %v1024, %v1024
        %v1089 = vpack.c.b16 %v1025, %v1025
        %v1090 = vpack.c.b16 %v1026, %v1026
        %v1091 = vpack.c.b16 %v1027, %v1027
        %v1092 = vpack.c.b16 %v1028, %v1028
        %v1093 = vpack.c.b16 %v1029, %v1029
        %v1094 = vpack.c.b16 %v1030, %v1030
        %v1095 = vpack.c.b16 %v1031, %v1031
        %v1096 = vpack.c.b16 %v1032, %v1032
        %v1097 = vpack.c.b16 %v1033, %v1033
        %v1098 = vpack.c.b16 %v1034, %v1034
        %v1099 = vpack.c.b16 %v1035, %v1035
        %v1100 = vpack.c.b16 %v1036, %v1036
        %v1101 = vpack.c.b16 %v1037, %v1037
        %v1102 = vpack.c.b16 %v1038, %v1038
        %v1103 = vpack.c.b16 %v1039, %v1039
        %v1104 = vpack.c.b16 %v1040, %v1040
        %v1105 = vpack.c.b16 %v1041, %v1041
        %v1106 = vpack.c.b16 %v1042, %v1042
        %v1107 = vpack.c.b16 %v1043, %v1043
        %vm1172 = vcmask 125952
        %1173 = vst.msk [vmem:[%s200] sm:$0xf] %vm1172, %v1044
        %1174 = vst.msk [vmem:[%s200 + $0x4] sm:$0xf] %vm1172, %v1045
        %1175 = vst.msk [vmem:[%s200 + $0x8] sm:$0xf] %vm1172, %v1046
        %1176 = vst.msk [vmem:[%s200 + $0xc] sm:$0xf] %vm1172, %v1047
        %1177 = vst.msk [vmem:[%s200 + $0x10] sm:$0xf] %vm1172, %v1048
        %1178 = vst.msk [vmem:[%s200 + $0x14] sm:$0xf] %vm1172, %v1049
        %1179 = vst.msk [vmem:[%s200 + $0x18] sm:$0xf] %vm1172, %v1050
        %1180 = vst.msk [vmem:[%s200 + $0x1c] sm:$0xf] %vm1172, %v1051
        %1181 = vst.msk [vmem:[%s200 + $0x20] sm:$0xf] %vm1172, %v1052
        %1182 = vst.msk [vmem:[%s200 + $0x24] sm:$0xf] %vm1172, %v1053
        %1183 = vst.msk [vmem:[%s200 + $0x28] sm:$0xf] %vm1172, %v1054
        %1184 = vst.msk [vmem:[%s200 + $0x2c] sm:$0xf] %vm1172, %v1055
        %1185 = vst.msk [vmem:[%s200 + $0x30] sm:$0xf] %vm1172, %v1056
        %1186 = vst.msk [vmem:[%s200 + $0x34] sm:$0xf] %vm1172, %v1057
        %1187 = vst.msk [vmem:[%s200 + $0x38] sm:$0xf] %vm1172, %v1058
        %1188 = vst.msk [vmem:[%s200 + $0x3c] sm:$0xf] %vm1172, %v1059
        %1189 = vst.msk [vmem:[%s200 + $0x40] sm:$0xf] %vm1172, %v1060
        %1190 = vst.msk [vmem:[%s200 + $0x44] sm:$0xf] %vm1172, %v1061
        %1191 = vst.msk [vmem:[%s200 + $0x48] sm:$0xf] %vm1172, %v1062
        %1192 = vst.msk [vmem:[%s200 + $0x4c] sm:$0xf] %vm1172, %v1063
        %1193 = vst.msk [vmem:[%s200 + $0x50] sm:$0xf] %vm1172, %v1064
        %1194 = vst.msk [vmem:[%s200 + $0x54] sm:$0xf] %vm1172, %v1065
        %1195 = vst.msk [vmem:[%s200 + $0x58] sm:$0xf] %vm1172, %v1066
        %1196 = vst.msk [vmem:[%s200 + $0x5c] sm:$0xf] %vm1172, %v1067
        %1197 = vst.msk [vmem:[%s200 + $0x60] sm:$0xf] %vm1172, %v1068
        %1198 = vst.msk [vmem:[%s200 + $0x64] sm:$0xf] %vm1172, %v1069
        %1199 = vst.msk [vmem:[%s200 + $0x68] sm:$0xf] %vm1172, %v1070
        %1200 = vst.msk [vmem:[%s200 + $0x6c] sm:$0xf] %vm1172, %v1071
        %1201 = vst.msk [vmem:[%s200 + $0x70] sm:$0xf] %vm1172, %v1072
        %1202 = vst.msk [vmem:[%s200 + $0x74] sm:$0xf] %vm1172, %v1073
        %1203 = vst.msk [vmem:[%s200 + $0x78] sm:$0xf] %vm1172, %v1074
        %1204 = vst.msk [vmem:[%s200 + $0x7c] sm:$0xf] %vm1172, %v1075
        %1205 = vst.msk [vmem:[%s200 + $0x80] sm:$0xf] %vm1172, %v1076
        %1206 = vst.msk [vmem:[%s200 + $0x84] sm:$0xf] %vm1172, %v1077
        %1207 = vst.msk [vmem:[%s200 + $0x88] sm:$0xf] %vm1172, %v1078
        %1208 = vst.msk [vmem:[%s200 + $0x8c] sm:$0xf] %vm1172, %v1079
        %1209 = vst.msk [vmem:[%s200 + $0x90] sm:$0xf] %vm1172, %v1080
        %1210 = vst.msk [vmem:[%s200 + $0x94] sm:$0xf] %vm1172, %v1081
        %1211 = vst.msk [vmem:[%s200 + $0x98] sm:$0xf] %vm1172, %v1082
        %1212 = vst.msk [vmem:[%s200 + $0x9c] sm:$0xf] %vm1172, %v1083
        %1213 = vst.msk [vmem:[%s200 + $0xa0] sm:$0xf] %vm1172, %v1084
        %1214 = vst.msk [vmem:[%s200 + $0xa4] sm:$0xf] %vm1172, %v1085
        %1215 = vst.msk [vmem:[%s200 + $0xa8] sm:$0xf] %vm1172, %v1086
        %1216 = vst.msk [vmem:[%s200 + $0xac] sm:$0xf] %vm1172, %v1087
        %1217 = vst.msk [vmem:[%s200 + $0xb0] sm:$0xf] %vm1172, %v1088
        %1218 = vst.msk [vmem:[%s200 + $0xb4] sm:$0xf] %vm1172, %v1089
        %1219 = vst.msk [vmem:[%s200 + $0xb8] sm:$0xf] %vm1172, %v1090
        %1220 = vst.msk [vmem:[%s200 + $0xbc] sm:$0xf] %vm1172, %v1091
        %1221 = vst.msk [vmem:[%s200 + $0xc0] sm:$0xf] %vm1172, %v1092
        %1222 = vst.msk [vmem:[%s200 + $0xc4] sm:$0xf] %vm1172, %v1093
        %1223 = vst.msk [vmem:[%s200 + $0xc8] sm:$0xf] %vm1172, %v1094
        %1224 = vst.msk [vmem:[%s200 + $0xcc] sm:$0xf] %vm1172, %v1095
        %1225 = vst.msk [vmem:[%s200 + $0xd0] sm:$0xf] %vm1172, %v1096
        %1226 = vst.msk [vmem:[%s200 + $0xd4] sm:$0xf] %vm1172, %v1097
        %1227 = vst.msk [vmem:[%s200 + $0xd8] sm:$0xf] %vm1172, %v1098
        %1228 = vst.msk [vmem:[%s200 + $0xdc] sm:$0xf] %vm1172, %v1099
        %1229 = vst.msk [vmem:[%s200 + $0xe0] sm:$0xf] %vm1172, %v1100
        %1230 = vst.msk [vmem:[%s200 + $0xe4] sm:$0xf] %vm1172, %v1101
        %1231 = vst.msk [vmem:[%s200 + $0xe8] sm:$0xf] %vm1172, %v1102
        %1232 = vst.msk [vmem:[%s200 + $0xec] sm:$0xf] %vm1172, %v1103
        %1233 = vst.msk [vmem:[%s200 + $0xf0] sm:$0xf] %vm1172, %v1104
        %1234 = vst.msk [vmem:[%s200 + $0xf4] sm:$0xf] %vm1172, %v1105
        %1235 = vst.msk [vmem:[%s200 + $0xf8] sm:$0xf] %vm1172, %v1106
        %1236 = vst.msk [vmem:[%s200 + $0xfc] sm:$0xf] %vm1172, %v1107
        %s1237 = sand.u32 %s92, 1
        %s1238 = sand.u32 %s92, 1
        %s1239 = smul.addr %s1238, 256
        %s1240 = scalar_lea.vmem [#allocation6], %s1239
        // Predicated region
        $region41: #{dcnn_forward.5} parent=31 // pred_check
          %p1241 = pneg %p102
        $region42: #{dcnn_forward.5} parent=31 // pred_check_branch
          %1243 = sbr.rel (%p1241) target = $region44
        $region43: #{dcnn_forward.5} parent=31 // pred_region
          %s1244 = smul.u32 64, %s16
          %s1245 = ssub.s32 169, %s1244
          %p1246 = scmp.lt.s32.totalorder %s1245, 64
          %s1247 = scalar_select %p1246, %s1245, 64
          %s1248 = smul.u32 64, %s1247
          %p1249 = scmp.ne.s32.totalorder 0, %s1248
          %s1250 = smul.addr %s1244, 4
          %s1251 = scalar_lea.vmem %s3, %s1250
          // Predicated region
          $region45: #{dcnn_forward.5} parent=43 // pred_check
            %p1252 = pneg %p1249
          $region46: #{dcnn_forward.5} parent=43 // pred_check_branch
            %1254 = sbr.rel (%p1252) target = $region48
          $region47: #{dcnn_forward.5} parent=43 // pred_region
            // Predicated region
            $region49: #{dcnn_forward.5} parent=47 // pred_check
              _
            $region50: #{dcnn_forward.5} parent=47 // pred_check_branch
              %1256 = sbr.rel target = $region52
            $region51: #{dcnn_forward.5} parent=47 // pred_region
              // Predicated region
              $region71: #{dcnn_forward.5} parent=51 // pred_check
                _
              $region72: #{dcnn_forward.5} parent=51 // pred_check_branch
                %1431 = sbr.rel (0) target = $region74
              $region73: #{dcnn_forward.5} parent=51 // pred_region
                %s1433 = sshrl.u32 %s1247, 6
                // While loop
                $region75: #{dcnn_forward.5} parent=73 // loop_pre_header
                  _
                $region76: #{dcnn_forward.5} parent=73 // loop_header
                  %s1435 = sphi 0, %s1437
                  %p1436 = scmp.ge.s32.totalorder %s1435, %s1433
                  %s1440 = sphi 0, %s1573
                  %s1441 = sphi %s1240, %s1576
                  %s1442 = sphi %s1251, %s1577
                $region77: #{dcnn_forward.5} parent=73 // loop_header_branch
                  %1439 = sbr.rel (%p1436) target = $region81
                $region78: #{dcnn_forward.5} parent=73 // loop_body
                  %v1443 = vld [vmem:[%s1441] sm:$0xf]
                  %1444 = vst [vmem:[%s1442] sm:$0xf] %v1443
                  %v1445 = vld [vmem:[%s1441 + $0x4] sm:$0xf]
                  %1446 = vst [vmem:[%s1442 + $0x4] sm:$0xf] %v1445
                  %v1447 = vld [vmem:[%s1441 + $0x8] sm:$0xf]
                  %1448 = vst [vmem:[%s1442 + $0x8] sm:$0xf] %v1447
                  %v1449 = vld [vmem:[%s1441 + $0xc] sm:$0xf]
                  %1450 = vst [vmem:[%s1442 + $0xc] sm:$0xf] %v1449
                  %v1451 = vld [vmem:[%s1441 + $0x10] sm:$0xf]
                  %1452 = vst [vmem:[%s1442 + $0x10] sm:$0xf] %v1451
                  %v1453 = vld [vmem:[%s1441 + $0x14] sm:$0xf]
                  %1454 = vst [vmem:[%s1442 + $0x14] sm:$0xf] %v1453
                  %v1455 = vld [vmem:[%s1441 + $0x18] sm:$0xf]
                  %1456 = vst [vmem:[%s1442 + $0x18] sm:$0xf] %v1455
                  %v1457 = vld [vmem:[%s1441 + $0x1c] sm:$0xf]
                  %1458 = vst [vmem:[%s1442 + $0x1c] sm:$0xf] %v1457
                  %v1459 = vld [vmem:[%s1441 + $0x20] sm:$0xf]
                  %1460 = vst [vmem:[%s1442 + $0x20] sm:$0xf] %v1459
                  %v1461 = vld [vmem:[%s1441 + $0x24] sm:$0xf]
                  %1462 = vst [vmem:[%s1442 + $0x24] sm:$0xf] %v1461
                  %v1463 = vld [vmem:[%s1441 + $0x28] sm:$0xf]
                  %1464 = vst [vmem:[%s1442 + $0x28] sm:$0xf] %v1463
                  %v1465 = vld [vmem:[%s1441 + $0x2c] sm:$0xf]
                  %1466 = vst [vmem:[%s1442 + $0x2c] sm:$0xf] %v1465
                  %v1467 = vld [vmem:[%s1441 + $0x30] sm:$0xf]
                  %1468 = vst [vmem:[%s1442 + $0x30] sm:$0xf] %v1467
                  %v1469 = vld [vmem:[%s1441 + $0x34] sm:$0xf]
                  %1470 = vst [vmem:[%s1442 + $0x34] sm:$0xf] %v1469
                  %v1471 = vld [vmem:[%s1441 + $0x38] sm:$0xf]
                  %1472 = vst [vmem:[%s1442 + $0x38] sm:$0xf] %v1471
                  %v1473 = vld [vmem:[%s1441 + $0x3c] sm:$0xf]
                  %1474 = vst [vmem:[%s1442 + $0x3c] sm:$0xf] %v1473
                  %v1475 = vld [vmem:[%s1441 + $0x40] sm:$0xf]
                  %1476 = vst [vmem:[%s1442 + $0x40] sm:$0xf] %v1475
                  %v1477 = vld [vmem:[%s1441 + $0x44] sm:$0xf]
                  %1478 = vst [vmem:[%s1442 + $0x44] sm:$0xf] %v1477
                  %v1479 = vld [vmem:[%s1441 + $0x48] sm:$0xf]
                  %1480 = vst [vmem:[%s1442 + $0x48] sm:$0xf] %v1479
                  %v1481 = vld [vmem:[%s1441 + $0x4c] sm:$0xf]
                  %1482 = vst [vmem:[%s1442 + $0x4c] sm:$0xf] %v1481
                  %v1483 = vld [vmem:[%s1441 + $0x50] sm:$0xf]
                  %1484 = vst [vmem:[%s1442 + $0x50] sm:$0xf] %v1483
                  %v1485 = vld [vmem:[%s1441 + $0x54] sm:$0xf]
                  %1486 = vst [vmem:[%s1442 + $0x54] sm:$0xf] %v1485
                  %v1487 = vld [vmem:[%s1441 + $0x58] sm:$0xf]
                  %1488 = vst [vmem:[%s1442 + $0x58] sm:$0xf] %v1487
                  %v1489 = vld [vmem:[%s1441 + $0x5c] sm:$0xf]
                  %1490 = vst [vmem:[%s1442 + $0x5c] sm:$0xf] %v1489
                  %v1491 = vld [vmem:[%s1441 + $0x60] sm:$0xf]
                  %1492 = vst [vmem:[%s1442 + $0x60] sm:$0xf] %v1491
                  %v1493 = vld [vmem:[%s1441 + $0x64] sm:$0xf]
                  %1494 = vst [vmem:[%s1442 + $0x64] sm:$0xf] %v1493
                  %v1495 = vld [vmem:[%s1441 + $0x68] sm:$0xf]
                  %1496 = vst [vmem:[%s1442 + $0x68] sm:$0xf] %v1495
                  %v1497 = vld [vmem:[%s1441 + $0x6c] sm:$0xf]
                  %1498 = vst [vmem:[%s1442 + $0x6c] sm:$0xf] %v1497
                  %v1499 = vld [vmem:[%s1441 + $0x70] sm:$0xf]
                  %1500 = vst [vmem:[%s1442 + $0x70] sm:$0xf] %v1499
                  %v1501 = vld [vmem:[%s1441 + $0x74] sm:$0xf]
                  %1502 = vst [vmem:[%s1442 + $0x74] sm:$0xf] %v1501
                  %v1503 = vld [vmem:[%s1441 + $0x78] sm:$0xf]
                  %1504 = vst [vmem:[%s1442 + $0x78] sm:$0xf] %v1503
                  %v1505 = vld [vmem:[%s1441 + $0x7c] sm:$0xf]
                  %1506 = vst [vmem:[%s1442 + $0x7c] sm:$0xf] %v1505
                  %v1507 = vld [vmem:[%s1441 + $0x80] sm:$0xf]
                  %1508 = vst [vmem:[%s1442 + $0x80] sm:$0xf] %v1507
                  %v1509 = vld [vmem:[%s1441 + $0x84] sm:$0xf]
                  %1510 = vst [vmem:[%s1442 + $0x84] sm:$0xf] %v1509
                  %v1511 = vld [vmem:[%s1441 + $0x88] sm:$0xf]
                  %1512 = vst [vmem:[%s1442 + $0x88] sm:$0xf] %v1511
                  %v1513 = vld [vmem:[%s1441 + $0x8c] sm:$0xf]
                  %1514 = vst [vmem:[%s1442 + $0x8c] sm:$0xf] %v1513
                  %v1515 = vld [vmem:[%s1441 + $0x90] sm:$0xf]
                  %1516 = vst [vmem:[%s1442 + $0x90] sm:$0xf] %v1515
                  %v1517 = vld [vmem:[%s1441 + $0x94] sm:$0xf]
                  %1518 = vst [vmem:[%s1442 + $0x94] sm:$0xf] %v1517
                  %v1519 = vld [vmem:[%s1441 + $0x98] sm:$0xf]
                  %1520 = vst [vmem:[%s1442 + $0x98] sm:$0xf] %v1519
                  %v1521 = vld [vmem:[%s1441 + $0x9c] sm:$0xf]
                  %1522 = vst [vmem:[%s1442 + $0x9c] sm:$0xf] %v1521
                  %v1523 = vld [vmem:[%s1441 + $0xa0] sm:$0xf]
                  %1524 = vst [vmem:[%s1442 + $0xa0] sm:$0xf] %v1523
                  %v1525 = vld [vmem:[%s1441 + $0xa4] sm:$0xf]
                  %1526 = vst [vmem:[%s1442 + $0xa4] sm:$0xf] %v1525
                  %v1527 = vld [vmem:[%s1441 + $0xa8] sm:$0xf]
                  %1528 = vst [vmem:[%s1442 + $0xa8] sm:$0xf] %v1527
                  %v1529 = vld [vmem:[%s1441 + $0xac] sm:$0xf]
                  %1530 = vst [vmem:[%s1442 + $0xac] sm:$0xf] %v1529
                  %v1531 = vld [vmem:[%s1441 + $0xb0] sm:$0xf]
                  %1532 = vst [vmem:[%s1442 + $0xb0] sm:$0xf] %v1531
                  %v1533 = vld [vmem:[%s1441 + $0xb4] sm:$0xf]
                  %1534 = vst [vmem:[%s1442 + $0xb4] sm:$0xf] %v1533
                  %v1535 = vld [vmem:[%s1441 + $0xb8] sm:$0xf]
                  %1536 = vst [vmem:[%s1442 + $0xb8] sm:$0xf] %v1535
                  %v1537 = vld [vmem:[%s1441 + $0xbc] sm:$0xf]
                  %1538 = vst [vmem:[%s1442 + $0xbc] sm:$0xf] %v1537
                  %v1539 = vld [vmem:[%s1441 + $0xc0] sm:$0xf]
                  %1540 = vst [vmem:[%s1442 + $0xc0] sm:$0xf] %v1539
                  %v1541 = vld [vmem:[%s1441 + $0xc4] sm:$0xf]
                  %1542 = vst [vmem:[%s1442 + $0xc4] sm:$0xf] %v1541
                  %v1543 = vld [vmem:[%s1441 + $0xc8] sm:$0xf]
                  %1544 = vst [vmem:[%s1442 + $0xc8] sm:$0xf] %v1543
                  %v1545 = vld [vmem:[%s1441 + $0xcc] sm:$0xf]
                  %1546 = vst [vmem:[%s1442 + $0xcc] sm:$0xf] %v1545
                  %v1547 = vld [vmem:[%s1441 + $0xd0] sm:$0xf]
                  %1548 = vst [vmem:[%s1442 + $0xd0] sm:$0xf] %v1547
                  %v1549 = vld [vmem:[%s1441 + $0xd4] sm:$0xf]
                  %1550 = vst [vmem:[%s1442 + $0xd4] sm:$0xf] %v1549
                  %v1551 = vld [vmem:[%s1441 + $0xd8] sm:$0xf]
                  %1552 = vst [vmem:[%s1442 + $0xd8] sm:$0xf] %v1551
                  %v1553 = vld [vmem:[%s1441 + $0xdc] sm:$0xf]
                  %1554 = vst [vmem:[%s1442 + $0xdc] sm:$0xf] %v1553
                  %v1555 = vld [vmem:[%s1441 + $0xe0] sm:$0xf]
                  %1556 = vst [vmem:[%s1442 + $0xe0] sm:$0xf] %v1555
                  %v1557 = vld [vmem:[%s1441 + $0xe4] sm:$0xf]
                  %1558 = vst [vmem:[%s1442 + $0xe4] sm:$0xf] %v1557
                  %v1559 = vld [vmem:[%s1441 + $0xe8] sm:$0xf]
                  %1560 = vst [vmem:[%s1442 + $0xe8] sm:$0xf] %v1559
                  %v1561 = vld [vmem:[%s1441 + $0xec] sm:$0xf]
                  %1562 = vst [vmem:[%s1442 + $0xec] sm:$0xf] %v1561
                  %v1563 = vld [vmem:[%s1441 + $0xf0] sm:$0xf]
                  %1564 = vst [vmem:[%s1442 + $0xf0] sm:$0xf] %v1563
                  %v1565 = vld [vmem:[%s1441 + $0xf4] sm:$0xf]
                  %1566 = vst [vmem:[%s1442 + $0xf4] sm:$0xf] %v1565
                  %v1567 = vld [vmem:[%s1441 + $0xf8] sm:$0xf]
                  %1568 = vst [vmem:[%s1442 + $0xf8] sm:$0xf] %v1567
                  %v1569 = vld [vmem:[%s1441 + $0xfc] sm:$0xf]
                  %1570 = vst [vmem:[%s1442 + $0xfc] sm:$0xf] %v1569
                  %s1571 = sadd.s32 1, %s1440
                  %p1572 = scmp.ge.s32.totalorder %s1571, %s1433
                  %s1573 = scalar_select %p1572, 0, %s1571
                  %s1574 = smul.u32 %s1573, 256
                  %s1575 = smul.u32 %s1573, 256
                  %s1576 = scalar_lea.vmem %s1240, %s1574 [#allocation6]
                  %s1577 = scalar_lea.vmem %s1251, %s1575
                $region79: #{dcnn_forward.5} parent=73 // loop_footer
                  %s1437 = sadd.s32 %s1435, 1
                $region80: #{dcnn_forward.5} parent=73 // loop_footer_branch
                  %1434 = sbr.rel target = $region76
                $region81: #{dcnn_forward.5} parent=73 // loop_exit
                  _
                %s1578 = sshrl.u32 %s1247, 6
                %s1579 = sand.u32 %s1247, 63
                %s1580 = smul.u32 %s1578, 64
                %s1581 = smul.u32 4, %s1580
                %s1582 = scalar_lea.vmem %s1240, %s1581 [#allocation6]
                %s1583 = smul.u32 4, %s1580
                %s1584 = scalar_lea.vmem %s1251, %s1583
                // While loop
                $region82: #{dcnn_forward.5} parent=73 // loop_pre_header
                  _
                $region83: #{dcnn_forward.5} parent=73 // loop_header
                  %s1586 = sphi 0, %s1588
                  %p1587 = scmp.ge.s32.totalorder %s1586, %s1579
                  %s1591 = sphi 0, %s1598
                  %s1592 = sphi %s1582, %s1601
                  %s1593 = sphi %s1584, %s1602
                $region84: #{dcnn_forward.5} parent=73 // loop_header_branch
                  %1590 = sbr.rel (%p1587) target = $region88
                $region85: #{dcnn_forward.5} parent=73 // loop_body
                  %v1594 = vld [vmem:[%s1592] sm:$0xf]
                  %1595 = vst [vmem:[%s1593] sm:$0xf] %v1594
                  %s1596 = sadd.s32 1, %s1591
                  %p1597 = scmp.ge.s32.totalorder %s1596, %s1579
                  %s1598 = scalar_select %p1597, 0, %s1596
                  %s1599 = smul.u32 %s1598, 4
                  %s1600 = smul.u32 %s1598, 4
                  %s1601 = scalar_lea.vmem %s1582, %s1599 [#allocation6]
                  %s1602 = scalar_lea.vmem %s1584, %s1600
                $region86: #{dcnn_forward.5} parent=73 // loop_footer
                  %s1588 = sadd.s32 %s1586, 1
                $region87: #{dcnn_forward.5} parent=73 // loop_footer_branch
                  %1585 = sbr.rel target = $region83
                $region88: #{dcnn_forward.5} parent=73 // loop_exit
                  _
              $region74: #{dcnn_forward.5} parent=51 // pred_fallthru
                _
            $region52: #{dcnn_forward.5} parent=47 // pred_fallthru
              _
            // Predicated region
            $region53: #{dcnn_forward.5} parent=47 // pred_check
              _
            $region54: #{dcnn_forward.5} parent=47 // pred_check_branch
              %1258 = sbr.rel (0) target = $region56
            $region55: #{dcnn_forward.5} parent=47 // pred_region
              %s1260 = sshrl.u32 %s1247, 6
              // While loop
              $region57: #{dcnn_forward.5} parent=55 // loop_pre_header
                _
              $region58: #{dcnn_forward.5} parent=55 // loop_header
                %s1262 = sphi 0, %s1264
                %p1263 = scmp.ge.s32.totalorder %s1262, %s1260
                %s1267 = sphi 0, %s1400
                %s1268 = sphi %s1240, %s1403
                %s1269 = sphi %s1251, %s1404
              $region59: #{dcnn_forward.5} parent=55 // loop_header_branch
                %1266 = sbr.rel (%p1263) target = $region63
              $region60: #{dcnn_forward.5} parent=55 // loop_body
                %v1270 = vld [vmem:[%s1268] sm:$0xf]
                %1271 = vst [vmem:[%s1269] sm:$0xf] %v1270
                %v1272 = vld [vmem:[%s1268 + $0x4] sm:$0xf]
                %1273 = vst [vmem:[%s1269 + $0x4] sm:$0xf] %v1272
                %v1274 = vld [vmem:[%s1268 + $0x8] sm:$0xf]
                %1275 = vst [vmem:[%s1269 + $0x8] sm:$0xf] %v1274
                %v1276 = vld [vmem:[%s1268 + $0xc] sm:$0xf]
                %1277 = vst [vmem:[%s1269 + $0xc] sm:$0xf] %v1276
                %v1278 = vld [vmem:[%s1268 + $0x10] sm:$0xf]
                %1279 = vst [vmem:[%s1269 + $0x10] sm:$0xf] %v1278
                %v1280 = vld [vmem:[%s1268 + $0x14] sm:$0xf]
                %1281 = vst [vmem:[%s1269 + $0x14] sm:$0xf] %v1280
                %v1282 = vld [vmem:[%s1268 + $0x18] sm:$0xf]
                %1283 = vst [vmem:[%s1269 + $0x18] sm:$0xf] %v1282
                %v1284 = vld [vmem:[%s1268 + $0x1c] sm:$0xf]
                %1285 = vst [vmem:[%s1269 + $0x1c] sm:$0xf] %v1284
                %v1286 = vld [vmem:[%s1268 + $0x20] sm:$0xf]
                %1287 = vst [vmem:[%s1269 + $0x20] sm:$0xf] %v1286
                %v1288 = vld [vmem:[%s1268 + $0x24] sm:$0xf]
                %1289 = vst [vmem:[%s1269 + $0x24] sm:$0xf] %v1288
                %v1290 = vld [vmem:[%s1268 + $0x28] sm:$0xf]
                %1291 = vst [vmem:[%s1269 + $0x28] sm:$0xf] %v1290
                %v1292 = vld [vmem:[%s1268 + $0x2c] sm:$0xf]
                %1293 = vst [vmem:[%s1269 + $0x2c] sm:$0xf] %v1292
                %v1294 = vld [vmem:[%s1268 + $0x30] sm:$0xf]
                %1295 = vst [vmem:[%s1269 + $0x30] sm:$0xf] %v1294
                %v1296 = vld [vmem:[%s1268 + $0x34] sm:$0xf]
                %1297 = vst [vmem:[%s1269 + $0x34] sm:$0xf] %v1296
                %v1298 = vld [vmem:[%s1268 + $0x38] sm:$0xf]
                %1299 = vst [vmem:[%s1269 + $0x38] sm:$0xf] %v1298
                %v1300 = vld [vmem:[%s1268 + $0x3c] sm:$0xf]
                %1301 = vst [vmem:[%s1269 + $0x3c] sm:$0xf] %v1300
                %v1302 = vld [vmem:[%s1268 + $0x40] sm:$0xf]
                %1303 = vst [vmem:[%s1269 + $0x40] sm:$0xf] %v1302
                %v1304 = vld [vmem:[%s1268 + $0x44] sm:$0xf]
                %1305 = vst [vmem:[%s1269 + $0x44] sm:$0xf] %v1304
                %v1306 = vld [vmem:[%s1268 + $0x48] sm:$0xf]
                %1307 = vst [vmem:[%s1269 + $0x48] sm:$0xf] %v1306
                %v1308 = vld [vmem:[%s1268 + $0x4c] sm:$0xf]
                %1309 = vst [vmem:[%s1269 + $0x4c] sm:$0xf] %v1308
                %v1310 = vld [vmem:[%s1268 + $0x50] sm:$0xf]
                %1311 = vst [vmem:[%s1269 + $0x50] sm:$0xf] %v1310
                %v1312 = vld [vmem:[%s1268 + $0x54] sm:$0xf]
                %1313 = vst [vmem:[%s1269 + $0x54] sm:$0xf] %v1312
                %v1314 = vld [vmem:[%s1268 + $0x58] sm:$0xf]
                %1315 = vst [vmem:[%s1269 + $0x58] sm:$0xf] %v1314
                %v1316 = vld [vmem:[%s1268 + $0x5c] sm:$0xf]
                %1317 = vst [vmem:[%s1269 + $0x5c] sm:$0xf] %v1316
                %v1318 = vld [vmem:[%s1268 + $0x60] sm:$0xf]
                %1319 = vst [vmem:[%s1269 + $0x60] sm:$0xf] %v1318
                %v1320 = vld [vmem:[%s1268 + $0x64] sm:$0xf]
                %1321 = vst [vmem:[%s1269 + $0x64] sm:$0xf] %v1320
                %v1322 = vld [vmem:[%s1268 + $0x68] sm:$0xf]
                %1323 = vst [vmem:[%s1269 + $0x68] sm:$0xf] %v1322
                %v1324 = vld [vmem:[%s1268 + $0x6c] sm:$0xf]
                %1325 = vst [vmem:[%s1269 + $0x6c] sm:$0xf] %v1324
                %v1326 = vld [vmem:[%s1268 + $0x70] sm:$0xf]
                %1327 = vst [vmem:[%s1269 + $0x70] sm:$0xf] %v1326
                %v1328 = vld [vmem:[%s1268 + $0x74] sm:$0xf]
                %1329 = vst [vmem:[%s1269 + $0x74] sm:$0xf] %v1328
                %v1330 = vld [vmem:[%s1268 + $0x78] sm:$0xf]
                %1331 = vst [vmem:[%s1269 + $0x78] sm:$0xf] %v1330
                %v1332 = vld [vmem:[%s1268 + $0x7c] sm:$0xf]
                %1333 = vst [vmem:[%s1269 + $0x7c] sm:$0xf] %v1332
                %v1334 = vld [vmem:[%s1268 + $0x80] sm:$0xf]
                %1335 = vst [vmem:[%s1269 + $0x80] sm:$0xf] %v1334
                %v1336 = vld [vmem:[%s1268 + $0x84] sm:$0xf]
                %1337 = vst [vmem:[%s1269 + $0x84] sm:$0xf] %v1336
                %v1338 = vld [vmem:[%s1268 + $0x88] sm:$0xf]
                %1339 = vst [vmem:[%s1269 + $0x88] sm:$0xf] %v1338
                %v1340 = vld [vmem:[%s1268 + $0x8c] sm:$0xf]
                %1341 = vst [vmem:[%s1269 + $0x8c] sm:$0xf] %v1340
                %v1342 = vld [vmem:[%s1268 + $0x90] sm:$0xf]
                %1343 = vst [vmem:[%s1269 + $0x90] sm:$0xf] %v1342
                %v1344 = vld [vmem:[%s1268 + $0x94] sm:$0xf]
                %1345 = vst [vmem:[%s1269 + $0x94] sm:$0xf] %v1344
                %v1346 = vld [vmem:[%s1268 + $0x98] sm:$0xf]
                %1347 = vst [vmem:[%s1269 + $0x98] sm:$0xf] %v1346
                %v1348 = vld [vmem:[%s1268 + $0x9c] sm:$0xf]
                %1349 = vst [vmem:[%s1269 + $0x9c] sm:$0xf] %v1348
                %v1350 = vld [vmem:[%s1268 + $0xa0] sm:$0xf]
                %1351 = vst [vmem:[%s1269 + $0xa0] sm:$0xf] %v1350
                %v1352 = vld [vmem:[%s1268 + $0xa4] sm:$0xf]
                %1353 = vst [vmem:[%s1269 + $0xa4] sm:$0xf] %v1352
                %v1354 = vld [vmem:[%s1268 + $0xa8] sm:$0xf]
                %1355 = vst [vmem:[%s1269 + $0xa8] sm:$0xf] %v1354
                %v1356 = vld [vmem:[%s1268 + $0xac] sm:$0xf]
                %1357 = vst [vmem:[%s1269 + $0xac] sm:$0xf] %v1356
                %v1358 = vld [vmem:[%s1268 + $0xb0] sm:$0xf]
                %1359 = vst [vmem:[%s1269 + $0xb0] sm:$0xf] %v1358
                %v1360 = vld [vmem:[%s1268 + $0xb4] sm:$0xf]
                %1361 = vst [vmem:[%s1269 + $0xb4] sm:$0xf] %v1360
                %v1362 = vld [vmem:[%s1268 + $0xb8] sm:$0xf]
                %1363 = vst [vmem:[%s1269 + $0xb8] sm:$0xf] %v1362
                %v1364 = vld [vmem:[%s1268 + $0xbc] sm:$0xf]
                %1365 = vst [vmem:[%s1269 + $0xbc] sm:$0xf] %v1364
                %v1366 = vld [vmem:[%s1268 + $0xc0] sm:$0xf]
                %1367 = vst [vmem:[%s1269 + $0xc0] sm:$0xf] %v1366
                %v1368 = vld [vmem:[%s1268 + $0xc4] sm:$0xf]
                %1369 = vst [vmem:[%s1269 + $0xc4] sm:$0xf] %v1368
                %v1370 = vld [vmem:[%s1268 + $0xc8] sm:$0xf]
                %1371 = vst [vmem:[%s1269 + $0xc8] sm:$0xf] %v1370
                %v1372 = vld [vmem:[%s1268 + $0xcc] sm:$0xf]
                %1373 = vst [vmem:[%s1269 + $0xcc] sm:$0xf] %v1372
                %v1374 = vld [vmem:[%s1268 + $0xd0] sm:$0xf]
                %1375 = vst [vmem:[%s1269 + $0xd0] sm:$0xf] %v1374
                %v1376 = vld [vmem:[%s1268 + $0xd4] sm:$0xf]
                %1377 = vst [vmem:[%s1269 + $0xd4] sm:$0xf] %v1376
                %v1378 = vld [vmem:[%s1268 + $0xd8] sm:$0xf]
                %1379 = vst [vmem:[%s1269 + $0xd8] sm:$0xf] %v1378
                %v1380 = vld [vmem:[%s1268 + $0xdc] sm:$0xf]
                %1381 = vst [vmem:[%s1269 + $0xdc] sm:$0xf] %v1380
                %v1382 = vld [vmem:[%s1268 + $0xe0] sm:$0xf]
                %1383 = vst [vmem:[%s1269 + $0xe0] sm:$0xf] %v1382
                %v1384 = vld [vmem:[%s1268 + $0xe4] sm:$0xf]
                %1385 = vst [vmem:[%s1269 + $0xe4] sm:$0xf] %v1384
                %v1386 = vld [vmem:[%s1268 + $0xe8] sm:$0xf]
                %1387 = vst [vmem:[%s1269 + $0xe8] sm:$0xf] %v1386
                %v1388 = vld [vmem:[%s1268 + $0xec] sm:$0xf]
                %1389 = vst [vmem:[%s1269 + $0xec] sm:$0xf] %v1388
                %v1390 = vld [vmem:[%s1268 + $0xf0] sm:$0xf]
                %1391 = vst [vmem:[%s1269 + $0xf0] sm:$0xf] %v1390
                %v1392 = vld [vmem:[%s1268 + $0xf4] sm:$0xf]
                %1393 = vst [vmem:[%s1269 + $0xf4] sm:$0xf] %v1392
                %v1394 = vld [vmem:[%s1268 + $0xf8] sm:$0xf]
                %1395 = vst [vmem:[%s1269 + $0xf8] sm:$0xf] %v1394
                %v1396 = vld [vmem:[%s1268 + $0xfc] sm:$0xf]
                %1397 = vst [vmem:[%s1269 + $0xfc] sm:$0xf] %v1396
                %s1398 = sadd.s32 1, %s1267
                %p1399 = scmp.ge.s32.totalorder %s1398, %s1260
                %s1400 = scalar_select %p1399, 0, %s1398
                %s1401 = smul.u32 %s1400, 256
                %s1402 = smul.u32 %s1400, 256
                %s1403 = scalar_lea.vmem %s1240, %s1401 [#allocation6]
                %s1404 = scalar_lea.vmem %s1251, %s1402
              $region61: #{dcnn_forward.5} parent=55 // loop_footer
                %s1264 = sadd.s32 %s1262, 1
              $region62: #{dcnn_forward.5} parent=55 // loop_footer_branch
                %1261 = sbr.rel target = $region58
              $region63: #{dcnn_forward.5} parent=55 // loop_exit
                _
              %s1405 = sshrl.u32 %s1247, 6
              %s1406 = sand.u32 %s1247, 63
              %s1407 = smul.u32 %s1405, 64
              %s1408 = smul.u32 4, %s1407
              %s1409 = scalar_lea.vmem %s1240, %s1408 [#allocation6]
              %s1410 = smul.u32 4, %s1407
              %s1411 = scalar_lea.vmem %s1251, %s1410
              // While loop
              $region64: #{dcnn_forward.5} parent=55 // loop_pre_header
                _
              $region65: #{dcnn_forward.5} parent=55 // loop_header
                %s1413 = sphi 0, %s1415
                %p1414 = scmp.ge.s32.totalorder %s1413, %s1406
                %s1418 = sphi 0, %s1425
                %s1419 = sphi %s1409, %s1428
                %s1420 = sphi %s1411, %s1429
              $region66: #{dcnn_forward.5} parent=55 // loop_header_branch
                %1417 = sbr.rel (%p1414) target = $region70
              $region67: #{dcnn_forward.5} parent=55 // loop_body
                %v1421 = vld [vmem:[%s1419] sm:$0xf]
                %1422 = vst [vmem:[%s1420] sm:$0xf] %v1421
                %s1423 = sadd.s32 1, %s1418
                %p1424 = scmp.ge.s32.totalorder %s1423, %s1406
                %s1425 = scalar_select %p1424, 0, %s1423
                %s1426 = smul.u32 %s1425, 4
                %s1427 = smul.u32 %s1425, 4
                %s1428 = scalar_lea.vmem %s1409, %s1426 [#allocation6]
                %s1429 = scalar_lea.vmem %s1411, %s1427
              $region68: #{dcnn_forward.5} parent=55 // loop_footer
                %s1415 = sadd.s32 %s1413, 1
              $region69: #{dcnn_forward.5} parent=55 // loop_footer_branch
                %1412 = sbr.rel target = $region65
              $region70: #{dcnn_forward.5} parent=55 // loop_exit
                _
            $region56: #{dcnn_forward.5} parent=47 // pred_fallthru
              _
          $region48: #{dcnn_forward.5} parent=43 // pred_fallthru
            _
          %1603 = vnop
        $region44: #{dcnn_forward.5} parent=31 // pred_fallthru
          _
      $region32: #{dcnn_forward.5} parent=5 // pred_fallthru
        _
      %p1604 = scmp.le.s32.totalorder 2, %s11
      // Predicated region
      $region89: #{dcnn_forward.5} parent=5 // pred_check
        %p1605 = pneg %p1604
      $region90: #{dcnn_forward.5} parent=5 // pred_check_branch
        %1607 = sbr.rel (%p1605) target = $region92
      $region91: #{dcnn_forward.5} parent=5 // pred_region
        %s1608 = ssub.s32 %s11, 2
        // Predicated region
        $region93: #{dcnn_forward.5} parent=91 // pred_check
          %p1609 = pneg %p108
        $region94: #{dcnn_forward.5} parent=91 // pred_check_branch
          %1611 = sbr.rel (%p1609) target = $region96
        $region95: #{dcnn_forward.5} parent=91 // pred_region
          %s1612 = sand.u32 %s93, 1
          %s1613 = sand.u32 %s93, 1
          %s1614 = smul.addr %s1613, 256
          %s1615 = scalar_lea.vmem [#allocation6], %s1614
        $region96: #{dcnn_forward.5} parent=91 // pred_fallthru
          _
      $region92: #{dcnn_forward.5} parent=5 // pred_fallthru
        _
    $region6: #{dcnn_forward.5} parent=1 // loop_footer
      %s15 = sadd.s32 1, %s11
    $region7: #{dcnn_forward.5} parent=1 // loop_footer_branch
      %10 = sbr.rel target = $region3
    $region8: #{dcnn_forward.5} parent=1 // loop_exit
      _
    %1616 = vsyncpa [#allocation3], 1
    %s1617 = scalar_lea.sflag [#allocation3], 1
    %1618 = vsyncpa %s1617, 1
    %1619 = vsyncpa [#allocation5], 1

// kernel: dcnn_forward.6
$region0: #{dcnn_forward.6}
  #allocation0 [shape = 'u32[]', space=smem, size = 0x4, offset = 0x4, fixed_abs, tag = 'smem constant byte address 0x4 - core index']
  #allocation1 [shape = 'u32[144,128]{1,0:T(1,128)}', space=vmem, size = 0x12000, scoped, tag = 'internal scratch']
  %s0 = inlined_call_operand.vmem [shape: bf16[1152,144], index: 0, kind: input, shape index: {}]
  %s1 = inlined_call_operand.vmem [shape: bf16[144,32], index: 1, kind: input, shape index: {}]
  %s2 = inlined_call_operand.vmem [shape: f32[1,32], index: 2, kind: input, shape index: {}]
  %s3 = inlined_call_operand.vmem [shape: bf16[1152,32], index: 3, kind: output, shape index: {}]
  %s4 = sld [smem:[#allocation0]]
  $region89: #{dcnn_forward.6} parent=0
    _
  %s6 = ssub.s32 1, %s4
  %s7 = scalar_select 0, %s6, %s4
  $region1: #{dcnn_forward.6} parent=0
    #allocation2 [shape = 'u8[262144]{0}', space=vmem, size = 0x40000, scoped, tag = 'output window, operand 0']
    loop: start=0, step=1, limit=5
    $region2: #{dcnn_forward.6} parent=1 // loop_pre_header
      _
    $region3: #{dcnn_forward.6} parent=1 // loop_header
      %s9 = sphi 0, %s13
      %p10 = scmp.ge.s32.totalorder %s9, 5
      %s19 = sphi 0, %s21
      %s22 = sphi 0, %s19
      %s23 = sphi 0, %s22
      %s39 = sphi 0, %s23
      %s43 = sphi 0, %s43
      %s45 = sphi 0, %s43
      %s46 = sphi 0, %s45
      %s60 = sphi 0, %s46
      %s64 = sphi 0, %s64
      %s66 = sphi 0, %s64
      %s67 = sphi 0, %s66
      %s81 = sphi 0, %s67
      %s87 = sphi 0, %s89
      %s90 = sphi 0, %s87
      %s91 = sphi 0, %s90
      %s107 = sphi 0, %s91
    $region4: #{dcnn_forward.6} parent=1 // loop_header_branch
      %12 = sbr.rel (%p10) target = $region8
    $region5: #{dcnn_forward.6} parent=1 // loop_body
      %s14 = ssub.s32 %s9, 1
      %s15 = ssub.s32 %s9, 2
      %s16 = sadd.s32 %s9, 1
      %s17 = ssub.s32 %s9, %s16
      %p18 = scmp.eq.s32.totalorder %s17, 0
      %s20 = sadd.s32 %s19, 1
      %s21 = scalar_select %p18, %s19, %s20
      %p24 = pneg %p18
      %p25 = scmp.eq.s32.totalorder %s9, 2
      %p26 = por %p24, %p25
      %p27 = scmp.ne.s32.totalorder %s19, %s22
      %p28 = scmp.eq.s32.totalorder %s9, 0
      %p29 = por %p27, %p28
      %p30 = scmp.ne.s32.totalorder %s19, %s22
      %p31 = scmp.eq.s32.totalorder %s14, 2
      %p32 = por %p30, %p31
      %p33 = scmp.ne.s32.totalorder %s22, %s23
      %p34 = scmp.eq.s32.totalorder %s14, 0
      %p35 = por %p33, %p34
      %p36 = scmp.ne.s32.totalorder %s22, %s23
      %p37 = scmp.eq.s32.totalorder %s15, 2
      %p38 = por %p36, %p37
      %p40 = scmp.ne.s32.totalorder %s23, %s39
      %p41 = scmp.eq.s32.totalorder %s15, 0
      %p42 = por %p40, %p41
      %s44 = sadd.s32 %s43, 1
      %p47 = scmp.eq.s32.totalorder %s9, 2
      %p48 = scmp.ne.s32.totalorder %s43, %s45
      %p49 = scmp.eq.s32.totalorder %s9, 0
      %p50 = por %p48, %p49
      %p51 = scmp.ne.s32.totalorder %s43, %s45
      %p52 = scmp.eq.s32.totalorder %s14, 2
      %p53 = por %p51, %p52
      %p54 = scmp.ne.s32.totalorder %s45, %s46
      %p55 = scmp.eq.s32.totalorder %s14, 0
      %p56 = por %p54, %p55
      %p57 = scmp.ne.s32.totalorder %s45, %s46
      %p58 = scmp.eq.s32.totalorder %s15, 2
      %p59 = por %p57, %p58
      %p61 = scmp.ne.s32.totalorder %s46, %s60
      %p62 = scmp.eq.s32.totalorder %s15, 0
      %p63 = por %p61, %p62
      %s65 = sadd.s32 %s64, 1
      %p68 = scmp.eq.s32.totalorder %s9, 2
      %p69 = scmp.ne.s32.totalorder %s64, %s66
      %p70 = scmp.eq.s32.totalorder %s9, 0
      %p71 = por %p69, %p70
      %p72 = scmp.ne.s32.totalorder %s64, %s66
      %p73 = scmp.eq.s32.totalorder %s14, 2
      %p74 = por %p72, %p73
      %p75 = scmp.ne.s32.totalorder %s66, %s67
      %p76 = scmp.eq.s32.totalorder %s14, 0
      %p77 = por %p75, %p76
      %p78 = scmp.ne.s32.totalorder %s66, %s67
      %p79 = scmp.eq.s32.totalorder %s15, 2
      %p80 = por %p78, %p79
      %p82 = scmp.ne.s32.totalorder %s67, %s81
      %p83 = scmp.eq.s32.totalorder %s15, 0
      %p84 = por %p82, %p83
      %s85 = ssub.s32 %s9, %s16
      %p86 = scmp.eq.s32.totalorder %s85, 0
      %s88 = sadd.s32 %s87, 1
      %s89 = scalar_select %p86, %s87, %s88
      %p92 = pneg %p86
      %p93 = scmp.eq.s32.totalorder %s9, 2
      %p94 = por %p92, %p93
      %p95 = scmp.ne.s32.totalorder %s87, %s90
      %p96 = scmp.eq.s32.totalorder %s9, 0
      %p97 = por %p95, %p96
      %p98 = scmp.ne.s32.totalorder %s87, %s90
      %p99 = scmp.eq.s32.totalorder %s14, 2
      %p100 = por %p98, %p99
      %p101 = scmp.ne.s32.totalorder %s90, %s91
      %p102 = scmp.eq.s32.totalorder %s14, 0
      %p103 = por %p101, %p102
      %p104 = scmp.ne.s32.totalorder %s90, %s91
      %p105 = scmp.eq.s32.totalorder %s15, 2
      %p106 = por %p104, %p105
      %p108 = scmp.ne.s32.totalorder %s91, %s107
      %p109 = scmp.eq.s32.totalorder %s15, 0
      %p110 = por %p108, %p109
      %p111 = scmp.le.s32.totalorder 1, %s9
      %p112 = scmp.lt.s32.totalorder %s9, 4
      %p113 = pnand %p111, %p112
      %p114 = pneg %p113
      // Predicated region
      $region9: #{dcnn_forward.6} parent=5 // pred_check
        _
      $region10: #{dcnn_forward.6} parent=5 // pred_check_branch
        %116 = sbr.rel (%p113) target = $region12
      $region11: #{dcnn_forward.6} parent=5 // pred_region
        %s117 = ssub.s32 %s9, 1
        // Predicated region
        $region13: #{dcnn_forward.6} parent=11 // pred_check
          %p118 = pneg %p56
        $region14: #{dcnn_forward.6} parent=11 // pred_check_branch
          %120 = sbr.rel (%p118) target = $region16
        $region15: #{dcnn_forward.6} parent=11 // pred_region
          _
        $region16: #{dcnn_forward.6} parent=11 // pred_fallthru
          _
        // Predicated region
        $region17: #{dcnn_forward.6} parent=11 // pred_check
          %p121 = pneg %p77
        $region18: #{dcnn_forward.6} parent=11 // pred_check_branch
          %123 = sbr.rel (%p121) target = $region20
        $region19: #{dcnn_forward.6} parent=11 // pred_region
          _
        $region20: #{dcnn_forward.6} parent=11 // pred_fallthru
          _
      $region12: #{dcnn_forward.6} parent=5 // pred_fallthru
        _
      %p124 = scmp.lt.s32.totalorder %s9, 3
      // Predicated region
      $region21: #{dcnn_forward.6} parent=5 // pred_check
        %p125 = pneg %p124
      $region22: #{dcnn_forward.6} parent=5 // pred_check_branch
        %127 = sbr.rel (%p125) target = $region24
      $region23: #{dcnn_forward.6} parent=5 // pred_region
        // Predicated region
        $region25: #{dcnn_forward.6} parent=23 // pred_check
          %p128 = pneg %p29
        $region26: #{dcnn_forward.6} parent=23 // pred_check_branch
          %130 = sbr.rel (%p128) target = $region28
        $region27: #{dcnn_forward.6} parent=23 // pred_region
          %s131 = smul.u32 64, %s9
          %s132 = ssub.s32 144, %s131
          %p133 = scmp.lt.s32.totalorder %s132, 64
          %s134 = scalar_select %p133, %s132, 64
          %s135 = smul.u32 64, %s134
          %s136 = smul.u32 %s135, 2
          %p137 = scmp.lt.s32.totalorder %s131, 143
          %s138 = scalar_select %p137, %s131, 143
          %s139 = smul.addr %s138, 2
          %s140 = smul.addr %s139, 4
          %s141 = scalar_lea.vmem %s0, %s140
          %s142 = smul.u32 64, %s9
          %s143 = ssub.s32 144, %s142
          %p144 = scmp.lt.s32.totalorder %s143, 64
          %s145 = scalar_select %p144, %s143, 64
          %s146 = smul.u32 64, %s145
          %s147 = smul.u32 %s146, 2
        $region28: #{dcnn_forward.6} parent=23 // pred_fallthru
          _
      $region24: #{dcnn_forward.6} parent=5 // pred_fallthru
        _
      %p148 = scmp.le.s32.totalorder 1, %s9
      %p149 = scmp.lt.s32.totalorder %s9, 4
      %p150 = pnand %p148, %p149
      %p151 = pneg %p150
      // Predicated region
      $region29: #{dcnn_forward.6} parent=5 // pred_check
        _
      $region30: #{dcnn_forward.6} parent=5 // pred_check_branch
        %153 = sbr.rel (%p150) target = $region32
      $region31: #{dcnn_forward.6} parent=5 // pred_region
        %s154 = ssub.s32 %s9, 1
        %s155 = smul.u32 64, %s14
        %s156 = ssub.s32 144, %s155
        %p157 = scmp.lt.s32.totalorder %s156, 64
        %s158 = scalar_select %p157, %s156, 64
        %s159 = smul.u32 64, %s158
        %s160 = smul.u32 %s159, 2
        %p161 = scmp.lt.s32.totalorder %s155, 143
        %s162 = scalar_select %p161, %s155, 143
        %s163 = smul.addr %s162, 2
        %s164 = smul.addr %s163, 4
        %s165 = scalar_lea.vmem %s0, %s164
        %p166 = pneg %p35
        %p167 = pneg %p32
        %p168 = pneg %p56
        %p169 = pneg %p53
        %p170 = pneg %p77
        %p171 = pneg %p74
        %p172 = pneg %p103
        %p173 = pneg %p100
        %s174 = sand.u32 %s90, 1
        %s175 = sand.u32 %s90, 1
        %s176 = smul.addr %s175, 256
        %s177 = scalar_lea.vmem [#allocation2], %s176
        %s178 = smul.u32 64, %s14
        %s179 = ssub.s32 144, %s178
        %p180 = scmp.lt.s32.totalorder %s179, 64
        %s181 = scalar_select %p180, %s179, 64
        %s182 = smul.u32 64, %s181
        %s183 = smul.u32 %s182, 2
        %p184 = scmp.lt.s32.totalorder %s178, 143
        %s185 = scalar_select %p184, %s178, 143
        %s186 = smul.addr %s185, 2
        %s187 = smul.addr %s186, 4
        %s188 = scalar_lea.vmem %s0, %s187
        %s189 = smul.u32 64, %s14
        %s190 = ssub.s32 144, %s189
        %p191 = scmp.lt.s32.totalorder %s190, 64
        %s192 = scalar_select %p191, %s190, 64
        %s193 = smul.u32 64, %s192
        %s194 = smul.u32 %s193, 2
        %s195 = smul.u32 64, %s14
        %s196 = ssub.s32 144, %s195
        %p197 = scmp.lt.s32.totalorder %s196, 64
        %s198 = scalar_select %p197, %s196, 64
        %s199 = smul.u32 64, %s198
        %v201 = vld [vmem:[%s188] sm:$0xff]
        %v202 = vld [vmem:[%s188 + $0x8] sm:$0xff]
        %v203 = vld [vmem:[%s188 + $0x10] sm:$0xff]
        %v204 = vld [vmem:[%s188 + $0x18] sm:$0xff]
        %v205 = vld [vmem:[%s188 + $0x20] sm:$0xff]
        %v206 = vld [vmem:[%s188 + $0x28] sm:$0xff]
        %v207 = vld [vmem:[%s188 + $0x30] sm:$0xff]
        %v208 = vld [vmem:[%s188 + $0x38] sm:$0xff]
        %v209 = vld [vmem:[%s188 + $0x40] sm:$0xff]
        %v210 = vld [vmem:[%s188 + $0x48] sm:$0xff]
        %v211 = vld [vmem:[%s188 + $0x50] sm:$0xff]
        %v212 = vld [vmem:[%s188 + $0x58] sm:$0xff]
        %v213 = vld [vmem:[%s188 + $0x60] sm:$0xff]
        %v214 = vld [vmem:[%s188 + $0x68] sm:$0xff]
        %v215 = vld [vmem:[%s188 + $0x70] sm:$0xff]
        %v216 = vld [vmem:[%s188 + $0x78] sm:$0xff]
        %v217 = vld [vmem:[%s188 + $0x80] sm:$0xff]
        %v218 = vld [vmem:[%s188 + $0x88] sm:$0xff]
        %v219 = vld [vmem:[%s188 + $0x90] sm:$0xff]
        %v220 = vld [vmem:[%s188 + $0x98] sm:$0xff]
        %v221 = vld [vmem:[%s188 + $0xa0] sm:$0xff]
        %v222 = vld [vmem:[%s188 + $0xa8] sm:$0xff]
        %v223 = vld [vmem:[%s188 + $0xb0] sm:$0xff]
        %v224 = vld [vmem:[%s188 + $0xb8] sm:$0xff]
        %v225 = vld [vmem:[%s188 + $0xc0] sm:$0xff]
        %v226 = vld [vmem:[%s188 + $0xc8] sm:$0xff]
        %v227 = vld [vmem:[%s188 + $0xd0] sm:$0xff]
        %v228 = vld [vmem:[%s188 + $0xd8] sm:$0xff]
        %v229 = vld [vmem:[%s188 + $0xe0] sm:$0xff]
        %v230 = vld [vmem:[%s188 + $0xe8] sm:$0xff]
        %v231 = vld [vmem:[%s188 + $0xf0] sm:$0xff]
        %v232 = vld [vmem:[%s188 + $0xf8] sm:$0xff]
        %v233 = vld [vmem:[%s188 + $0x100] sm:$0xff]
        %v234 = vld [vmem:[%s188 + $0x108] sm:$0xff]
        %v235 = vld [vmem:[%s188 + $0x110] sm:$0xff]
        %v236 = vld [vmem:[%s188 + $0x118] sm:$0xff]
        %v237 = vld [vmem:[%s188 + $0x120] sm:$0xff]
        %v238 = vld [vmem:[%s188 + $0x128] sm:$0xff]
        %v239 = vld [vmem:[%s188 + $0x130] sm:$0xff]
        %v240 = vld [vmem:[%s188 + $0x138] sm:$0xff]
        %v241 = vld [vmem:[%s188 + $0x140] sm:$0xff]
        %v242 = vld [vmem:[%s188 + $0x148] sm:$0xff]
        %v243 = vld [vmem:[%s188 + $0x150] sm:$0xff]
        %v244 = vld [vmem:[%s188 + $0x158] sm:$0xff]
        %v245 = vld [vmem:[%s188 + $0x160] sm:$0xff]
        %v246 = vld [vmem:[%s188 + $0x168] sm:$0xff]
        %v247 = vld [vmem:[%s188 + $0x170] sm:$0xff]
        %v248 = vld [vmem:[%s188 + $0x178] sm:$0xff]
        %v249 = vld [vmem:[%s188 + $0x180] sm:$0xff]
        %v250 = vld [vmem:[%s188 + $0x188] sm:$0xff]
        %v251 = vld [vmem:[%s188 + $0x190] sm:$0xff]
        %v252 = vld [vmem:[%s188 + $0x198] sm:$0xff]
        %v253 = vld [vmem:[%s188 + $0x1a0] sm:$0xff]
        %v254 = vld [vmem:[%s188 + $0x1a8] sm:$0xff]
        %v255 = vld [vmem:[%s188 + $0x1b0] sm:$0xff]
        %v256 = vld [vmem:[%s188 + $0x1b8] sm:$0xff]
        %v257 = vld [vmem:[%s188 + $0x1c0] sm:$0xff]
        %v258 = vld [vmem:[%s188 + $0x1c8] sm:$0xff]
        %v259 = vld [vmem:[%s188 + $0x1d0] sm:$0xff]
        %v260 = vld [vmem:[%s188 + $0x1d8] sm:$0xff]
        %v261 = vld [vmem:[%s188 + $0x1e0] sm:$0xff]
        %v262 = vld [vmem:[%s188 + $0x1e8] sm:$0xff]
        %v263 = vld [vmem:[%s188 + $0x1f0] sm:$0xff]
        %v264 = vld [vmem:[%s188 + $0x1f8] sm:$0xff]
        %v265 = vld [vmem:[%s1] sm:$0xf]
        %v266 = vld [vmem:[%s1 + $0x4] sm:$0xf]
        %v267 = vld [vmem:[%s1 + $0x8] sm:$0xf]
        %v268 = vld [vmem:[%s1 + $0xc] sm:$0xf]
        %v269 = vld [vmem:[%s1 + $0x10] sm:$0xf]
        %v270 = vld [vmem:[%s1 + $0x14] sm:$0xf]
        %v271 = vld [vmem:[%s1 + $0x18] sm:$0xf]
        %v272 = vld [vmem:[%s1 + $0x1c] sm:$0xf]
        %v273 = vld [vmem:[%s1 + $0x20] sm:$0xf]
        %v274 = vld [vmem:[%s1 + $0x24] sm:$0xf]
        %v275 = vld [vmem:[%s1 + $0x28] sm:$0xf]
        %v276 = vld [vmem:[%s1 + $0x2c] sm:$0xf]
        %v277 = vld [vmem:[%s1 + $0x30] sm:$0xf]
        %v278 = vld [vmem:[%s1 + $0x34] sm:$0xf]
        %v279 = vld [vmem:[%s1 + $0x38] sm:$0xf]
        %v280 = vld [vmem:[%s1 + $0x3c] sm:$0xf]
        %v281 = vld [vmem:[%s1 + $0x40] sm:$0xf]
        %v282 = vld [vmem:[%s1 + $0x44] sm:$0xf]
        %v283 = vld [vmem:[%s2] sm:$0x1]
        %v285 = vlaneseq
        %v286 = vshrl.u32 %v285, 7
        %v287 = vsub.s32 0, %v286
        %v288 = vrot.slane %v283, %v287
        %v354 = vunpack.c.l.b16 %v201
        %v355 = vunpack.c.h.b16 %v201
        %v356 = vunpack.c.l.b16 %v202
        %v357 = vunpack.c.h.b16 %v202
        %v358 = vunpack.c.l.b16 %v203
        %v359 = vunpack.c.h.b16 %v203
        %v360 = vunpack.c.l.b16 %v204
        %v361 = vunpack.c.h.b16 %v204
        %v362 = vunpack.c.l.b16 %v205
        %v363 = vunpack.c.h.b16 %v205
        %v364 = vunpack.c.l.b16 %v206
        %v365 = vunpack.c.h.b16 %v206
        %v366 = vunpack.c.l.b16 %v207
        %v367 = vunpack.c.h.b16 %v207
        %v368 = vunpack.c.l.b16 %v208
        %v369 = vunpack.c.h.b16 %v208
        %v370 = vunpack.c.l.b16 %v209
        %v371 = vunpack.c.h.b16 %v209
        %v372 = vunpack.c.l.b16 %v210
        %v373 = vunpack.c.h.b16 %v210
        %v374 = vunpack.c.l.b16 %v211
        %v375 = vunpack.c.h.b16 %v211
        %v376 = vunpack.c.l.b16 %v212
        %v377 = vunpack.c.h.b16 %v212
        %v378 = vunpack.c.l.b16 %v213
        %v379 = vunpack.c.h.b16 %v213
        %v380 = vunpack.c.l.b16 %v214
        %v381 = vunpack.c.h.b16 %v214
        %v382 = vunpack.c.l.b16 %v215
        %v383 = vunpack.c.h.b16 %v215
        %v384 = vunpack.c.l.b16 %v216
        %v385 = vunpack.c.h.b16 %v216
        %v386 = vunpack.c.l.b16 %v217
        %v387 = vunpack.c.h.b16 %v217
        %v388 = vunpack.c.l.b16 %v218
        %v389 = vunpack.c.h.b16 %v218
        %v390 = vunpack.c.l.b16 %v219
        %v391 = vunpack.c.h.b16 %v219
        %v392 = vunpack.c.l.b16 %v220
        %v393 = vunpack.c.h.b16 %v220
        %v394 = vunpack.c.l.b16 %v221
        %v395 = vunpack.c.h.b16 %v221
        %v396 = vunpack.c.l.b16 %v222
        %v397 = vunpack.c.h.b16 %v222
        %v398 = vunpack.c.l.b16 %v223
        %v399 = vunpack.c.h.b16 %v223
        %v400 = vunpack.c.l.b16 %v224
        %v401 = vunpack.c.h.b16 %v224
        %v402 = vunpack.c.l.b16 %v225
        %v403 = vunpack.c.h.b16 %v225
        %v404 = vunpack.c.l.b16 %v226
        %v405 = vunpack.c.h.b16 %v226
        %v406 = vunpack.c.l.b16 %v227
        %v407 = vunpack.c.h.b16 %v227
        %v408 = vunpack.c.l.b16 %v228
        %v409 = vunpack.c.h.b16 %v228
        %v410 = vunpack.c.l.b16 %v229
        %v411 = vunpack.c.h.b16 %v229
        %v412 = vunpack.c.l.b16 %v230
        %v413 = vunpack.c.h.b16 %v230
        %v414 = vunpack.c.l.b16 %v231
        %v415 = vunpack.c.h.b16 %v231
        %v416 = vunpack.c.l.b16 %v232
        %v417 = vunpack.c.h.b16 %v232
        %v418 = vunpack.c.l.b16 %v233
        %v419 = vunpack.c.h.b16 %v233
        %v420 = vunpack.c.l.b16 %v234
        %v421 = vunpack.c.h.b16 %v234
        %v422 = vunpack.c.l.b16 %v235
        %v423 = vunpack.c.h.b16 %v235
        %v424 = vunpack.c.l.b16 %v236
        %v425 = vunpack.c.h.b16 %v236
        %v426 = vunpack.c.l.b16 %v237
        %v427 = vunpack.c.h.b16 %v237
        %v428 = vunpack.c.l.b16 %v238
        %v429 = vunpack.c.h.b16 %v238
        %v430 = vunpack.c.l.b16 %v239
        %v431 = vunpack.c.h.b16 %v239
        %v432 = vunpack.c.l.b16 %v240
        %v433 = vunpack.c.h.b16 %v240
        %v434 = vunpack.c.l.b16 %v241
        %v435 = vunpack.c.h.b16 %v241
        %v436 = vunpack.c.l.b16 %v242
        %v437 = vunpack.c.h.b16 %v242
        %v438 = vunpack.c.l.b16 %v243
        %v439 = vunpack.c.h.b16 %v243
        %v440 = vunpack.c.l.b16 %v244
        %v441 = vunpack.c.h.b16 %v244
        %v442 = vunpack.c.l.b16 %v245
        %v443 = vunpack.c.h.b16 %v245
        %v444 = vunpack.c.l.b16 %v246
        %v445 = vunpack.c.h.b16 %v246
        %v446 = vunpack.c.l.b16 %v247
        %v447 = vunpack.c.h.b16 %v247
        %v448 = vunpack.c.l.b16 %v248
        %v449 = vunpack.c.h.b16 %v248
        %v450 = vunpack.c.l.b16 %v249
        %v451 = vunpack.c.h.b16 %v249
        %v452 = vunpack.c.l.b16 %v250
        %v453 = vunpack.c.h.b16 %v250
        %v454 = vunpack.c.l.b16 %v251
        %v455 = vunpack.c.h.b16 %v251
        %v456 = vunpack.c.l.b16 %v252
        %v457 = vunpack.c.h.b16 %v252
        %v458 = vunpack.c.l.b16 %v253
        %v459 = vunpack.c.h.b16 %v253
        %v460 = vunpack.c.l.b16 %v254
        %v461 = vunpack.c.h.b16 %v254
        %v462 = vunpack.c.l.b16 %v255
        %v463 = vunpack.c.h.b16 %v255
        %v464 = vunpack.c.l.b16 %v256
        %v465 = vunpack.c.h.b16 %v256
        %v466 = vunpack.c.l.b16 %v257
        %v467 = vunpack.c.h.b16 %v257
        %v468 = vunpack.c.l.b16 %v258
        %v469 = vunpack.c.h.b16 %v258
        %v470 = vunpack.c.l.b16 %v259
        %v471 = vunpack.c.h.b16 %v259
        %v472 = vunpack.c.l.b16 %v260
        %v473 = vunpack.c.h.b16 %v260
        %v474 = vunpack.c.l.b16 %v261
        %v475 = vunpack.c.h.b16 %v261
        %v476 = vunpack.c.l.b16 %v262
        %v477 = vunpack.c.h.b16 %v262
        %v478 = vunpack.c.l.b16 %v263
        %v479 = vunpack.c.h.b16 %v263
        %v480 = vunpack.c.l.b16 %v264
        %v481 = vunpack.c.h.b16 %v264
        %v482 = vpack.c.b16 %v356, %v354
        %v483 = vpack.c.b16 %v357, %v355
        %v484 = vpack.c.b16 %v360, %v358
        %v485 = vpack.c.b16 %v361, %v359
        %v486 = vpack.c.b16 %v364, %v362
        %v487 = vpack.c.b16 %v365, %v363
        %v488 = vpack.c.b16 %v368, %v366
        %v489 = vpack.c.b16 %v369, %v367
        %v490 = vpack.c.b16 %v372, %v370
        %v491 = vpack.c.b16 %v373, %v371
        %v492 = vpack.c.b16 %v376, %v374
        %v493 = vpack.c.b16 %v377, %v375
        %v494 = vpack.c.b16 %v380, %v378
        %v495 = vpack.c.b16 %v381, %v379
        %v496 = vpack.c.b16 %v384, %v382
        %v497 = vpack.c.b16 %v385, %v383
        %v498 = vpack.c.b16 %v388, %v386
        %v499 = vpack.c.b16 %v389, %v387
        %v500 = vpack.c.b16 %v392, %v390
        %v501 = vpack.c.b16 %v393, %v391
        %v502 = vpack.c.b16 %v396, %v394
        %v503 = vpack.c.b16 %v397, %v395
        %v504 = vpack.c.b16 %v400, %v398
        %v505 = vpack.c.b16 %v401, %v399
        %v506 = vpack.c.b16 %v404, %v402
        %v507 = vpack.c.b16 %v405, %v403
        %v508 = vpack.c.b16 %v408, %v406
        %v509 = vpack.c.b16 %v409, %v407
        %v510 = vpack.c.b16 %v412, %v410
        %v511 = vpack.c.b16 %v413, %v411
        %v512 = vpack.c.b16 %v416, %v414
        %v513 = vpack.c.b16 %v417, %v415
        %v514 = vpack.c.b16 %v420, %v418
        %v515 = vpack.c.b16 %v421, %v419
        %v516 = vpack.c.b16 %v424, %v422
        %v517 = vpack.c.b16 %v425, %v423
        %v518 = vpack.c.b16 %v428, %v426
        %v519 = vpack.c.b16 %v429, %v427
        %v520 = vpack.c.b16 %v432, %v430
        %v521 = vpack.c.b16 %v433, %v431
        %v522 = vpack.c.b16 %v436, %v434
        %v523 = vpack.c.b16 %v437, %v435
        %v524 = vpack.c.b16 %v440, %v438
        %v525 = vpack.c.b16 %v441, %v439
        %v526 = vpack.c.b16 %v444, %v442
        %v527 = vpack.c.b16 %v445, %v443
        %v528 = vpack.c.b16 %v448, %v446
        %v529 = vpack.c.b16 %v449, %v447
        %v530 = vpack.c.b16 %v452, %v450
        %v531 = vpack.c.b16 %v453, %v451
        %v532 = vpack.c.b16 %v456, %v454
        %v533 = vpack.c.b16 %v457, %v455
        %v534 = vpack.c.b16 %v460, %v458
        %v535 = vpack.c.b16 %v461, %v459
        %v536 = vpack.c.b16 %v464, %v462
        %v537 = vpack.c.b16 %v465, %v463
        %v538 = vpack.c.b16 %v468, %v466
        %v539 = vpack.c.b16 %v469, %v467
        %v540 = vpack.c.b16 %v472, %v470
        %v541 = vpack.c.b16 %v473, %v471
        %v542 = vpack.c.b16 %v476, %v474
        %v543 = vpack.c.b16 %v477, %v475
        %v544 = vpack.c.b16 %v480, %v478
        %v545 = vpack.c.b16 %v481, %v479
        %v596 = vunpack.c.l.b16 %v265
        %v597 = vunpack.c.l.b16 %v266
        %v598 = vunpack.c.l.b16 %v267
        %v599 = vunpack.c.l.b16 %v268
        %v600 = vunpack.c.l.b16 %v269
        %v601 = vunpack.c.l.b16 %v270
        %v602 = vunpack.c.l.b16 %v271
        %v603 = vunpack.c.l.b16 %v272
        %v604 = vunpack.c.l.b16 %v273
        %v605 = vunpack.c.l.b16 %v274
        %v606 = vunpack.c.l.b16 %v275
        %v607 = vunpack.c.l.b16 %v276
        %v608 = vunpack.c.l.b16 %v277
        %v609 = vunpack.c.l.b16 %v278
        %v610 = vunpack.c.l.b16 %v279
        %v611 = vunpack.c.l.b16 %v280
        %v612 = vunpack.c.l.b16 %v281
        %v613 = vunpack.c.l.b16 %v282
        %v614 = vpack.c.b16 %v597, %v596
        %v615 = vpack.c.b16 %v599, %v598
        %v616 = vpack.c.b16 %v601, %v600
        %v617 = vpack.c.b16 %v603, %v602
        %v618 = vpack.c.b16 %v605, %v604
        %v619 = vpack.c.b16 %v607, %v606
        %v620 = vpack.c.b16 %v609, %v608
        %v621 = vpack.c.b16 %v611, %v610
        %v622 = vpack.c.b16 %v613, %v612
        %vm632 = vcmask 130048
        %v634 = vsel %vm632, %v483, 0
        %v637 = vsel %vm632, %v485, 0
        %v640 = vsel %vm632, %v487, 0
        %v643 = vsel %vm632, %v489, 0
        %v646 = vsel %vm632, %v491, 0
        %v649 = vsel %vm632, %v493, 0
        %v652 = vsel %vm632, %v495, 0
        %v655 = vsel %vm632, %v497, 0
        %v658 = vsel %vm632, %v499, 0
        %v661 = vsel %vm632, %v501, 0
        %v664 = vsel %vm632, %v503, 0
        %v667 = vsel %vm632, %v505, 0
        %v670 = vsel %vm632, %v507, 0
        %v673 = vsel %vm632, %v509, 0
        %v676 = vsel %vm632, %v511, 0
        %v679 = vsel %vm632, %v513, 0
        %v682 = vsel %vm632, %v515, 0
        %v685 = vsel %vm632, %v517, 0
        %v688 = vsel %vm632, %v519, 0
        %v691 = vsel %vm632, %v521, 0
        %v694 = vsel %vm632, %v523, 0
        %v697 = vsel %vm632, %v525, 0
        %v700 = vsel %vm632, %v527, 0
        %v703 = vsel %vm632, %v529, 0
        %v706 = vsel %vm632, %v531, 0
        %v709 = vsel %vm632, %v533, 0
        %v712 = vsel %vm632, %v535, 0
        %v715 = vsel %vm632, %v537, 0
        %v718 = vsel %vm632, %v539, 0
        %v721 = vsel %vm632, %v541, 0
        %v724 = vsel %vm632, %v543, 0
        %v727 = vsel %vm632, %v545, 0
        %729 = vmatprep.subr.bf16.mxu0 0
        %730 = vmatpush1.bf16.msra.mxu0 %v614
        %731 = vmatprep.subr.bf16.mxu0 0
        %732 = vmatpush1.bf16.msra.mxu0 %v615
        %733 = vmatprep.subr.bf16.mxu0 0
        %734 = vmatpush1.bf16.msra.mxu0 %v616
        %735 = vmatprep.subr.bf16.mxu0 0
        %736 = vmatpush1.bf16.msra.mxu0 %v617
        %737 = vmatprep.subr.bf16.mxu0 0
        %738 = vmatpush1.bf16.msra.mxu0 %v618
        %739 = vmatprep.subr.bf16.mxu0 0
        %740 = vmatpush1.bf16.msra.mxu0 %v619
        %741 = vmatprep.subr.bf16.mxu0 0
        %742 = vmatpush1.bf16.msra.mxu0 %v620
        %743 = vmatprep.subr.bf16.mxu0 0
        %744 = vmatpush1.bf16.msra.mxu0 %v621
        %745 = vmatprep.subr.bf16.mxu0 0
        %746 = vmatpush1.bf16.msra.mxu0 %v622
        %747 = vmatprep.subr.bf16.mxu0 0
        %748 = vmatpush1.bf16.msra.mxu0 0
        %749 = vmatprep.subr.bf16.mxu0 0
        %750 = vmatpush1.bf16.msra.mxu0 0
        %751 = vmatprep.subr.bf16.mxu0 0
        %752 = vmatpush1.bf16.msra.mxu0 0
        %753 = vmatprep.subr.bf16.mxu0 0
        %754 = vmatpush1.bf16.msra.mxu0 0
        %755 = vmatprep.subr.bf16.mxu0 0
        %756 = vmatpush1.bf16.msra.mxu0 0
        %757 = vmatprep.subr.bf16.mxu0 0
        %758 = vmatpush1.bf16.msra.mxu0 0
        %759 = vmatprep.subr.bf16.mxu0 0
        %760 = vmatpush1.bf16.msra.mxu0 0
        %761 = vmatprep.mubr.bf16.mxu0 %v634
        %762 = vmatmul.mubr.bf16.gmra.mrb[0].mxu0 %v482
        %v763 = vpop.f32.mrb[0].mxu0
        %v764 = vadd.f32 %v288, %v763
        %v765 = vpop.f32.mrb[0].mxu0
        %v766 = vpop.f32.mrb[0].mxu0
        %v767 = vadd.f32 %v288, %v766
        %v768 = vpop.f32.mrb[0].mxu0
        %769 = vmatprep.mubr.bf16.mxu0 %v637
        %770 = vmatmul.mubr.bf16.gmra.mrb[0].mxu0 %v484
        %v771 = vpop.f32.mrb[0].mxu0
        %v772 = vadd.f32 %v288, %v771
        %v773 = vpop.f32.mrb[0].mxu0
        %v774 = vpop.f32.mrb[0].mxu0
        %v775 = vadd.f32 %v288, %v774
        %v776 = vpop.f32.mrb[0].mxu0
        %777 = vmatprep.mubr.bf16.mxu0 %v640
        %778 = vmatmul.mubr.bf16.gmra.mrb[0].mxu0 %v486
        %v779 = vpop.f32.mrb[0].mxu0
        %v780 = vadd.f32 %v288, %v779
        %v781 = vpop.f32.mrb[0].mxu0
        %v782 = vpop.f32.mrb[0].mxu0
        %v783 = vadd.f32 %v288, %v782
        %v784 = vpop.f32.mrb[0].mxu0
        %785 = vmatprep.mubr.bf16.mxu0 %v643
        %786 = vmatmul.mubr.bf16.gmra.mrb[0].mxu0 %v488
        %v787 = vpop.f32.mrb[0].mxu0
        %v788 = vadd.f32 %v288, %v787
        %v789 = vpop.f32.mrb[0].mxu0
        %v790 = vpop.f32.mrb[0].mxu0
        %v791 = vadd.f32 %v288, %v790
        %v792 = vpop.f32.mrb[0].mxu0
        %793 = vmatprep.mubr.bf16.mxu0 %v646
        %794 = vmatmul.mubr.bf16.gmra.mrb[0].mxu0 %v490
        %v795 = vpop.f32.mrb[0].mxu0
        %v796 = vadd.f32 %v288, %v795
        %v797 = vpop.f32.mrb[0].mxu0
        %v798 = vpop.f32.mrb[0].mxu0
        %v799 = vadd.f32 %v288, %v798
        %v800 = vpop.f32.mrb[0].mxu0
        %801 = vmatprep.mubr.bf16.mxu0 %v649
        %802 = vmatmul.mubr.bf16.gmra.mrb[0].mxu0 %v492
        %v803 = vpop.f32.mrb[0].mxu0
        %v804 = vadd.f32 %v288, %v803
        %v805 = vpop.f32.mrb[0].mxu0
        %v806 = vpop.f32.mrb[0].mxu0
        %v807 = vadd.f32 %v288, %v806
        %v808 = vpop.f32.mrb[0].mxu0
        %809 = vmatprep.mubr.bf16.mxu0 %v652
        %810 = vmatmul.mubr.bf16.gmra.mrb[0].mxu0 %v494
        %v811 = vpop.f32.mrb[0].mxu0
        %v812 = vadd.f32 %v288, %v811
        %v813 = vpop.f32.mrb[0].mxu0
        %v814 = vpop.f32.mrb[0].mxu0
        %v815 = vadd.f32 %v288, %v814
        %v816 = vpop.f32.mrb[0].mxu0
        %817 = vmatprep.mubr.bf16.mxu0 %v655
        %818 = vmatmul.mubr.bf16.gmra.mrb[0].mxu0 %v496
        %v819 = vpop.f32.mrb[0].mxu0
        %v820 = vadd.f32 %v288, %v819
        %v821 = vpop.f32.mrb[0].mxu0
        %v822 = vpop.f32.mrb[0].mxu0
        %v823 = vadd.f32 %v288, %v822
        %v824 = vpop.f32.mrb[0].mxu0
        %825 = vmatprep.mubr.bf16.mxu0 %v658
        %826 = vmatmul.mubr.bf16.gmra.mrb[0].mxu0 %v498
        %v827 = vpop.f32.mrb[0].mxu0
        %v828 = vadd.f32 %v288, %v827
        %v829 = vpop.f32.mrb[0].mxu0
        %v830 = vpop.f32.mrb[0].mxu0
        %v831 = vadd.f32 %v288, %v830
        %v832 = vpop.f32.mrb[0].mxu0
        %833 = vmatprep.mubr.bf16.mxu0 %v661
        %834 = vmatmul.mubr.bf16.gmra.mrb[0].mxu0 %v500
        %v835 = vpop.f32.mrb[0].mxu0
        %v836 = vadd.f32 %v288, %v835
        %v837 = vpop.f32.mrb[0].mxu0
        %v838 = vpop.f32.mrb[0].mxu0
        %v839 = vadd.f32 %v288, %v838
        %v840 = vpop.f32.mrb[0].mxu0
        %841 = vmatprep.mubr.bf16.mxu0 %v664
        %842 = vmatmul.mubr.bf16.gmra.mrb[0].mxu0 %v502
        %v843 = vpop.f32.mrb[0].mxu0
        %v844 = vadd.f32 %v288, %v843
        %v845 = vpop.f32.mrb[0].mxu0
        %v846 = vpop.f32.mrb[0].mxu0
        %v847 = vadd.f32 %v288, %v846
        %v848 = vpop.f32.mrb[0].mxu0
        %849 = vmatprep.mubr.bf16.mxu0 %v667
        %850 = vmatmul.mubr.bf16.gmra.mrb[0].mxu0 %v504
        %v851 = vpop.f32.mrb[0].mxu0
        %v852 = vadd.f32 %v288, %v851
        %v853 = vpop.f32.mrb[0].mxu0
        %v854 = vpop.f32.mrb[0].mxu0
        %v855 = vadd.f32 %v288, %v854
        %v856 = vpop.f32.mrb[0].mxu0
        %857 = vmatprep.mubr.bf16.mxu0 %v670
        %858 = vmatmul.mubr.bf16.gmra.mrb[0].mxu0 %v506
        %v859 = vpop.f32.mrb[0].mxu0
        %v860 = vadd.f32 %v288, %v859
        %v861 = vpop.f32.mrb[0].mxu0
        %v862 = vpop.f32.mrb[0].mxu0
        %v863 = vadd.f32 %v288, %v862
        %v864 = vpop.f32.mrb[0].mxu0
        %865 = vmatprep.mubr.bf16.mxu0 %v673
        %866 = vmatmul.mubr.bf16.gmra.mrb[0].mxu0 %v508
        %v867 = vpop.f32.mrb[0].mxu0
        %v868 = vadd.f32 %v288, %v867
        %v869 = vpop.f32.mrb[0].mxu0
        %v870 = vpop.f32.mrb[0].mxu0
        %v871 = vadd.f32 %v288, %v870
        %v872 = vpop.f32.mrb[0].mxu0
        %873 = vmatprep.mubr.bf16.mxu0 %v676
        %874 = vmatmul.mubr.bf16.gmra.mrb[0].mxu0 %v510
        %v875 = vpop.f32.mrb[0].mxu0
        %v876 = vadd.f32 %v288, %v875
        %v877 = vpop.f32.mrb[0].mxu0
        %v878 = vpop.f32.mrb[0].mxu0
        %v879 = vadd.f32 %v288, %v878
        %v880 = vpop.f32.mrb[0].mxu0
        %881 = vmatprep.mubr.bf16.mxu0 %v679
        %882 = vmatmul.mubr.bf16.gmra.mrb[0].mxu0 %v512
        %v883 = vpop.f32.mrb[0].mxu0
        %v884 = vadd.f32 %v288, %v883
        %v885 = vpop.f32.mrb[0].mxu0
        %v886 = vpop.f32.mrb[0].mxu0
        %v887 = vadd.f32 %v288, %v886
        %v888 = vpop.f32.mrb[0].mxu0
        %889 = vmatprep.mubr.bf16.mxu0 %v682
        %890 = vmatmul.mubr.bf16.gmra.mrb[0].mxu0 %v514
        %v891 = vpop.f32.mrb[0].mxu0
        %v892 = vadd.f32 %v288, %v891
        %v893 = vpop.f32.mrb[0].mxu0
        %v894 = vpop.f32.mrb[0].mxu0
        %v895 = vadd.f32 %v288, %v894
        %v896 = vpop.f32.mrb[0].mxu0
        %897 = vmatprep.mubr.bf16.mxu0 %v685
        %898 = vmatmul.mubr.bf16.gmra.mrb[0].mxu0 %v516
        %v899 = vpop.f32.mrb[0].mxu0
        %v900 = vadd.f32 %v288, %v899
        %v901 = vpop.f32.mrb[0].mxu0
        %v902 = vpop.f32.mrb[0].mxu0
        %v903 = vadd.f32 %v288, %v902
        %v904 = vpop.f32.mrb[0].mxu0
        %905 = vmatprep.mubr.bf16.mxu0 %v688
        %906 = vmatmul.mubr.bf16.gmra.mrb[0].mxu0 %v518
        %v907 = vpop.f32.mrb[0].mxu0
        %v908 = vadd.f32 %v288, %v907
        %v909 = vpop.f32.mrb[0].mxu0
        %v910 = vpop.f32.mrb[0].mxu0
        %v911 = vadd.f32 %v288, %v910
        %v912 = vpop.f32.mrb[0].mxu0
        %913 = vmatprep.mubr.bf16.mxu0 %v691
        %914 = vmatmul.mubr.bf16.gmra.mrb[0].mxu0 %v520
        %v915 = vpop.f32.mrb[0].mxu0
        %v916 = vadd.f32 %v288, %v915
        %v917 = vpop.f32.mrb[0].mxu0
        %v918 = vpop.f32.mrb[0].mxu0
        %v919 = vadd.f32 %v288, %v918
        %v920 = vpop.f32.mrb[0].mxu0
        %921 = vmatprep.mubr.bf16.mxu0 %v694
        %922 = vmatmul.mubr.bf16.gmra.mrb[0].mxu0 %v522
        %v923 = vpop.f32.mrb[0].mxu0
        %v924 = vadd.f32 %v288, %v923
        %v925 = vpop.f32.mrb[0].mxu0
        %v926 = vpop.f32.mrb[0].mxu0
        %v927 = vadd.f32 %v288, %v926
        %v928 = vpop.f32.mrb[0].mxu0
        %929 = vmatprep.mubr.bf16.mxu0 %v697
        %930 = vmatmul.mubr.bf16.gmra.mrb[0].mxu0 %v524
        %v931 = vpop.f32.mrb[0].mxu0
        %v932 = vadd.f32 %v288, %v931
        %v933 = vpop.f32.mrb[0].mxu0
        %v934 = vpop.f32.mrb[0].mxu0
        %v935 = vadd.f32 %v288, %v934
        %v936 = vpop.f32.mrb[0].mxu0
        %937 = vmatprep.mubr.bf16.mxu0 %v700
        %938 = vmatmul.mubr.bf16.gmra.mrb[0].mxu0 %v526
        %v939 = vpop.f32.mrb[0].mxu0
        %v940 = vadd.f32 %v288, %v939
        %v941 = vpop.f32.mrb[0].mxu0
        %v942 = vpop.f32.mrb[0].mxu0
        %v943 = vadd.f32 %v288, %v942
        %v944 = vpop.f32.mrb[0].mxu0
        %945 = vmatprep.mubr.bf16.mxu0 %v703
        %946 = vmatmul.mubr.bf16.gmra.mrb[0].mxu0 %v528
        %v947 = vpop.f32.mrb[0].mxu0
        %v948 = vadd.f32 %v288, %v947
        %v949 = vpop.f32.mrb[0].mxu0
        %v950 = vpop.f32.mrb[0].mxu0
        %v951 = vadd.f32 %v288, %v950
        %v952 = vpop.f32.mrb[0].mxu0
        %953 = vmatprep.mubr.bf16.mxu0 %v706
        %954 = vmatmul.mubr.bf16.gmra.mrb[0].mxu0 %v530
        %v955 = vpop.f32.mrb[0].mxu0
        %v956 = vadd.f32 %v288, %v955
        %v957 = vpop.f32.mrb[0].mxu0
        %v958 = vpop.f32.mrb[0].mxu0
        %v959 = vadd.f32 %v288, %v958
        %v960 = vpop.f32.mrb[0].mxu0
        %961 = vmatprep.mubr.bf16.mxu0 %v709
        %962 = vmatmul.mubr.bf16.gmra.mrb[0].mxu0 %v532
        %v963 = vpop.f32.mrb[0].mxu0
        %v964 = vadd.f32 %v288, %v963
        %v965 = vpop.f32.mrb[0].mxu0
        %v966 = vpop.f32.mrb[0].mxu0
        %v967 = vadd.f32 %v288, %v966
        %v968 = vpop.f32.mrb[0].mxu0
        %969 = vmatprep.mubr.bf16.mxu0 %v712
        %970 = vmatmul.mubr.bf16.gmra.mrb[0].mxu0 %v534
        %v971 = vpop.f32.mrb[0].mxu0
        %v972 = vadd.f32 %v288, %v971
        %v973 = vpop.f32.mrb[0].mxu0
        %v974 = vpop.f32.mrb[0].mxu0
        %v975 = vadd.f32 %v288, %v974
        %v976 = vpop.f32.mrb[0].mxu0
        %977 = vmatprep.mubr.bf16.mxu0 %v715
        %978 = vmatmul.mubr.bf16.gmra.mrb[0].mxu0 %v536
        %v979 = vpop.f32.mrb[0].mxu0
        %v980 = vadd.f32 %v288, %v979
        %v981 = vpop.f32.mrb[0].mxu0
        %v982 = vpop.f32.mrb[0].mxu0
        %v983 = vadd.f32 %v288, %v982
        %v984 = vpop.f32.mrb[0].mxu0
        %985 = vmatprep.mubr.bf16.mxu0 %v718
        %986 = vmatmul.mubr.bf16.gmra.mrb[0].mxu0 %v538
        %v987 = vpop.f32.mrb[0].mxu0
        %v988 = vadd.f32 %v288, %v987
        %v989 = vpop.f32.mrb[0].mxu0
        %v990 = vpop.f32.mrb[0].mxu0
        %v991 = vadd.f32 %v288, %v990
        %v992 = vpop.f32.mrb[0].mxu0
        %993 = vmatprep.mubr.bf16.mxu0 %v721
        %994 = vmatmul.mubr.bf16.gmra.mrb[0].mxu0 %v540
        %v995 = vpop.f32.mrb[0].mxu0
        %v996 = vadd.f32 %v288, %v995
        %v997 = vpop.f32.mrb[0].mxu0
        %v998 = vpop.f32.mrb[0].mxu0
        %v999 = vadd.f32 %v288, %v998
        %v1000 = vpop.f32.mrb[0].mxu0
        %1001 = vmatprep.mubr.bf16.mxu0 %v724
        %1002 = vmatmul.mubr.bf16.gmra.mrb[0].mxu0 %v542
        %v1003 = vpop.f32.mrb[0].mxu0
        %v1004 = vadd.f32 %v288, %v1003
        %v1005 = vpop.f32.mrb[0].mxu0
        %v1006 = vpop.f32.mrb[0].mxu0
        %v1007 = vadd.f32 %v288, %v1006
        %v1008 = vpop.f32.mrb[0].mxu0
        %1009 = vmatprep.mubr.bf16.mxu0 %v727
        %1010 = vmatmul.mubr.bf16.gmra.mrb[0].mxu0 %v544
        %v1011 = vpop.f32.mrb[0].mxu0
        %v1012 = vadd.f32 %v288, %v1011
        %v1013 = vpop.f32.mrb[0].mxu0
        %v1014 = vpop.f32.mrb[0].mxu0
        %v1015 = vadd.f32 %v288, %v1014
        %v1016 = vpop.f32.mrb[0].mxu0
        %1017 = vdwg.mxu0
        %v1018 = vmax.f32 %v764, 0.0
        %v1019 = vmax.f32 %v767, 0.0
        %v1020 = vmax.f32 %v772, 0.0
        %v1021 = vmax.f32 %v775, 0.0
        %v1022 = vmax.f32 %v780, 0.0
        %v1023 = vmax.f32 %v783, 0.0
        %v1024 = vmax.f32 %v788, 0.0
        %v1025 = vmax.f32 %v791, 0.0
        %v1026 = vmax.f32 %v796, 0.0
        %v1027 = vmax.f32 %v799, 0.0
        %v1028 = vmax.f32 %v804, 0.0
        %v1029 = vmax.f32 %v807, 0.0
        %v1030 = vmax.f32 %v812, 0.0
        %v1031 = vmax.f32 %v815, 0.0
        %v1032 = vmax.f32 %v820, 0.0
        %v1033 = vmax.f32 %v823, 0.0
        %v1034 = vmax.f32 %v828, 0.0
        %v1035 = vmax.f32 %v831, 0.0
        %v1036 = vmax.f32 %v836, 0.0
        %v1037 = vmax.f32 %v839, 0.0
        %v1038 = vmax.f32 %v844, 0.0
        %v1039 = vmax.f32 %v847, 0.0
        %v1040 = vmax.f32 %v852, 0.0
        %v1041 = vmax.f32 %v855, 0.0
        %v1042 = vmax.f32 %v860, 0.0
        %v1043 = vmax.f32 %v863, 0.0
        %v1044 = vmax.f32 %v868, 0.0
        %v1045 = vmax.f32 %v871, 0.0
        %v1046 = vmax.f32 %v876, 0.0
        %v1047 = vmax.f32 %v879, 0.0
        %v1048 = vmax.f32 %v884, 0.0
        %v1049 = vmax.f32 %v887, 0.0
        %v1050 = vmax.f32 %v892, 0.0
        %v1051 = vmax.f32 %v895, 0.0
        %v1052 = vmax.f32 %v900, 0.0
        %v1053 = vmax.f32 %v903, 0.0
        %v1054 = vmax.f32 %v908, 0.0
        %v1055 = vmax.f32 %v911, 0.0
        %v1056 = vmax.f32 %v916, 0.0
        %v1057 = vmax.f32 %v919, 0.0
        %v1058 = vmax.f32 %v924, 0.0
        %v1059 = vmax.f32 %v927, 0.0
        %v1060 = vmax.f32 %v932, 0.0
        %v1061 = vmax.f32 %v935, 0.0
        %v1062 = vmax.f32 %v940, 0.0
        %v1063 = vmax.f32 %v943, 0.0
        %v1064 = vmax.f32 %v948, 0.0
        %v1065 = vmax.f32 %v951, 0.0
        %v1066 = vmax.f32 %v956, 0.0
        %v1067 = vmax.f32 %v959, 0.0
        %v1068 = vmax.f32 %v964, 0.0
        %v1069 = vmax.f32 %v967, 0.0
        %v1070 = vmax.f32 %v972, 0.0
        %v1071 = vmax.f32 %v975, 0.0
        %v1072 = vmax.f32 %v980, 0.0
        %v1073 = vmax.f32 %v983, 0.0
        %v1074 = vmax.f32 %v988, 0.0
        %v1075 = vmax.f32 %v991, 0.0
        %v1076 = vmax.f32 %v996, 0.0
        %v1077 = vmax.f32 %v999, 0.0
        %v1078 = vmax.f32 %v1004, 0.0
        %v1079 = vmax.f32 %v1007, 0.0
        %v1080 = vmax.f32 %v1012, 0.0
        %v1081 = vmax.f32 %v1015, 0.0
        %v1082 = vpack.c.bf16 %v1019, %v1018
        %v1083 = vpack.c.bf16 %v1021, %v1020
        %v1084 = vpack.c.bf16 %v1023, %v1022
        %v1085 = vpack.c.bf16 %v1025, %v1024
        %v1086 = vpack.c.bf16 %v1027, %v1026
        %v1087 = vpack.c.bf16 %v1029, %v1028
        %v1088 = vpack.c.bf16 %v1031, %v1030
        %v1089 = vpack.c.bf16 %v1033, %v1032
        %v1090 = vpack.c.bf16 %v1035, %v1034
        %v1091 = vpack.c.bf16 %v1037, %v1036
        %v1092 = vpack.c.bf16 %v1039, %v1038
        %v1093 = vpack.c.bf16 %v1041, %v1040
        %v1094 = vpack.c.bf16 %v1043, %v1042
        %v1095 = vpack.c.bf16 %v1045, %v1044
        %v1096 = vpack.c.bf16 %v1047, %v1046
        %v1097 = vpack.c.bf16 %v1049, %v1048
        %v1098 = vpack.c.bf16 %v1051, %v1050
        %v1099 = vpack.c.bf16 %v1053, %v1052
        %v1100 = vpack.c.bf16 %v1055, %v1054
        %v1101 = vpack.c.bf16 %v1057, %v1056
        %v1102 = vpack.c.bf16 %v1059, %v1058
        %v1103 = vpack.c.bf16 %v1061, %v1060
        %v1104 = vpack.c.bf16 %v1063, %v1062
        %v1105 = vpack.c.bf16 %v1065, %v1064
        %v1106 = vpack.c.bf16 %v1067, %v1066
        %v1107 = vpack.c.bf16 %v1069, %v1068
        %v1108 = vpack.c.bf16 %v1071, %v1070
        %v1109 = vpack.c.bf16 %v1073, %v1072
        %v1110 = vpack.c.bf16 %v1075, %v1074
        %v1111 = vpack.c.bf16 %v1077, %v1076
        %v1112 = vpack.c.bf16 %v1079, %v1078
        %v1113 = vpack.c.bf16 %v1081, %v1080
        %v1146 = vunpack.c.l.b16 %v1082
        %v1147 = vunpack.c.h.b16 %v1082
        %v1148 = vunpack.c.l.b16 %v1083
        %v1149 = vunpack.c.h.b16 %v1083
        %v1150 = vunpack.c.l.b16 %v1084
        %v1151 = vunpack.c.h.b16 %v1084
        %v1152 = vunpack.c.l.b16 %v1085
        %v1153 = vunpack.c.h.b16 %v1085
        %v1154 = vunpack.c.l.b16 %v1086
        %v1155 = vunpack.c.h.b16 %v1086
        %v1156 = vunpack.c.l.b16 %v1087
        %v1157 = vunpack.c.h.b16 %v1087
        %v1158 = vunpack.c.l.b16 %v1088
        %v1159 = vunpack.c.h.b16 %v1088
        %v1160 = vunpack.c.l.b16 %v1089
        %v1161 = vunpack.c.h.b16 %v1089
        %v1162 = vunpack.c.l.b16 %v1090
        %v1163 = vunpack.c.h.b16 %v1090
        %v1164 = vunpack.c.l.b16 %v1091
        %v1165 = vunpack.c.h.b16 %v1091
        %v1166 = vunpack.c.l.b16 %v1092
        %v1167 = vunpack.c.h.b16 %v1092
        %v1168 = vunpack.c.l.b16 %v1093
        %v1169 = vunpack.c.h.b16 %v1093
        %v1170 = vunpack.c.l.b16 %v1094
        %v1171 = vunpack.c.h.b16 %v1094
        %v1172 = vunpack.c.l.b16 %v1095
        %v1173 = vunpack.c.h.b16 %v1095
        %v1174 = vunpack.c.l.b16 %v1096
        %v1175 = vunpack.c.h.b16 %v1096
        %v1176 = vunpack.c.l.b16 %v1097
        %v1177 = vunpack.c.h.b16 %v1097
        %v1178 = vunpack.c.l.b16 %v1098
        %v1179 = vunpack.c.h.b16 %v1098
        %v1180 = vunpack.c.l.b16 %v1099
        %v1181 = vunpack.c.h.b16 %v1099
        %v1182 = vunpack.c.l.b16 %v1100
        %v1183 = vunpack.c.h.b16 %v1100
        %v1184 = vunpack.c.l.b16 %v1101
        %v1185 = vunpack.c.h.b16 %v1101
        %v1186 = vunpack.c.l.b16 %v1102
        %v1187 = vunpack.c.h.b16 %v1102
        %v1188 = vunpack.c.l.b16 %v1103
        %v1189 = vunpack.c.h.b16 %v1103
        %v1190 = vunpack.c.l.b16 %v1104
        %v1191 = vunpack.c.h.b16 %v1104
        %v1192 = vunpack.c.l.b16 %v1105
        %v1193 = vunpack.c.h.b16 %v1105
        %v1194 = vunpack.c.l.b16 %v1106
        %v1195 = vunpack.c.h.b16 %v1106
        %v1196 = vunpack.c.l.b16 %v1107
        %v1197 = vunpack.c.h.b16 %v1107
        %v1198 = vunpack.c.l.b16 %v1108
        %v1199 = vunpack.c.h.b16 %v1108
        %v1200 = vunpack.c.l.b16 %v1109
        %v1201 = vunpack.c.h.b16 %v1109
        %v1202 = vunpack.c.l.b16 %v1110
        %v1203 = vunpack.c.h.b16 %v1110
        %v1204 = vunpack.c.l.b16 %v1111
        %v1205 = vunpack.c.h.b16 %v1111
        %v1206 = vunpack.c.l.b16 %v1112
        %v1207 = vunpack.c.h.b16 %v1112
        %v1208 = vunpack.c.l.b16 %v1113
        %v1209 = vunpack.c.h.b16 %v1113
        %v1210 = vpack.c.b16 %v1146, %v1146
        %v1211 = vpack.c.b16 %v1147, %v1147
        %v1212 = vpack.c.b16 %v1148, %v1148
        %v1213 = vpack.c.b16 %v1149, %v1149
        %v1214 = vpack.c.b16 %v1150, %v1150
        %v1215 = vpack.c.b16 %v1151, %v1151
        %v1216 = vpack.c.b16 %v1152, %v1152
        %v1217 = vpack.c.b16 %v1153, %v1153
        %v1218 = vpack.c.b16 %v1154, %v1154
        %v1219 = vpack.c.b16 %v1155, %v1155
        %v1220 = vpack.c.b16 %v1156, %v1156
        %v1221 = vpack.c.b16 %v1157, %v1157
        %v1222 = vpack.c.b16 %v1158, %v1158
        %v1223 = vpack.c.b16 %v1159, %v1159
        %v1224 = vpack.c.b16 %v1160, %v1160
        %v1225 = vpack.c.b16 %v1161, %v1161
        %v1226 = vpack.c.b16 %v1162, %v1162
        %v1227 = vpack.c.b16 %v1163, %v1163
        %v1228 = vpack.c.b16 %v1164, %v1164
        %v1229 = vpack.c.b16 %v1165, %v1165
        %v1230 = vpack.c.b16 %v1166, %v1166
        %v1231 = vpack.c.b16 %v1167, %v1167
        %v1232 = vpack.c.b16 %v1168, %v1168
        %v1233 = vpack.c.b16 %v1169, %v1169
        %v1234 = vpack.c.b16 %v1170, %v1170
        %v1235 = vpack.c.b16 %v1171, %v1171
        %v1236 = vpack.c.b16 %v1172, %v1172
        %v1237 = vpack.c.b16 %v1173, %v1173
        %v1238 = vpack.c.b16 %v1174, %v1174
        %v1239 = vpack.c.b16 %v1175, %v1175
        %v1240 = vpack.c.b16 %v1176, %v1176
        %v1241 = vpack.c.b16 %v1177, %v1177
        %v1242 = vpack.c.b16 %v1178, %v1178
        %v1243 = vpack.c.b16 %v1179, %v1179
        %v1244 = vpack.c.b16 %v1180, %v1180
        %v1245 = vpack.c.b16 %v1181, %v1181
        %v1246 = vpack.c.b16 %v1182, %v1182
        %v1247 = vpack.c.b16 %v1183, %v1183
        %v1248 = vpack.c.b16 %v1184, %v1184
        %v1249 = vpack.c.b16 %v1185, %v1185
        %v1250 = vpack.c.b16 %v1186, %v1186
        %v1251 = vpack.c.b16 %v1187, %v1187
        %v1252 = vpack.c.b16 %v1188, %v1188
        %v1253 = vpack.c.b16 %v1189, %v1189
        %v1254 = vpack.c.b16 %v1190, %v1190
        %v1255 = vpack.c.b16 %v1191, %v1191
        %v1256 = vpack.c.b16 %v1192, %v1192
        %v1257 = vpack.c.b16 %v1193, %v1193
        %v1258 = vpack.c.b16 %v1194, %v1194
        %v1259 = vpack.c.b16 %v1195, %v1195
        %v1260 = vpack.c.b16 %v1196, %v1196
        %v1261 = vpack.c.b16 %v1197, %v1197
        %v1262 = vpack.c.b16 %v1198, %v1198
        %v1263 = vpack.c.b16 %v1199, %v1199
        %v1264 = vpack.c.b16 %v1200, %v1200
        %v1265 = vpack.c.b16 %v1201, %v1201
        %v1266 = vpack.c.b16 %v1202, %v1202
        %v1267 = vpack.c.b16 %v1203, %v1203
        %v1268 = vpack.c.b16 %v1204, %v1204
        %v1269 = vpack.c.b16 %v1205, %v1205
        %v1270 = vpack.c.b16 %v1206, %v1206
        %v1271 = vpack.c.b16 %v1207, %v1207
        %v1272 = vpack.c.b16 %v1208, %v1208
        %v1273 = vpack.c.b16 %v1209, %v1209
        %vm1338 = vcmask 257024
        %1339 = vst.msk [vmem:[%s177] sm:$0xf] %vm1338, %v1210
        %1340 = vst.msk [vmem:[%s177 + $0x4] sm:$0xf] %vm1338, %v1211
        %1341 = vst.msk [vmem:[%s177 + $0x8] sm:$0xf] %vm1338, %v1212
        %1342 = vst.msk [vmem:[%s177 + $0xc] sm:$0xf] %vm1338, %v1213
        %1343 = vst.msk [vmem:[%s177 + $0x10] sm:$0xf] %vm1338, %v1214
        %1344 = vst.msk [vmem:[%s177 + $0x14] sm:$0xf] %vm1338, %v1215
        %1345 = vst.msk [vmem:[%s177 + $0x18] sm:$0xf] %vm1338, %v1216
        %1346 = vst.msk [vmem:[%s177 + $0x1c] sm:$0xf] %vm1338, %v1217
        %1347 = vst.msk [vmem:[%s177 + $0x20] sm:$0xf] %vm1338, %v1218
        %1348 = vst.msk [vmem:[%s177 + $0x24] sm:$0xf] %vm1338, %v1219
        %1349 = vst.msk [vmem:[%s177 + $0x28] sm:$0xf] %vm1338, %v1220
        %1350 = vst.msk [vmem:[%s177 + $0x2c] sm:$0xf] %vm1338, %v1221
        %1351 = vst.msk [vmem:[%s177 + $0x30] sm:$0xf] %vm1338, %v1222
        %1352 = vst.msk [vmem:[%s177 + $0x34] sm:$0xf] %vm1338, %v1223
        %1353 = vst.msk [vmem:[%s177 + $0x38] sm:$0xf] %vm1338, %v1224
        %1354 = vst.msk [vmem:[%s177 + $0x3c] sm:$0xf] %vm1338, %v1225
        %1355 = vst.msk [vmem:[%s177 + $0x40] sm:$0xf] %vm1338, %v1226
        %1356 = vst.msk [vmem:[%s177 + $0x44] sm:$0xf] %vm1338, %v1227
        %1357 = vst.msk [vmem:[%s177 + $0x48] sm:$0xf] %vm1338, %v1228
        %1358 = vst.msk [vmem:[%s177 + $0x4c] sm:$0xf] %vm1338, %v1229
        %1359 = vst.msk [vmem:[%s177 + $0x50] sm:$0xf] %vm1338, %v1230
        %1360 = vst.msk [vmem:[%s177 + $0x54] sm:$0xf] %vm1338, %v1231
        %1361 = vst.msk [vmem:[%s177 + $0x58] sm:$0xf] %vm1338, %v1232
        %1362 = vst.msk [vmem:[%s177 + $0x5c] sm:$0xf] %vm1338, %v1233
        %1363 = vst.msk [vmem:[%s177 + $0x60] sm:$0xf] %vm1338, %v1234
        %1364 = vst.msk [vmem:[%s177 + $0x64] sm:$0xf] %vm1338, %v1235
        %1365 = vst.msk [vmem:[%s177 + $0x68] sm:$0xf] %vm1338, %v1236
        %1366 = vst.msk [vmem:[%s177 + $0x6c] sm:$0xf] %vm1338, %v1237
        %1367 = vst.msk [vmem:[%s177 + $0x70] sm:$0xf] %vm1338, %v1238
        %1368 = vst.msk [vmem:[%s177 + $0x74] sm:$0xf] %vm1338, %v1239
        %1369 = vst.msk [vmem:[%s177 + $0x78] sm:$0xf] %vm1338, %v1240
        %1370 = vst.msk [vmem:[%s177 + $0x7c] sm:$0xf] %vm1338, %v1241
        %1371 = vst.msk [vmem:[%s177 + $0x80] sm:$0xf] %vm1338, %v1242
        %1372 = vst.msk [vmem:[%s177 + $0x84] sm:$0xf] %vm1338, %v1243
        %1373 = vst.msk [vmem:[%s177 + $0x88] sm:$0xf] %vm1338, %v1244
        %1374 = vst.msk [vmem:[%s177 + $0x8c] sm:$0xf] %vm1338, %v1245
        %1375 = vst.msk [vmem:[%s177 + $0x90] sm:$0xf] %vm1338, %v1246
        %1376 = vst.msk [vmem:[%s177 + $0x94] sm:$0xf] %vm1338, %v1247
        %1377 = vst.msk [vmem:[%s177 + $0x98] sm:$0xf] %vm1338, %v1248
        %1378 = vst.msk [vmem:[%s177 + $0x9c] sm:$0xf] %vm1338, %v1249
        %1379 = vst.msk [vmem:[%s177 + $0xa0] sm:$0xf] %vm1338, %v1250
        %1380 = vst.msk [vmem:[%s177 + $0xa4] sm:$0xf] %vm1338, %v1251
        %1381 = vst.msk [vmem:[%s177 + $0xa8] sm:$0xf] %vm1338, %v1252
        %1382 = vst.msk [vmem:[%s177 + $0xac] sm:$0xf] %vm1338, %v1253
        %1383 = vst.msk [vmem:[%s177 + $0xb0] sm:$0xf] %vm1338, %v1254
        %1384 = vst.msk [vmem:[%s177 + $0xb4] sm:$0xf] %vm1338, %v1255
        %1385 = vst.msk [vmem:[%s177 + $0xb8] sm:$0xf] %vm1338, %v1256
        %1386 = vst.msk [vmem:[%s177 + $0xbc] sm:$0xf] %vm1338, %v1257
        %1387 = vst.msk [vmem:[%s177 + $0xc0] sm:$0xf] %vm1338, %v1258
        %1388 = vst.msk [vmem:[%s177 + $0xc4] sm:$0xf] %vm1338, %v1259
        %1389 = vst.msk [vmem:[%s177 + $0xc8] sm:$0xf] %vm1338, %v1260
        %1390 = vst.msk [vmem:[%s177 + $0xcc] sm:$0xf] %vm1338, %v1261
        %1391 = vst.msk [vmem:[%s177 + $0xd0] sm:$0xf] %vm1338, %v1262
        %1392 = vst.msk [vmem:[%s177 + $0xd4] sm:$0xf] %vm1338, %v1263
        %1393 = vst.msk [vmem:[%s177 + $0xd8] sm:$0xf] %vm1338, %v1264
        %1394 = vst.msk [vmem:[%s177 + $0xdc] sm:$0xf] %vm1338, %v1265
        %1395 = vst.msk [vmem:[%s177 + $0xe0] sm:$0xf] %vm1338, %v1266
        %1396 = vst.msk [vmem:[%s177 + $0xe4] sm:$0xf] %vm1338, %v1267
        %1397 = vst.msk [vmem:[%s177 + $0xe8] sm:$0xf] %vm1338, %v1268
        %1398 = vst.msk [vmem:[%s177 + $0xec] sm:$0xf] %vm1338, %v1269
        %1399 = vst.msk [vmem:[%s177 + $0xf0] sm:$0xf] %vm1338, %v1270
        %1400 = vst.msk [vmem:[%s177 + $0xf4] sm:$0xf] %vm1338, %v1271
        %1401 = vst.msk [vmem:[%s177 + $0xf8] sm:$0xf] %vm1338, %v1272
        %1402 = vst.msk [vmem:[%s177 + $0xfc] sm:$0xf] %vm1338, %v1273
        %s1403 = sand.u32 %s90, 1
        %s1404 = sand.u32 %s90, 1
        %s1405 = smul.addr %s1404, 256
        %s1406 = scalar_lea.vmem [#allocation2], %s1405
        // Predicated region
        $region33: #{dcnn_forward.6} parent=31 // pred_check
          %p1407 = pneg %p100
        $region34: #{dcnn_forward.6} parent=31 // pred_check_branch
          %1409 = sbr.rel (%p1407) target = $region36
        $region35: #{dcnn_forward.6} parent=31 // pred_region
          %s1410 = smul.u32 64, %s14
          %s1411 = ssub.s32 144, %s1410
          %p1412 = scmp.lt.s32.totalorder %s1411, 64
          %s1413 = scalar_select %p1412, %s1411, 64
          %s1414 = smul.u32 64, %s1413
          %p1415 = scmp.ne.s32.totalorder 0, %s1414
          %s1416 = smul.addr %s1410, 4
          %s1417 = scalar_lea.vmem %s3, %s1416
          // Predicated region
          $region37: #{dcnn_forward.6} parent=35 // pred_check
            %p1418 = pneg %p1415
          $region38: #{dcnn_forward.6} parent=35 // pred_check_branch
            %1420 = sbr.rel (%p1418) target = $region40
          $region39: #{dcnn_forward.6} parent=35 // pred_region
            // Predicated region
            $region41: #{dcnn_forward.6} parent=39 // pred_check
              _
            $region42: #{dcnn_forward.6} parent=39 // pred_check_branch
              %1422 = sbr.rel target = $region44
            $region43: #{dcnn_forward.6} parent=39 // pred_region
              // Predicated region
              $region63: #{dcnn_forward.6} parent=43 // pred_check
                _
              $region64: #{dcnn_forward.6} parent=43 // pred_check_branch
                %1597 = sbr.rel (0) target = $region66
              $region65: #{dcnn_forward.6} parent=43 // pred_region
                %s1599 = sshrl.u32 %s1413, 6
                // While loop
                $region67: #{dcnn_forward.6} parent=65 // loop_pre_header
                  _
                $region68: #{dcnn_forward.6} parent=65 // loop_header
                  %s1601 = sphi 0, %s1603
                  %p1602 = scmp.ge.s32.totalorder %s1601, %s1599
                  %s1606 = sphi 0, %s1739
                  %s1607 = sphi %s1406, %s1742
                  %s1608 = sphi %s1417, %s1743
                $region69: #{dcnn_forward.6} parent=65 // loop_header_branch
                  %1605 = sbr.rel (%p1602) target = $region73
                $region70: #{dcnn_forward.6} parent=65 // loop_body
                  %v1609 = vld [vmem:[%s1607] sm:$0xf]
                  %1610 = vst [vmem:[%s1608] sm:$0xf] %v1609
                  %v1611 = vld [vmem:[%s1607 + $0x4] sm:$0xf]
                  %1612 = vst [vmem:[%s1608 + $0x4] sm:$0xf] %v1611
                  %v1613 = vld [vmem:[%s1607 + $0x8] sm:$0xf]
                  %1614 = vst [vmem:[%s1608 + $0x8] sm:$0xf] %v1613
                  %v1615 = vld [vmem:[%s1607 + $0xc] sm:$0xf]
                  %1616 = vst [vmem:[%s1608 + $0xc] sm:$0xf] %v1615
                  %v1617 = vld [vmem:[%s1607 + $0x10] sm:$0xf]
                  %1618 = vst [vmem:[%s1608 + $0x10] sm:$0xf] %v1617
                  %v1619 = vld [vmem:[%s1607 + $0x14] sm:$0xf]
                  %1620 = vst [vmem:[%s1608 + $0x14] sm:$0xf] %v1619
                  %v1621 = vld [vmem:[%s1607 + $0x18] sm:$0xf]
                  %1622 = vst [vmem:[%s1608 + $0x18] sm:$0xf] %v1621
                  %v1623 = vld [vmem:[%s1607 + $0x1c] sm:$0xf]
                  %1624 = vst [vmem:[%s1608 + $0x1c] sm:$0xf] %v1623
                  %v1625 = vld [vmem:[%s1607 + $0x20] sm:$0xf]
                  %1626 = vst [vmem:[%s1608 + $0x20] sm:$0xf] %v1625
                  %v1627 = vld [vmem:[%s1607 + $0x24] sm:$0xf]
                  %1628 = vst [vmem:[%s1608 + $0x24] sm:$0xf] %v1627
                  %v1629 = vld [vmem:[%s1607 + $0x28] sm:$0xf]
                  %1630 = vst [vmem:[%s1608 + $0x28] sm:$0xf] %v1629
                  %v1631 = vld [vmem:[%s1607 + $0x2c] sm:$0xf]
                  %1632 = vst [vmem:[%s1608 + $0x2c] sm:$0xf] %v1631
                  %v1633 = vld [vmem:[%s1607 + $0x30] sm:$0xf]
                  %1634 = vst [vmem:[%s1608 + $0x30] sm:$0xf] %v1633
                  %v1635 = vld [vmem:[%s1607 + $0x34] sm:$0xf]
                  %1636 = vst [vmem:[%s1608 + $0x34] sm:$0xf] %v1635
                  %v1637 = vld [vmem:[%s1607 + $0x38] sm:$0xf]
                  %1638 = vst [vmem:[%s1608 + $0x38] sm:$0xf] %v1637
                  %v1639 = vld [vmem:[%s1607 + $0x3c] sm:$0xf]
                  %1640 = vst [vmem:[%s1608 + $0x3c] sm:$0xf] %v1639
                  %v1641 = vld [vmem:[%s1607 + $0x40] sm:$0xf]
                  %1642 = vst [vmem:[%s1608 + $0x40] sm:$0xf] %v1641
                  %v1643 = vld [vmem:[%s1607 + $0x44] sm:$0xf]
                  %1644 = vst [vmem:[%s1608 + $0x44] sm:$0xf] %v1643
                  %v1645 = vld [vmem:[%s1607 + $0x48] sm:$0xf]
                  %1646 = vst [vmem:[%s1608 + $0x48] sm:$0xf] %v1645
                  %v1647 = vld [vmem:[%s1607 + $0x4c] sm:$0xf]
                  %1648 = vst [vmem:[%s1608 + $0x4c] sm:$0xf] %v1647
                  %v1649 = vld [vmem:[%s1607 + $0x50] sm:$0xf]
                  %1650 = vst [vmem:[%s1608 + $0x50] sm:$0xf] %v1649
                  %v1651 = vld [vmem:[%s1607 + $0x54] sm:$0xf]
                  %1652 = vst [vmem:[%s1608 + $0x54] sm:$0xf] %v1651
                  %v1653 = vld [vmem:[%s1607 + $0x58] sm:$0xf]
                  %1654 = vst [vmem:[%s1608 + $0x58] sm:$0xf] %v1653
                  %v1655 = vld [vmem:[%s1607 + $0x5c] sm:$0xf]
                  %1656 = vst [vmem:[%s1608 + $0x5c] sm:$0xf] %v1655
                  %v1657 = vld [vmem:[%s1607 + $0x60] sm:$0xf]
                  %1658 = vst [vmem:[%s1608 + $0x60] sm:$0xf] %v1657
                  %v1659 = vld [vmem:[%s1607 + $0x64] sm:$0xf]
                  %1660 = vst [vmem:[%s1608 + $0x64] sm:$0xf] %v1659
                  %v1661 = vld [vmem:[%s1607 + $0x68] sm:$0xf]
                  %1662 = vst [vmem:[%s1608 + $0x68] sm:$0xf] %v1661
                  %v1663 = vld [vmem:[%s1607 + $0x6c] sm:$0xf]
                  %1664 = vst [vmem:[%s1608 + $0x6c] sm:$0xf] %v1663
                  %v1665 = vld [vmem:[%s1607 + $0x70] sm:$0xf]
                  %1666 = vst [vmem:[%s1608 + $0x70] sm:$0xf] %v1665
                  %v1667 = vld [vmem:[%s1607 + $0x74] sm:$0xf]
                  %1668 = vst [vmem:[%s1608 + $0x74] sm:$0xf] %v1667
                  %v1669 = vld [vmem:[%s1607 + $0x78] sm:$0xf]
                  %1670 = vst [vmem:[%s1608 + $0x78] sm:$0xf] %v1669
                  %v1671 = vld [vmem:[%s1607 + $0x7c] sm:$0xf]
                  %1672 = vst [vmem:[%s1608 + $0x7c] sm:$0xf] %v1671
                  %v1673 = vld [vmem:[%s1607 + $0x80] sm:$0xf]
                  %1674 = vst [vmem:[%s1608 + $0x80] sm:$0xf] %v1673
                  %v1675 = vld [vmem:[%s1607 + $0x84] sm:$0xf]
                  %1676 = vst [vmem:[%s1608 + $0x84] sm:$0xf] %v1675
                  %v1677 = vld [vmem:[%s1607 + $0x88] sm:$0xf]
                  %1678 = vst [vmem:[%s1608 + $0x88] sm:$0xf] %v1677
                  %v1679 = vld [vmem:[%s1607 + $0x8c] sm:$0xf]
                  %1680 = vst [vmem:[%s1608 + $0x8c] sm:$0xf] %v1679
                  %v1681 = vld [vmem:[%s1607 + $0x90] sm:$0xf]
                  %1682 = vst [vmem:[%s1608 + $0x90] sm:$0xf] %v1681
                  %v1683 = vld [vmem:[%s1607 + $0x94] sm:$0xf]
                  %1684 = vst [vmem:[%s1608 + $0x94] sm:$0xf] %v1683
                  %v1685 = vld [vmem:[%s1607 + $0x98] sm:$0xf]
                  %1686 = vst [vmem:[%s1608 + $0x98] sm:$0xf] %v1685
                  %v1687 = vld [vmem:[%s1607 + $0x9c] sm:$0xf]
                  %1688 = vst [vmem:[%s1608 + $0x9c] sm:$0xf] %v1687
                  %v1689 = vld [vmem:[%s1607 + $0xa0] sm:$0xf]
                  %1690 = vst [vmem:[%s1608 + $0xa0] sm:$0xf] %v1689
                  %v1691 = vld [vmem:[%s1607 + $0xa4] sm:$0xf]
                  %1692 = vst [vmem:[%s1608 + $0xa4] sm:$0xf] %v1691
                  %v1693 = vld [vmem:[%s1607 + $0xa8] sm:$0xf]
                  %1694 = vst [vmem:[%s1608 + $0xa8] sm:$0xf] %v1693
                  %v1695 = vld [vmem:[%s1607 + $0xac] sm:$0xf]
                  %1696 = vst [vmem:[%s1608 + $0xac] sm:$0xf] %v1695
                  %v1697 = vld [vmem:[%s1607 + $0xb0] sm:$0xf]
                  %1698 = vst [vmem:[%s1608 + $0xb0] sm:$0xf] %v1697
                  %v1699 = vld [vmem:[%s1607 + $0xb4] sm:$0xf]
                  %1700 = vst [vmem:[%s1608 + $0xb4] sm:$0xf] %v1699
                  %v1701 = vld [vmem:[%s1607 + $0xb8] sm:$0xf]
                  %1702 = vst [vmem:[%s1608 + $0xb8] sm:$0xf] %v1701
                  %v1703 = vld [vmem:[%s1607 + $0xbc] sm:$0xf]
                  %1704 = vst [vmem:[%s1608 + $0xbc] sm:$0xf] %v1703
                  %v1705 = vld [vmem:[%s1607 + $0xc0] sm:$0xf]
                  %1706 = vst [vmem:[%s1608 + $0xc0] sm:$0xf] %v1705
                  %v1707 = vld [vmem:[%s1607 + $0xc4] sm:$0xf]
                  %1708 = vst [vmem:[%s1608 + $0xc4] sm:$0xf] %v1707
                  %v1709 = vld [vmem:[%s1607 + $0xc8] sm:$0xf]
                  %1710 = vst [vmem:[%s1608 + $0xc8] sm:$0xf] %v1709
                  %v1711 = vld [vmem:[%s1607 + $0xcc] sm:$0xf]
                  %1712 = vst [vmem:[%s1608 + $0xcc] sm:$0xf] %v1711
                  %v1713 = vld [vmem:[%s1607 + $0xd0] sm:$0xf]
                  %1714 = vst [vmem:[%s1608 + $0xd0] sm:$0xf] %v1713
                  %v1715 = vld [vmem:[%s1607 + $0xd4] sm:$0xf]
                  %1716 = vst [vmem:[%s1608 + $0xd4] sm:$0xf] %v1715
                  %v1717 = vld [vmem:[%s1607 + $0xd8] sm:$0xf]
                  %1718 = vst [vmem:[%s1608 + $0xd8] sm:$0xf] %v1717
                  %v1719 = vld [vmem:[%s1607 + $0xdc] sm:$0xf]
                  %1720 = vst [vmem:[%s1608 + $0xdc] sm:$0xf] %v1719
                  %v1721 = vld [vmem:[%s1607 + $0xe0] sm:$0xf]
                  %1722 = vst [vmem:[%s1608 + $0xe0] sm:$0xf] %v1721
                  %v1723 = vld [vmem:[%s1607 + $0xe4] sm:$0xf]
                  %1724 = vst [vmem:[%s1608 + $0xe4] sm:$0xf] %v1723
                  %v1725 = vld [vmem:[%s1607 + $0xe8] sm:$0xf]
                  %1726 = vst [vmem:[%s1608 + $0xe8] sm:$0xf] %v1725
                  %v1727 = vld [vmem:[%s1607 + $0xec] sm:$0xf]
                  %1728 = vst [vmem:[%s1608 + $0xec] sm:$0xf] %v1727
                  %v1729 = vld [vmem:[%s1607 + $0xf0] sm:$0xf]
                  %1730 = vst [vmem:[%s1608 + $0xf0] sm:$0xf] %v1729
                  %v1731 = vld [vmem:[%s1607 + $0xf4] sm:$0xf]
                  %1732 = vst [vmem:[%s1608 + $0xf4] sm:$0xf] %v1731
                  %v1733 = vld [vmem:[%s1607 + $0xf8] sm:$0xf]
                  %1734 = vst [vmem:[%s1608 + $0xf8] sm:$0xf] %v1733
                  %v1735 = vld [vmem:[%s1607 + $0xfc] sm:$0xf]
                  %1736 = vst [vmem:[%s1608 + $0xfc] sm:$0xf] %v1735
                  %s1737 = sadd.s32 1, %s1606
                  %p1738 = scmp.ge.s32.totalorder %s1737, %s1599
                  %s1739 = scalar_select %p1738, 0, %s1737
                  %s1740 = smul.u32 %s1739, 256
                  %s1741 = smul.u32 %s1739, 256
                  %s1742 = scalar_lea.vmem %s1406, %s1740 [#allocation2]
                  %s1743 = scalar_lea.vmem %s1417, %s1741
                $region71: #{dcnn_forward.6} parent=65 // loop_footer
                  %s1603 = sadd.s32 %s1601, 1
                $region72: #{dcnn_forward.6} parent=65 // loop_footer_branch
                  %1600 = sbr.rel target = $region68
                $region73: #{dcnn_forward.6} parent=65 // loop_exit
                  _
                %s1744 = sshrl.u32 %s1413, 6
                %s1745 = sand.u32 %s1413, 63
                %s1746 = smul.u32 %s1744, 64
                %s1747 = smul.u32 4, %s1746
                %s1748 = scalar_lea.vmem %s1406, %s1747 [#allocation2]
                %s1749 = smul.u32 4, %s1746
                %s1750 = scalar_lea.vmem %s1417, %s1749
                // While loop
                $region74: #{dcnn_forward.6} parent=65 // loop_pre_header
                  _
                $region75: #{dcnn_forward.6} parent=65 // loop_header
                  %s1752 = sphi 0, %s1754
                  %p1753 = scmp.ge.s32.totalorder %s1752, %s1745
                  %s1757 = sphi 0, %s1764
                  %s1758 = sphi %s1748, %s1767
                  %s1759 = sphi %s1750, %s1768
                $region76: #{dcnn_forward.6} parent=65 // loop_header_branch
                  %1756 = sbr.rel (%p1753) target = $region80
                $region77: #{dcnn_forward.6} parent=65 // loop_body
                  %v1760 = vld [vmem:[%s1758] sm:$0xf]
                  %1761 = vst [vmem:[%s1759] sm:$0xf] %v1760
                  %s1762 = sadd.s32 1, %s1757
                  %p1763 = scmp.ge.s32.totalorder %s1762, %s1745
                  %s1764 = scalar_select %p1763, 0, %s1762
                  %s1765 = smul.u32 %s1764, 4
                  %s1766 = smul.u32 %s1764, 4
                  %s1767 = scalar_lea.vmem %s1748, %s1765 [#allocation2]
                  %s1768 = scalar_lea.vmem %s1750, %s1766
                $region78: #{dcnn_forward.6} parent=65 // loop_footer
                  %s1754 = sadd.s32 %s1752, 1
                $region79: #{dcnn_forward.6} parent=65 // loop_footer_branch
                  %1751 = sbr.rel target = $region75
                $region80: #{dcnn_forward.6} parent=65 // loop_exit
                  _
              $region66: #{dcnn_forward.6} parent=43 // pred_fallthru
                _
            $region44: #{dcnn_forward.6} parent=39 // pred_fallthru
              _
            // Predicated region
            $region45: #{dcnn_forward.6} parent=39 // pred_check
              _
            $region46: #{dcnn_forward.6} parent=39 // pred_check_branch
              %1424 = sbr.rel (0) target = $region48
            $region47: #{dcnn_forward.6} parent=39 // pred_region
              %s1426 = sshrl.u32 %s1413, 6
              // While loop
              $region49: #{dcnn_forward.6} parent=47 // loop_pre_header
                _
              $region50: #{dcnn_forward.6} parent=47 // loop_header
                %s1428 = sphi 0, %s1430
                %p1429 = scmp.ge.s32.totalorder %s1428, %s1426
                %s1433 = sphi 0, %s1566
                %s1434 = sphi %s1406, %s1569
                %s1435 = sphi %s1417, %s1570
              $region51: #{dcnn_forward.6} parent=47 // loop_header_branch
                %1432 = sbr.rel (%p1429) target = $region55
              $region52: #{dcnn_forward.6} parent=47 // loop_body
                %v1436 = vld [vmem:[%s1434] sm:$0xf]
                %1437 = vst [vmem:[%s1435] sm:$0xf] %v1436
                %v1438 = vld [vmem:[%s1434 + $0x4] sm:$0xf]
                %1439 = vst [vmem:[%s1435 + $0x4] sm:$0xf] %v1438
                %v1440 = vld [vmem:[%s1434 + $0x8] sm:$0xf]
                %1441 = vst [vmem:[%s1435 + $0x8] sm:$0xf] %v1440
                %v1442 = vld [vmem:[%s1434 + $0xc] sm:$0xf]
                %1443 = vst [vmem:[%s1435 + $0xc] sm:$0xf] %v1442
                %v1444 = vld [vmem:[%s1434 + $0x10] sm:$0xf]
                %1445 = vst [vmem:[%s1435 + $0x10] sm:$0xf] %v1444
                %v1446 = vld [vmem:[%s1434 + $0x14] sm:$0xf]
                %1447 = vst [vmem:[%s1435 + $0x14] sm:$0xf] %v1446
                %v1448 = vld [vmem:[%s1434 + $0x18] sm:$0xf]
                %1449 = vst [vmem:[%s1435 + $0x18] sm:$0xf] %v1448
                %v1450 = vld [vmem:[%s1434 + $0x1c] sm:$0xf]
                %1451 = vst [vmem:[%s1435 + $0x1c] sm:$0xf] %v1450
                %v1452 = vld [vmem:[%s1434 + $0x20] sm:$0xf]
                %1453 = vst [vmem:[%s1435 + $0x20] sm:$0xf] %v1452
                %v1454 = vld [vmem:[%s1434 + $0x24] sm:$0xf]
                %1455 = vst [vmem:[%s1435 + $0x24] sm:$0xf] %v1454
                %v1456 = vld [vmem:[%s1434 + $0x28] sm:$0xf]
                %1457 = vst [vmem:[%s1435 + $0x28] sm:$0xf] %v1456
                %v1458 = vld [vmem:[%s1434 + $0x2c] sm:$0xf]
                %1459 = vst [vmem:[%s1435 + $0x2c] sm:$0xf] %v1458
                %v1460 = vld [vmem:[%s1434 + $0x30] sm:$0xf]
                %1461 = vst [vmem:[%s1435 + $0x30] sm:$0xf] %v1460
                %v1462 = vld [vmem:[%s1434 + $0x34] sm:$0xf]
                %1463 = vst [vmem:[%s1435 + $0x34] sm:$0xf] %v1462
                %v1464 = vld [vmem:[%s1434 + $0x38] sm:$0xf]
                %1465 = vst [vmem:[%s1435 + $0x38] sm:$0xf] %v1464
                %v1466 = vld [vmem:[%s1434 + $0x3c] sm:$0xf]
                %1467 = vst [vmem:[%s1435 + $0x3c] sm:$0xf] %v1466
                %v1468 = vld [vmem:[%s1434 + $0x40] sm:$0xf]
                %1469 = vst [vmem:[%s1435 + $0x40] sm:$0xf] %v1468
                %v1470 = vld [vmem:[%s1434 + $0x44] sm:$0xf]
                %1471 = vst [vmem:[%s1435 + $0x44] sm:$0xf] %v1470
                %v1472 = vld [vmem:[%s1434 + $0x48] sm:$0xf]
                %1473 = vst [vmem:[%s1435 + $0x48] sm:$0xf] %v1472
                %v1474 = vld [vmem:[%s1434 + $0x4c] sm:$0xf]
                %1475 = vst [vmem:[%s1435 + $0x4c] sm:$0xf] %v1474
                %v1476 = vld [vmem:[%s1434 + $0x50] sm:$0xf]
                %1477 = vst [vmem:[%s1435 + $0x50] sm:$0xf] %v1476
                %v1478 = vld [vmem:[%s1434 + $0x54] sm:$0xf]
                %1479 = vst [vmem:[%s1435 + $0x54] sm:$0xf] %v1478
                %v1480 = vld [vmem:[%s1434 + $0x58] sm:$0xf]
                %1481 = vst [vmem:[%s1435 + $0x58] sm:$0xf] %v1480
                %v1482 = vld [vmem:[%s1434 + $0x5c] sm:$0xf]
                %1483 = vst [vmem:[%s1435 + $0x5c] sm:$0xf] %v1482
                %v1484 = vld [vmem:[%s1434 + $0x60] sm:$0xf]
                %1485 = vst [vmem:[%s1435 + $0x60] sm:$0xf] %v1484
                %v1486 = vld [vmem:[%s1434 + $0x64] sm:$0xf]
                %1487 = vst [vmem:[%s1435 + $0x64] sm:$0xf] %v1486
                %v1488 = vld [vmem:[%s1434 + $0x68] sm:$0xf]
                %1489 = vst [vmem:[%s1435 + $0x68] sm:$0xf] %v1488
                %v1490 = vld [vmem:[%s1434 + $0x6c] sm:$0xf]
                %1491 = vst [vmem:[%s1435 + $0x6c] sm:$0xf] %v1490
                %v1492 = vld [vmem:[%s1434 + $0x70] sm:$0xf]
                %1493 = vst [vmem:[%s1435 + $0x70] sm:$0xf] %v1492
                %v1494 = vld [vmem:[%s1434 + $0x74] sm:$0xf]
                %1495 = vst [vmem:[%s1435 + $0x74] sm:$0xf] %v1494
                %v1496 = vld [vmem:[%s1434 + $0x78] sm:$0xf]
                %1497 = vst [vmem:[%s1435 + $0x78] sm:$0xf] %v1496
                %v1498 = vld [vmem:[%s1434 + $0x7c] sm:$0xf]
                %1499 = vst [vmem:[%s1435 + $0x7c] sm:$0xf] %v1498
                %v1500 = vld [vmem:[%s1434 + $0x80] sm:$0xf]
                %1501 = vst [vmem:[%s1435 + $0x80] sm:$0xf] %v1500
                %v1502 = vld [vmem:[%s1434 + $0x84] sm:$0xf]
                %1503 = vst [vmem:[%s1435 + $0x84] sm:$0xf] %v1502
                %v1504 = vld [vmem:[%s1434 + $0x88] sm:$0xf]
                %1505 = vst [vmem:[%s1435 + $0x88] sm:$0xf] %v1504
                %v1506 = vld [vmem:[%s1434 + $0x8c] sm:$0xf]
                %1507 = vst [vmem:[%s1435 + $0x8c] sm:$0xf] %v1506
                %v1508 = vld [vmem:[%s1434 + $0x90] sm:$0xf]
                %1509 = vst [vmem:[%s1435 + $0x90] sm:$0xf] %v1508
                %v1510 = vld [vmem:[%s1434 + $0x94] sm:$0xf]
                %1511 = vst [vmem:[%s1435 + $0x94] sm:$0xf] %v1510
                %v1512 = vld [vmem:[%s1434 + $0x98] sm:$0xf]
                %1513 = vst [vmem:[%s1435 + $0x98] sm:$0xf] %v1512
                %v1514 = vld [vmem:[%s1434 + $0x9c] sm:$0xf]
                %1515 = vst [vmem:[%s1435 + $0x9c] sm:$0xf] %v1514
                %v1516 = vld [vmem:[%s1434 + $0xa0] sm:$0xf]
                %1517 = vst [vmem:[%s1435 + $0xa0] sm:$0xf] %v1516
                %v1518 = vld [vmem:[%s1434 + $0xa4] sm:$0xf]
                %1519 = vst [vmem:[%s1435 + $0xa4] sm:$0xf] %v1518
                %v1520 = vld [vmem:[%s1434 + $0xa8] sm:$0xf]
                %1521 = vst [vmem:[%s1435 + $0xa8] sm:$0xf] %v1520
                %v1522 = vld [vmem:[%s1434 + $0xac] sm:$0xf]
                %1523 = vst [vmem:[%s1435 + $0xac] sm:$0xf] %v1522
                %v1524 = vld [vmem:[%s1434 + $0xb0] sm:$0xf]
                %1525 = vst [vmem:[%s1435 + $0xb0] sm:$0xf] %v1524
                %v1526 = vld [vmem:[%s1434 + $0xb4] sm:$0xf]
                %1527 = vst [vmem:[%s1435 + $0xb4] sm:$0xf] %v1526
                %v1528 = vld [vmem:[%s1434 + $0xb8] sm:$0xf]
                %1529 = vst [vmem:[%s1435 + $0xb8] sm:$0xf] %v1528
                %v1530 = vld [vmem:[%s1434 + $0xbc] sm:$0xf]
                %1531 = vst [vmem:[%s1435 + $0xbc] sm:$0xf] %v1530
                %v1532 = vld [vmem:[%s1434 + $0xc0] sm:$0xf]
                %1533 = vst [vmem:[%s1435 + $0xc0] sm:$0xf] %v1532
                %v1534 = vld [vmem:[%s1434 + $0xc4] sm:$0xf]
                %1535 = vst [vmem:[%s1435 + $0xc4] sm:$0xf] %v1534
                %v1536 = vld [vmem:[%s1434 + $0xc8] sm:$0xf]
                %1537 = vst [vmem:[%s1435 + $0xc8] sm:$0xf] %v1536
                %v1538 = vld [vmem:[%s1434 + $0xcc] sm:$0xf]
                %1539 = vst [vmem:[%s1435 + $0xcc] sm:$0xf] %v1538
                %v1540 = vld [vmem:[%s1434 + $0xd0] sm:$0xf]
                %1541 = vst [vmem:[%s1435 + $0xd0] sm:$0xf] %v1540
                %v1542 = vld [vmem:[%s1434 + $0xd4] sm:$0xf]
                %1543 = vst [vmem:[%s1435 + $0xd4] sm:$0xf] %v1542
                %v1544 = vld [vmem:[%s1434 + $0xd8] sm:$0xf]
                %1545 = vst [vmem:[%s1435 + $0xd8] sm:$0xf] %v1544
                %v1546 = vld [vmem:[%s1434 + $0xdc] sm:$0xf]
                %1547 = vst [vmem:[%s1435 + $0xdc] sm:$0xf] %v1546
                %v1548 = vld [vmem:[%s1434 + $0xe0] sm:$0xf]
                %1549 = vst [vmem:[%s1435 + $0xe0] sm:$0xf] %v1548
                %v1550 = vld [vmem:[%s1434 + $0xe4] sm:$0xf]
                %1551 = vst [vmem:[%s1435 + $0xe4] sm:$0xf] %v1550
                %v1552 = vld [vmem:[%s1434 + $0xe8] sm:$0xf]
                %1553 = vst [vmem:[%s1435 + $0xe8] sm:$0xf] %v1552
                %v1554 = vld [vmem:[%s1434 + $0xec] sm:$0xf]
                %1555 = vst [vmem:[%s1435 + $0xec] sm:$0xf] %v1554
                %v1556 = vld [vmem:[%s1434 + $0xf0] sm:$0xf]
                %1557 = vst [vmem:[%s1435 + $0xf0] sm:$0xf] %v1556
                %v1558 = vld [vmem:[%s1434 + $0xf4] sm:$0xf]
                %1559 = vst [vmem:[%s1435 + $0xf4] sm:$0xf] %v1558
                %v1560 = vld [vmem:[%s1434 + $0xf8] sm:$0xf]
                %1561 = vst [vmem:[%s1435 + $0xf8] sm:$0xf] %v1560
                %v1562 = vld [vmem:[%s1434 + $0xfc] sm:$0xf]
                %1563 = vst [vmem:[%s1435 + $0xfc] sm:$0xf] %v1562
                %s1564 = sadd.s32 1, %s1433
                %p1565 = scmp.ge.s32.totalorder %s1564, %s1426
                %s1566 = scalar_select %p1565, 0, %s1564
                %s1567 = smul.u32 %s1566, 256
                %s1568 = smul.u32 %s1566, 256
                %s1569 = scalar_lea.vmem %s1406, %s1567 [#allocation2]
                %s1570 = scalar_lea.vmem %s1417, %s1568
              $region53: #{dcnn_forward.6} parent=47 // loop_footer
                %s1430 = sadd.s32 %s1428, 1
              $region54: #{dcnn_forward.6} parent=47 // loop_footer_branch
                %1427 = sbr.rel target = $region50
              $region55: #{dcnn_forward.6} parent=47 // loop_exit
                _
              %s1571 = sshrl.u32 %s1413, 6
              %s1572 = sand.u32 %s1413, 63
              %s1573 = smul.u32 %s1571, 64
              %s1574 = smul.u32 4, %s1573
              %s1575 = scalar_lea.vmem %s1406, %s1574 [#allocation2]
              %s1576 = smul.u32 4, %s1573
              %s1577 = scalar_lea.vmem %s1417, %s1576
              // While loop
              $region56: #{dcnn_forward.6} parent=47 // loop_pre_header
                _
              $region57: #{dcnn_forward.6} parent=47 // loop_header
                %s1579 = sphi 0, %s1581
                %p1580 = scmp.ge.s32.totalorder %s1579, %s1572
                %s1584 = sphi 0, %s1591
                %s1585 = sphi %s1575, %s1594
                %s1586 = sphi %s1577, %s1595
              $region58: #{dcnn_forward.6} parent=47 // loop_header_branch
                %1583 = sbr.rel (%p1580) target = $region62
              $region59: #{dcnn_forward.6} parent=47 // loop_body
                %v1587 = vld [vmem:[%s1585] sm:$0xf]
                %1588 = vst [vmem:[%s1586] sm:$0xf] %v1587
                %s1589 = sadd.s32 1, %s1584
                %p1590 = scmp.ge.s32.totalorder %s1589, %s1572
                %s1591 = scalar_select %p1590, 0, %s1589
                %s1592 = smul.u32 %s1591, 4
                %s1593 = smul.u32 %s1591, 4
                %s1594 = scalar_lea.vmem %s1575, %s1592 [#allocation2]
                %s1595 = scalar_lea.vmem %s1577, %s1593
              $region60: #{dcnn_forward.6} parent=47 // loop_footer
                %s1581 = sadd.s32 %s1579, 1
              $region61: #{dcnn_forward.6} parent=47 // loop_footer_branch
                %1578 = sbr.rel target = $region57
              $region62: #{dcnn_forward.6} parent=47 // loop_exit
                _
            $region48: #{dcnn_forward.6} parent=39 // pred_fallthru
              _
          $region40: #{dcnn_forward.6} parent=35 // pred_fallthru
            _
          %1769 = vnop
        $region36: #{dcnn_forward.6} parent=31 // pred_fallthru
          _
      $region32: #{dcnn_forward.6} parent=5 // pred_fallthru
        _
      %p1770 = scmp.le.s32.totalorder 2, %s9
      // Predicated region
      $region81: #{dcnn_forward.6} parent=5 // pred_check
        %p1771 = pneg %p1770
      $region82: #{dcnn_forward.6} parent=5 // pred_check_branch
        %1773 = sbr.rel (%p1771) target = $region84
      $region83: #{dcnn_forward.6} parent=5 // pred_region
        %s1774 = ssub.s32 %s9, 2
        // Predicated region
        $region85: #{dcnn_forward.6} parent=83 // pred_check
          %p1775 = pneg %p106
        $region86: #{dcnn_forward.6} parent=83 // pred_check_branch
          %1777 = sbr.rel (%p1775) target = $region88
        $region87: #{dcnn_forward.6} parent=83 // pred_region
          %s1778 = sand.u32 %s91, 1
          %s1779 = sand.u32 %s91, 1
          %s1780 = smul.addr %s1779, 256
          %s1781 = scalar_lea.vmem [#allocation2], %s1780
        $region88: #{dcnn_forward.6} parent=83 // pred_fallthru
          _
      $region84: #{dcnn_forward.6} parent=5 // pred_fallthru
        _
    $region6: #{dcnn_forward.6} parent=1 // loop_footer
      %s13 = sadd.s32 1, %s9
    $region7: #{dcnn_forward.6} parent=1 // loop_footer_branch
      %8 = sbr.rel target = $region3
    $region8: #{dcnn_forward.6} parent=1 // loop_exit
      _

// kernel: dcnn_forward.7
$region0: #{dcnn_forward.7}
  #allocation0 [shape = 'u32[]', space=smem, size = 0x4, offset = 0x4, fixed_abs, tag = 'smem constant byte address 0x4 - core index']
  #allocation1 [shape = 'u32[144,128]{1,0:T(1,128)}', space=vmem, size = 0x12000, scoped, tag = 'internal scratch']
  %s0 = inlined_call_operand.vmem [shape: bf16[200,288], index: 0, kind: input, shape index: {}]
  %s1 = inlined_call_operand.vmem [shape: bf16[288,64], index: 1, kind: input, shape index: {}]
  %s2 = inlined_call_operand.vmem [shape: f32[1,64], index: 2, kind: input, shape index: {}]
  %s3 = inlined_call_operand.vmem [shape: bf16[200,64], index: 3, kind: output, shape index: {}]
  %s4 = sld [smem:[#allocation0]]
  $region22: #{dcnn_forward.7} parent=0
    _
  %s6 = ssub.s32 1, %s4
  %s7 = scalar_select 0, %s6, %s4
  // Predicated region
  $region2: #{dcnn_forward.7} parent=0 // pred_check
    _
  $region3: #{dcnn_forward.7} parent=0 // pred_check_branch
    %9 = sbr.rel (0) target = $region5
  $region4: #{dcnn_forward.7} parent=0 // pred_region
    _
  $region5: #{dcnn_forward.7} parent=0 // pred_fallthru
    _
  // Predicated region
  $region6: #{dcnn_forward.7} parent=0 // pred_check
    _
  $region7: #{dcnn_forward.7} parent=0 // pred_check_branch
    %11 = sbr.rel (0) target = $region9
  $region8: #{dcnn_forward.7} parent=0 // pred_region
    _
  $region9: #{dcnn_forward.7} parent=0 // pred_fallthru
    _
  // Predicated region
  $region10: #{dcnn_forward.7} parent=0 // pred_check
    _
  $region11: #{dcnn_forward.7} parent=0 // pred_check_branch
    %13 = sbr.rel (0) target = $region13
  $region12: #{dcnn_forward.7} parent=0 // pred_region
    _
  $region13: #{dcnn_forward.7} parent=0 // pred_fallthru
    _
  %v15 = vld [vmem:[%s0] sm:$0xff]
  %v16 = vld [vmem:[%s0 + $0x8] sm:$0xf]
  %v17 = vld [vmem:[%s0 + $0xc] sm:$0xff]
  %v18 = vld [vmem:[%s0 + $0x14] sm:$0xf]
  %v19 = vld [vmem:[%s0 + $0x18] sm:$0xff]
  %v20 = vld [vmem:[%s0 + $0x20] sm:$0xf]
  %v21 = vld [vmem:[%s0 + $0x24] sm:$0xff]
  %v22 = vld [vmem:[%s0 + $0x2c] sm:$0xf]
  %v23 = vld [vmem:[%s0 + $0x30] sm:$0xff]
  %v24 = vld [vmem:[%s0 + $0x38] sm:$0xf]
  %v25 = vld [vmem:[%s0 + $0x3c] sm:$0xff]
  %v26 = vld [vmem:[%s0 + $0x44] sm:$0xf]
  %v27 = vld [vmem:[%s0 + $0x48] sm:$0xff]
  %v28 = vld [vmem:[%s0 + $0x50] sm:$0xf]
  %v29 = vld [vmem:[%s0 + $0x54] sm:$0xff]
  %v30 = vld [vmem:[%s0 + $0x5c] sm:$0xf]
  %v31 = vld [vmem:[%s0 + $0x60] sm:$0xff]
  %v32 = vld [vmem:[%s0 + $0x68] sm:$0xf]
  %v33 = vld [vmem:[%s0 + $0x6c] sm:$0xff]
  %v34 = vld [vmem:[%s0 + $0x74] sm:$0xf]
  %v35 = vld [vmem:[%s0 + $0x78] sm:$0xff]
  %v36 = vld [vmem:[%s0 + $0x80] sm:$0xf]
  %v37 = vld [vmem:[%s0 + $0x84] sm:$0xff]
  %v38 = vld [vmem:[%s0 + $0x8c] sm:$0xf]
  %v39 = vld [vmem:[%s0 + $0x90] sm:$0xff]
  %v40 = vld [vmem:[%s0 + $0x98] sm:$0xf]
  %v41 = vld [vmem:[%s0 + $0x9c] sm:$0xff]
  %v42 = vld [vmem:[%s0 + $0xa4] sm:$0xf]
  %v43 = vld [vmem:[%s0 + $0xa8] sm:$0xff]
  %v44 = vld [vmem:[%s0 + $0xb0] sm:$0xf]
  %v45 = vld [vmem:[%s0 + $0xb4] sm:$0xff]
  %v46 = vld [vmem:[%s0 + $0xbc] sm:$0xf]
  %v47 = vld [vmem:[%s0 + $0xc0] sm:$0xff]
  %v48 = vld [vmem:[%s0 + $0xc8] sm:$0xf]
  %v49 = vld [vmem:[%s0 + $0xcc] sm:$0xff]
  %v50 = vld [vmem:[%s0 + $0xd4] sm:$0xf]
  %v51 = vld [vmem:[%s0 + $0xd8] sm:$0xff]
  %v52 = vld [vmem:[%s0 + $0xe0] sm:$0xf]
  %v53 = vld [vmem:[%s0 + $0xe4] sm:$0xff]
  %v54 = vld [vmem:[%s0 + $0xec] sm:$0xf]
  %v55 = vld [vmem:[%s0 + $0xf0] sm:$0xff]
  %v56 = vld [vmem:[%s0 + $0xf8] sm:$0xf]
  %v57 = vld [vmem:[%s0 + $0xfc] sm:$0xff]
  %v58 = vld [vmem:[%s0 + $0x104] sm:$0xf]
  %v59 = vld [vmem:[%s0 + $0x108] sm:$0xff]
  %v60 = vld [vmem:[%s0 + $0x110] sm:$0xf]
  %v61 = vld [vmem:[%s0 + $0x114] sm:$0xff]
  %v62 = vld [vmem:[%s0 + $0x11c] sm:$0xf]
  %v63 = vld [vmem:[%s0 + $0x120] sm:$0xff]
  %v64 = vld [vmem:[%s0 + $0x128] sm:$0xf]
  %v65 = vld [vmem:[%s1] sm:$0xf]
  %v66 = vld [vmem:[%s1 + $0x4] sm:$0xf]
  %v67 = vld [vmem:[%s1 + $0x8] sm:$0xf]
  %v68 = vld [vmem:[%s1 + $0xc] sm:$0xf]
  %v69 = vld [vmem:[%s1 + $0x10] sm:$0xf]
  %v70 = vld [vmem:[%s1 + $0x14] sm:$0xf]
  %v71 = vld [vmem:[%s1 + $0x18] sm:$0xf]
  %v72 = vld [vmem:[%s1 + $0x1c] sm:$0xf]
  %v73 = vld [vmem:[%s1 + $0x20] sm:$0xf]
  %v74 = vld [vmem:[%s1 + $0x24] sm:$0xf]
  %v75 = vld [vmem:[%s1 + $0x28] sm:$0xf]
  %v76 = vld [vmem:[%s1 + $0x2c] sm:$0xf]
  %v77 = vld [vmem:[%s1 + $0x30] sm:$0xf]
  %v78 = vld [vmem:[%s1 + $0x34] sm:$0xf]
  %v79 = vld [vmem:[%s1 + $0x38] sm:$0xf]
  %v80 = vld [vmem:[%s1 + $0x3c] sm:$0xf]
  %v81 = vld [vmem:[%s1 + $0x40] sm:$0xf]
  %v82 = vld [vmem:[%s1 + $0x44] sm:$0xf]
  %v83 = vld [vmem:[%s1 + $0x48] sm:$0xf]
  %v84 = vld [vmem:[%s1 + $0x4c] sm:$0xf]
  %v85 = vld [vmem:[%s1 + $0x50] sm:$0xf]
  %v86 = vld [vmem:[%s1 + $0x54] sm:$0xf]
  %v87 = vld [vmem:[%s1 + $0x58] sm:$0xf]
  %v88 = vld [vmem:[%s1 + $0x5c] sm:$0xf]
  %v89 = vld [vmem:[%s1 + $0x60] sm:$0xf]
  %v90 = vld [vmem:[%s1 + $0x64] sm:$0xf]
  %v91 = vld [vmem:[%s1 + $0x68] sm:$0xf]
  %v92 = vld [vmem:[%s1 + $0x6c] sm:$0xf]
  %v93 = vld [vmem:[%s1 + $0x70] sm:$0xf]
  %v94 = vld [vmem:[%s1 + $0x74] sm:$0xf]
  %v95 = vld [vmem:[%s1 + $0x78] sm:$0xf]
  %v96 = vld [vmem:[%s1 + $0x7c] sm:$0xf]
  %v97 = vld [vmem:[%s1 + $0x80] sm:$0xf]
  %v98 = vld [vmem:[%s1 + $0x84] sm:$0xf]
  %v99 = vld [vmem:[%s1 + $0x88] sm:$0xf]
  %v100 = vld [vmem:[%s1 + $0x8c] sm:$0xf]
  %v101 = vld [vmem:[%s2] sm:$0x1]
  %v103 = vlaneseq
  %v104 = vshrl.u32 %v103, 7
  %v105 = vsub.s32 0, %v104
  %v106 = vrot.slane %v101, %v105
  %v158 = vunpack.c.l.b16 %v15
  %v159 = vunpack.c.h.b16 %v15
  %v160 = vunpack.c.l.b16 %v16
  %v161 = vunpack.c.l.b16 %v17
  %v162 = vunpack.c.h.b16 %v17
  %v163 = vunpack.c.l.b16 %v18
  %v164 = vunpack.c.l.b16 %v19
  %v165 = vunpack.c.h.b16 %v19
  %v166 = vunpack.c.l.b16 %v20
  %v167 = vunpack.c.l.b16 %v21
  %v168 = vunpack.c.h.b16 %v21
  %v169 = vunpack.c.l.b16 %v22
  %v170 = vunpack.c.l.b16 %v23
  %v171 = vunpack.c.h.b16 %v23
  %v172 = vunpack.c.l.b16 %v24
  %v173 = vunpack.c.l.b16 %v25
  %v174 = vunpack.c.h.b16 %v25
  %v175 = vunpack.c.l.b16 %v26
  %v176 = vunpack.c.l.b16 %v27
  %v177 = vunpack.c.h.b16 %v27
  %v178 = vunpack.c.l.b16 %v28
  %v179 = vunpack.c.l.b16 %v29
  %v180 = vunpack.c.h.b16 %v29
  %v181 = vunpack.c.l.b16 %v30
  %v182 = vunpack.c.l.b16 %v31
  %v183 = vunpack.c.h.b16 %v31
  %v184 = vunpack.c.l.b16 %v32
  %v185 = vunpack.c.l.b16 %v33
  %v186 = vunpack.c.h.b16 %v33
  %v187 = vunpack.c.l.b16 %v34
  %v188 = vunpack.c.l.b16 %v35
  %v189 = vunpack.c.h.b16 %v35
  %v190 = vunpack.c.l.b16 %v36
  %v191 = vunpack.c.l.b16 %v37
  %v192 = vunpack.c.h.b16 %v37
  %v193 = vunpack.c.l.b16 %v38
  %v194 = vunpack.c.l.b16 %v39
  %v195 = vunpack.c.h.b16 %v39
  %v196 = vunpack.c.l.b16 %v40
  %v197 = vunpack.c.l.b16 %v41
  %v198 = vunpack.c.h.b16 %v41
  %v199 = vunpack.c.l.b16 %v42
  %v200 = vunpack.c.l.b16 %v43
  %v201 = vunpack.c.h.b16 %v43
  %v202 = vunpack.c.l.b16 %v44
  %v203 = vunpack.c.l.b16 %v45
  %v204 = vunpack.c.h.b16 %v45
  %v205 = vunpack.c.l.b16 %v46
  %v206 = vunpack.c.l.b16 %v47
  %v207 = vunpack.c.h.b16 %v47
  %v208 = vunpack.c.l.b16 %v48
  %v209 = vunpack.c.l.b16 %v49
  %v210 = vunpack.c.h.b16 %v49
  %v211 = vunpack.c.l.b16 %v50
  %v212 = vunpack.c.l.b16 %v51
  %v213 = vunpack.c.h.b16 %v51
  %v214 = vunpack.c.l.b16 %v52
  %v215 = vunpack.c.l.b16 %v53
  %v216 = vunpack.c.h.b16 %v53
  %v217 = vunpack.c.l.b16 %v54
  %v218 = vunpack.c.l.b16 %v55
  %v219 = vunpack.c.h.b16 %v55
  %v220 = vunpack.c.l.b16 %v56
  %v221 = vunpack.c.l.b16 %v57
  %v222 = vunpack.c.h.b16 %v57
  %v223 = vunpack.c.l.b16 %v58
  %v224 = vunpack.c.l.b16 %v59
  %v225 = vunpack.c.h.b16 %v59
  %v226 = vunpack.c.l.b16 %v60
  %v227 = vunpack.c.l.b16 %v61
  %v228 = vunpack.c.h.b16 %v61
  %v229 = vunpack.c.l.b16 %v62
  %v230 = vunpack.c.l.b16 %v63
  %v231 = vunpack.c.h.b16 %v63
  %v232 = vunpack.c.l.b16 %v64
  %v233 = vpack.c.b16 %v161, %v158
  %v234 = vpack.c.b16 %v162, %v159
  %v235 = vpack.c.b16 %v163, %v160
  %v236 = vpack.c.b16 %v167, %v164
  %v237 = vpack.c.b16 %v168, %v165
  %v238 = vpack.c.b16 %v169, %v166
  %v239 = vpack.c.b16 %v173, %v170
  %v240 = vpack.c.b16 %v174, %v171
  %v241 = vpack.c.b16 %v175, %v172
  %v242 = vpack.c.b16 %v179, %v176
  %v243 = vpack.c.b16 %v180, %v177
  %v244 = vpack.c.b16 %v181, %v178
  %v245 = vpack.c.b16 %v185, %v182
  %v246 = vpack.c.b16 %v186, %v183
  %v247 = vpack.c.b16 %v187, %v184
  %v248 = vpack.c.b16 %v191, %v188
  %v249 = vpack.c.b16 %v192, %v189
  %v250 = vpack.c.b16 %v193, %v190
  %v251 = vpack.c.b16 %v197, %v194
  %v252 = vpack.c.b16 %v198, %v195
  %v253 = vpack.c.b16 %v199, %v196
  %v254 = vpack.c.b16 %v203, %v200
  %v255 = vpack.c.b16 %v204, %v201
  %v256 = vpack.c.b16 %v205, %v202
  %v257 = vpack.c.b16 %v209, %v206
  %v258 = vpack.c.b16 %v210, %v207
  %v259 = vpack.c.b16 %v211, %v208
  %v260 = vpack.c.b16 %v215, %v212
  %v261 = vpack.c.b16 %v216, %v213
  %v262 = vpack.c.b16 %v217, %v214
  %v263 = vpack.c.b16 %v221, %v218
  %v264 = vpack.c.b16 %v222, %v219
  %v265 = vpack.c.b16 %v223, %v220
  %v266 = vpack.c.b16 %v227, %v224
  %v267 = vpack.c.b16 %v228, %v225
  %v268 = vpack.c.b16 %v229, %v226
  %v269 = vpack.c.b16 %v230, %v230
  %v270 = vpack.c.b16 %v231, %v231
  %v271 = vpack.c.b16 %v232, %v232
  %v334 = vunpack.c.l.b16 %v65
  %v335 = vunpack.c.l.b16 %v66
  %v336 = vunpack.c.l.b16 %v67
  %v337 = vunpack.c.l.b16 %v68
  %v338 = vunpack.c.l.b16 %v69
  %v339 = vunpack.c.l.b16 %v70
  %v340 = vunpack.c.l.b16 %v71
  %v341 = vunpack.c.l.b16 %v72
  %v342 = vunpack.c.l.b16 %v73
  %v343 = vunpack.c.l.b16 %v74
  %v344 = vunpack.c.l.b16 %v75
  %v345 = vunpack.c.l.b16 %v76
  %v346 = vunpack.c.l.b16 %v77
  %v347 = vunpack.c.l.b16 %v78
  %v348 = vunpack.c.l.b16 %v79
  %v349 = vunpack.c.l.b16 %v80
  %v350 = vunpack.c.l.b16 %v81
  %v351 = vunpack.c.l.b16 %v82
  %v352 = vunpack.c.l.b16 %v83
  %v353 = vunpack.c.l.b16 %v84
  %v354 = vunpack.c.l.b16 %v85
  %v355 = vunpack.c.l.b16 %v86
  %v356 = vunpack.c.l.b16 %v87
  %v357 = vunpack.c.l.b16 %v88
  %v358 = vunpack.c.l.b16 %v89
  %v359 = vunpack.c.l.b16 %v90
  %v360 = vunpack.c.l.b16 %v91
  %v361 = vunpack.c.l.b16 %v92
  %v362 = vunpack.c.l.b16 %v93
  %v363 = vunpack.c.l.b16 %v94
  %v364 = vunpack.c.l.b16 %v95
  %v365 = vunpack.c.l.b16 %v96
  %v366 = vunpack.c.l.b16 %v97
  %v367 = vunpack.c.l.b16 %v98
  %v368 = vunpack.c.l.b16 %v99
  %v369 = vunpack.c.l.b16 %v100
  %v370 = vpack.c.b16 %v335, %v334
  %v371 = vpack.c.b16 %v337, %v336
  %v372 = vpack.c.b16 %v339, %v338
  %v373 = vpack.c.b16 %v341, %v340
  %v374 = vpack.c.b16 %v343, %v342
  %v375 = vpack.c.b16 %v345, %v344
  %v376 = vpack.c.b16 %v347, %v346
  %v377 = vpack.c.b16 %v349, %v348
  %v378 = vpack.c.b16 %v351, %v350
  %v379 = vpack.c.b16 %v353, %v352
  %v380 = vpack.c.b16 %v355, %v354
  %v381 = vpack.c.b16 %v357, %v356
  %v382 = vpack.c.b16 %v359, %v358
  %v383 = vpack.c.b16 %v361, %v360
  %v384 = vpack.c.b16 %v363, %v362
  %v385 = vpack.c.b16 %v365, %v364
  %v386 = vpack.c.b16 %v367, %v366
  %v387 = vpack.c.b16 %v369, %v368
  %vm406 = vcmask 261120
  %v408 = vsel %vm406, %v235, 0
  %v411 = vsel %vm406, %v238, 0
  %v414 = vsel %vm406, %v241, 0
  %v417 = vsel %vm406, %v244, 0
  %v420 = vsel %vm406, %v247, 0
  %v423 = vsel %vm406, %v250, 0
  %v426 = vsel %vm406, %v253, 0
  %v429 = vsel %vm406, %v256, 0
  %v432 = vsel %vm406, %v259, 0
  %v435 = vsel %vm406, %v262, 0
  %v438 = vsel %vm406, %v265, 0
  %v441 = vsel %vm406, %v268, 0
  %v444 = vsel %vm406, %v271, 0
  %446 = vmatprep.subr.bf16.mxu0 0
  %447 = vmatpush1.bf16.msra.mxu0 %v370
  %448 = vmatprep.subr.bf16.mxu0 0
  %449 = vmatpush1.bf16.msra.mxu0 %v371
  %450 = vmatprep.subr.bf16.mxu0 0
  %451 = vmatpush1.bf16.msra.mxu0 %v372
  %452 = vmatprep.subr.bf16.mxu0 0
  %453 = vmatpush1.bf16.msra.mxu0 %v373
  %454 = vmatprep.subr.bf16.mxu0 0
  %455 = vmatpush1.bf16.msra.mxu0 %v374
  %456 = vmatprep.subr.bf16.mxu0 0
  %457 = vmatpush1.bf16.msra.mxu0 %v375
  %458 = vmatprep.subr.bf16.mxu0 0
  %459 = vmatpush1.bf16.msra.mxu0 %v376
  %460 = vmatprep.subr.bf16.mxu0 0
  %461 = vmatpush1.bf16.msra.mxu0 %v377
  %462 = vmatprep.subr.bf16.mxu0 0
  %463 = vmatpush1.bf16.msra.mxu0 %v378
  %464 = vmatprep.subr.bf16.mxu0 0
  %465 = vmatpush1.bf16.msra.mxu0 %v379
  %466 = vmatprep.subr.bf16.mxu0 0
  %467 = vmatpush1.bf16.msra.mxu0 %v380
  %468 = vmatprep.subr.bf16.mxu0 0
  %469 = vmatpush1.bf16.msra.mxu0 %v381
  %470 = vmatprep.subr.bf16.mxu0 0
  %471 = vmatpush1.bf16.msra.mxu0 %v382
  %472 = vmatprep.subr.bf16.mxu0 0
  %473 = vmatpush1.bf16.msra.mxu0 %v383
  %474 = vmatprep.subr.bf16.mxu0 0
  %475 = vmatpush1.bf16.msra.mxu0 %v384
  %476 = vmatprep.subr.bf16.mxu0 0
  %477 = vmatpush1.bf16.msra.mxu0 %v385
  %478 = vmatprep.mubr.bf16.mxu0 %v234
  %479 = vmatmul.mubr.bf16.gmra.mrb[0].mxu0 %v233
  %v480 = vpop.f32.mrb[0].mxu0
  %v481 = vadd.f32 %v106, %v480
  %v482 = vpop.f32.mrb[0].mxu0
  %v483 = vpop.f32.mrb[0].mxu0
  %v484 = vadd.f32 %v106, %v483
  %v485 = vpop.f32.mrb[0].mxu0
  %486 = vmatprep.mubr.bf16.mxu0 %v237
  %487 = vmatmul.mubr.bf16.gmra.mrb[0].mxu0 %v236
  %v488 = vpop.f32.mrb[0].mxu0
  %v489 = vadd.f32 %v106, %v488
  %v490 = vpop.f32.mrb[0].mxu0
  %v491 = vpop.f32.mrb[0].mxu0
  %v492 = vadd.f32 %v106, %v491
  %v493 = vpop.f32.mrb[0].mxu0
  %494 = vmatprep.mubr.bf16.mxu0 %v240
  %495 = vmatmul.mubr.bf16.gmra.mrb[0].mxu0 %v239
  %v496 = vpop.f32.mrb[0].mxu0
  %v497 = vadd.f32 %v106, %v496
  %v498 = vpop.f32.mrb[0].mxu0
  %v499 = vpop.f32.mrb[0].mxu0
  %v500 = vadd.f32 %v106, %v499
  %v501 = vpop.f32.mrb[0].mxu0
  %502 = vmatprep.mubr.bf16.mxu0 %v243
  %503 = vmatmul.mubr.bf16.gmra.mrb[0].mxu0 %v242
  %v504 = vpop.f32.mrb[0].mxu0
  %v505 = vadd.f32 %v106, %v504
  %v506 = vpop.f32.mrb[0].mxu0
  %v507 = vpop.f32.mrb[0].mxu0
  %v508 = vadd.f32 %v106, %v507
  %v509 = vpop.f32.mrb[0].mxu0
  %510 = vmatprep.mubr.bf16.mxu0 %v246
  %511 = vmatmul.mubr.bf16.gmra.mrb[0].mxu0 %v245
  %v512 = vpop.f32.mrb[0].mxu0
  %v513 = vadd.f32 %v106, %v512
  %v514 = vpop.f32.mrb[0].mxu0
  %v515 = vpop.f32.mrb[0].mxu0
  %v516 = vadd.f32 %v106, %v515
  %v517 = vpop.f32.mrb[0].mxu0
  %518 = vmatprep.mubr.bf16.mxu0 %v249
  %519 = vmatmul.mubr.bf16.gmra.mrb[0].mxu0 %v248
  %v520 = vpop.f32.mrb[0].mxu0
  %v521 = vadd.f32 %v106, %v520
  %v522 = vpop.f32.mrb[0].mxu0
  %v523 = vpop.f32.mrb[0].mxu0
  %v524 = vadd.f32 %v106, %v523
  %v525 = vpop.f32.mrb[0].mxu0
  %526 = vmatprep.mubr.bf16.mxu0 %v252
  %527 = vmatmul.mubr.bf16.gmra.mrb[0].mxu0 %v251
  %v528 = vpop.f32.mrb[0].mxu0
  %v529 = vadd.f32 %v106, %v528
  %v530 = vpop.f32.mrb[0].mxu0
  %v531 = vpop.f32.mrb[0].mxu0
  %v532 = vadd.f32 %v106, %v531
  %v533 = vpop.f32.mrb[0].mxu0
  %534 = vmatprep.mubr.bf16.mxu0 %v255
  %535 = vmatmul.mubr.bf16.gmra.mrb[0].mxu0 %v254
  %v536 = vpop.f32.mrb[0].mxu0
  %v537 = vadd.f32 %v106, %v536
  %v538 = vpop.f32.mrb[0].mxu0
  %v539 = vpop.f32.mrb[0].mxu0
  %v540 = vadd.f32 %v106, %v539
  %v541 = vpop.f32.mrb[0].mxu0
  %542 = vmatprep.mubr.bf16.mxu0 %v258
  %543 = vmatmul.mubr.bf16.gmra.mrb[0].mxu0 %v257
  %v544 = vpop.f32.mrb[0].mxu0
  %v545 = vadd.f32 %v106, %v544
  %v546 = vpop.f32.mrb[0].mxu0
  %v547 = vpop.f32.mrb[0].mxu0
  %v548 = vadd.f32 %v106, %v547
  %v549 = vpop.f32.mrb[0].mxu0
  %550 = vmatprep.mubr.bf16.mxu0 %v261
  %551 = vmatmul.mubr.bf16.gmra.mrb[0].mxu0 %v260
  %v552 = vpop.f32.mrb[0].mxu0
  %v553 = vadd.f32 %v106, %v552
  %v554 = vpop.f32.mrb[0].mxu0
  %v555 = vpop.f32.mrb[0].mxu0
  %v556 = vadd.f32 %v106, %v555
  %v557 = vpop.f32.mrb[0].mxu0
  %558 = vmatprep.mubr.bf16.mxu0 %v264
  %559 = vmatmul.mubr.bf16.gmra.mrb[0].mxu0 %v263
  %v560 = vpop.f32.mrb[0].mxu0
  %v561 = vadd.f32 %v106, %v560
  %v562 = vpop.f32.mrb[0].mxu0
  %v563 = vpop.f32.mrb[0].mxu0
  %v564 = vadd.f32 %v106, %v563
  %v565 = vpop.f32.mrb[0].mxu0
  %566 = vmatprep.mubr.bf16.mxu0 %v267
  %567 = vmatmul.mubr.bf16.gmra.mrb[0].mxu0 %v266
  %v568 = vpop.f32.mrb[0].mxu0
  %v569 = vadd.f32 %v106, %v568
  %v570 = vpop.f32.mrb[0].mxu0
  %v571 = vpop.f32.mrb[0].mxu0
  %v572 = vadd.f32 %v106, %v571
  %v573 = vpop.f32.mrb[0].mxu0
  %574 = vmatprep.mubr.bf16.mxu0 %v270
  %575 = vmatmul.mubr.bf16.gmra.mrb[0].mxu0 %v269
  %v576 = vpop.f32.mrb[0].mxu0
  %v577 = vadd.f32 %v106, %v576
  %v578 = vpop.f32.mrb[0].mxu0
  %v579 = vpop.f32.mrb[0].mxu0
  %v580 = vpop.f32.mrb[0].mxu0
  %581 = vdwg.mxu0
  %582 = vmatprep.subr.bf16.mxu0 0
  %583 = vmatpush1.bf16.msra.mxu0 %v386
  %584 = vmatprep.subr.bf16.mxu0 0
  %585 = vmatpush1.bf16.msra.mxu0 %v387
  %586 = vmatprep.subr.bf16.mxu0 0
  %587 = vmatpush1.bf16.msra.mxu0 0
  %588 = vmatprep.subr.bf16.mxu0 0
  %589 = vmatpush1.bf16.msra.mxu0 0
  %590 = vmatprep.subr.bf16.mxu0 0
  %591 = vmatpush1.bf16.msra.mxu0 0
  %592 = vmatprep.subr.bf16.mxu0 0
  %593 = vmatpush1.bf16.msra.mxu0 0
  %594 = vmatprep.subr.bf16.mxu0 0
  %595 = vmatpush1.bf16.msra.mxu0 0
  %596 = vmatprep.subr.bf16.mxu0 0
  %597 = vmatpush1.bf16.msra.mxu0 0
  %598 = vmatprep.subr.bf16.mxu0 0
  %599 = vmatpush1.bf16.msra.mxu0 0
  %600 = vmatprep.subr.bf16.mxu0 0
  %601 = vmatpush1.bf16.msra.mxu0 0
  %602 = vmatprep.subr.bf16.mxu0 0
  %603 = vmatpush1.bf16.msra.mxu0 0
  %604 = vmatprep.subr.bf16.mxu0 0
  %605 = vmatpush1.bf16.msra.mxu0 0
  %606 = vmatprep.subr.bf16.mxu0 0
  %607 = vmatpush1.bf16.msra.mxu0 0
  %608 = vmatprep.subr.bf16.mxu0 0
  %609 = vmatpush1.bf16.msra.mxu0 0
  %610 = vmatprep.subr.bf16.mxu0 0
  %611 = vmatpush1.bf16.msra.mxu0 0
  %612 = vmatprep.subr.bf16.mxu0 0
  %613 = vmatpush1.bf16.msra.mxu0 0
  %614 = vmatprep.mubr.bf16.mxu0 0
  %615 = vmatmul.mubr.bf16.gmra.mrb[0].mxu0 %v408
  %v616 = vpop.f32.mrb[0].mxu0
  %v617 = vadd.f32 %v481, %v616
  %v618 = vpop.f32.mrb[0].mxu0
  %v619 = vpop.f32.mrb[0].mxu0
  %v620 = vadd.f32 %v484, %v619
  %v621 = vpop.f32.mrb[0].mxu0
  %622 = vmatprep.mubr.bf16.mxu0 0
  %623 = vmatmul.mubr.bf16.gmra.mrb[0].mxu0 %v411
  %v624 = vpop.f32.mrb[0].mxu0
  %v625 = vadd.f32 %v489, %v624
  %v626 = vpop.f32.mrb[0].mxu0
  %v627 = vpop.f32.mrb[0].mxu0
  %v628 = vadd.f32 %v492, %v627
  %v629 = vpop.f32.mrb[0].mxu0
  %630 = vmatprep.mubr.bf16.mxu0 0
  %631 = vmatmul.mubr.bf16.gmra.mrb[0].mxu0 %v414
  %v632 = vpop.f32.mrb[0].mxu0
  %v633 = vadd.f32 %v497, %v632
  %v634 = vpop.f32.mrb[0].mxu0
  %v635 = vpop.f32.mrb[0].mxu0
  %v636 = vadd.f32 %v500, %v635
  %v637 = vpop.f32.mrb[0].mxu0
  %638 = vmatprep.mubr.bf16.mxu0 0
  %639 = vmatmul.mubr.bf16.gmra.mrb[0].mxu0 %v417
  %v640 = vpop.f32.mrb[0].mxu0
  %v641 = vadd.f32 %v505, %v640
  %v642 = vpop.f32.mrb[0].mxu0
  %v643 = vpop.f32.mrb[0].mxu0
  %v644 = vadd.f32 %v508, %v643
  %v645 = vpop.f32.mrb[0].mxu0
  %646 = vmatprep.mubr.bf16.mxu0 0
  %647 = vmatmul.mubr.bf16.gmra.mrb[0].mxu0 %v420
  %v648 = vpop.f32.mrb[0].mxu0
  %v649 = vadd.f32 %v513, %v648
  %v650 = vpop.f32.mrb[0].mxu0
  %v651 = vpop.f32.mrb[0].mxu0
  %v652 = vadd.f32 %v516, %v651
  %v653 = vpop.f32.mrb[0].mxu0
  %654 = vmatprep.mubr.bf16.mxu0 0
  %655 = vmatmul.mubr.bf16.gmra.mrb[0].mxu0 %v423
  %v656 = vpop.f32.mrb[0].mxu0
  %v657 = vadd.f32 %v521, %v656
  %v658 = vpop.f32.mrb[0].mxu0
  %v659 = vpop.f32.mrb[0].mxu0
  %v660 = vadd.f32 %v524, %v659
  %v661 = vpop.f32.mrb[0].mxu0
  %662 = vmatprep.mubr.bf16.mxu0 0
  %663 = vmatmul.mubr.bf16.gmra.mrb[0].mxu0 %v426
  %v664 = vpop.f32.mrb[0].mxu0
  %v665 = vadd.f32 %v529, %v664
  %v666 = vpop.f32.mrb[0].mxu0
  %v667 = vpop.f32.mrb[0].mxu0
  %v668 = vadd.f32 %v532, %v667
  %v669 = vpop.f32.mrb[0].mxu0
  %670 = vmatprep.mubr.bf16.mxu0 0
  %671 = vmatmul.mubr.bf16.gmra.mrb[0].mxu0 %v429
  %v672 = vpop.f32.mrb[0].mxu0
  %v673 = vadd.f32 %v537, %v672
  %v674 = vpop.f32.mrb[0].mxu0
  %v675 = vpop.f32.mrb[0].mxu0
  %v676 = vadd.f32 %v540, %v675
  %v677 = vpop.f32.mrb[0].mxu0
  %678 = vmatprep.mubr.bf16.mxu0 0
  %679 = vmatmul.mubr.bf16.gmra.mrb[0].mxu0 %v432
  %v680 = vpop.f32.mrb[0].mxu0
  %v681 = vadd.f32 %v545, %v680
  %v682 = vpop.f32.mrb[0].mxu0
  %v683 = vpop.f32.mrb[0].mxu0
  %v684 = vadd.f32 %v548, %v683
  %v685 = vpop.f32.mrb[0].mxu0
  %686 = vmatprep.mubr.bf16.mxu0 0
  %687 = vmatmul.mubr.bf16.gmra.mrb[0].mxu0 %v435
  %v688 = vpop.f32.mrb[0].mxu0
  %v689 = vadd.f32 %v553, %v688
  %v690 = vpop.f32.mrb[0].mxu0
  %v691 = vpop.f32.mrb[0].mxu0
  %v692 = vadd.f32 %v556, %v691
  %v693 = vpop.f32.mrb[0].mxu0
  %694 = vmatprep.mubr.bf16.mxu0 0
  %695 = vmatmul.mubr.bf16.gmra.mrb[0].mxu0 %v438
  %v696 = vpop.f32.mrb[0].mxu0
  %v697 = vadd.f32 %v561, %v696
  %v698 = vpop.f32.mrb[0].mxu0
  %v699 = vpop.f32.mrb[0].mxu0
  %v700 = vadd.f32 %v564, %v699
  %v701 = vpop.f32.mrb[0].mxu0
  %702 = vmatprep.mubr.bf16.mxu0 0
  %703 = vmatmul.mubr.bf16.gmra.mrb[0].mxu0 %v441
  %v704 = vpop.f32.mrb[0].mxu0
  %v705 = vadd.f32 %v569, %v704
  %v706 = vpop.f32.mrb[0].mxu0
  %v707 = vpop.f32.mrb[0].mxu0
  %v708 = vadd.f32 %v572, %v707
  %v709 = vpop.f32.mrb[0].mxu0
  %710 = vmatprep.mubr.bf16.mxu0 0
  %711 = vmatmul.mubr.bf16.gmra.mrb[0].mxu0 %v444
  %v712 = vpop.f32.mrb[0].mxu0
  %v713 = vadd.f32 %v577, %v712
  %v714 = vpop.f32.mrb[0].mxu0
  %v715 = vpop.f32.mrb[0].mxu0
  %v716 = vpop.f32.mrb[0].mxu0
  %717 = vdwg.mxu0
  %v718 = vmax.f32 %v617, 0.0
  %v719 = vmax.f32 %v620, 0.0
  %v720 = vmax.f32 %v625, 0.0
  %v721 = vmax.f32 %v628, 0.0
  %v722 = vmax.f32 %v633, 0.0
  %v723 = vmax.f32 %v636, 0.0
  %v724 = vmax.f32 %v641, 0.0
  %v725 = vmax.f32 %v644, 0.0
  %v726 = vmax.f32 %v649, 0.0
  %v727 = vmax.f32 %v652, 0.0
  %v728 = vmax.f32 %v657, 0.0
  %v729 = vmax.f32 %v660, 0.0
  %v730 = vmax.f32 %v665, 0.0
  %v731 = vmax.f32 %v668, 0.0
  %v732 = vmax.f32 %v673, 0.0
  %v733 = vmax.f32 %v676, 0.0
  %v734 = vmax.f32 %v681, 0.0
  %v735 = vmax.f32 %v684, 0.0
  %v736 = vmax.f32 %v689, 0.0
  %v737 = vmax.f32 %v692, 0.0
  %v738 = vmax.f32 %v697, 0.0
  %v739 = vmax.f32 %v700, 0.0
  %v740 = vmax.f32 %v705, 0.0
  %v741 = vmax.f32 %v708, 0.0
  %v742 = vmax.f32 %v713, 0.0
  %v743 = vpack.c.bf16 %v719, %v718
  %v744 = vpack.c.bf16 %v721, %v720
  %v745 = vpack.c.bf16 %v723, %v722
  %v746 = vpack.c.bf16 %v725, %v724
  %v747 = vpack.c.bf16 %v727, %v726
  %v748 = vpack.c.bf16 %v729, %v728
  %v749 = vpack.c.bf16 %v731, %v730
  %v750 = vpack.c.bf16 %v733, %v732
  %v751 = vpack.c.bf16 %v735, %v734
  %v752 = vpack.c.bf16 %v737, %v736
  %v753 = vpack.c.bf16 %v739, %v738
  %v754 = vpack.c.bf16 %v741, %v740
  %v755 = vpack.c.bf16 %v742, %v742
  %v769 = vunpack.c.l.b16 %v743
  %v770 = vunpack.c.h.b16 %v743
  %v771 = vunpack.c.l.b16 %v744
  %v772 = vunpack.c.h.b16 %v744
  %v773 = vunpack.c.l.b16 %v745
  %v774 = vunpack.c.h.b16 %v745
  %v775 = vunpack.c.l.b16 %v746
  %v776 = vunpack.c.h.b16 %v746
  %v777 = vunpack.c.l.b16 %v747
  %v778 = vunpack.c.h.b16 %v747
  %v779 = vunpack.c.l.b16 %v748
  %v780 = vunpack.c.h.b16 %v748
  %v781 = vunpack.c.l.b16 %v749
  %v782 = vunpack.c.h.b16 %v749
  %v783 = vunpack.c.l.b16 %v750
  %v784 = vunpack.c.h.b16 %v750
  %v785 = vunpack.c.l.b16 %v751
  %v786 = vunpack.c.h.b16 %v751
  %v787 = vunpack.c.l.b16 %v752
  %v788 = vunpack.c.h.b16 %v752
  %v789 = vunpack.c.l.b16 %v753
  %v790 = vunpack.c.h.b16 %v753
  %v791 = vunpack.c.l.b16 %v754
  %v792 = vunpack.c.h.b16 %v754
  %v793 = vunpack.c.l.b16 %v755
  %v794 = vpack.c.b16 %v769, %v769
  %v795 = vpack.c.b16 %v770, %v770
  %v796 = vpack.c.b16 %v771, %v771
  %v797 = vpack.c.b16 %v772, %v772
  %v798 = vpack.c.b16 %v773, %v773
  %v799 = vpack.c.b16 %v774, %v774
  %v800 = vpack.c.b16 %v775, %v775
  %v801 = vpack.c.b16 %v776, %v776
  %v802 = vpack.c.b16 %v777, %v777
  %v803 = vpack.c.b16 %v778, %v778
  %v804 = vpack.c.b16 %v779, %v779
  %v805 = vpack.c.b16 %v780, %v780
  %v806 = vpack.c.b16 %v781, %v781
  %v807 = vpack.c.b16 %v782, %v782
  %v808 = vpack.c.b16 %v783, %v783
  %v809 = vpack.c.b16 %v784, %v784
  %v810 = vpack.c.b16 %v785, %v785
  %v811 = vpack.c.b16 %v786, %v786
  %v812 = vpack.c.b16 %v787, %v787
  %v813 = vpack.c.b16 %v788, %v788
  %v814 = vpack.c.b16 %v789, %v789
  %v815 = vpack.c.b16 %v790, %v790
  %v816 = vpack.c.b16 %v791, %v791
  %v817 = vpack.c.b16 %v792, %v792
  %v818 = vpack.c.b16 %v793, %v793
  %vm844 = vcmask 519168
  %845 = vst.msk [vmem:[%s3] sm:$0xf] %vm844, %v794
  %846 = vst.msk [vmem:[%s3 + $0x4] sm:$0xf] %vm844, %v795
  %847 = vst.msk [vmem:[%s3 + $0x8] sm:$0xf] %vm844, %v796
  %848 = vst.msk [vmem:[%s3 + $0xc] sm:$0xf] %vm844, %v797
  %849 = vst.msk [vmem:[%s3 + $0x10] sm:$0xf] %vm844, %v798
  %850 = vst.msk [vmem:[%s3 + $0x14] sm:$0xf] %vm844, %v799
  %851 = vst.msk [vmem:[%s3 + $0x18] sm:$0xf] %vm844, %v800
  %852 = vst.msk [vmem:[%s3 + $0x1c] sm:$0xf] %vm844, %v801
  %853 = vst.msk [vmem:[%s3 + $0x20] sm:$0xf] %vm844, %v802
  %854 = vst.msk [vmem:[%s3 + $0x24] sm:$0xf] %vm844, %v803
  %855 = vst.msk [vmem:[%s3 + $0x28] sm:$0xf] %vm844, %v804
  %856 = vst.msk [vmem:[%s3 + $0x2c] sm:$0xf] %vm844, %v805
  %857 = vst.msk [vmem:[%s3 + $0x30] sm:$0xf] %vm844, %v806
  %858 = vst.msk [vmem:[%s3 + $0x34] sm:$0xf] %vm844, %v807
  %859 = vst.msk [vmem:[%s3 + $0x38] sm:$0xf] %vm844, %v808
  %860 = vst.msk [vmem:[%s3 + $0x3c] sm:$0xf] %vm844, %v809
  %861 = vst.msk [vmem:[%s3 + $0x40] sm:$0xf] %vm844, %v810
  %862 = vst.msk [vmem:[%s3 + $0x44] sm:$0xf] %vm844, %v811
  %863 = vst.msk [vmem:[%s3 + $0x48] sm:$0xf] %vm844, %v812
  %864 = vst.msk [vmem:[%s3 + $0x4c] sm:$0xf] %vm844, %v813
  %865 = vst.msk [vmem:[%s3 + $0x50] sm:$0xf] %vm844, %v814
  %866 = vst.msk [vmem:[%s3 + $0x54] sm:$0xf] %vm844, %v815
  %867 = vst.msk [vmem:[%s3 + $0x58] sm:$0xf] %vm844, %v816
  %868 = vst.msk [vmem:[%s3 + $0x5c] sm:$0xf] %vm844, %v817
  %869 = vst.msk [vmem:[%s3 + $0x60] sm:$0xf] %vm844, %v818
  // Predicated region
  $region14: #{dcnn_forward.7} parent=0 // pred_check
    _
  $region15: #{dcnn_forward.7} parent=0 // pred_check_branch
    %871 = sbr.rel (0) target = $region17
  $region16: #{dcnn_forward.7} parent=0 // pred_region
    _
  $region17: #{dcnn_forward.7} parent=0 // pred_fallthru
    _
  // Predicated region
  $region18: #{dcnn_forward.7} parent=0 // pred_check
    _
  $region19: #{dcnn_forward.7} parent=0 // pred_check_branch
    %873 = sbr.rel (0) target = $region21
  $region20: #{dcnn_forward.7} parent=0 // pred_region
    _
  $region21: #{dcnn_forward.7} parent=0 // pred_fallthru
    _

// kernel: dcnn_forward.8
$region0: #{dcnn_forward.8}
  #allocation0 [shape = 'u32[]', space=smem, size = 0x4, offset = 0x4, fixed_abs, tag = 'smem constant byte address 0x4 - core index']
  #allocation1 [shape = 'u32[144,128]{1,0:T(1,128)}', space=vmem, size = 0x12000, scoped, tag = 'internal scratch']
  %s0 = inlined_call_operand.vmem [shape: bf16[128,576], index: 0, kind: input, shape index: {}]
  %s1 = inlined_call_operand.vmem [shape: bf16[576,128], index: 1, kind: input, shape index: {}]
  %s2 = inlined_call_operand.vmem [shape: f32[1,128], index: 2, kind: input, shape index: {}]
  %s3 = inlined_call_operand.vmem [shape: bf16[128,128], index: 3, kind: output, shape index: {}]
  %s4 = sld [smem:[#allocation0]]
  $region22: #{dcnn_forward.8} parent=0
    _
  %s6 = ssub.s32 1, %s4
  %s7 = scalar_select 0, %s6, %s4
  // Predicated region
  $region2: #{dcnn_forward.8} parent=0 // pred_check
    _
  $region3: #{dcnn_forward.8} parent=0 // pred_check_branch
    %9 = sbr.rel (0) target = $region5
  $region4: #{dcnn_forward.8} parent=0 // pred_region
    _
  $region5: #{dcnn_forward.8} parent=0 // pred_fallthru
    _
  // Predicated region
  $region6: #{dcnn_forward.8} parent=0 // pred_check
    _
  $region7: #{dcnn_forward.8} parent=0 // pred_check_branch
    %11 = sbr.rel (0) target = $region9
  $region8: #{dcnn_forward.8} parent=0 // pred_region
    _
  $region9: #{dcnn_forward.8} parent=0 // pred_fallthru
    _
  // Predicated region
  $region10: #{dcnn_forward.8} parent=0 // pred_check
    _
  $region11: #{dcnn_forward.8} parent=0 // pred_check_branch
    %13 = sbr.rel (0) target = $region13
  $region12: #{dcnn_forward.8} parent=0 // pred_region
    _
  $region13: #{dcnn_forward.8} parent=0 // pred_fallthru
    _
  %v15 = vld [vmem:[%s0] sm:$0xff]
  %v16 = vld [vmem:[%s0 + $0x8] sm:$0xff]
  %v17 = vld [vmem:[%s0 + $0x10] sm:$0xf]
  %v18 = vld [vmem:[%s0 + $0x14] sm:$0xff]
  %v19 = vld [vmem:[%s0 + $0x1c] sm:$0xff]
  %v20 = vld [vmem:[%s0 + $0x24] sm:$0xf]
  %v21 = vld [vmem:[%s0 + $0x28] sm:$0xff]
  %v22 = vld [vmem:[%s0 + $0x30] sm:$0xff]
  %v23 = vld [vmem:[%s0 + $0x38] sm:$0xf]
  %v24 = vld [vmem:[%s0 + $0x3c] sm:$0xff]
  %v25 = vld [vmem:[%s0 + $0x44] sm:$0xff]
  %v26 = vld [vmem:[%s0 + $0x4c] sm:$0xf]
  %v27 = vld [vmem:[%s0 + $0x50] sm:$0xff]
  %v28 = vld [vmem:[%s0 + $0x58] sm:$0xff]
  %v29 = vld [vmem:[%s0 + $0x60] sm:$0xf]
  %v30 = vld [vmem:[%s0 + $0x64] sm:$0xff]
  %v31 = vld [vmem:[%s0 + $0x6c] sm:$0xff]
  %v32 = vld [vmem:[%s0 + $0x74] sm:$0xf]
  %v33 = vld [vmem:[%s0 + $0x78] sm:$0xff]
  %v34 = vld [vmem:[%s0 + $0x80] sm:$0xff]
  %v35 = vld [vmem:[%s0 + $0x88] sm:$0xf]
  %v36 = vld [vmem:[%s0 + $0x8c] sm:$0xff]
  %v37 = vld [vmem:[%s0 + $0x94] sm:$0xff]
  %v38 = vld [vmem:[%s0 + $0x9c] sm:$0xf]
  %v39 = vld [vmem:[%s0 + $0xa0] sm:$0xff]
  %v40 = vld [vmem:[%s0 + $0xa8] sm:$0xff]
  %v41 = vld [vmem:[%s0 + $0xb0] sm:$0xf]
  %v42 = vld [vmem:[%s0 + $0xb4] sm:$0xff]
  %v43 = vld [vmem:[%s0 + $0xbc] sm:$0xff]
  %v44 = vld [vmem:[%s0 + $0xc4] sm:$0xf]
  %v45 = vld [vmem:[%s0 + $0xc8] sm:$0xff]
  %v46 = vld [vmem:[%s0 + $0xd0] sm:$0xff]
  %v47 = vld [vmem:[%s0 + $0xd8] sm:$0xf]
  %v48 = vld [vmem:[%s0 + $0xdc] sm:$0xff]
  %v49 = vld [vmem:[%s0 + $0xe4] sm:$0xff]
  %v50 = vld [vmem:[%s0 + $0xec] sm:$0xf]
  %v51 = vld [vmem:[%s0 + $0xf0] sm:$0xff]
  %v52 = vld [vmem:[%s0 + $0xf8] sm:$0xff]
  %v53 = vld [vmem:[%s0 + $0x100] sm:$0xf]
  %v54 = vld [vmem:[%s0 + $0x104] sm:$0xff]
  %v55 = vld [vmem:[%s0 + $0x10c] sm:$0xff]
  %v56 = vld [vmem:[%s0 + $0x114] sm:$0xf]
  %v57 = vld [vmem:[%s0 + $0x118] sm:$0xff]
  %v58 = vld [vmem:[%s0 + $0x120] sm:$0xff]
  %v59 = vld [vmem:[%s0 + $0x128] sm:$0xf]
  %v60 = vld [vmem:[%s0 + $0x12c] sm:$0xff]
  %v61 = vld [vmem:[%s0 + $0x134] sm:$0xff]
  %v62 = vld [vmem:[%s0 + $0x13c] sm:$0xf]
  %v63 = vld [vmem:[%s1] sm:$0xf]
  %v64 = vld [vmem:[%s1 + $0x4] sm:$0xf]
  %v65 = vld [vmem:[%s1 + $0x8] sm:$0xf]
  %v66 = vld [vmem:[%s1 + $0xc] sm:$0xf]
  %v67 = vld [vmem:[%s1 + $0x10] sm:$0xf]
  %v68 = vld [vmem:[%s1 + $0x14] sm:$0xf]
  %v69 = vld [vmem:[%s1 + $0x18] sm:$0xf]
  %v70 = vld [vmem:[%s1 + $0x1c] sm:$0xf]
  %v71 = vld [vmem:[%s1 + $0x20] sm:$0xf]
  %v72 = vld [vmem:[%s1 + $0x24] sm:$0xf]
  %v73 = vld [vmem:[%s1 + $0x28] sm:$0xf]
  %v74 = vld [vmem:[%s1 + $0x2c] sm:$0xf]
  %v75 = vld [vmem:[%s1 + $0x30] sm:$0xf]
  %v76 = vld [vmem:[%s1 + $0x34] sm:$0xf]
  %v77 = vld [vmem:[%s1 + $0x38] sm:$0xf]
  %v78 = vld [vmem:[%s1 + $0x3c] sm:$0xf]
  %v79 = vld [vmem:[%s1 + $0x40] sm:$0xf]
  %v80 = vld [vmem:[%s1 + $0x44] sm:$0xf]
  %v81 = vld [vmem:[%s1 + $0x48] sm:$0xf]
  %v82 = vld [vmem:[%s1 + $0x4c] sm:$0xf]
  %v83 = vld [vmem:[%s1 + $0x50] sm:$0xf]
  %v84 = vld [vmem:[%s1 + $0x54] sm:$0xf]
  %v85 = vld [vmem:[%s1 + $0x58] sm:$0xf]
  %v86 = vld [vmem:[%s1 + $0x5c] sm:$0xf]
  %v87 = vld [vmem:[%s1 + $0x60] sm:$0xf]
  %v88 = vld [vmem:[%s1 + $0x64] sm:$0xf]
  %v89 = vld [vmem:[%s1 + $0x68] sm:$0xf]
  %v90 = vld [vmem:[%s1 + $0x6c] sm:$0xf]
  %v91 = vld [vmem:[%s1 + $0x70] sm:$0xf]
  %v92 = vld [vmem:[%s1 + $0x74] sm:$0xf]
  %v93 = vld [vmem:[%s1 + $0x78] sm:$0xf]
  %v94 = vld [vmem:[%s1 + $0x7c] sm:$0xf]
  %v95 = vld [vmem:[%s1 + $0x80] sm:$0xf]
  %v96 = vld [vmem:[%s1 + $0x84] sm:$0xf]
  %v97 = vld [vmem:[%s1 + $0x88] sm:$0xf]
  %v98 = vld [vmem:[%s1 + $0x8c] sm:$0xf]
  %v99 = vld [vmem:[%s1 + $0x90] sm:$0xf]
  %v100 = vld [vmem:[%s1 + $0x94] sm:$0xf]
  %v101 = vld [vmem:[%s1 + $0x98] sm:$0xf]
  %v102 = vld [vmem:[%s1 + $0x9c] sm:$0xf]
  %v103 = vld [vmem:[%s1 + $0xa0] sm:$0xf]
  %v104 = vld [vmem:[%s1 + $0xa4] sm:$0xf]
  %v105 = vld [vmem:[%s1 + $0xa8] sm:$0xf]
  %v106 = vld [vmem:[%s1 + $0xac] sm:$0xf]
  %v107 = vld [vmem:[%s1 + $0xb0] sm:$0xf]
  %v108 = vld [vmem:[%s1 + $0xb4] sm:$0xf]
  %v109 = vld [vmem:[%s1 + $0xb8] sm:$0xf]
  %v110 = vld [vmem:[%s1 + $0xbc] sm:$0xf]
  %v111 = vld [vmem:[%s1 + $0xc0] sm:$0xf]
  %v112 = vld [vmem:[%s1 + $0xc4] sm:$0xf]
  %v113 = vld [vmem:[%s1 + $0xc8] sm:$0xf]
  %v114 = vld [vmem:[%s1 + $0xcc] sm:$0xf]
  %v115 = vld [vmem:[%s1 + $0xd0] sm:$0xf]
  %v116 = vld [vmem:[%s1 + $0xd4] sm:$0xf]
  %v117 = vld [vmem:[%s1 + $0xd8] sm:$0xf]
  %v118 = vld [vmem:[%s1 + $0xdc] sm:$0xf]
  %v119 = vld [vmem:[%s1 + $0xe0] sm:$0xf]
  %v120 = vld [vmem:[%s1 + $0xe4] sm:$0xf]
  %v121 = vld [vmem:[%s1 + $0xe8] sm:$0xf]
  %v122 = vld [vmem:[%s1 + $0xec] sm:$0xf]
  %v123 = vld [vmem:[%s1 + $0xf0] sm:$0xf]
  %v124 = vld [vmem:[%s1 + $0xf4] sm:$0xf]
  %v125 = vld [vmem:[%s1 + $0xf8] sm:$0xf]
  %v126 = vld [vmem:[%s1 + $0xfc] sm:$0xf]
  %v127 = vld [vmem:[%s1 + $0x100] sm:$0xf]
  %v128 = vld [vmem:[%s1 + $0x104] sm:$0xf]
  %v129 = vld [vmem:[%s1 + $0x108] sm:$0xf]
  %v130 = vld [vmem:[%s1 + $0x10c] sm:$0xf]
  %v131 = vld [vmem:[%s1 + $0x110] sm:$0xf]
  %v132 = vld [vmem:[%s1 + $0x114] sm:$0xf]
  %v133 = vld [vmem:[%s1 + $0x118] sm:$0xf]
  %v134 = vld [vmem:[%s1 + $0x11c] sm:$0xf]
  %v135 = vld [vmem:[%s2] sm:$0x1]
  %v137 = vlaneseq
  %v138 = vshrl.u32 %v137, 7
  %v139 = vsub.s32 0, %v138
  %v140 = vrot.slane %v135, %v139
  %v190 = vunpack.c.l.b16 %v15
  %v191 = vunpack.c.h.b16 %v15
  %v192 = vunpack.c.l.b16 %v16
  %v193 = vunpack.c.h.b16 %v16
  %v194 = vunpack.c.l.b16 %v17
  %v195 = vunpack.c.l.b16 %v18
  %v196 = vunpack.c.h.b16 %v18
  %v197 = vunpack.c.l.b16 %v19
  %v198 = vunpack.c.h.b16 %v19
  %v199 = vunpack.c.l.b16 %v20
  %v200 = vunpack.c.l.b16 %v21
  %v201 = vunpack.c.h.b16 %v21
  %v202 = vunpack.c.l.b16 %v22
  %v203 = vunpack.c.h.b16 %v22
  %v204 = vunpack.c.l.b16 %v23
  %v205 = vunpack.c.l.b16 %v24
  %v206 = vunpack.c.h.b16 %v24
  %v207 = vunpack.c.l.b16 %v25
  %v208 = vunpack.c.h.b16 %v25
  %v209 = vunpack.c.l.b16 %v26
  %v210 = vunpack.c.l.b16 %v27
  %v211 = vunpack.c.h.b16 %v27
  %v212 = vunpack.c.l.b16 %v28
  %v213 = vunpack.c.h.b16 %v28
  %v214 = vunpack.c.l.b16 %v29
  %v215 = vunpack.c.l.b16 %v30
  %v216 = vunpack.c.h.b16 %v30
  %v217 = vunpack.c.l.b16 %v31
  %v218 = vunpack.c.h.b16 %v31
  %v219 = vunpack.c.l.b16 %v32
  %v220 = vunpack.c.l.b16 %v33
  %v221 = vunpack.c.h.b16 %v33
  %v222 = vunpack.c.l.b16 %v34
  %v223 = vunpack.c.h.b16 %v34
  %v224 = vunpack.c.l.b16 %v35
  %v225 = vunpack.c.l.b16 %v36
  %v226 = vunpack.c.h.b16 %v36
  %v227 = vunpack.c.l.b16 %v37
  %v228 = vunpack.c.h.b16 %v37
  %v229 = vunpack.c.l.b16 %v38
  %v230 = vunpack.c.l.b16 %v39
  %v231 = vunpack.c.h.b16 %v39
  %v232 = vunpack.c.l.b16 %v40
  %v233 = vunpack.c.h.b16 %v40
  %v234 = vunpack.c.l.b16 %v41
  %v235 = vunpack.c.l.b16 %v42
  %v236 = vunpack.c.h.b16 %v42
  %v237 = vunpack.c.l.b16 %v43
  %v238 = vunpack.c.h.b16 %v43
  %v239 = vunpack.c.l.b16 %v44
  %v240 = vunpack.c.l.b16 %v45
  %v241 = vunpack.c.h.b16 %v45
  %v242 = vunpack.c.l.b16 %v46
  %v243 = vunpack.c.h.b16 %v46
  %v244 = vunpack.c.l.b16 %v47
  %v245 = vunpack.c.l.b16 %v48
  %v246 = vunpack.c.h.b16 %v48
  %v247 = vunpack.c.l.b16 %v49
  %v248 = vunpack.c.h.b16 %v49
  %v249 = vunpack.c.l.b16 %v50
  %v250 = vunpack.c.l.b16 %v51
  %v251 = vunpack.c.h.b16 %v51
  %v252 = vunpack.c.l.b16 %v52
  %v253 = vunpack.c.h.b16 %v52
  %v254 = vunpack.c.l.b16 %v53
  %v255 = vunpack.c.l.b16 %v54
  %v256 = vunpack.c.h.b16 %v54
  %v257 = vunpack.c.l.b16 %v55
  %v258 = vunpack.c.h.b16 %v55
  %v259 = vunpack.c.l.b16 %v56
  %v260 = vunpack.c.l.b16 %v57
  %v261 = vunpack.c.h.b16 %v57
  %v262 = vunpack.c.l.b16 %v58
  %v263 = vunpack.c.h.b16 %v58
  %v264 = vunpack.c.l.b16 %v59
  %v265 = vunpack.c.l.b16 %v60
  %v266 = vunpack.c.h.b16 %v60
  %v267 = vunpack.c.l.b16 %v61
  %v268 = vunpack.c.h.b16 %v61
  %v269 = vunpack.c.l.b16 %v62
  %v270 = vpack.c.b16 %v195, %v190
  %v271 = vpack.c.b16 %v196, %v191
  %v272 = vpack.c.b16 %v197, %v192
  %v273 = vpack.c.b16 %v198, %v193
  %v274 = vpack.c.b16 %v199, %v194
  %v275 = vpack.c.b16 %v205, %v200
  %v276 = vpack.c.b16 %v206, %v201
  %v277 = vpack.c.b16 %v207, %v202
  %v278 = vpack.c.b16 %v208, %v203
  %v279 = vpack.c.b16 %v209, %v204
  %v280 = vpack.c.b16 %v215, %v210
  %v281 = vpack.c.b16 %v216, %v211
  %v282 = vpack.c.b16 %v217, %v212
  %v283 = vpack.c.b16 %v218, %v213
  %v284 = vpack.c.b16 %v219, %v214
  %v285 = vpack.c.b16 %v225, %v220
  %v286 = vpack.c.b16 %v226, %v221
  %v287 = vpack.c.b16 %v227, %v222
  %v288 = vpack.c.b16 %v228, %v223
  %v289 = vpack.c.b16 %v229, %v224
  %v290 = vpack.c.b16 %v235, %v230
  %v291 = vpack.c.b16 %v236, %v231
  %v292 = vpack.c.b16 %v237, %v232
  %v293 = vpack.c.b16 %v238, %v233
  %v294 = vpack.c.b16 %v239, %v234
  %v295 = vpack.c.b16 %v245, %v240
  %v296 = vpack.c.b16 %v246, %v241
  %v297 = vpack.c.b16 %v247, %v242
  %v298 = vpack.c.b16 %v248, %v243
  %v299 = vpack.c.b16 %v249, %v244
  %v300 = vpack.c.b16 %v255, %v250
  %v301 = vpack.c.b16 %v256, %v251
  %v302 = vpack.c.b16 %v257, %v252
  %v303 = vpack.c.b16 %v258, %v253
  %v304 = vpack.c.b16 %v259, %v254
  %v305 = vpack.c.b16 %v265, %v260
  %v306 = vpack.c.b16 %v266, %v261
  %v307 = vpack.c.b16 %v267, %v262
  %v308 = vpack.c.b16 %v268, %v263
  %v309 = vpack.c.b16 %v269, %v264
  %v414 = vunpack.c.l.b16 %v63
  %v415 = vunpack.c.l.b16 %v64
  %v416 = vunpack.c.l.b16 %v65
  %v417 = vunpack.c.l.b16 %v66
  %v418 = vunpack.c.l.b16 %v67
  %v419 = vunpack.c.l.b16 %v68
  %v420 = vunpack.c.l.b16 %v69
  %v421 = vunpack.c.l.b16 %v70
  %v422 = vunpack.c.l.b16 %v71
  %v423 = vunpack.c.l.b16 %v72
  %v424 = vunpack.c.l.b16 %v73
  %v425 = vunpack.c.l.b16 %v74
  %v426 = vunpack.c.l.b16 %v75
  %v427 = vunpack.c.l.b16 %v76
  %v428 = vunpack.c.l.b16 %v77
  %v429 = vunpack.c.l.b16 %v78
  %v430 = vunpack.c.l.b16 %v79
  %v431 = vunpack.c.l.b16 %v80
  %v432 = vunpack.c.l.b16 %v81
  %v433 = vunpack.c.l.b16 %v82
  %v434 = vunpack.c.l.b16 %v83
  %v435 = vunpack.c.l.b16 %v84
  %v436 = vunpack.c.l.b16 %v85
  %v437 = vunpack.c.l.b16 %v86
  %v438 = vunpack.c.l.b16 %v87
  %v439 = vunpack.c.l.b16 %v88
  %v440 = vunpack.c.l.b16 %v89
  %v441 = vunpack.c.l.b16 %v90
  %v442 = vunpack.c.l.b16 %v91
  %v443 = vunpack.c.l.b16 %v92
  %v444 = vunpack.c.l.b16 %v93
  %v445 = vunpack.c.l.b16 %v94
  %v446 = vunpack.c.l.b16 %v95
  %v447 = vunpack.c.l.b16 %v96
  %v448 = vunpack.c.l.b16 %v97
  %v449 = vunpack.c.l.b16 %v98
  %v450 = vunpack.c.l.b16 %v99
  %v451 = vunpack.c.l.b16 %v100
  %v452 = vunpack.c.l.b16 %v101
  %v453 = vunpack.c.l.b16 %v102
  %v454 = vunpack.c.l.b16 %v103
  %v455 = vunpack.c.l.b16 %v104
  %v456 = vunpack.c.l.b16 %v105
  %v457 = vunpack.c.l.b16 %v106
  %v458 = vunpack.c.l.b16 %v107
  %v459 = vunpack.c.l.b16 %v108
  %v460 = vunpack.c.l.b16 %v109
  %v461 = vunpack.c.l.b16 %v110
  %v462 = vunpack.c.l.b16 %v111
  %v463 = vunpack.c.l.b16 %v112
  %v464 = vunpack.c.l.b16 %v113
  %v465 = vunpack.c.l.b16 %v114
  %v466 = vunpack.c.l.b16 %v115
  %v467 = vunpack.c.l.b16 %v116
  %v468 = vunpack.c.l.b16 %v117
  %v469 = vunpack.c.l.b16 %v118
  %v470 = vunpack.c.l.b16 %v119
  %v471 = vunpack.c.l.b16 %v120
  %v472 = vunpack.c.l.b16 %v121
  %v473 = vunpack.c.l.b16 %v122
  %v474 = vunpack.c.l.b16 %v123
  %v475 = vunpack.c.l.b16 %v124
  %v476 = vunpack.c.l.b16 %v125
  %v477 = vunpack.c.l.b16 %v126
  %v478 = vunpack.c.l.b16 %v127
  %v479 = vunpack.c.l.b16 %v128
  %v480 = vunpack.c.l.b16 %v129
  %v481 = vunpack.c.l.b16 %v130
  %v482 = vunpack.c.l.b16 %v131
  %v483 = vunpack.c.l.b16 %v132
  %v484 = vunpack.c.l.b16 %v133
  %v485 = vunpack.c.l.b16 %v134
  %v486 = vpack.c.b16 %v415, %v414
  %v487 = vpack.c.b16 %v417, %v416
  %v488 = vpack.c.b16 %v419, %v418
  %v489 = vpack.c.b16 %v421, %v420
  %v490 = vpack.c.b16 %v423, %v422
  %v491 = vpack.c.b16 %v425, %v424
  %v492 = vpack.c.b16 %v427, %v426
  %v493 = vpack.c.b16 %v429, %v428
  %v494 = vpack.c.b16 %v431, %v430
  %v495 = vpack.c.b16 %v433, %v432
  %v496 = vpack.c.b16 %v435, %v434
  %v497 = vpack.c.b16 %v437, %v436
  %v498 = vpack.c.b16 %v439, %v438
  %v499 = vpack.c.b16 %v441, %v440
  %v500 = vpack.c.b16 %v443, %v442
  %v501 = vpack.c.b16 %v445, %v444
  %v502 = vpack.c.b16 %v447, %v446
  %v503 = vpack.c.b16 %v449, %v448
  %v504 = vpack.c.b16 %v451, %v450
  %v505 = vpack.c.b16 %v453, %v452
  %v506 = vpack.c.b16 %v455, %v454
  %v507 = vpack.c.b16 %v457, %v456
  %v508 = vpack.c.b16 %v459, %v458
  %v509 = vpack.c.b16 %v461, %v460
  %v510 = vpack.c.b16 %v463, %v462
  %v511 = vpack.c.b16 %v465, %v464
  %v512 = vpack.c.b16 %v467, %v466
  %v513 = vpack.c.b16 %v469, %v468
  %v514 = vpack.c.b16 %v471, %v470
  %v515 = vpack.c.b16 %v473, %v472
  %v516 = vpack.c.b16 %v475, %v474
  %v517 = vpack.c.b16 %v477, %v476
  %v518 = vpack.c.b16 %v479, %v478
  %v519 = vpack.c.b16 %v481, %v480
  %v520 = vpack.c.b16 %v483, %v482
  %v521 = vpack.c.b16 %v485, %v484
  %vm558 = vcmask 523264
  %v560 = vsel %vm558, %v274, 0
  %v563 = vsel %vm558, %v279, 0
  %v566 = vsel %vm558, %v284, 0
  %v569 = vsel %vm558, %v289, 0
  %v572 = vsel %vm558, %v294, 0
  %v575 = vsel %vm558, %v299, 0
  %v578 = vsel %vm558, %v304, 0
  %v581 = vsel %vm558, %v309, 0
  %583 = vmatprep.subr.bf16.mxu0 0
  %584 = vmatpush1.bf16.msra.mxu0 %v486
  %585 = vmatprep.subr.bf16.mxu0 0
  %586 = vmatpush1.bf16.msra.mxu0 %v487
  %587 = vmatprep.subr.bf16.mxu0 0
  %588 = vmatpush1.bf16.msra.mxu0 %v488
  %589 = vmatprep.subr.bf16.mxu0 0
  %590 = vmatpush1.bf16.msra.mxu0 %v489
  %591 = vmatprep.subr.bf16.mxu0 0
  %592 = vmatpush1.bf16.msra.mxu0 %v490
  %593 = vmatprep.subr.bf16.mxu0 0
  %594 = vmatpush1.bf16.msra.mxu0 %v491
  %595 = vmatprep.subr.bf16.mxu0 0
  %596 = vmatpush1.bf16.msra.mxu0 %v492
  %597 = vmatprep.subr.bf16.mxu0 0
  %598 = vmatpush1.bf16.msra.mxu0 %v493
  %599 = vmatprep.subr.bf16.mxu0 0
  %600 = vmatpush1.bf16.msra.mxu0 %v494
  %601 = vmatprep.subr.bf16.mxu0 0
  %602 = vmatpush1.bf16.msra.mxu0 %v495
  %603 = vmatprep.subr.bf16.mxu0 0
  %604 = vmatpush1.bf16.msra.mxu0 %v496
  %605 = vmatprep.subr.bf16.mxu0 0
  %606 = vmatpush1.bf16.msra.mxu0 %v497
  %607 = vmatprep.subr.bf16.mxu0 0
  %608 = vmatpush1.bf16.msra.mxu0 %v498
  %609 = vmatprep.subr.bf16.mxu0 0
  %610 = vmatpush1.bf16.msra.mxu0 %v499
  %611 = vmatprep.subr.bf16.mxu0 0
  %612 = vmatpush1.bf16.msra.mxu0 %v500
  %613 = vmatprep.subr.bf16.mxu0 0
  %614 = vmatpush1.bf16.msra.mxu0 %v501
  %615 = vmatprep.mubr.bf16.mxu0 %v271
  %616 = vmatmul.mubr.bf16.gmra.mrb[0].mxu0 %v270
  %v617 = vpop.f32.mrb[0].mxu0
  %v618 = vadd.f32 %v140, %v617
  %v619 = vpop.f32.mrb[0].mxu0
  %v620 = vpop.f32.mrb[0].mxu0
  %v621 = vadd.f32 %v140, %v620
  %v622 = vpop.f32.mrb[0].mxu0
  %623 = vmatprep.mubr.bf16.mxu0 %v276
  %624 = vmatmul.mubr.bf16.gmra.mrb[0].mxu0 %v275
  %v625 = vpop.f32.mrb[0].mxu0
  %v626 = vadd.f32 %v140, %v625
  %v627 = vpop.f32.mrb[0].mxu0
  %v628 = vpop.f32.mrb[0].mxu0
  %v629 = vadd.f32 %v140, %v628
  %v630 = vpop.f32.mrb[0].mxu0
  %631 = vmatprep.mubr.bf16.mxu0 %v281
  %632 = vmatmul.mubr.bf16.gmra.mrb[0].mxu0 %v280
  %v633 = vpop.f32.mrb[0].mxu0
  %v634 = vadd.f32 %v140, %v633
  %v635 = vpop.f32.mrb[0].mxu0
  %v636 = vpop.f32.mrb[0].mxu0
  %v637 = vadd.f32 %v140, %v636
  %v638 = vpop.f32.mrb[0].mxu0
  %639 = vmatprep.mubr.bf16.mxu0 %v286
  %640 = vmatmul.mubr.bf16.gmra.mrb[0].mxu0 %v285
  %v641 = vpop.f32.mrb[0].mxu0
  %v642 = vadd.f32 %v140, %v641
  %v643 = vpop.f32.mrb[0].mxu0
  %v644 = vpop.f32.mrb[0].mxu0
  %v645 = vadd.f32 %v140, %v644
  %v646 = vpop.f32.mrb[0].mxu0
  %647 = vmatprep.mubr.bf16.mxu0 %v291
  %648 = vmatmul.mubr.bf16.gmra.mrb[0].mxu0 %v290
  %v649 = vpop.f32.mrb[0].mxu0
  %v650 = vadd.f32 %v140, %v649
  %v651 = vpop.f32.mrb[0].mxu0
  %v652 = vpop.f32.mrb[0].mxu0
  %v653 = vadd.f32 %v140, %v652
  %v654 = vpop.f32.mrb[0].mxu0
  %655 = vmatprep.mubr.bf16.mxu0 %v296
  %656 = vmatmul.mubr.bf16.gmra.mrb[0].mxu0 %v295
  %v657 = vpop.f32.mrb[0].mxu0
  %v658 = vadd.f32 %v140, %v657
  %v659 = vpop.f32.mrb[0].mxu0
  %v660 = vpop.f32.mrb[0].mxu0
  %v661 = vadd.f32 %v140, %v660
  %v662 = vpop.f32.mrb[0].mxu0
  %663 = vmatprep.mubr.bf16.mxu0 %v301
  %664 = vmatmul.mubr.bf16.gmra.mrb[0].mxu0 %v300
  %v665 = vpop.f32.mrb[0].mxu0
  %v666 = vadd.f32 %v140, %v665
  %v667 = vpop.f32.mrb[0].mxu0
  %v668 = vpop.f32.mrb[0].mxu0
  %v669 = vadd.f32 %v140, %v668
  %v670 = vpop.f32.mrb[0].mxu0
  %671 = vmatprep.mubr.bf16.mxu0 %v306
  %672 = vmatmul.mubr.bf16.gmra.mrb[0].mxu0 %v305
  %v673 = vpop.f32.mrb[0].mxu0
  %v674 = vadd.f32 %v140, %v673
  %v675 = vpop.f32.mrb[0].mxu0
  %v676 = vpop.f32.mrb[0].mxu0
  %v677 = vadd.f32 %v140, %v676
  %v678 = vpop.f32.mrb[0].mxu0
  %679 = vdwg.mxu0
  %680 = vmatprep.subr.bf16.mxu0 0
  %681 = vmatpush1.bf16.msra.mxu0 %v502
  %682 = vmatprep.subr.bf16.mxu0 0
  %683 = vmatpush1.bf16.msra.mxu0 %v503
  %684 = vmatprep.subr.bf16.mxu0 0
  %685 = vmatpush1.bf16.msra.mxu0 %v504
  %686 = vmatprep.subr.bf16.mxu0 0
  %687 = vmatpush1.bf16.msra.mxu0 %v505
  %688 = vmatprep.subr.bf16.mxu0 0
  %689 = vmatpush1.bf16.msra.mxu0 %v506
  %690 = vmatprep.subr.bf16.mxu0 0
  %691 = vmatpush1.bf16.msra.mxu0 %v507
  %692 = vmatprep.subr.bf16.mxu0 0
  %693 = vmatpush1.bf16.msra.mxu0 %v508
  %694 = vmatprep.subr.bf16.mxu0 0
  %695 = vmatpush1.bf16.msra.mxu0 %v509
  %696 = vmatprep.subr.bf16.mxu0 0
  %697 = vmatpush1.bf16.msra.mxu0 %v510
  %698 = vmatprep.subr.bf16.mxu0 0
  %699 = vmatpush1.bf16.msra.mxu0 %v511
  %700 = vmatprep.subr.bf16.mxu0 0
  %701 = vmatpush1.bf16.msra.mxu0 %v512
  %702 = vmatprep.subr.bf16.mxu0 0
  %703 = vmatpush1.bf16.msra.mxu0 %v513
  %704 = vmatprep.subr.bf16.mxu0 0
  %705 = vmatpush1.bf16.msra.mxu0 %v514
  %706 = vmatprep.subr.bf16.mxu0 0
  %707 = vmatpush1.bf16.msra.mxu0 %v515
  %708 = vmatprep.subr.bf16.mxu0 0
  %709 = vmatpush1.bf16.msra.mxu0 %v516
  %710 = vmatprep.subr.bf16.mxu0 0
  %711 = vmatpush1.bf16.msra.mxu0 %v517
  %712 = vmatprep.mubr.bf16.mxu0 %v273
  %713 = vmatmul.mubr.bf16.gmra.mrb[0].mxu0 %v272
  %v714 = vpop.f32.mrb[0].mxu0
  %v715 = vadd.f32 %v618, %v714
  %v716 = vpop.f32.mrb[0].mxu0
  %v717 = vpop.f32.mrb[0].mxu0
  %v718 = vadd.f32 %v621, %v717
  %v719 = vpop.f32.mrb[0].mxu0
  %720 = vmatprep.mubr.bf16.mxu0 %v278
  %721 = vmatmul.mubr.bf16.gmra.mrb[0].mxu0 %v277
  %v722 = vpop.f32.mrb[0].mxu0
  %v723 = vadd.f32 %v626, %v722
  %v724 = vpop.f32.mrb[0].mxu0
  %v725 = vpop.f32.mrb[0].mxu0
  %v726 = vadd.f32 %v629, %v725
  %v727 = vpop.f32.mrb[0].mxu0
  %728 = vmatprep.mubr.bf16.mxu0 %v283
  %729 = vmatmul.mubr.bf16.gmra.mrb[0].mxu0 %v282
  %v730 = vpop.f32.mrb[0].mxu0
  %v731 = vadd.f32 %v634, %v730
  %v732 = vpop.f32.mrb[0].mxu0
  %v733 = vpop.f32.mrb[0].mxu0
  %v734 = vadd.f32 %v637, %v733
  %v735 = vpop.f32.mrb[0].mxu0
  %736 = vmatprep.mubr.bf16.mxu0 %v288
  %737 = vmatmul.mubr.bf16.gmra.mrb[0].mxu0 %v287
  %v738 = vpop.f32.mrb[0].mxu0
  %v739 = vadd.f32 %v642, %v738
  %v740 = vpop.f32.mrb[0].mxu0
  %v741 = vpop.f32.mrb[0].mxu0
  %v742 = vadd.f32 %v645, %v741
  %v743 = vpop.f32.mrb[0].mxu0
  %744 = vmatprep.mubr.bf16.mxu0 %v293
  %745 = vmatmul.mubr.bf16.gmra.mrb[0].mxu0 %v292
  %v746 = vpop.f32.mrb[0].mxu0
  %v747 = vadd.f32 %v650, %v746
  %v748 = vpop.f32.mrb[0].mxu0
  %v749 = vpop.f32.mrb[0].mxu0
  %v750 = vadd.f32 %v653, %v749
  %v751 = vpop.f32.mrb[0].mxu0
  %752 = vmatprep.mubr.bf16.mxu0 %v298
  %753 = vmatmul.mubr.bf16.gmra.mrb[0].mxu0 %v297
  %v754 = vpop.f32.mrb[0].mxu0
  %v755 = vadd.f32 %v658, %v754
  %v756 = vpop.f32.mrb[0].mxu0
  %v757 = vpop.f32.mrb[0].mxu0
  %v758 = vadd.f32 %v661, %v757
  %v759 = vpop.f32.mrb[0].mxu0
  %760 = vmatprep.mubr.bf16.mxu0 %v303
  %761 = vmatmul.mubr.bf16.gmra.mrb[0].mxu0 %v302
  %v762 = vpop.f32.mrb[0].mxu0
  %v763 = vadd.f32 %v666, %v762
  %v764 = vpop.f32.mrb[0].mxu0
  %v765 = vpop.f32.mrb[0].mxu0
  %v766 = vadd.f32 %v669, %v765
  %v767 = vpop.f32.mrb[0].mxu0
  %768 = vmatprep.mubr.bf16.mxu0 %v308
  %769 = vmatmul.mubr.bf16.gmra.mrb[0].mxu0 %v307
  %v770 = vpop.f32.mrb[0].mxu0
  %v771 = vadd.f32 %v674, %v770
  %v772 = vpop.f32.mrb[0].mxu0
  %v773 = vpop.f32.mrb[0].mxu0
  %v774 = vadd.f32 %v677, %v773
  %v775 = vpop.f32.mrb[0].mxu0
  %776 = vdwg.mxu0
  %777 = vmatprep.subr.bf16.mxu0 0
  %778 = vmatpush1.bf16.msra.mxu0 %v518
  %779 = vmatprep.subr.bf16.mxu0 0
  %780 = vmatpush1.bf16.msra.mxu0 %v519
  %781 = vmatprep.subr.bf16.mxu0 0
  %782 = vmatpush1.bf16.msra.mxu0 %v520
  %783 = vmatprep.subr.bf16.mxu0 0
  %784 = vmatpush1.bf16.msra.mxu0 %v521
  %785 = vmatprep.subr.bf16.mxu0 0
  %786 = vmatpush1.bf16.msra.mxu0 0
  %787 = vmatprep.subr.bf16.mxu0 0
  %788 = vmatpush1.bf16.msra.mxu0 0
  %789 = vmatprep.subr.bf16.mxu0 0
  %790 = vmatpush1.bf16.msra.mxu0 0
  %791 = vmatprep.subr.bf16.mxu0 0
  %792 = vmatpush1.bf16.msra.mxu0 0
  %793 = vmatprep.subr.bf16.mxu0 0
  %794 = vmatpush1.bf16.msra.mxu0 0
  %795 = vmatprep.subr.bf16.mxu0 0
  %796 = vmatpush1.bf16.msra.mxu0 0
  %797 = vmatprep.subr.bf16.mxu0 0
  %798 = vmatpush1.bf16.msra.mxu0 0
  %799 = vmatprep.subr.bf16.mxu0 0
  %800 = vmatpush1.bf16.msra.mxu0 0
  %801 = vmatprep.subr.bf16.mxu0 0
  %802 = vmatpush1.bf16.msra.mxu0 0
  %803 = vmatprep.subr.bf16.mxu0 0
  %804 = vmatpush1.bf16.msra.mxu0 0
  %805 = vmatprep.subr.bf16.mxu0 0
  %806 = vmatpush1.bf16.msra.mxu0 0
  %807 = vmatprep.subr.bf16.mxu0 0
  %808 = vmatpush1.bf16.msra.mxu0 0
  %809 = vmatprep.mubr.bf16.mxu0 0
  %810 = vmatmul.mubr.bf16.gmra.mrb[0].mxu0 %v560
  %v811 = vpop.f32.mrb[0].mxu0
  %v812 = vadd.f32 %v715, %v811
  %v813 = vpop.f32.mrb[0].mxu0
  %v814 = vpop.f32.mrb[0].mxu0
  %v815 = vadd.f32 %v718, %v814
  %v816 = vpop.f32.mrb[0].mxu0
  %817 = vmatprep.mubr.bf16.mxu0 0
  %818 = vmatmul.mubr.bf16.gmra.mrb[0].mxu0 %v563
  %v819 = vpop.f32.mrb[0].mxu0
  %v820 = vadd.f32 %v723, %v819
  %v821 = vpop.f32.mrb[0].mxu0
  %v822 = vpop.f32.mrb[0].mxu0
  %v823 = vadd.f32 %v726, %v822
  %v824 = vpop.f32.mrb[0].mxu0
  %825 = vmatprep.mubr.bf16.mxu0 0
  %826 = vmatmul.mubr.bf16.gmra.mrb[0].mxu0 %v566
  %v827 = vpop.f32.mrb[0].mxu0
  %v828 = vadd.f32 %v731, %v827
  %v829 = vpop.f32.mrb[0].mxu0
  %v830 = vpop.f32.mrb[0].mxu0
  %v831 = vadd.f32 %v734, %v830
  %v832 = vpop.f32.mrb[0].mxu0
  %833 = vmatprep.mubr.bf16.mxu0 0
  %834 = vmatmul.mubr.bf16.gmra.mrb[0].mxu0 %v569
  %v835 = vpop.f32.mrb[0].mxu0
  %v836 = vadd.f32 %v739, %v835
  %v837 = vpop.f32.mrb[0].mxu0
  %v838 = vpop.f32.mrb[0].mxu0
  %v839 = vadd.f32 %v742, %v838
  %v840 = vpop.f32.mrb[0].mxu0
  %841 = vmatprep.mubr.bf16.mxu0 0
  %842 = vmatmul.mubr.bf16.gmra.mrb[0].mxu0 %v572
  %v843 = vpop.f32.mrb[0].mxu0
  %v844 = vadd.f32 %v747, %v843
  %v845 = vpop.f32.mrb[0].mxu0
  %v846 = vpop.f32.mrb[0].mxu0
  %v847 = vadd.f32 %v750, %v846
  %v848 = vpop.f32.mrb[0].mxu0
  %849 = vmatprep.mubr.bf16.mxu0 0
  %850 = vmatmul.mubr.bf16.gmra.mrb[0].mxu0 %v575
  %v851 = vpop.f32.mrb[0].mxu0
  %v852 = vadd.f32 %v755, %v851
  %v853 = vpop.f32.mrb[0].mxu0
  %v854 = vpop.f32.mrb[0].mxu0
  %v855 = vadd.f32 %v758, %v854
  %v856 = vpop.f32.mrb[0].mxu0
  %857 = vmatprep.mubr.bf16.mxu0 0
  %858 = vmatmul.mubr.bf16.gmra.mrb[0].mxu0 %v578
  %v859 = vpop.f32.mrb[0].mxu0
  %v860 = vadd.f32 %v763, %v859
  %v861 = vpop.f32.mrb[0].mxu0
  %v862 = vpop.f32.mrb[0].mxu0
  %v863 = vadd.f32 %v766, %v862
  %v864 = vpop.f32.mrb[0].mxu0
  %865 = vmatprep.mubr.bf16.mxu0 0
  %866 = vmatmul.mubr.bf16.gmra.mrb[0].mxu0 %v581
  %v867 = vpop.f32.mrb[0].mxu0
  %v868 = vadd.f32 %v771, %v867
  %v869 = vpop.f32.mrb[0].mxu0
  %v870 = vpop.f32.mrb[0].mxu0
  %v871 = vadd.f32 %v774, %v870
  %v872 = vpop.f32.mrb[0].mxu0
  %873 = vdwg.mxu0
  %v874 = vmax.f32 %v812, 0.0
  %v875 = vmax.f32 %v815, 0.0
  %v876 = vmax.f32 %v820, 0.0
  %v877 = vmax.f32 %v823, 0.0
  %v878 = vmax.f32 %v828, 0.0
  %v879 = vmax.f32 %v831, 0.0
  %v880 = vmax.f32 %v836, 0.0
  %v881 = vmax.f32 %v839, 0.0
  %v882 = vmax.f32 %v844, 0.0
  %v883 = vmax.f32 %v847, 0.0
  %v884 = vmax.f32 %v852, 0.0
  %v885 = vmax.f32 %v855, 0.0
  %v886 = vmax.f32 %v860, 0.0
  %v887 = vmax.f32 %v863, 0.0
  %v888 = vmax.f32 %v868, 0.0
  %v889 = vmax.f32 %v871, 0.0
  %v890 = vpack.c.bf16 %v875, %v874
  %v891 = vpack.c.bf16 %v877, %v876
  %v892 = vpack.c.bf16 %v879, %v878
  %v893 = vpack.c.bf16 %v881, %v880
  %v894 = vpack.c.bf16 %v883, %v882
  %v895 = vpack.c.bf16 %v885, %v884
  %v896 = vpack.c.bf16 %v887, %v886
  %v897 = vpack.c.bf16 %v889, %v888
  %v906 = vunpack.c.l.b16 %v890
  %v907 = vunpack.c.h.b16 %v890
  %v908 = vunpack.c.l.b16 %v891
  %v909 = vunpack.c.h.b16 %v891
  %v910 = vunpack.c.l.b16 %v892
  %v911 = vunpack.c.h.b16 %v892
  %v912 = vunpack.c.l.b16 %v893
  %v913 = vunpack.c.h.b16 %v893
  %v914 = vunpack.c.l.b16 %v894
  %v915 = vunpack.c.h.b16 %v894
  %v916 = vunpack.c.l.b16 %v895
  %v917 = vunpack.c.h.b16 %v895
  %v918 = vunpack.c.l.b16 %v896
  %v919 = vunpack.c.h.b16 %v896
  %v920 = vunpack.c.l.b16 %v897
  %v921 = vunpack.c.h.b16 %v897
  %v922 = vpack.c.b16 %v906, %v906
  %v923 = vpack.c.b16 %v907, %v907
  %v924 = vpack.c.b16 %v908, %v908
  %v925 = vpack.c.b16 %v909, %v909
  %v926 = vpack.c.b16 %v910, %v910
  %v927 = vpack.c.b16 %v911, %v911
  %v928 = vpack.c.b16 %v912, %v912
  %v929 = vpack.c.b16 %v913, %v913
  %v930 = vpack.c.b16 %v914, %v914
  %v931 = vpack.c.b16 %v915, %v915
  %v932 = vpack.c.b16 %v916, %v916
  %v933 = vpack.c.b16 %v917, %v917
  %v934 = vpack.c.b16 %v918, %v918
  %v935 = vpack.c.b16 %v919, %v919
  %v936 = vpack.c.b16 %v920, %v920
  %v937 = vpack.c.b16 %v921, %v921
  %954 = vst [vmem:[%s3] sm:$0xf] %v922
  %955 = vst [vmem:[%s3 + $0x4] sm:$0xf] %v923
  %956 = vst [vmem:[%s3 + $0x8] sm:$0xf] %v924
  %957 = vst [vmem:[%s3 + $0xc] sm:$0xf] %v925
  %958 = vst [vmem:[%s3 + $0x10] sm:$0xf] %v926
  %959 = vst [vmem:[%s3 + $0x14] sm:$0xf] %v927
  %960 = vst [vmem:[%s3 + $0x18] sm:$0xf] %v928
  %961 = vst [vmem:[%s3 + $0x1c] sm:$0xf] %v929
  %962 = vst [vmem:[%s3 + $0x20] sm:$0xf] %v930
  %963 = vst [vmem:[%s3 + $0x24] sm:$0xf] %v931
  %964 = vst [vmem:[%s3 + $0x28] sm:$0xf] %v932
  %965 = vst [vmem:[%s3 + $0x2c] sm:$0xf] %v933
  %966 = vst [vmem:[%s3 + $0x30] sm:$0xf] %v934
  %967 = vst [vmem:[%s3 + $0x34] sm:$0xf] %v935
  %968 = vst [vmem:[%s3 + $0x38] sm:$0xf] %v936
  %969 = vst [vmem:[%s3 + $0x3c] sm:$0xf] %v937
  // Predicated region
  $region14: #{dcnn_forward.8} parent=0 // pred_check
    _
  $region15: #{dcnn_forward.8} parent=0 // pred_check_branch
    %971 = sbr.rel (0) target = $region17
  $region16: #{dcnn_forward.8} parent=0 // pred_region
    _
  $region17: #{dcnn_forward.8} parent=0 // pred_fallthru
    _
  // Predicated region
  $region18: #{dcnn_forward.8} parent=0 // pred_check
    _
  $region19: #{dcnn_forward.8} parent=0 // pred_check_branch
    %973 = sbr.rel (0) target = $region21
  $region20: #{dcnn_forward.8} parent=0 // pred_region
    _
  $region21: #{dcnn_forward.8} parent=0 // pred_fallthru
    _

// kernel: dcnn_forward.9
$region0: #{dcnn_forward.9}
  #allocation0 [shape = 'u32[]', space=smem, size = 0x4, offset = 0x4, fixed_abs, tag = 'smem constant byte address 0x4 - core index']
  #allocation1 [shape = 'u32[144,128]{1,0:T(1,128)}', space=vmem, size = 0x12000, scoped, tag = 'internal scratch']
  %s0 = inlined_call_operand.vmem [shape: bf16[2,2048], index: 0, kind: input, shape index: {}]
  %s1 = inlined_call_operand.vmem [shape: bf16[2048,1024], index: 1, kind: input, shape index: {}]
  %s2 = inlined_call_operand.vmem [shape: f32[1,1024], index: 2, kind: input, shape index: {}]
  %s3 = inlined_call_operand.vmem [shape: bf16[1024,128], index: 3, kind: input, shape index: {}]
  %s4 = inlined_call_operand.vmem [shape: f32[1,128], index: 4, kind: input, shape index: {}]
  %s5 = inlined_call_operand.vmem [shape: bf16[128,10], index: 5, kind: input, shape index: {}]
  %s6 = inlined_call_operand.vmem [shape: f32[1,10], index: 6, kind: input, shape index: {}]
  %s7 = inlined_call_operand.hbm [shape: f32[2,10], index: 7, kind: output, shape index: {}]
  %s8 = sld [smem:[#allocation0]]
  $region38: #{dcnn_forward.9} parent=0
    _
  %s10 = ssub.s32 1, %s8
  %s11 = scalar_select 0, %s10, %s8
  $region1: #{dcnn_forward.9} parent=0
    #allocation2 [shape = 'u8[1024]{0}', space=vmem, size = 0x400, scoped, tag = 'output window, operand 0, single buffered']
    #allocation3 [shape = 's32[1]{0}', space=sflag, size = 0x4, scoped, tag = 'scoped memory for dcnn_forward.9']
    %12 = vsyncpa [#allocation3], 0
    // Predicated region
    $region2: #{dcnn_forward.9} parent=1 // pred_check
      _
    $region3: #{dcnn_forward.9} parent=1 // pred_check_branch
      %14 = sbr.rel (0) target = $region5
    $region4: #{dcnn_forward.9} parent=1 // pred_region
      _
    $region5: #{dcnn_forward.9} parent=1 // pred_fallthru
      _
    // Predicated region
    $region6: #{dcnn_forward.9} parent=1 // pred_check
      _
    $region7: #{dcnn_forward.9} parent=1 // pred_check_branch
      %16 = sbr.rel (0) target = $region9
    $region8: #{dcnn_forward.9} parent=1 // pred_region
      _
    $region9: #{dcnn_forward.9} parent=1 // pred_fallthru
      _
    // Predicated region
    $region10: #{dcnn_forward.9} parent=1 // pred_check
      _
    $region11: #{dcnn_forward.9} parent=1 // pred_check_branch
      %18 = sbr.rel (0) target = $region13
    $region12: #{dcnn_forward.9} parent=1 // pred_region
      _
    $region13: #{dcnn_forward.9} parent=1 // pred_fallthru
      _
    // Predicated region
    $region14: #{dcnn_forward.9} parent=1 // pred_check
      _
    $region15: #{dcnn_forward.9} parent=1 // pred_check_branch
      %20 = sbr.rel (0) target = $region17
    $region16: #{dcnn_forward.9} parent=1 // pred_region
      _
    $region17: #{dcnn_forward.9} parent=1 // pred_fallthru
      _
    // Predicated region
    $region18: #{dcnn_forward.9} parent=1 // pred_check
      _
    $region19: #{dcnn_forward.9} parent=1 // pred_check_branch
      %22 = sbr.rel (0) target = $region21
    $region20: #{dcnn_forward.9} parent=1 // pred_region
      _
    $region21: #{dcnn_forward.9} parent=1 // pred_fallthru
      _
    // Predicated region
    $region22: #{dcnn_forward.9} parent=1 // pred_check
      _
    $region23: #{dcnn_forward.9} parent=1 // pred_check_branch
      %24 = sbr.rel (0) target = $region25
    $region24: #{dcnn_forward.9} parent=1 // pred_region
      _
    $region25: #{dcnn_forward.9} parent=1 // pred_fallthru
      _
    // Predicated region
    $region26: #{dcnn_forward.9} parent=1 // pred_check
      _
    $region27: #{dcnn_forward.9} parent=1 // pred_check_branch
      %26 = sbr.rel (0) target = $region29
    $region28: #{dcnn_forward.9} parent=1 // pred_region
      _
    $region29: #{dcnn_forward.9} parent=1 // pred_fallthru
      _
    %v28 = vld [vmem:[%s0] sm:$0xff]
    %v29 = vld [vmem:[%s0 + $0x8] sm:$0xff]
    %v30 = vld [vmem:[%s1] sm:$0xff]
    %v31 = vld [vmem:[%s1 + $0x8] sm:$0xff]
    %v32 = vld [vmem:[%s1 + $0x10] sm:$0xff]
    %v33 = vld [vmem:[%s1 + $0x18] sm:$0xff]
    %v34 = vld [vmem:[%s1 + $0x20] sm:$0xff]
    %v35 = vld [vmem:[%s1 + $0x28] sm:$0xff]
    %v36 = vld [vmem:[%s1 + $0x30] sm:$0xff]
    %v37 = vld [vmem:[%s1 + $0x38] sm:$0xff]
    %v38 = vld [vmem:[%s1 + $0x40] sm:$0xff]
    %v39 = vld [vmem:[%s1 + $0x48] sm:$0xff]
    %v40 = vld [vmem:[%s1 + $0x50] sm:$0xff]
    %v41 = vld [vmem:[%s1 + $0x58] sm:$0xff]
    %v42 = vld [vmem:[%s1 + $0x60] sm:$0xff]
    %v43 = vld [vmem:[%s1 + $0x68] sm:$0xff]
    %v44 = vld [vmem:[%s1 + $0x70] sm:$0xff]
    %v45 = vld [vmem:[%s1 + $0x78] sm:$0xff]
    %v46 = vld [vmem:[%s1 + $0x80] sm:$0xff]
    %v47 = vld [vmem:[%s1 + $0x88] sm:$0xff]
    %v48 = vld [vmem:[%s1 + $0x90] sm:$0xff]
    %v49 = vld [vmem:[%s1 + $0x98] sm:$0xff]
    %v50 = vld [vmem:[%s1 + $0xa0] sm:$0xff]
    %v51 = vld [vmem:[%s1 + $0xa8] sm:$0xff]
    %v52 = vld [vmem:[%s1 + $0xb0] sm:$0xff]
    %v53 = vld [vmem:[%s1 + $0xb8] sm:$0xff]
    %v54 = vld [vmem:[%s1 + $0xc0] sm:$0xff]
    %v55 = vld [vmem:[%s1 + $0xc8] sm:$0xff]
    %v56 = vld [vmem:[%s1 + $0xd0] sm:$0xff]
    %v57 = vld [vmem:[%s1 + $0xd8] sm:$0xff]
    %v58 = vld [vmem:[%s1 + $0xe0] sm:$0xff]
    %v59 = vld [vmem:[%s1 + $0xe8] sm:$0xff]
    %v60 = vld [vmem:[%s1 + $0xf0] sm:$0xff]
    %v61 = vld [vmem:[%s1 + $0xf8] sm:$0xff]
    %v62 = vld [vmem:[%s1 + $0x100] sm:$0xff]
    %v63 = vld [vmem:[%s1 + $0x108] sm:$0xff]
    %v64 = vld [vmem:[%s1 + $0x110] sm:$0xff]
    %v65 = vld [vmem:[%s1 + $0x118] sm:$0xff]
    %v66 = vld [vmem:[%s1 + $0x120] sm:$0xff]
    %v67 = vld [vmem:[%s1 + $0x128] sm:$0xff]
    %v68 = vld [vmem:[%s1 + $0x130] sm:$0xff]
    %v69 = vld [vmem:[%s1 + $0x138] sm:$0xff]
    %v70 = vld [vmem:[%s1 + $0x140] sm:$0xff]
    %v71 = vld [vmem:[%s1 + $0x148] sm:$0xff]
    %v72 = vld [vmem:[%s1 + $0x150] sm:$0xff]
    %v73 = vld [vmem:[%s1 + $0x158] sm:$0xff]
    %v74 = vld [vmem:[%s1 + $0x160] sm:$0xff]
    %v75 = vld [vmem:[%s1 + $0x168] sm:$0xff]
    %v76 = vld [vmem:[%s1 + $0x170] sm:$0xff]
    %v77 = vld [vmem:[%s1 + $0x178] sm:$0xff]
    %v78 = vld [vmem:[%s1 + $0x180] sm:$0xff]
    %v79 = vld [vmem:[%s1 + $0x188] sm:$0xff]
    %v80 = vld [vmem:[%s1 + $0x190] sm:$0xff]
    %v81 = vld [vmem:[%s1 + $0x198] sm:$0xff]
    %v82 = vld [vmem:[%s1 + $0x1a0] sm:$0xff]
    %v83 = vld [vmem:[%s1 + $0x1a8] sm:$0xff]
    %v84 = vld [vmem:[%s1 + $0x1b0] sm:$0xff]
    %v85 = vld [vmem:[%s1 + $0x1b8] sm:$0xff]
    %v86 = vld [vmem:[%s1 + $0x1c0] sm:$0xff]
    %v87 = vld [vmem:[%s1 + $0x1c8] sm:$0xff]
    %v88 = vld [vmem:[%s1 + $0x1d0] sm:$0xff]
    %v89 = vld [vmem:[%s1 + $0x1d8] sm:$0xff]
    %v90 = vld [vmem:[%s1 + $0x1e0] sm:$0xff]
    %v91 = vld [vmem:[%s1 + $0x1e8] sm:$0xff]
    %v92 = vld [vmem:[%s1 + $0x1f0] sm:$0xff]
    %v93 = vld [vmem:[%s1 + $0x1f8] sm:$0xff]
    %v94 = vld [vmem:[%s1 + $0x200] sm:$0xff]
    %v95 = vld [vmem:[%s1 + $0x208] sm:$0xff]
    %v96 = vld [vmem:[%s1 + $0x210] sm:$0xff]
    %v97 = vld [vmem:[%s1 + $0x218] sm:$0xff]
    %v98 = vld [vmem:[%s1 + $0x220] sm:$0xff]
    %v99 = vld [vmem:[%s1 + $0x228] sm:$0xff]
    %v100 = vld [vmem:[%s1 + $0x230] sm:$0xff]
    %v101 = vld [vmem:[%s1 + $0x238] sm:$0xff]
    %v102 = vld [vmem:[%s1 + $0x240] sm:$0xff]
    %v103 = vld [vmem:[%s1 + $0x248] sm:$0xff]
    %v104 = vld [vmem:[%s1 + $0x250] sm:$0xff]
    %v105 = vld [vmem:[%s1 + $0x258] sm:$0xff]
    %v106 = vld [vmem:[%s1 + $0x260] sm:$0xff]
    %v107 = vld [vmem:[%s1 + $0x268] sm:$0xff]
    %v108 = vld [vmem:[%s1 + $0x270] sm:$0xff]
    %v109 = vld [vmem:[%s1 + $0x278] sm:$0xff]
    %v110 = vld [vmem:[%s1 + $0x280] sm:$0xff]
    %v111 = vld [vmem:[%s1 + $0x288] sm:$0xff]
    %v112 = vld [vmem:[%s1 + $0x290] sm:$0xff]
    %v113 = vld [vmem:[%s1 + $0x298] sm:$0xff]
    %v114 = vld [vmem:[%s1 + $0x2a0] sm:$0xff]
    %v115 = vld [vmem:[%s1 + $0x2a8] sm:$0xff]
    %v116 = vld [vmem:[%s1 + $0x2b0] sm:$0xff]
    %v117 = vld [vmem:[%s1 + $0x2b8] sm:$0xff]
    %v118 = vld [vmem:[%s1 + $0x2c0] sm:$0xff]
    %v119 = vld [vmem:[%s1 + $0x2c8] sm:$0xff]
    %v120 = vld [vmem:[%s1 + $0x2d0] sm:$0xff]
    %v121 = vld [vmem:[%s1 + $0x2d8] sm:$0xff]
    %v122 = vld [vmem:[%s1 + $0x2e0] sm:$0xff]
    %v123 = vld [vmem:[%s1 + $0x2e8] sm:$0xff]
    %v124 = vld [vmem:[%s1 + $0x2f0] sm:$0xff]
    %v125 = vld [vmem:[%s1 + $0x2f8] sm:$0xff]
    %v126 = vld [vmem:[%s1 + $0x300] sm:$0xff]
    %v127 = vld [vmem:[%s1 + $0x308] sm:$0xff]
    %v128 = vld [vmem:[%s1 + $0x310] sm:$0xff]
    %v129 = vld [vmem:[%s1 + $0x318] sm:$0xff]
    %v130 = vld [vmem:[%s1 + $0x320] sm:$0xff]
    %v131 = vld [vmem:[%s1 + $0x328] sm:$0xff]
    %v132 = vld [vmem:[%s1 + $0x330] sm:$0xff]
    %v133 = vld [vmem:[%s1 + $0x338] sm:$0xff]
    %v134 = vld [vmem:[%s1 + $0x340] sm:$0xff]
    %v135 = vld [vmem:[%s1 + $0x348] sm:$0xff]
    %v136 = vld [vmem:[%s1 + $0x350] sm:$0xff]
    %v137 = vld [vmem:[%s1 + $0x358] sm:$0xff]
    %v138 = vld [vmem:[%s1 + $0x360] sm:$0xff]
    %v139 = vld [vmem:[%s1 + $0x368] sm:$0xff]
    %v140 = vld [vmem:[%s1 + $0x370] sm:$0xff]
    %v141 = vld [vmem:[%s1 + $0x378] sm:$0xff]
    %v142 = vld [vmem:[%s1 + $0x380] sm:$0xff]
    %v143 = vld [vmem:[%s1 + $0x388] sm:$0xff]
    %v144 = vld [vmem:[%s1 + $0x390] sm:$0xff]
    %v145 = vld [vmem:[%s1 + $0x398] sm:$0xff]
    %v146 = vld [vmem:[%s1 + $0x3a0] sm:$0xff]
    %v147 = vld [vmem:[%s1 + $0x3a8] sm:$0xff]
    %v148 = vld [vmem:[%s1 + $0x3b0] sm:$0xff]
    %v149 = vld [vmem:[%s1 + $0x3b8] sm:$0xff]
    %v150 = vld [vmem:[%s1 + $0x3c0] sm:$0xff]
    %v151 = vld [vmem:[%s1 + $0x3c8] sm:$0xff]
    %v152 = vld [vmem:[%s1 + $0x3d0] sm:$0xff]
    %v153 = vld [vmem:[%s1 + $0x3d8] sm:$0xff]
    %v154 = vld [vmem:[%s1 + $0x3e0] sm:$0xff]
    %v155 = vld [vmem:[%s1 + $0x3e8] sm:$0xff]
    %v156 = vld [vmem:[%s1 + $0x3f0] sm:$0xff]
    %v157 = vld [vmem:[%s1 + $0x3f8] sm:$0xff]
    %v158 = vld [vmem:[%s1 + $0x400] sm:$0xff]
    %v159 = vld [vmem:[%s1 + $0x408] sm:$0xff]
    %v160 = vld [vmem:[%s1 + $0x410] sm:$0xff]
    %v161 = vld [vmem:[%s1 + $0x418] sm:$0xff]
    %v162 = vld [vmem:[%s1 + $0x420] sm:$0xff]
    %v163 = vld [vmem:[%s1 + $0x428] sm:$0xff]
    %v164 = vld [vmem:[%s1 + $0x430] sm:$0xff]
    %v165 = vld [vmem:[%s1 + $0x438] sm:$0xff]
    %v166 = vld [vmem:[%s1 + $0x440] sm:$0xff]
    %v167 = vld [vmem:[%s1 + $0x448] sm:$0xff]
    %v168 = vld [vmem:[%s1 + $0x450] sm:$0xff]
    %v169 = vld [vmem:[%s1 + $0x458] sm:$0xff]
    %v170 = vld [vmem:[%s1 + $0x460] sm:$0xff]
    %v171 = vld [vmem:[%s1 + $0x468] sm:$0xff]
    %v172 = vld [vmem:[%s1 + $0x470] sm:$0xff]
    %v173 = vld [vmem:[%s1 + $0x478] sm:$0xff]
    %v174 = vld [vmem:[%s1 + $0x480] sm:$0xff]
    %v175 = vld [vmem:[%s1 + $0x488] sm:$0xff]
    %v176 = vld [vmem:[%s1 + $0x490] sm:$0xff]
    %v177 = vld [vmem:[%s1 + $0x498] sm:$0xff]
    %v178 = vld [vmem:[%s1 + $0x4a0] sm:$0xff]
    %v179 = vld [vmem:[%s1 + $0x4a8] sm:$0xff]
    %v180 = vld [vmem:[%s1 + $0x4b0] sm:$0xff]
    %v181 = vld [vmem:[%s1 + $0x4b8] sm:$0xff]
    %v182 = vld [vmem:[%s1 + $0x4c0] sm:$0xff]
    %v183 = vld [vmem:[%s1 + $0x4c8] sm:$0xff]
    %v184 = vld [vmem:[%s1 + $0x4d0] sm:$0xff]
    %v185 = vld [vmem:[%s1 + $0x4d8] sm:$0xff]
    %v186 = vld [vmem:[%s1 + $0x4e0] sm:$0xff]
    %v187 = vld [vmem:[%s1 + $0x4e8] sm:$0xff]
    %v188 = vld [vmem:[%s1 + $0x4f0] sm:$0xff]
    %v189 = vld [vmem:[%s1 + $0x4f8] sm:$0xff]
    %v190 = vld [vmem:[%s1 + $0x500] sm:$0xff]
    %v191 = vld [vmem:[%s1 + $0x508] sm:$0xff]
    %v192 = vld [vmem:[%s1 + $0x510] sm:$0xff]
    %v193 = vld [vmem:[%s1 + $0x518] sm:$0xff]
    %v194 = vld [vmem:[%s1 + $0x520] sm:$0xff]
    %v195 = vld [vmem:[%s1 + $0x528] sm:$0xff]
    %v196 = vld [vmem:[%s1 + $0x530] sm:$0xff]
    %v197 = vld [vmem:[%s1 + $0x538] sm:$0xff]
    %v198 = vld [vmem:[%s1 + $0x540] sm:$0xff]
    %v199 = vld [vmem:[%s1 + $0x548] sm:$0xff]
    %v200 = vld [vmem:[%s1 + $0x550] sm:$0xff]
    %v201 = vld [vmem:[%s1 + $0x558] sm:$0xff]
    %v202 = vld [vmem:[%s1 + $0x560] sm:$0xff]
    %v203 = vld [vmem:[%s1 + $0x568] sm:$0xff]
    %v204 = vld [vmem:[%s1 + $0x570] sm:$0xff]
    %v205 = vld [vmem:[%s1 + $0x578] sm:$0xff]
    %v206 = vld [vmem:[%s1 + $0x580] sm:$0xff]
    %v207 = vld [vmem:[%s1 + $0x588] sm:$0xff]
    %v208 = vld [vmem:[%s1 + $0x590] sm:$0xff]
    %v209 = vld [vmem:[%s1 + $0x598] sm:$0xff]
    %v210 = vld [vmem:[%s1 + $0x5a0] sm:$0xff]
    %v211 = vld [vmem:[%s1 + $0x5a8] sm:$0xff]
    %v212 = vld [vmem:[%s1 + $0x5b0] sm:$0xff]
    %v213 = vld [vmem:[%s1 + $0x5b8] sm:$0xff]
    %v214 = vld [vmem:[%s1 + $0x5c0] sm:$0xff]
    %v215 = vld [vmem:[%s1 + $0x5c8] sm:$0xff]
    %v216 = vld [vmem:[%s1 + $0x5d0] sm:$0xff]
    %v217 = vld [vmem:[%s1 + $0x5d8] sm:$0xff]
    %v218 = vld [vmem:[%s1 + $0x5e0] sm:$0xff]
    %v219 = vld [vmem:[%s1 + $0x5e8] sm:$0xff]
    %v220 = vld [vmem:[%s1 + $0x5f0] sm:$0xff]
    %v221 = vld [vmem:[%s1 + $0x5f8] sm:$0xff]
    %v222 = vld [vmem:[%s1 + $0x600] sm:$0xff]
    %v223 = vld [vmem:[%s1 + $0x608] sm:$0xff]
    %v224 = vld [vmem:[%s1 + $0x610] sm:$0xff]
    %v225 = vld [vmem:[%s1 + $0x618] sm:$0xff]
    %v226 = vld [vmem:[%s1 + $0x620] sm:$0xff]
    %v227 = vld [vmem:[%s1 + $0x628] sm:$0xff]
    %v228 = vld [vmem:[%s1 + $0x630] sm:$0xff]
    %v229 = vld [vmem:[%s1 + $0x638] sm:$0xff]
    %v230 = vld [vmem:[%s1 + $0x640] sm:$0xff]
    %v231 = vld [vmem:[%s1 + $0x648] sm:$0xff]
    %v232 = vld [vmem:[%s1 + $0x650] sm:$0xff]
    %v233 = vld [vmem:[%s1 + $0x658] sm:$0xff]
    %v234 = vld [vmem:[%s1 + $0x660] sm:$0xff]
    %v235 = vld [vmem:[%s1 + $0x668] sm:$0xff]
    %v236 = vld [vmem:[%s1 + $0x670] sm:$0xff]
    %v237 = vld [vmem:[%s1 + $0x678] sm:$0xff]
    %v238 = vld [vmem:[%s1 + $0x680] sm:$0xff]
    %v239 = vld [vmem:[%s1 + $0x688] sm:$0xff]
    %v240 = vld [vmem:[%s1 + $0x690] sm:$0xff]
    %v241 = vld [vmem:[%s1 + $0x698] sm:$0xff]
    %v242 = vld [vmem:[%s1 + $0x6a0] sm:$0xff]
    %v243 = vld [vmem:[%s1 + $0x6a8] sm:$0xff]
    %v244 = vld [vmem:[%s1 + $0x6b0] sm:$0xff]
    %v245 = vld [vmem:[%s1 + $0x6b8] sm:$0xff]
    %v246 = vld [vmem:[%s1 + $0x6c0] sm:$0xff]
    %v247 = vld [vmem:[%s1 + $0x6c8] sm:$0xff]
    %v248 = vld [vmem:[%s1 + $0x6d0] sm:$0xff]
    %v249 = vld [vmem:[%s1 + $0x6d8] sm:$0xff]
    %v250 = vld [vmem:[%s1 + $0x6e0] sm:$0xff]
    %v251 = vld [vmem:[%s1 + $0x6e8] sm:$0xff]
    %v252 = vld [vmem:[%s1 + $0x6f0] sm:$0xff]
    %v253 = vld [vmem:[%s1 + $0x6f8] sm:$0xff]
    %v254 = vld [vmem:[%s1 + $0x700] sm:$0xff]
    %v255 = vld [vmem:[%s1 + $0x708] sm:$0xff]
    %v256 = vld [vmem:[%s1 + $0x710] sm:$0xff]
    %v257 = vld [vmem:[%s1 + $0x718] sm:$0xff]
    %v258 = vld [vmem:[%s1 + $0x720] sm:$0xff]
    %v259 = vld [vmem:[%s1 + $0x728] sm:$0xff]
    %v260 = vld [vmem:[%s1 + $0x730] sm:$0xff]
    %v261 = vld [vmem:[%s1 + $0x738] sm:$0xff]
    %v262 = vld [vmem:[%s1 + $0x740] sm:$0xff]
    %v263 = vld [vmem:[%s1 + $0x748] sm:$0xff]
    %v264 = vld [vmem:[%s1 + $0x750] sm:$0xff]
    %v265 = vld [vmem:[%s1 + $0x758] sm:$0xff]
    %v266 = vld [vmem:[%s1 + $0x760] sm:$0xff]
    %v267 = vld [vmem:[%s1 + $0x768] sm:$0xff]
    %v268 = vld [vmem:[%s1 + $0x770] sm:$0xff]
    %v269 = vld [vmem:[%s1 + $0x778] sm:$0xff]
    %v270 = vld [vmem:[%s1 + $0x780] sm:$0xff]
    %v271 = vld [vmem:[%s1 + $0x788] sm:$0xff]
    %v272 = vld [vmem:[%s1 + $0x790] sm:$0xff]
    %v273 = vld [vmem:[%s1 + $0x798] sm:$0xff]
    %v274 = vld [vmem:[%s1 + $0x7a0] sm:$0xff]
    %v275 = vld [vmem:[%s1 + $0x7a8] sm:$0xff]
    %v276 = vld [vmem:[%s1 + $0x7b0] sm:$0xff]
    %v277 = vld [vmem:[%s1 + $0x7b8] sm:$0xff]
    %v278 = vld [vmem:[%s1 + $0x7c0] sm:$0xff]
    %v279 = vld [vmem:[%s1 + $0x7c8] sm:$0xff]
    %v280 = vld [vmem:[%s1 + $0x7d0] sm:$0xff]
    %v281 = vld [vmem:[%s1 + $0x7d8] sm:$0xff]
    %v282 = vld [vmem:[%s1 + $0x7e0] sm:$0xff]
    %v283 = vld [vmem:[%s1 + $0x7e8] sm:$0xff]
    %v284 = vld [vmem:[%s1 + $0x7f0] sm:$0xff]
    %v285 = vld [vmem:[%s1 + $0x7f8] sm:$0xff]
    %v286 = vld [vmem:[%s1 + $0x800] sm:$0xff]
    %v287 = vld [vmem:[%s1 + $0x808] sm:$0xff]
    %v288 = vld [vmem:[%s1 + $0x810] sm:$0xff]
    %v289 = vld [vmem:[%s1 + $0x818] sm:$0xff]
    %v290 = vld [vmem:[%s1 + $0x820] sm:$0xff]
    %v291 = vld [vmem:[%s1 + $0x828] sm:$0xff]
    %v292 = vld [vmem:[%s1 + $0x830] sm:$0xff]
    %v293 = vld [vmem:[%s1 + $0x838] sm:$0xff]
    %v294 = vld [vmem:[%s1 + $0x840] sm:$0xff]
    %v295 = vld [vmem:[%s1 + $0x848] sm:$0xff]
    %v296 = vld [vmem:[%s1 + $0x850] sm:$0xff]
    %v297 = vld [vmem:[%s1 + $0x858] sm:$0xff]
    %v298 = vld [vmem:[%s1 + $0x860] sm:$0xff]
    %v299 = vld [vmem:[%s1 + $0x868] sm:$0xff]
    %v300 = vld [vmem:[%s1 + $0x870] sm:$0xff]
    %v301 = vld [vmem:[%s1 + $0x878] sm:$0xff]
    %v302 = vld [vmem:[%s1 + $0x880] sm:$0xff]
    %v303 = vld [vmem:[%s1 + $0x888] sm:$0xff]
    %v304 = vld [vmem:[%s1 + $0x890] sm:$0xff]
    %v305 = vld [vmem:[%s1 + $0x898] sm:$0xff]
    %v306 = vld [vmem:[%s1 + $0x8a0] sm:$0xff]
    %v307 = vld [vmem:[%s1 + $0x8a8] sm:$0xff]
    %v308 = vld [vmem:[%s1 + $0x8b0] sm:$0xff]
    %v309 = vld [vmem:[%s1 + $0x8b8] sm:$0xff]
    %v310 = vld [vmem:[%s1 + $0x8c0] sm:$0xff]
    %v311 = vld [vmem:[%s1 + $0x8c8] sm:$0xff]
    %v312 = vld [vmem:[%s1 + $0x8d0] sm:$0xff]
    %v313 = vld [vmem:[%s1 + $0x8d8] sm:$0xff]
    %v314 = vld [vmem:[%s1 + $0x8e0] sm:$0xff]
    %v315 = vld [vmem:[%s1 + $0x8e8] sm:$0xff]
    %v316 = vld [vmem:[%s1 + $0x8f0] sm:$0xff]
    %v317 = vld [vmem:[%s1 + $0x8f8] sm:$0xff]
    %v318 = vld [vmem:[%s1 + $0x900] sm:$0xff]
    %v319 = vld [vmem:[%s1 + $0x908] sm:$0xff]
    %v320 = vld [vmem:[%s1 + $0x910] sm:$0xff]
    %v321 = vld [vmem:[%s1 + $0x918] sm:$0xff]
    %v322 = vld [vmem:[%s1 + $0x920] sm:$0xff]
    %v323 = vld [vmem:[%s1 + $0x928] sm:$0xff]
    %v324 = vld [vmem:[%s1 + $0x930] sm:$0xff]
    %v325 = vld [vmem:[%s1 + $0x938] sm:$0xff]
    %v326 = vld [vmem:[%s1 + $0x940] sm:$0xff]
    %v327 = vld [vmem:[%s1 + $0x948] sm:$0xff]
    %v328 = vld [vmem:[%s1 + $0x950] sm:$0xff]
    %v329 = vld [vmem:[%s1 + $0x958] sm:$0xff]
    %v330 = vld [vmem:[%s1 + $0x960] sm:$0xff]
    %v331 = vld [vmem:[%s1 + $0x968] sm:$0xff]
    %v332 = vld [vmem:[%s1 + $0x970] sm:$0xff]
    %v333 = vld [vmem:[%s1 + $0x978] sm:$0xff]
    %v334 = vld [vmem:[%s1 + $0x980] sm:$0xff]
    %v335 = vld [vmem:[%s1 + $0x988] sm:$0xff]
    %v336 = vld [vmem:[%s1 + $0x990] sm:$0xff]
    %v337 = vld [vmem:[%s1 + $0x998] sm:$0xff]
    %v338 = vld [vmem:[%s1 + $0x9a0] sm:$0xff]
    %v339 = vld [vmem:[%s1 + $0x9a8] sm:$0xff]
    %v340 = vld [vmem:[%s1 + $0x9b0] sm:$0xff]
    %v341 = vld [vmem:[%s1 + $0x9b8] sm:$0xff]
    %v342 = vld [vmem:[%s1 + $0x9c0] sm:$0xff]
    %v343 = vld [vmem:[%s1 + $0x9c8] sm:$0xff]
    %v344 = vld [vmem:[%s1 + $0x9d0] sm:$0xff]
    %v345 = vld [vmem:[%s1 + $0x9d8] sm:$0xff]
    %v346 = vld [vmem:[%s1 + $0x9e0] sm:$0xff]
    %v347 = vld [vmem:[%s1 + $0x9e8] sm:$0xff]
    %v348 = vld [vmem:[%s1 + $0x9f0] sm:$0xff]
    %v349 = vld [vmem:[%s1 + $0x9f8] sm:$0xff]
    %v350 = vld [vmem:[%s1 + $0xa00] sm:$0xff]
    %v351 = vld [vmem:[%s1 + $0xa08] sm:$0xff]
    %v352 = vld [vmem:[%s1 + $0xa10] sm:$0xff]
    %v353 = vld [vmem:[%s1 + $0xa18] sm:$0xff]
    %v354 = vld [vmem:[%s1 + $0xa20] sm:$0xff]
    %v355 = vld [vmem:[%s1 + $0xa28] sm:$0xff]
    %v356 = vld [vmem:[%s1 + $0xa30] sm:$0xff]
    %v357 = vld [vmem:[%s1 + $0xa38] sm:$0xff]
    %v358 = vld [vmem:[%s1 + $0xa40] sm:$0xff]
    %v359 = vld [vmem:[%s1 + $0xa48] sm:$0xff]
    %v360 = vld [vmem:[%s1 + $0xa50] sm:$0xff]
    %v361 = vld [vmem:[%s1 + $0xa58] sm:$0xff]
    %v362 = vld [vmem:[%s1 + $0xa60] sm:$0xff]
    %v363 = vld [vmem:[%s1 + $0xa68] sm:$0xff]
    %v364 = vld [vmem:[%s1 + $0xa70] sm:$0xff]
    %v365 = vld [vmem:[%s1 + $0xa78] sm:$0xff]
    %v366 = vld [vmem:[%s1 + $0xa80] sm:$0xff]
    %v367 = vld [vmem:[%s1 + $0xa88] sm:$0xff]
    %v368 = vld [vmem:[%s1 + $0xa90] sm:$0xff]
    %v369 = vld [vmem:[%s1 + $0xa98] sm:$0xff]
    %v370 = vld [vmem:[%s1 + $0xaa0] sm:$0xff]
    %v371 = vld [vmem:[%s1 + $0xaa8] sm:$0xff]
    %v372 = vld [vmem:[%s1 + $0xab0] sm:$0xff]
    %v373 = vld [vmem:[%s1 + $0xab8] sm:$0xff]
    %v374 = vld [vmem:[%s1 + $0xac0] sm:$0xff]
    %v375 = vld [vmem:[%s1 + $0xac8] sm:$0xff]
    %v376 = vld [vmem:[%s1 + $0xad0] sm:$0xff]
    %v377 = vld [vmem:[%s1 + $0xad8] sm:$0xff]
    %v378 = vld [vmem:[%s1 + $0xae0] sm:$0xff]
    %v379 = vld [vmem:[%s1 + $0xae8] sm:$0xff]
    %v380 = vld [vmem:[%s1 + $0xaf0] sm:$0xff]
    %v381 = vld [vmem:[%s1 + $0xaf8] sm:$0xff]
    %v382 = vld [vmem:[%s1 + $0xb00] sm:$0xff]
    %v383 = vld [vmem:[%s1 + $0xb08] sm:$0xff]
    %v384 = vld [vmem:[%s1 + $0xb10] sm:$0xff]
    %v385 = vld [vmem:[%s1 + $0xb18] sm:$0xff]
    %v386 = vld [vmem:[%s1 + $0xb20] sm:$0xff]
    %v387 = vld [vmem:[%s1 + $0xb28] sm:$0xff]
    %v388 = vld [vmem:[%s1 + $0xb30] sm:$0xff]
    %v389 = vld [vmem:[%s1 + $0xb38] sm:$0xff]
    %v390 = vld [vmem:[%s1 + $0xb40] sm:$0xff]
    %v391 = vld [vmem:[%s1 + $0xb48] sm:$0xff]
    %v392 = vld [vmem:[%s1 + $0xb50] sm:$0xff]
    %v393 = vld [vmem:[%s1 + $0xb58] sm:$0xff]
    %v394 = vld [vmem:[%s1 + $0xb60] sm:$0xff]
    %v395 = vld [vmem:[%s1 + $0xb68] sm:$0xff]
    %v396 = vld [vmem:[%s1 + $0xb70] sm:$0xff]
    %v397 = vld [vmem:[%s1 + $0xb78] sm:$0xff]
    %v398 = vld [vmem:[%s1 + $0xb80] sm:$0xff]
    %v399 = vld [vmem:[%s1 + $0xb88] sm:$0xff]
    %v400 = vld [vmem:[%s1 + $0xb90] sm:$0xff]
    %v401 = vld [vmem:[%s1 + $0xb98] sm:$0xff]
    %v402 = vld [vmem:[%s1 + $0xba0] sm:$0xff]
    %v403 = vld [vmem:[%s1 + $0xba8] sm:$0xff]
    %v404 = vld [vmem:[%s1 + $0xbb0] sm:$0xff]
    %v405 = vld [vmem:[%s1 + $0xbb8] sm:$0xff]
    %v406 = vld [vmem:[%s1 + $0xbc0] sm:$0xff]
    %v407 = vld [vmem:[%s1 + $0xbc8] sm:$0xff]
    %v408 = vld [vmem:[%s1 + $0xbd0] sm:$0xff]
    %v409 = vld [vmem:[%s1 + $0xbd8] sm:$0xff]
    %v410 = vld [vmem:[%s1 + $0xbe0] sm:$0xff]
    %v411 = vld [vmem:[%s1 + $0xbe8] sm:$0xff]
    %v412 = vld [vmem:[%s1 + $0xbf0] sm:$0xff]
    %v413 = vld [vmem:[%s1 + $0xbf8] sm:$0xff]
    %v414 = vld [vmem:[%s1 + $0xc00] sm:$0xff]
    %v415 = vld [vmem:[%s1 + $0xc08] sm:$0xff]
    %v416 = vld [vmem:[%s1 + $0xc10] sm:$0xff]
    %v417 = vld [vmem:[%s1 + $0xc18] sm:$0xff]
    %v418 = vld [vmem:[%s1 + $0xc20] sm:$0xff]
    %v419 = vld [vmem:[%s1 + $0xc28] sm:$0xff]
    %v420 = vld [vmem:[%s1 + $0xc30] sm:$0xff]
    %v421 = vld [vmem:[%s1 + $0xc38] sm:$0xff]
    %v422 = vld [vmem:[%s1 + $0xc40] sm:$0xff]
    %v423 = vld [vmem:[%s1 + $0xc48] sm:$0xff]
    %v424 = vld [vmem:[%s1 + $0xc50] sm:$0xff]
    %v425 = vld [vmem:[%s1 + $0xc58] sm:$0xff]
    %v426 = vld [vmem:[%s1 + $0xc60] sm:$0xff]
    %v427 = vld [vmem:[%s1 + $0xc68] sm:$0xff]
    %v428 = vld [vmem:[%s1 + $0xc70] sm:$0xff]
    %v429 = vld [vmem:[%s1 + $0xc78] sm:$0xff]
    %v430 = vld [vmem:[%s1 + $0xc80] sm:$0xff]
    %v431 = vld [vmem:[%s1 + $0xc88] sm:$0xff]
    %v432 = vld [vmem:[%s1 + $0xc90] sm:$0xff]
    %v433 = vld [vmem:[%s1 + $0xc98] sm:$0xff]
    %v434 = vld [vmem:[%s1 + $0xca0] sm:$0xff]
    %v435 = vld [vmem:[%s1 + $0xca8] sm:$0xff]
    %v436 = vld [vmem:[%s1 + $0xcb0] sm:$0xff]
    %v437 = vld [vmem:[%s1 + $0xcb8] sm:$0xff]
    %v438 = vld [vmem:[%s1 + $0xcc0] sm:$0xff]
    %v439 = vld [vmem:[%s1 + $0xcc8] sm:$0xff]
    %v440 = vld [vmem:[%s1 + $0xcd0] sm:$0xff]
    %v441 = vld [vmem:[%s1 + $0xcd8] sm:$0xff]
    %v442 = vld [vmem:[%s1 + $0xce0] sm:$0xff]
    %v443 = vld [vmem:[%s1 + $0xce8] sm:$0xff]
    %v444 = vld [vmem:[%s1 + $0xcf0] sm:$0xff]
    %v445 = vld [vmem:[%s1 + $0xcf8] sm:$0xff]
    %v446 = vld [vmem:[%s1 + $0xd00] sm:$0xff]
    %v447 = vld [vmem:[%s1 + $0xd08] sm:$0xff]
    %v448 = vld [vmem:[%s1 + $0xd10] sm:$0xff]
    %v449 = vld [vmem:[%s1 + $0xd18] sm:$0xff]
    %v450 = vld [vmem:[%s1 + $0xd20] sm:$0xff]
    %v451 = vld [vmem:[%s1 + $0xd28] sm:$0xff]
    %v452 = vld [vmem:[%s1 + $0xd30] sm:$0xff]
    %v453 = vld [vmem:[%s1 + $0xd38] sm:$0xff]
    %v454 = vld [vmem:[%s1 + $0xd40] sm:$0xff]
    %v455 = vld [vmem:[%s1 + $0xd48] sm:$0xff]
    %v456 = vld [vmem:[%s1 + $0xd50] sm:$0xff]
    %v457 = vld [vmem:[%s1 + $0xd58] sm:$0xff]
    %v458 = vld [vmem:[%s1 + $0xd60] sm:$0xff]
    %v459 = vld [vmem:[%s1 + $0xd68] sm:$0xff]
    %v460 = vld [vmem:[%s1 + $0xd70] sm:$0xff]
    %v461 = vld [vmem:[%s1 + $0xd78] sm:$0xff]
    %v462 = vld [vmem:[%s1 + $0xd80] sm:$0xff]
    %v463 = vld [vmem:[%s1 + $0xd88] sm:$0xff]
    %v464 = vld [vmem:[%s1 + $0xd90] sm:$0xff]
    %v465 = vld [vmem:[%s1 + $0xd98] sm:$0xff]
    %v466 = vld [vmem:[%s1 + $0xda0] sm:$0xff]
    %v467 = vld [vmem:[%s1 + $0xda8] sm:$0xff]
    %v468 = vld [vmem:[%s1 + $0xdb0] sm:$0xff]
    %v469 = vld [vmem:[%s1 + $0xdb8] sm:$0xff]
    %v470 = vld [vmem:[%s1 + $0xdc0] sm:$0xff]
    %v471 = vld [vmem:[%s1 + $0xdc8] sm:$0xff]
    %v472 = vld [vmem:[%s1 + $0xdd0] sm:$0xff]
    %v473 = vld [vmem:[%s1 + $0xdd8] sm:$0xff]
    %v474 = vld [vmem:[%s1 + $0xde0] sm:$0xff]
    %v475 = vld [vmem:[%s1 + $0xde8] sm:$0xff]
    %v476 = vld [vmem:[%s1 + $0xdf0] sm:$0xff]
    %v477 = vld [vmem:[%s1 + $0xdf8] sm:$0xff]
    %v478 = vld [vmem:[%s1 + $0xe00] sm:$0xff]
    %v479 = vld [vmem:[%s1 + $0xe08] sm:$0xff]
    %v480 = vld [vmem:[%s1 + $0xe10] sm:$0xff]
    %v481 = vld [vmem:[%s1 + $0xe18] sm:$0xff]
    %v482 = vld [vmem:[%s1 + $0xe20] sm:$0xff]
    %v483 = vld [vmem:[%s1 + $0xe28] sm:$0xff]
    %v484 = vld [vmem:[%s1 + $0xe30] sm:$0xff]
    %v485 = vld [vmem:[%s1 + $0xe38] sm:$0xff]
    %v486 = vld [vmem:[%s1 + $0xe40] sm:$0xff]
    %v487 = vld [vmem:[%s1 + $0xe48] sm:$0xff]
    %v488 = vld [vmem:[%s1 + $0xe50] sm:$0xff]
    %v489 = vld [vmem:[%s1 + $0xe58] sm:$0xff]
    %v490 = vld [vmem:[%s1 + $0xe60] sm:$0xff]
    %v491 = vld [vmem:[%s1 + $0xe68] sm:$0xff]
    %v492 = vld [vmem:[%s1 + $0xe70] sm:$0xff]
    %v493 = vld [vmem:[%s1 + $0xe78] sm:$0xff]
    %v494 = vld [vmem:[%s1 + $0xe80] sm:$0xff]
    %v495 = vld [vmem:[%s1 + $0xe88] sm:$0xff]
    %v496 = vld [vmem:[%s1 + $0xe90] sm:$0xff]
    %v497 = vld [vmem:[%s1 + $0xe98] sm:$0xff]
    %v498 = vld [vmem:[%s1 + $0xea0] sm:$0xff]
    %v499 = vld [vmem:[%s1 + $0xea8] sm:$0xff]
    %v500 = vld [vmem:[%s1 + $0xeb0] sm:$0xff]
    %v501 = vld [vmem:[%s1 + $0xeb8] sm:$0xff]
    %v502 = vld [vmem:[%s1 + $0xec0] sm:$0xff]
    %v503 = vld [vmem:[%s1 + $0xec8] sm:$0xff]
    %v504 = vld [vmem:[%s1 + $0xed0] sm:$0xff]
    %v505 = vld [vmem:[%s1 + $0xed8] sm:$0xff]
    %v506 = vld [vmem:[%s1 + $0xee0] sm:$0xff]
    %v507 = vld [vmem:[%s1 + $0xee8] sm:$0xff]
    %v508 = vld [vmem:[%s1 + $0xef0] sm:$0xff]
    %v509 = vld [vmem:[%s1 + $0xef8] sm:$0xff]
    %v510 = vld [vmem:[%s1 + $0xf00] sm:$0xff]
    %v511 = vld [vmem:[%s1 + $0xf08] sm:$0xff]
    %v512 = vld [vmem:[%s1 + $0xf10] sm:$0xff]
    %v513 = vld [vmem:[%s1 + $0xf18] sm:$0xff]
    %v514 = vld [vmem:[%s1 + $0xf20] sm:$0xff]
    %v515 = vld [vmem:[%s1 + $0xf28] sm:$0xff]
    %v516 = vld [vmem:[%s1 + $0xf30] sm:$0xff]
    %v517 = vld [vmem:[%s1 + $0xf38] sm:$0xff]
    %v518 = vld [vmem:[%s1 + $0xf40] sm:$0xff]
    %v519 = vld [vmem:[%s1 + $0xf48] sm:$0xff]
    %v520 = vld [vmem:[%s1 + $0xf50] sm:$0xff]
    %v521 = vld [vmem:[%s1 + $0xf58] sm:$0xff]
    %v522 = vld [vmem:[%s1 + $0xf60] sm:$0xff]
    %v523 = vld [vmem:[%s1 + $0xf68] sm:$0xff]
    %v524 = vld [vmem:[%s1 + $0xf70] sm:$0xff]
    %v525 = vld [vmem:[%s1 + $0xf78] sm:$0xff]
    %v526 = vld [vmem:[%s1 + $0xf80] sm:$0xff]
    %v527 = vld [vmem:[%s1 + $0xf88] sm:$0xff]
    %v528 = vld [vmem:[%s1 + $0xf90] sm:$0xff]
    %v529 = vld [vmem:[%s1 + $0xf98] sm:$0xff]
    %v530 = vld [vmem:[%s1 + $0xfa0] sm:$0xff]
    %v531 = vld [vmem:[%s1 + $0xfa8] sm:$0xff]
    %v532 = vld [vmem:[%s1 + $0xfb0] sm:$0xff]
    %v533 = vld [vmem:[%s1 + $0xfb8] sm:$0xff]
    %v534 = vld [vmem:[%s1 + $0xfc0] sm:$0xff]
    %v535 = vld [vmem:[%s1 + $0xfc8] sm:$0xff]
    %v536 = vld [vmem:[%s1 + $0xfd0] sm:$0xff]
    %v537 = vld [vmem:[%s1 + $0xfd8] sm:$0xff]
    %v538 = vld [vmem:[%s1 + $0xfe0] sm:$0xff]
    %v539 = vld [vmem:[%s1 + $0xfe8] sm:$0xff]
    %v540 = vld [vmem:[%s1 + $0xff0] sm:$0xff]
    %v541 = vld [vmem:[%s1 + $0xff8] sm:$0xff]
    %v542 = vld [vmem:[%s1 + $0x1000] sm:$0xff]
    %v543 = vld [vmem:[%s1 + $0x1008] sm:$0xff]
    %v544 = vld [vmem:[%s1 + $0x1010] sm:$0xff]
    %v545 = vld [vmem:[%s1 + $0x1018] sm:$0xff]
    %v546 = vld [vmem:[%s1 + $0x1020] sm:$0xff]
    %v547 = vld [vmem:[%s1 + $0x1028] sm:$0xff]
    %v548 = vld [vmem:[%s1 + $0x1030] sm:$0xff]
    %v549 = vld [vmem:[%s1 + $0x1038] sm:$0xff]
    %v550 = vld [vmem:[%s1 + $0x1040] sm:$0xff]
    %v551 = vld [vmem:[%s1 + $0x1048] sm:$0xff]
    %v552 = vld [vmem:[%s1 + $0x1050] sm:$0xff]
    %v553 = vld [vmem:[%s1 + $0x1058] sm:$0xff]
    %v554 = vld [vmem:[%s1 + $0x1060] sm:$0xff]
    %v555 = vld [vmem:[%s1 + $0x1068] sm:$0xff]
    %v556 = vld [vmem:[%s1 + $0x1070] sm:$0xff]
    %v557 = vld [vmem:[%s1 + $0x1078] sm:$0xff]
    %v558 = vld [vmem:[%s1 + $0x1080] sm:$0xff]
    %v559 = vld [vmem:[%s1 + $0x1088] sm:$0xff]
    %v560 = vld [vmem:[%s1 + $0x1090] sm:$0xff]
    %v561 = vld [vmem:[%s1 + $0x1098] sm:$0xff]
    %v562 = vld [vmem:[%s1 + $0x10a0] sm:$0xff]
    %v563 = vld [vmem:[%s1 + $0x10a8] sm:$0xff]
    %v564 = vld [vmem:[%s1 + $0x10b0] sm:$0xff]
    %v565 = vld [vmem:[%s1 + $0x10b8] sm:$0xff]
    %v566 = vld [vmem:[%s1 + $0x10c0] sm:$0xff]
    %v567 = vld [vmem:[%s1 + $0x10c8] sm:$0xff]
    %v568 = vld [vmem:[%s1 + $0x10d0] sm:$0xff]
    %v569 = vld [vmem:[%s1 + $0x10d8] sm:$0xff]
    %v570 = vld [vmem:[%s1 + $0x10e0] sm:$0xff]
    %v571 = vld [vmem:[%s1 + $0x10e8] sm:$0xff]
    %v572 = vld [vmem:[%s1 + $0x10f0] sm:$0xff]
    %v573 = vld [vmem:[%s1 + $0x10f8] sm:$0xff]
    %v574 = vld [vmem:[%s1 + $0x1100] sm:$0xff]
    %v575 = vld [vmem:[%s1 + $0x1108] sm:$0xff]
    %v576 = vld [vmem:[%s1 + $0x1110] sm:$0xff]
    %v577 = vld [vmem:[%s1 + $0x1118] sm:$0xff]
    %v578 = vld [vmem:[%s1 + $0x1120] sm:$0xff]
    %v579 = vld [vmem:[%s1 + $0x1128] sm:$0xff]
    %v580 = vld [vmem:[%s1 + $0x1130] sm:$0xff]
    %v581 = vld [vmem:[%s1 + $0x1138] sm:$0xff]
    %v582 = vld [vmem:[%s1 + $0x1140] sm:$0xff]
    %v583 = vld [vmem:[%s1 + $0x1148] sm:$0xff]
    %v584 = vld [vmem:[%s1 + $0x1150] sm:$0xff]
    %v585 = vld [vmem:[%s1 + $0x1158] sm:$0xff]
    %v586 = vld [vmem:[%s1 + $0x1160] sm:$0xff]
    %v587 = vld [vmem:[%s1 + $0x1168] sm:$0xff]
    %v588 = vld [vmem:[%s1 + $0x1170] sm:$0xff]
    %v589 = vld [vmem:[%s1 + $0x1178] sm:$0xff]
    %v590 = vld [vmem:[%s1 + $0x1180] sm:$0xff]
    %v591 = vld [vmem:[%s1 + $0x1188] sm:$0xff]
    %v592 = vld [vmem:[%s1 + $0x1190] sm:$0xff]
    %v593 = vld [vmem:[%s1 + $0x1198] sm:$0xff]
    %v594 = vld [vmem:[%s1 + $0x11a0] sm:$0xff]
    %v595 = vld [vmem:[%s1 + $0x11a8] sm:$0xff]
    %v596 = vld [vmem:[%s1 + $0x11b0] sm:$0xff]
    %v597 = vld [vmem:[%s1 + $0x11b8] sm:$0xff]
    %v598 = vld [vmem:[%s1 + $0x11c0] sm:$0xff]
    %v599 = vld [vmem:[%s1 + $0x11c8] sm:$0xff]
    %v600 = vld [vmem:[%s1 + $0x11d0] sm:$0xff]
    %v601 = vld [vmem:[%s1 + $0x11d8] sm:$0xff]
    %v602 = vld [vmem:[%s1 + $0x11e0] sm:$0xff]
    %v603 = vld [vmem:[%s1 + $0x11e8] sm:$0xff]
    %v604 = vld [vmem:[%s1 + $0x11f0] sm:$0xff]
    %v605 = vld [vmem:[%s1 + $0x11f8] sm:$0xff]
    %v606 = vld [vmem:[%s1 + $0x1200] sm:$0xff]
    %v607 = vld [vmem:[%s1 + $0x1208] sm:$0xff]
    %v608 = vld [vmem:[%s1 + $0x1210] sm:$0xff]
    %v609 = vld [vmem:[%s1 + $0x1218] sm:$0xff]
    %v610 = vld [vmem:[%s1 + $0x1220] sm:$0xff]
    %v611 = vld [vmem:[%s1 + $0x1228] sm:$0xff]
    %v612 = vld [vmem:[%s1 + $0x1230] sm:$0xff]
    %v613 = vld [vmem:[%s1 + $0x1238] sm:$0xff]
    %v614 = vld [vmem:[%s1 + $0x1240] sm:$0xff]
    %v615 = vld [vmem:[%s1 + $0x1248] sm:$0xff]
    %v616 = vld [vmem:[%s1 + $0x1250] sm:$0xff]
    %v617 = vld [vmem:[%s1 + $0x1258] sm:$0xff]
    %v618 = vld [vmem:[%s1 + $0x1260] sm:$0xff]
    %v619 = vld [vmem:[%s1 + $0x1268] sm:$0xff]
    %v620 = vld [vmem:[%s1 + $0x1270] sm:$0xff]
    %v621 = vld [vmem:[%s1 + $0x1278] sm:$0xff]
    %v622 = vld [vmem:[%s1 + $0x1280] sm:$0xff]
    %v623 = vld [vmem:[%s1 + $0x1288] sm:$0xff]
    %v624 = vld [vmem:[%s1 + $0x1290] sm:$0xff]
    %v625 = vld [vmem:[%s1 + $0x1298] sm:$0xff]
    %v626 = vld [vmem:[%s1 + $0x12a0] sm:$0xff]
    %v627 = vld [vmem:[%s1 + $0x12a8] sm:$0xff]
    %v628 = vld [vmem:[%s1 + $0x12b0] sm:$0xff]
    %v629 = vld [vmem:[%s1 + $0x12b8] sm:$0xff]
    %v630 = vld [vmem:[%s1 + $0x12c0] sm:$0xff]
    %v631 = vld [vmem:[%s1 + $0x12c8] sm:$0xff]
    %v632 = vld [vmem:[%s1 + $0x12d0] sm:$0xff]
    %v633 = vld [vmem:[%s1 + $0x12d8] sm:$0xff]
    %v634 = vld [vmem:[%s1 + $0x12e0] sm:$0xff]
    %v635 = vld [vmem:[%s1 + $0x12e8] sm:$0xff]
    %v636 = vld [vmem:[%s1 + $0x12f0] sm:$0xff]
    %v637 = vld [vmem:[%s1 + $0x12f8] sm:$0xff]
    %v638 = vld [vmem:[%s1 + $0x1300] sm:$0xff]
    %v639 = vld [vmem:[%s1 + $0x1308] sm:$0xff]
    %v640 = vld [vmem:[%s1 + $0x1310] sm:$0xff]
    %v641 = vld [vmem:[%s1 + $0x1318] sm:$0xff]
    %v642 = vld [vmem:[%s1 + $0x1320] sm:$0xff]
    %v643 = vld [vmem:[%s1 + $0x1328] sm:$0xff]
    %v644 = vld [vmem:[%s1 + $0x1330] sm:$0xff]
    %v645 = vld [vmem:[%s1 + $0x1338] sm:$0xff]
    %v646 = vld [vmem:[%s1 + $0x1340] sm:$0xff]
    %v647 = vld [vmem:[%s1 + $0x1348] sm:$0xff]
    %v648 = vld [vmem:[%s1 + $0x1350] sm:$0xff]
    %v649 = vld [vmem:[%s1 + $0x1358] sm:$0xff]
    %v650 = vld [vmem:[%s1 + $0x1360] sm:$0xff]
    %v651 = vld [vmem:[%s1 + $0x1368] sm:$0xff]
    %v652 = vld [vmem:[%s1 + $0x1370] sm:$0xff]
    %v653 = vld [vmem:[%s1 + $0x1378] sm:$0xff]
    %v654 = vld [vmem:[%s1 + $0x1380] sm:$0xff]
    %v655 = vld [vmem:[%s1 + $0x1388] sm:$0xff]
    %v656 = vld [vmem:[%s1 + $0x1390] sm:$0xff]
    %v657 = vld [vmem:[%s1 + $0x1398] sm:$0xff]
    %v658 = vld [vmem:[%s1 + $0x13a0] sm:$0xff]
    %v659 = vld [vmem:[%s1 + $0x13a8] sm:$0xff]
    %v660 = vld [vmem:[%s1 + $0x13b0] sm:$0xff]
    %v661 = vld [vmem:[%s1 + $0x13b8] sm:$0xff]
    %v662 = vld [vmem:[%s1 + $0x13c0] sm:$0xff]
    %v663 = vld [vmem:[%s1 + $0x13c8] sm:$0xff]
    %v664 = vld [vmem:[%s1 + $0x13d0] sm:$0xff]
    %v665 = vld [vmem:[%s1 + $0x13d8] sm:$0xff]
    %v666 = vld [vmem:[%s1 + $0x13e0] sm:$0xff]
    %v667 = vld [vmem:[%s1 + $0x13e8] sm:$0xff]
    %v668 = vld [vmem:[%s1 + $0x13f0] sm:$0xff]
    %v669 = vld [vmem:[%s1 + $0x13f8] sm:$0xff]
    %v670 = vld [vmem:[%s1 + $0x1400] sm:$0xff]
    %v671 = vld [vmem:[%s1 + $0x1408] sm:$0xff]
    %v672 = vld [vmem:[%s1 + $0x1410] sm:$0xff]
    %v673 = vld [vmem:[%s1 + $0x1418] sm:$0xff]
    %v674 = vld [vmem:[%s1 + $0x1420] sm:$0xff]
    %v675 = vld [vmem:[%s1 + $0x1428] sm:$0xff]
    %v676 = vld [vmem:[%s1 + $0x1430] sm:$0xff]
    %v677 = vld [vmem:[%s1 + $0x1438] sm:$0xff]
    %v678 = vld [vmem:[%s1 + $0x1440] sm:$0xff]
    %v679 = vld [vmem:[%s1 + $0x1448] sm:$0xff]
    %v680 = vld [vmem:[%s1 + $0x1450] sm:$0xff]
    %v681 = vld [vmem:[%s1 + $0x1458] sm:$0xff]
    %v682 = vld [vmem:[%s1 + $0x1460] sm:$0xff]
    %v683 = vld [vmem:[%s1 + $0x1468] sm:$0xff]
    %v684 = vld [vmem:[%s1 + $0x1470] sm:$0xff]
    %v685 = vld [vmem:[%s1 + $0x1478] sm:$0xff]
    %v686 = vld [vmem:[%s1 + $0x1480] sm:$0xff]
    %v687 = vld [vmem:[%s1 + $0x1488] sm:$0xff]
    %v688 = vld [vmem:[%s1 + $0x1490] sm:$0xff]
    %v689 = vld [vmem:[%s1 + $0x1498] sm:$0xff]
    %v690 = vld [vmem:[%s1 + $0x14a0] sm:$0xff]
    %v691 = vld [vmem:[%s1 + $0x14a8] sm:$0xff]
    %v692 = vld [vmem:[%s1 + $0x14b0] sm:$0xff]
    %v693 = vld [vmem:[%s1 + $0x14b8] sm:$0xff]
    %v694 = vld [vmem:[%s1 + $0x14c0] sm:$0xff]
    %v695 = vld [vmem:[%s1 + $0x14c8] sm:$0xff]
    %v696 = vld [vmem:[%s1 + $0x14d0] sm:$0xff]
    %v697 = vld [vmem:[%s1 + $0x14d8] sm:$0xff]
    %v698 = vld [vmem:[%s1 + $0x14e0] sm:$0xff]
    %v699 = vld [vmem:[%s1 + $0x14e8] sm:$0xff]
    %v700 = vld [vmem:[%s1 + $0x14f0] sm:$0xff]
    %v701 = vld [vmem:[%s1 + $0x14f8] sm:$0xff]
    %v702 = vld [vmem:[%s1 + $0x1500] sm:$0xff]
    %v703 = vld [vmem:[%s1 + $0x1508] sm:$0xff]
    %v704 = vld [vmem:[%s1 + $0x1510] sm:$0xff]
    %v705 = vld [vmem:[%s1 + $0x1518] sm:$0xff]
    %v706 = vld [vmem:[%s1 + $0x1520] sm:$0xff]
    %v707 = vld [vmem:[%s1 + $0x1528] sm:$0xff]
    %v708 = vld [vmem:[%s1 + $0x1530] sm:$0xff]
    %v709 = vld [vmem:[%s1 + $0x1538] sm:$0xff]
    %v710 = vld [vmem:[%s1 + $0x1540] sm:$0xff]
    %v711 = vld [vmem:[%s1 + $0x1548] sm:$0xff]
    %v712 = vld [vmem:[%s1 + $0x1550] sm:$0xff]
    %v713 = vld [vmem:[%s1 + $0x1558] sm:$0xff]
    %v714 = vld [vmem:[%s1 + $0x1560] sm:$0xff]
    %v715 = vld [vmem:[%s1 + $0x1568] sm:$0xff]
    %v716 = vld [vmem:[%s1 + $0x1570] sm:$0xff]
    %v717 = vld [vmem:[%s1 + $0x1578] sm:$0xff]
    %v718 = vld [vmem:[%s1 + $0x1580] sm:$0xff]
    %v719 = vld [vmem:[%s1 + $0x1588] sm:$0xff]
    %v720 = vld [vmem:[%s1 + $0x1590] sm:$0xff]
    %v721 = vld [vmem:[%s1 + $0x1598] sm:$0xff]
    %v722 = vld [vmem:[%s1 + $0x15a0] sm:$0xff]
    %v723 = vld [vmem:[%s1 + $0x15a8] sm:$0xff]
    %v724 = vld [vmem:[%s1 + $0x15b0] sm:$0xff]
    %v725 = vld [vmem:[%s1 + $0x15b8] sm:$0xff]
    %v726 = vld [vmem:[%s1 + $0x15c0] sm:$0xff]
    %v727 = vld [vmem:[%s1 + $0x15c8] sm:$0xff]
    %v728 = vld [vmem:[%s1 + $0x15d0] sm:$0xff]
    %v729 = vld [vmem:[%s1 + $0x15d8] sm:$0xff]
    %v730 = vld [vmem:[%s1 + $0x15e0] sm:$0xff]
    %v731 = vld [vmem:[%s1 + $0x15e8] sm:$0xff]
    %v732 = vld [vmem:[%s1 + $0x15f0] sm:$0xff]
    %v733 = vld [vmem:[%s1 + $0x15f8] sm:$0xff]
    %v734 = vld [vmem:[%s1 + $0x1600] sm:$0xff]
    %v735 = vld [vmem:[%s1 + $0x1608] sm:$0xff]
    %v736 = vld [vmem:[%s1 + $0x1610] sm:$0xff]
    %v737 = vld [vmem:[%s1 + $0x1618] sm:$0xff]
    %v738 = vld [vmem:[%s1 + $0x1620] sm:$0xff]
    %v739 = vld [vmem:[%s1 + $0x1628] sm:$0xff]
    %v740 = vld [vmem:[%s1 + $0x1630] sm:$0xff]
    %v741 = vld [vmem:[%s1 + $0x1638] sm:$0xff]
    %v742 = vld [vmem:[%s1 + $0x1640] sm:$0xff]
    %v743 = vld [vmem:[%s1 + $0x1648] sm:$0xff]
    %v744 = vld [vmem:[%s1 + $0x1650] sm:$0xff]
    %v745 = vld [vmem:[%s1 + $0x1658] sm:$0xff]
    %v746 = vld [vmem:[%s1 + $0x1660] sm:$0xff]
    %v747 = vld [vmem:[%s1 + $0x1668] sm:$0xff]
    %v748 = vld [vmem:[%s1 + $0x1670] sm:$0xff]
    %v749 = vld [vmem:[%s1 + $0x1678] sm:$0xff]
    %v750 = vld [vmem:[%s1 + $0x1680] sm:$0xff]
    %v751 = vld [vmem:[%s1 + $0x1688] sm:$0xff]
    %v752 = vld [vmem:[%s1 + $0x1690] sm:$0xff]
    %v753 = vld [vmem:[%s1 + $0x1698] sm:$0xff]
    %v754 = vld [vmem:[%s1 + $0x16a0] sm:$0xff]
    %v755 = vld [vmem:[%s1 + $0x16a8] sm:$0xff]
    %v756 = vld [vmem:[%s1 + $0x16b0] sm:$0xff]
    %v757 = vld [vmem:[%s1 + $0x16b8] sm:$0xff]
    %v758 = vld [vmem:[%s1 + $0x16c0] sm:$0xff]
    %v759 = vld [vmem:[%s1 + $0x16c8] sm:$0xff]
    %v760 = vld [vmem:[%s1 + $0x16d0] sm:$0xff]
    %v761 = vld [vmem:[%s1 + $0x16d8] sm:$0xff]
    %v762 = vld [vmem:[%s1 + $0x16e0] sm:$0xff]
    %v763 = vld [vmem:[%s1 + $0x16e8] sm:$0xff]
    %v764 = vld [vmem:[%s1 + $0x16f0] sm:$0xff]
    %v765 = vld [vmem:[%s1 + $0x16f8] sm:$0xff]
    %v766 = vld [vmem:[%s1 + $0x1700] sm:$0xff]
    %v767 = vld [vmem:[%s1 + $0x1708] sm:$0xff]
    %v768 = vld [vmem:[%s1 + $0x1710] sm:$0xff]
    %v769 = vld [vmem:[%s1 + $0x1718] sm:$0xff]
    %v770 = vld [vmem:[%s1 + $0x1720] sm:$0xff]
    %v771 = vld [vmem:[%s1 + $0x1728] sm:$0xff]
    %v772 = vld [vmem:[%s1 + $0x1730] sm:$0xff]
    %v773 = vld [vmem:[%s1 + $0x1738] sm:$0xff]
    %v774 = vld [vmem:[%s1 + $0x1740] sm:$0xff]
    %v775 = vld [vmem:[%s1 + $0x1748] sm:$0xff]
    %v776 = vld [vmem:[%s1 + $0x1750] sm:$0xff]
    %v777 = vld [vmem:[%s1 + $0x1758] sm:$0xff]
    %v778 = vld [vmem:[%s1 + $0x1760] sm:$0xff]
    %v779 = vld [vmem:[%s1 + $0x1768] sm:$0xff]
    %v780 = vld [vmem:[%s1 + $0x1770] sm:$0xff]
    %v781 = vld [vmem:[%s1 + $0x1778] sm:$0xff]
    %v782 = vld [vmem:[%s1 + $0x1780] sm:$0xff]
    %v783 = vld [vmem:[%s1 + $0x1788] sm:$0xff]
    %v784 = vld [vmem:[%s1 + $0x1790] sm:$0xff]
    %v785 = vld [vmem:[%s1 + $0x1798] sm:$0xff]
    %v786 = vld [vmem:[%s1 + $0x17a0] sm:$0xff]
    %v787 = vld [vmem:[%s1 + $0x17a8] sm:$0xff]
    %v788 = vld [vmem:[%s1 + $0x17b0] sm:$0xff]
    %v789 = vld [vmem:[%s1 + $0x17b8] sm:$0xff]
    %v790 = vld [vmem:[%s1 + $0x17c0] sm:$0xff]
    %v791 = vld [vmem:[%s1 + $0x17c8] sm:$0xff]
    %v792 = vld [vmem:[%s1 + $0x17d0] sm:$0xff]
    %v793 = vld [vmem:[%s1 + $0x17d8] sm:$0xff]
    %v794 = vld [vmem:[%s1 + $0x17e0] sm:$0xff]
    %v795 = vld [vmem:[%s1 + $0x17e8] sm:$0xff]
    %v796 = vld [vmem:[%s1 + $0x17f0] sm:$0xff]
    %v797 = vld [vmem:[%s1 + $0x17f8] sm:$0xff]
    %v798 = vld [vmem:[%s1 + $0x1800] sm:$0xff]
    %v799 = vld [vmem:[%s1 + $0x1808] sm:$0xff]
    %v800 = vld [vmem:[%s1 + $0x1810] sm:$0xff]
    %v801 = vld [vmem:[%s1 + $0x1818] sm:$0xff]
    %v802 = vld [vmem:[%s1 + $0x1820] sm:$0xff]
    %v803 = vld [vmem:[%s1 + $0x1828] sm:$0xff]
    %v804 = vld [vmem:[%s1 + $0x1830] sm:$0xff]
    %v805 = vld [vmem:[%s1 + $0x1838] sm:$0xff]
    %v806 = vld [vmem:[%s1 + $0x1840] sm:$0xff]
    %v807 = vld [vmem:[%s1 + $0x1848] sm:$0xff]
    %v808 = vld [vmem:[%s1 + $0x1850] sm:$0xff]
    %v809 = vld [vmem:[%s1 + $0x1858] sm:$0xff]
    %v810 = vld [vmem:[%s1 + $0x1860] sm:$0xff]
    %v811 = vld [vmem:[%s1 + $0x1868] sm:$0xff]
    %v812 = vld [vmem:[%s1 + $0x1870] sm:$0xff]
    %v813 = vld [vmem:[%s1 + $0x1878] sm:$0xff]
    %v814 = vld [vmem:[%s1 + $0x1880] sm:$0xff]
    %v815 = vld [vmem:[%s1 + $0x1888] sm:$0xff]
    %v816 = vld [vmem:[%s1 + $0x1890] sm:$0xff]
    %v817 = vld [vmem:[%s1 + $0x1898] sm:$0xff]
    %v818 = vld [vmem:[%s1 + $0x18a0] sm:$0xff]
    %v819 = vld [vmem:[%s1 + $0x18a8] sm:$0xff]
    %v820 = vld [vmem:[%s1 + $0x18b0] sm:$0xff]
    %v821 = vld [vmem:[%s1 + $0x18b8] sm:$0xff]
    %v822 = vld [vmem:[%s1 + $0x18c0] sm:$0xff]
    %v823 = vld [vmem:[%s1 + $0x18c8] sm:$0xff]
    %v824 = vld [vmem:[%s1 + $0x18d0] sm:$0xff]
    %v825 = vld [vmem:[%s1 + $0x18d8] sm:$0xff]
    %v826 = vld [vmem:[%s1 + $0x18e0] sm:$0xff]
    %v827 = vld [vmem:[%s1 + $0x18e8] sm:$0xff]
    %v828 = vld [vmem:[%s1 + $0x18f0] sm:$0xff]
    %v829 = vld [vmem:[%s1 + $0x18f8] sm:$0xff]
    %v830 = vld [vmem:[%s1 + $0x1900] sm:$0xff]
    %v831 = vld [vmem:[%s1 + $0x1908] sm:$0xff]
    %v832 = vld [vmem:[%s1 + $0x1910] sm:$0xff]
    %v833 = vld [vmem:[%s1 + $0x1918] sm:$0xff]
    %v834 = vld [vmem:[%s1 + $0x1920] sm:$0xff]
    %v835 = vld [vmem:[%s1 + $0x1928] sm:$0xff]
    %v836 = vld [vmem:[%s1 + $0x1930] sm:$0xff]
    %v837 = vld [vmem:[%s1 + $0x1938] sm:$0xff]
    %v838 = vld [vmem:[%s1 + $0x1940] sm:$0xff]
    %v839 = vld [vmem:[%s1 + $0x1948] sm:$0xff]
    %v840 = vld [vmem:[%s1 + $0x1950] sm:$0xff]
    %v841 = vld [vmem:[%s1 + $0x1958] sm:$0xff]
    %v842 = vld [vmem:[%s1 + $0x1960] sm:$0xff]
    %v843 = vld [vmem:[%s1 + $0x1968] sm:$0xff]
    %v844 = vld [vmem:[%s1 + $0x1970] sm:$0xff]
    %v845 = vld [vmem:[%s1 + $0x1978] sm:$0xff]
    %v846 = vld [vmem:[%s1 + $0x1980] sm:$0xff]
    %v847 = vld [vmem:[%s1 + $0x1988] sm:$0xff]
    %v848 = vld [vmem:[%s1 + $0x1990] sm:$0xff]
    %v849 = vld [vmem:[%s1 + $0x1998] sm:$0xff]
    %v850 = vld [vmem:[%s1 + $0x19a0] sm:$0xff]
    %v851 = vld [vmem:[%s1 + $0x19a8] sm:$0xff]
    %v852 = vld [vmem:[%s1 + $0x19b0] sm:$0xff]
    %v853 = vld [vmem:[%s1 + $0x19b8] sm:$0xff]
    %v854 = vld [vmem:[%s1 + $0x19c0] sm:$0xff]
    %v855 = vld [vmem:[%s1 + $0x19c8] sm:$0xff]
    %v856 = vld [vmem:[%s1 + $0x19d0] sm:$0xff]
    %v857 = vld [vmem:[%s1 + $0x19d8] sm:$0xff]
    %v858 = vld [vmem:[%s1 + $0x19e0] sm:$0xff]
    %v859 = vld [vmem:[%s1 + $0x19e8] sm:$0xff]
    %v860 = vld [vmem:[%s1 + $0x19f0] sm:$0xff]
    %v861 = vld [vmem:[%s1 + $0x19f8] sm:$0xff]
    %v862 = vld [vmem:[%s1 + $0x1a00] sm:$0xff]
    %v863 = vld [vmem:[%s1 + $0x1a08] sm:$0xff]
    %v864 = vld [vmem:[%s1 + $0x1a10] sm:$0xff]
    %v865 = vld [vmem:[%s1 + $0x1a18] sm:$0xff]
    %v866 = vld [vmem:[%s1 + $0x1a20] sm:$0xff]
    %v867 = vld [vmem:[%s1 + $0x1a28] sm:$0xff]
    %v868 = vld [vmem:[%s1 + $0x1a30] sm:$0xff]
    %v869 = vld [vmem:[%s1 + $0x1a38] sm:$0xff]
    %v870 = vld [vmem:[%s1 + $0x1a40] sm:$0xff]
    %v871 = vld [vmem:[%s1 + $0x1a48] sm:$0xff]
    %v872 = vld [vmem:[%s1 + $0x1a50] sm:$0xff]
    %v873 = vld [vmem:[%s1 + $0x1a58] sm:$0xff]
    %v874 = vld [vmem:[%s1 + $0x1a60] sm:$0xff]
    %v875 = vld [vmem:[%s1 + $0x1a68] sm:$0xff]
    %v876 = vld [vmem:[%s1 + $0x1a70] sm:$0xff]
    %v877 = vld [vmem:[%s1 + $0x1a78] sm:$0xff]
    %v878 = vld [vmem:[%s1 + $0x1a80] sm:$0xff]
    %v879 = vld [vmem:[%s1 + $0x1a88] sm:$0xff]
    %v880 = vld [vmem:[%s1 + $0x1a90] sm:$0xff]
    %v881 = vld [vmem:[%s1 + $0x1a98] sm:$0xff]
    %v882 = vld [vmem:[%s1 + $0x1aa0] sm:$0xff]
    %v883 = vld [vmem:[%s1 + $0x1aa8] sm:$0xff]
    %v884 = vld [vmem:[%s1 + $0x1ab0] sm:$0xff]
    %v885 = vld [vmem:[%s1 + $0x1ab8] sm:$0xff]
    %v886 = vld [vmem:[%s1 + $0x1ac0] sm:$0xff]
    %v887 = vld [vmem:[%s1 + $0x1ac8] sm:$0xff]
    %v888 = vld [vmem:[%s1 + $0x1ad0] sm:$0xff]
    %v889 = vld [vmem:[%s1 + $0x1ad8] sm:$0xff]
    %v890 = vld [vmem:[%s1 + $0x1ae0] sm:$0xff]
    %v891 = vld [vmem:[%s1 + $0x1ae8] sm:$0xff]
    %v892 = vld [vmem:[%s1 + $0x1af0] sm:$0xff]
    %v893 = vld [vmem:[%s1 + $0x1af8] sm:$0xff]
    %v894 = vld [vmem:[%s1 + $0x1b00] sm:$0xff]
    %v895 = vld [vmem:[%s1 + $0x1b08] sm:$0xff]
    %v896 = vld [vmem:[%s1 + $0x1b10] sm:$0xff]
    %v897 = vld [vmem:[%s1 + $0x1b18] sm:$0xff]
    %v898 = vld [vmem:[%s1 + $0x1b20] sm:$0xff]
    %v899 = vld [vmem:[%s1 + $0x1b28] sm:$0xff]
    %v900 = vld [vmem:[%s1 + $0x1b30] sm:$0xff]
    %v901 = vld [vmem:[%s1 + $0x1b38] sm:$0xff]
    %v902 = vld [vmem:[%s1 + $0x1b40] sm:$0xff]
    %v903 = vld [vmem:[%s1 + $0x1b48] sm:$0xff]
    %v904 = vld [vmem:[%s1 + $0x1b50] sm:$0xff]
    %v905 = vld [vmem:[%s1 + $0x1b58] sm:$0xff]
    %v906 = vld [vmem:[%s1 + $0x1b60] sm:$0xff]
    %v907 = vld [vmem:[%s1 + $0x1b68] sm:$0xff]
    %v908 = vld [vmem:[%s1 + $0x1b70] sm:$0xff]
    %v909 = vld [vmem:[%s1 + $0x1b78] sm:$0xff]
    %v910 = vld [vmem:[%s1 + $0x1b80] sm:$0xff]
    %v911 = vld [vmem:[%s1 + $0x1b88] sm:$0xff]
    %v912 = vld [vmem:[%s1 + $0x1b90] sm:$0xff]
    %v913 = vld [vmem:[%s1 + $0x1b98] sm:$0xff]
    %v914 = vld [vmem:[%s1 + $0x1ba0] sm:$0xff]
    %v915 = vld [vmem:[%s1 + $0x1ba8] sm:$0xff]
    %v916 = vld [vmem:[%s1 + $0x1bb0] sm:$0xff]
    %v917 = vld [vmem:[%s1 + $0x1bb8] sm:$0xff]
    %v918 = vld [vmem:[%s1 + $0x1bc0] sm:$0xff]
    %v919 = vld [vmem:[%s1 + $0x1bc8] sm:$0xff]
    %v920 = vld [vmem:[%s1 + $0x1bd0] sm:$0xff]
    %v921 = vld [vmem:[%s1 + $0x1bd8] sm:$0xff]
    %v922 = vld [vmem:[%s1 + $0x1be0] sm:$0xff]
    %v923 = vld [vmem:[%s1 + $0x1be8] sm:$0xff]
    %v924 = vld [vmem:[%s1 + $0x1bf0] sm:$0xff]
    %v925 = vld [vmem:[%s1 + $0x1bf8] sm:$0xff]
    %v926 = vld [vmem:[%s1 + $0x1c00] sm:$0xff]
    %v927 = vld [vmem:[%s1 + $0x1c08] sm:$0xff]
    %v928 = vld [vmem:[%s1 + $0x1c10] sm:$0xff]
    %v929 = vld [vmem:[%s1 + $0x1c18] sm:$0xff]
    %v930 = vld [vmem:[%s1 + $0x1c20] sm:$0xff]
    %v931 = vld [vmem:[%s1 + $0x1c28] sm:$0xff]
    %v932 = vld [vmem:[%s1 + $0x1c30] sm:$0xff]
    %v933 = vld [vmem:[%s1 + $0x1c38] sm:$0xff]
    %v934 = vld [vmem:[%s1 + $0x1c40] sm:$0xff]
    %v935 = vld [vmem:[%s1 + $0x1c48] sm:$0xff]
    %v936 = vld [vmem:[%s1 + $0x1c50] sm:$0xff]
    %v937 = vld [vmem:[%s1 + $0x1c58] sm:$0xff]
    %v938 = vld [vmem:[%s1 + $0x1c60] sm:$0xff]
    %v939 = vld [vmem:[%s1 + $0x1c68] sm:$0xff]
    %v940 = vld [vmem:[%s1 + $0x1c70] sm:$0xff]
    %v941 = vld [vmem:[%s1 + $0x1c78] sm:$0xff]
    %v942 = vld [vmem:[%s1 + $0x1c80] sm:$0xff]
    %v943 = vld [vmem:[%s1 + $0x1c88] sm:$0xff]
    %v944 = vld [vmem:[%s1 + $0x1c90] sm:$0xff]
    %v945 = vld [vmem:[%s1 + $0x1c98] sm:$0xff]
    %v946 = vld [vmem:[%s1 + $0x1ca0] sm:$0xff]
    %v947 = vld [vmem:[%s1 + $0x1ca8] sm:$0xff]
    %v948 = vld [vmem:[%s1 + $0x1cb0] sm:$0xff]
    %v949 = vld [vmem:[%s1 + $0x1cb8] sm:$0xff]
    %v950 = vld [vmem:[%s1 + $0x1cc0] sm:$0xff]
    %v951 = vld [vmem:[%s1 + $0x1cc8] sm:$0xff]
    %v952 = vld [vmem:[%s1 + $0x1cd0] sm:$0xff]
    %v953 = vld [vmem:[%s1 + $0x1cd8] sm:$0xff]
    %v954 = vld [vmem:[%s1 + $0x1ce0] sm:$0xff]
    %v955 = vld [vmem:[%s1 + $0x1ce8] sm:$0xff]
    %v956 = vld [vmem:[%s1 + $0x1cf0] sm:$0xff]
    %v957 = vld [vmem:[%s1 + $0x1cf8] sm:$0xff]
    %v958 = vld [vmem:[%s1 + $0x1d00] sm:$0xff]
    %v959 = vld [vmem:[%s1 + $0x1d08] sm:$0xff]
    %v960 = vld [vmem:[%s1 + $0x1d10] sm:$0xff]
    %v961 = vld [vmem:[%s1 + $0x1d18] sm:$0xff]
    %v962 = vld [vmem:[%s1 + $0x1d20] sm:$0xff]
    %v963 = vld [vmem:[%s1 + $0x1d28] sm:$0xff]
    %v964 = vld [vmem:[%s1 + $0x1d30] sm:$0xff]
    %v965 = vld [vmem:[%s1 + $0x1d38] sm:$0xff]
    %v966 = vld [vmem:[%s1 + $0x1d40] sm:$0xff]
    %v967 = vld [vmem:[%s1 + $0x1d48] sm:$0xff]
    %v968 = vld [vmem:[%s1 + $0x1d50] sm:$0xff]
    %v969 = vld [vmem:[%s1 + $0x1d58] sm:$0xff]
    %v970 = vld [vmem:[%s1 + $0x1d60] sm:$0xff]
    %v971 = vld [vmem:[%s1 + $0x1d68] sm:$0xff]
    %v972 = vld [vmem:[%s1 + $0x1d70] sm:$0xff]
    %v973 = vld [vmem:[%s1 + $0x1d78] sm:$0xff]
    %v974 = vld [vmem:[%s1 + $0x1d80] sm:$0xff]
    %v975 = vld [vmem:[%s1 + $0x1d88] sm:$0xff]
    %v976 = vld [vmem:[%s1 + $0x1d90] sm:$0xff]
    %v977 = vld [vmem:[%s1 + $0x1d98] sm:$0xff]
    %v978 = vld [vmem:[%s1 + $0x1da0] sm:$0xff]
    %v979 = vld [vmem:[%s1 + $0x1da8] sm:$0xff]
    %v980 = vld [vmem:[%s1 + $0x1db0] sm:$0xff]
    %v981 = vld [vmem:[%s1 + $0x1db8] sm:$0xff]
    %v982 = vld [vmem:[%s1 + $0x1dc0] sm:$0xff]
    %v983 = vld [vmem:[%s1 + $0x1dc8] sm:$0xff]
    %v984 = vld [vmem:[%s1 + $0x1dd0] sm:$0xff]
    %v985 = vld [vmem:[%s1 + $0x1dd8] sm:$0xff]
    %v986 = vld [vmem:[%s1 + $0x1de0] sm:$0xff]
    %v987 = vld [vmem:[%s1 + $0x1de8] sm:$0xff]
    %v988 = vld [vmem:[%s1 + $0x1df0] sm:$0xff]
    %v989 = vld [vmem:[%s1 + $0x1df8] sm:$0xff]
    %v990 = vld [vmem:[%s1 + $0x1e00] sm:$0xff]
    %v991 = vld [vmem:[%s1 + $0x1e08] sm:$0xff]
    %v992 = vld [vmem:[%s1 + $0x1e10] sm:$0xff]
    %v993 = vld [vmem:[%s1 + $0x1e18] sm:$0xff]
    %v994 = vld [vmem:[%s1 + $0x1e20] sm:$0xff]
    %v995 = vld [vmem:[%s1 + $0x1e28] sm:$0xff]
    %v996 = vld [vmem:[%s1 + $0x1e30] sm:$0xff]
    %v997 = vld [vmem:[%s1 + $0x1e38] sm:$0xff]
    %v998 = vld [vmem:[%s1 + $0x1e40] sm:$0xff]
    %v999 = vld [vmem:[%s1 + $0x1e48] sm:$0xff]
    %v1000 = vld [vmem:[%s1 + $0x1e50] sm:$0xff]
    %v1001 = vld [vmem:[%s1 + $0x1e58] sm:$0xff]
    %v1002 = vld [vmem:[%s1 + $0x1e60] sm:$0xff]
    %v1003 = vld [vmem:[%s1 + $0x1e68] sm:$0xff]
    %v1004 = vld [vmem:[%s1 + $0x1e70] sm:$0xff]
    %v1005 = vld [vmem:[%s1 + $0x1e78] sm:$0xff]
    %v1006 = vld [vmem:[%s1 + $0x1e80] sm:$0xff]
    %v1007 = vld [vmem:[%s1 + $0x1e88] sm:$0xff]
    %v1008 = vld [vmem:[%s1 + $0x1e90] sm:$0xff]
    %v1009 = vld [vmem:[%s1 + $0x1e98] sm:$0xff]
    %v1010 = vld [vmem:[%s1 + $0x1ea0] sm:$0xff]
    %v1011 = vld [vmem:[%s1 + $0x1ea8] sm:$0xff]
    %v1012 = vld [vmem:[%s1 + $0x1eb0] sm:$0xff]
    %v1013 = vld [vmem:[%s1 + $0x1eb8] sm:$0xff]
    %v1014 = vld [vmem:[%s1 + $0x1ec0] sm:$0xff]
    %v1015 = vld [vmem:[%s1 + $0x1ec8] sm:$0xff]
    %v1016 = vld [vmem:[%s1 + $0x1ed0] sm:$0xff]
    %v1017 = vld [vmem:[%s1 + $0x1ed8] sm:$0xff]
    %v1018 = vld [vmem:[%s1 + $0x1ee0] sm:$0xff]
    %v1019 = vld [vmem:[%s1 + $0x1ee8] sm:$0xff]
    %v1020 = vld [vmem:[%s1 + $0x1ef0] sm:$0xff]
    %v1021 = vld [vmem:[%s1 + $0x1ef8] sm:$0xff]
    %v1022 = vld [vmem:[%s1 + $0x1f00] sm:$0xff]
    %v1023 = vld [vmem:[%s1 + $0x1f08] sm:$0xff]
    %v1024 = vld [vmem:[%s1 + $0x1f10] sm:$0xff]
    %v1025 = vld [vmem:[%s1 + $0x1f18] sm:$0xff]
    %v1026 = vld [vmem:[%s1 + $0x1f20] sm:$0xff]
    %v1027 = vld [vmem:[%s1 + $0x1f28] sm:$0xff]
    %v1028 = vld [vmem:[%s1 + $0x1f30] sm:$0xff]
    %v1029 = vld [vmem:[%s1 + $0x1f38] sm:$0xff]
    %v1030 = vld [vmem:[%s1 + $0x1f40] sm:$0xff]
    %v1031 = vld [vmem:[%s1 + $0x1f48] sm:$0xff]
    %v1032 = vld [vmem:[%s1 + $0x1f50] sm:$0xff]
    %v1033 = vld [vmem:[%s1 + $0x1f58] sm:$0xff]
    %v1034 = vld [vmem:[%s1 + $0x1f60] sm:$0xff]
    %v1035 = vld [vmem:[%s1 + $0x1f68] sm:$0xff]
    %v1036 = vld [vmem:[%s1 + $0x1f70] sm:$0xff]
    %v1037 = vld [vmem:[%s1 + $0x1f78] sm:$0xff]
    %v1038 = vld [vmem:[%s1 + $0x1f80] sm:$0xff]
    %v1039 = vld [vmem:[%s1 + $0x1f88] sm:$0xff]
    %v1040 = vld [vmem:[%s1 + $0x1f90] sm:$0xff]
    %v1041 = vld [vmem:[%s1 + $0x1f98] sm:$0xff]
    %v1042 = vld [vmem:[%s1 + $0x1fa0] sm:$0xff]
    %v1043 = vld [vmem:[%s1 + $0x1fa8] sm:$0xff]
    %v1044 = vld [vmem:[%s1 + $0x1fb0] sm:$0xff]
    %v1045 = vld [vmem:[%s1 + $0x1fb8] sm:$0xff]
    %v1046 = vld [vmem:[%s1 + $0x1fc0] sm:$0xff]
    %v1047 = vld [vmem:[%s1 + $0x1fc8] sm:$0xff]
    %v1048 = vld [vmem:[%s1 + $0x1fd0] sm:$0xff]
    %v1049 = vld [vmem:[%s1 + $0x1fd8] sm:$0xff]
    %v1050 = vld [vmem:[%s1 + $0x1fe0] sm:$0xff]
    %v1051 = vld [vmem:[%s1 + $0x1fe8] sm:$0xff]
    %v1052 = vld [vmem:[%s1 + $0x1ff0] sm:$0xff]
    %v1053 = vld [vmem:[%s1 + $0x1ff8] sm:$0xff]
    %v1054 = vld [vmem:[%s2] sm:$0xff]
    %v1056 = vlaneseq
    %v1057 = vshrl.u32 %v1056, 7
    %v1058 = vsub.s32 0, %v1057
    %v1059 = vrot.slane %v1054, %v1058
    %v1060 = vlaneseq
    %v1061 = vshrl.u32 %v1060, 7
    %v1062 = vsub.s32 1, %v1061
    %v1063 = vrot.slane %v1054, %v1062
    %v1064 = vlaneseq
    %v1065 = vshrl.u32 %v1064, 7
    %v1066 = vsub.s32 2, %v1065
    %v1067 = vrot.slane %v1054, %v1066
    %v1068 = vlaneseq
    %v1069 = vshrl.u32 %v1068, 7
    %v1070 = vsub.s32 3, %v1069
    %v1071 = vrot.slane %v1054, %v1070
    %v1072 = vlaneseq
    %v1073 = vshrl.u32 %v1072, 7
    %v1074 = vsub.s32 4, %v1073
    %v1075 = vrot.slane %v1054, %v1074
    %v1076 = vlaneseq
    %v1077 = vshrl.u32 %v1076, 7
    %v1078 = vsub.s32 5, %v1077
    %v1079 = vrot.slane %v1054, %v1078
    %v1080 = vlaneseq
    %v1081 = vshrl.u32 %v1080, 7
    %v1082 = vsub.s32 6, %v1081
    %v1083 = vrot.slane %v1054, %v1082
    %v1084 = vlaneseq
    %v1085 = vshrl.u32 %v1084, 7
    %v1086 = vsub.s32 7, %v1085
    %v1087 = vrot.slane %v1054, %v1086
    %v1098 = vcombine.high %v28, %v28
    %v1100 = vunpack.c.l.s4 1966171168
    %v1101 = vunpack.c.0.s8 %v1100
    %v1102 = vlaneseq
    %v1103 = vshrl.u32 %v1102, 7
    %v1104 = vsub.s32 %v1101, %v1103
    %v1105 = vrot.slane %v28, %v1104
    %v1107 = vunpack.c.l.s4 1966171168
    %v1108 = vunpack.c.0.s8 %v1107
    %v1109 = vlaneseq
    %v1110 = vshrl.u32 %v1109, 7
    %v1111 = vsub.s32 %v1108, %v1110
    %v1112 = vrot.slane %v1098, %v1111
    %v1113 = vcombine.high %v1105, %v1105
    %v1114 = vcombine.high %v1112, %v1112
    %v1116 = vunpack.c.l.s4 1966171168
    %v1117 = vunpack.c.0.s8 %v1116
    %v1118 = vlaneseq
    %v1119 = vshrl.u32 %v1118, 7
    %v1120 = vsub.s32 %v1117, %v1119
    %v1121 = vrot.slane %v1105, %v1120
    %v1123 = vunpack.c.l.s4 1966171168
    %v1124 = vunpack.c.0.s8 %v1123
    %v1125 = vlaneseq
    %v1126 = vshrl.u32 %v1125, 7
    %v1127 = vsub.s32 %v1124, %v1126
    %v1128 = vrot.slane %v1112, %v1127
    %v1130 = vunpack.c.l.s4 1966171168
    %v1131 = vunpack.c.0.s8 %v1130
    %v1132 = vlaneseq
    %v1133 = vshrl.u32 %v1132, 7
    %v1134 = vsub.s32 %v1131, %v1133
    %v1135 = vrot.slane %v1113, %v1134
    %v1137 = vunpack.c.l.s4 1966171168
    %v1138 = vunpack.c.0.s8 %v1137
    %v1139 = vlaneseq
    %v1140 = vshrl.u32 %v1139, 7
    %v1141 = vsub.s32 %v1138, %v1140
    %v1142 = vrot.slane %v1114, %v1141
    %v1143 = vcombine.high %v1121, %v1121
    %v1144 = vcombine.high %v1128, %v1128
    %v1145 = vcombine.high %v1135, %v1135
    %v1146 = vcombine.high %v1142, %v1142
    %v1147 = vcombine.high %v29, %v29
    %v1149 = vunpack.c.l.s4 1966171168
    %v1150 = vunpack.c.0.s8 %v1149
    %v1151 = vlaneseq
    %v1152 = vshrl.u32 %v1151, 7
    %v1153 = vsub.s32 %v1150, %v1152
    %v1154 = vrot.slane %v29, %v1153
    %v1156 = vunpack.c.l.s4 1966171168
    %v1157 = vunpack.c.0.s8 %v1156
    %v1158 = vlaneseq
    %v1159 = vshrl.u32 %v1158, 7
    %v1160 = vsub.s32 %v1157, %v1159
    %v1161 = vrot.slane %v1147, %v1160
    %v1162 = vcombine.high %v1154, %v1154
    %v1163 = vcombine.high %v1161, %v1161
    %v1165 = vunpack.c.l.s4 1966171168
    %v1166 = vunpack.c.0.s8 %v1165
    %v1167 = vlaneseq
    %v1168 = vshrl.u32 %v1167, 7
    %v1169 = vsub.s32 %v1166, %v1168
    %v1170 = vrot.slane %v1154, %v1169
    %v1172 = vunpack.c.l.s4 1966171168
    %v1173 = vunpack.c.0.s8 %v1172
    %v1174 = vlaneseq
    %v1175 = vshrl.u32 %v1174, 7
    %v1176 = vsub.s32 %v1173, %v1175
    %v1177 = vrot.slane %v1161, %v1176
    %v1179 = vunpack.c.l.s4 1966171168
    %v1180 = vunpack.c.0.s8 %v1179
    %v1181 = vlaneseq
    %v1182 = vshrl.u32 %v1181, 7
    %v1183 = vsub.s32 %v1180, %v1182
    %v1184 = vrot.slane %v1162, %v1183
    %v1186 = vunpack.c.l.s4 1966171168
    %v1187 = vunpack.c.0.s8 %v1186
    %v1188 = vlaneseq
    %v1189 = vshrl.u32 %v1188, 7
    %v1190 = vsub.s32 %v1187, %v1189
    %v1191 = vrot.slane %v1163, %v1190
    %v1192 = vcombine.high %v1170, %v1170
    %v1193 = vcombine.high %v1177, %v1177
    %v1194 = vcombine.high %v1184, %v1184
    %v1195 = vcombine.high %v1191, %v1191
    %v2236 = vunpack.c.l.b16 %v30
    %v2237 = vunpack.c.h.b16 %v30
    %v2238 = vunpack.c.l.b16 %v31
    %v2239 = vunpack.c.h.b16 %v31
    %v2240 = vunpack.c.l.b16 %v32
    %v2241 = vunpack.c.h.b16 %v32
    %v2242 = vunpack.c.l.b16 %v33
    %v2243 = vunpack.c.h.b16 %v33
    %v2244 = vunpack.c.l.b16 %v34
    %v2245 = vunpack.c.h.b16 %v34
    %v2246 = vunpack.c.l.b16 %v35
    %v2247 = vunpack.c.h.b16 %v35
    %v2248 = vunpack.c.l.b16 %v36
    %v2249 = vunpack.c.h.b16 %v36
    %v2250 = vunpack.c.l.b16 %v37
    %v2251 = vunpack.c.h.b16 %v37
    %v2252 = vunpack.c.l.b16 %v38
    %v2253 = vunpack.c.h.b16 %v38
    %v2254 = vunpack.c.l.b16 %v39
    %v2255 = vunpack.c.h.b16 %v39
    %v2256 = vunpack.c.l.b16 %v40
    %v2257 = vunpack.c.h.b16 %v40
    %v2258 = vunpack.c.l.b16 %v41
    %v2259 = vunpack.c.h.b16 %v41
    %v2260 = vunpack.c.l.b16 %v42
    %v2261 = vunpack.c.h.b16 %v42
    %v2262 = vunpack.c.l.b16 %v43
    %v2263 = vunpack.c.h.b16 %v43
    %v2264 = vunpack.c.l.b16 %v44
    %v2265 = vunpack.c.h.b16 %v44
    %v2266 = vunpack.c.l.b16 %v45
    %v2267 = vunpack.c.h.b16 %v45
    %v2268 = vunpack.c.l.b16 %v46
    %v2269 = vunpack.c.h.b16 %v46
    %v2270 = vunpack.c.l.b16 %v47
    %v2271 = vunpack.c.h.b16 %v47
    %v2272 = vunpack.c.l.b16 %v48
    %v2273 = vunpack.c.h.b16 %v48
    %v2274 = vunpack.c.l.b16 %v49
    %v2275 = vunpack.c.h.b16 %v49
    %v2276 = vunpack.c.l.b16 %v50
    %v2277 = vunpack.c.h.b16 %v50
    %v2278 = vunpack.c.l.b16 %v51
    %v2279 = vunpack.c.h.b16 %v51
    %v2280 = vunpack.c.l.b16 %v52
    %v2281 = vunpack.c.h.b16 %v52
    %v2282 = vunpack.c.l.b16 %v53
    %v2283 = vunpack.c.h.b16 %v53
    %v2284 = vunpack.c.l.b16 %v54
    %v2285 = vunpack.c.h.b16 %v54
    %v2286 = vunpack.c.l.b16 %v55
    %v2287 = vunpack.c.h.b16 %v55
    %v2288 = vunpack.c.l.b16 %v56
    %v2289 = vunpack.c.h.b16 %v56
    %v2290 = vunpack.c.l.b16 %v57
    %v2291 = vunpack.c.h.b16 %v57
    %v2292 = vunpack.c.l.b16 %v58
    %v2293 = vunpack.c.h.b16 %v58
    %v2294 = vunpack.c.l.b16 %v59
    %v2295 = vunpack.c.h.b16 %v59
    %v2296 = vunpack.c.l.b16 %v60
    %v2297 = vunpack.c.h.b16 %v60
    %v2298 = vunpack.c.l.b16 %v61
    %v2299 = vunpack.c.h.b16 %v61
    %v2300 = vunpack.c.l.b16 %v62
    %v2301 = vunpack.c.h.b16 %v62
    %v2302 = vunpack.c.l.b16 %v63
    %v2303 = vunpack.c.h.b16 %v63
    %v2304 = vunpack.c.l.b16 %v64
    %v2305 = vunpack.c.h.b16 %v64
    %v2306 = vunpack.c.l.b16 %v65
    %v2307 = vunpack.c.h.b16 %v65
    %v2308 = vunpack.c.l.b16 %v66
    %v2309 = vunpack.c.h.b16 %v66
    %v2310 = vunpack.c.l.b16 %v67
    %v2311 = vunpack.c.h.b16 %v67
    %v2312 = vunpack.c.l.b16 %v68
    %v2313 = vunpack.c.h.b16 %v68
    %v2314 = vunpack.c.l.b16 %v69
    %v2315 = vunpack.c.h.b16 %v69
    %v2316 = vunpack.c.l.b16 %v70
    %v2317 = vunpack.c.h.b16 %v70
    %v2318 = vunpack.c.l.b16 %v71
    %v2319 = vunpack.c.h.b16 %v71
    %v2320 = vunpack.c.l.b16 %v72
    %v2321 = vunpack.c.h.b16 %v72
    %v2322 = vunpack.c.l.b16 %v73
    %v2323 = vunpack.c.h.b16 %v73
    %v2324 = vunpack.c.l.b16 %v74
    %v2325 = vunpack.c.h.b16 %v74
    %v2326 = vunpack.c.l.b16 %v75
    %v2327 = vunpack.c.h.b16 %v75
    %v2328 = vunpack.c.l.b16 %v76
    %v2329 = vunpack.c.h.b16 %v76
    %v2330 = vunpack.c.l.b16 %v77
    %v2331 = vunpack.c.h.b16 %v77
    %v2332 = vunpack.c.l.b16 %v78
    %v2333 = vunpack.c.h.b16 %v78
    %v2334 = vunpack.c.l.b16 %v79
    %v2335 = vunpack.c.h.b16 %v79
    %v2336 = vunpack.c.l.b16 %v80
    %v2337 = vunpack.c.h.b16 %v80
    %v2338 = vunpack.c.l.b16 %v81
    %v2339 = vunpack.c.h.b16 %v81
    %v2340 = vunpack.c.l.b16 %v82
    %v2341 = vunpack.c.h.b16 %v82
    %v2342 = vunpack.c.l.b16 %v83
    %v2343 = vunpack.c.h.b16 %v83
    %v2344 = vunpack.c.l.b16 %v84
    %v2345 = vunpack.c.h.b16 %v84
    %v2346 = vunpack.c.l.b16 %v85
    %v2347 = vunpack.c.h.b16 %v85
    %v2348 = vunpack.c.l.b16 %v86
    %v2349 = vunpack.c.h.b16 %v86
    %v2350 = vunpack.c.l.b16 %v87
    %v2351 = vunpack.c.h.b16 %v87
    %v2352 = vunpack.c.l.b16 %v88
    %v2353 = vunpack.c.h.b16 %v88
    %v2354 = vunpack.c.l.b16 %v89
    %v2355 = vunpack.c.h.b16 %v89
    %v2356 = vunpack.c.l.b16 %v90
    %v2357 = vunpack.c.h.b16 %v90
    %v2358 = vunpack.c.l.b16 %v91
    %v2359 = vunpack.c.h.b16 %v91
    %v2360 = vunpack.c.l.b16 %v92
    %v2361 = vunpack.c.h.b16 %v92
    %v2362 = vunpack.c.l.b16 %v93
    %v2363 = vunpack.c.h.b16 %v93
    %v2364 = vunpack.c.l.b16 %v94
    %v2365 = vunpack.c.h.b16 %v94
    %v2366 = vunpack.c.l.b16 %v95
    %v2367 = vunpack.c.h.b16 %v95
    %v2368 = vunpack.c.l.b16 %v96
    %v2369 = vunpack.c.h.b16 %v96
    %v2370 = vunpack.c.l.b16 %v97
    %v2371 = vunpack.c.h.b16 %v97
    %v2372 = vunpack.c.l.b16 %v98
    %v2373 = vunpack.c.h.b16 %v98
    %v2374 = vunpack.c.l.b16 %v99
    %v2375 = vunpack.c.h.b16 %v99
    %v2376 = vunpack.c.l.b16 %v100
    %v2377 = vunpack.c.h.b16 %v100
    %v2378 = vunpack.c.l.b16 %v101
    %v2379 = vunpack.c.h.b16 %v101
    %v2380 = vunpack.c.l.b16 %v102
    %v2381 = vunpack.c.h.b16 %v102
    %v2382 = vunpack.c.l.b16 %v103
    %v2383 = vunpack.c.h.b16 %v103
    %v2384 = vunpack.c.l.b16 %v104
    %v2385 = vunpack.c.h.b16 %v104
    %v2386 = vunpack.c.l.b16 %v105
    %v2387 = vunpack.c.h.b16 %v105
    %v2388 = vunpack.c.l.b16 %v106
    %v2389 = vunpack.c.h.b16 %v106
    %v2390 = vunpack.c.l.b16 %v107
    %v2391 = vunpack.c.h.b16 %v107
    %v2392 = vunpack.c.l.b16 %v108
    %v2393 = vunpack.c.h.b16 %v108
    %v2394 = vunpack.c.l.b16 %v109
    %v2395 = vunpack.c.h.b16 %v109
    %v2396 = vunpack.c.l.b16 %v110
    %v2397 = vunpack.c.h.b16 %v110
    %v2398 = vunpack.c.l.b16 %v111
    %v2399 = vunpack.c.h.b16 %v111
    %v2400 = vunpack.c.l.b16 %v112
    %v2401 = vunpack.c.h.b16 %v112
    %v2402 = vunpack.c.l.b16 %v113
    %v2403 = vunpack.c.h.b16 %v113
    %v2404 = vunpack.c.l.b16 %v114
    %v2405 = vunpack.c.h.b16 %v114
    %v2406 = vunpack.c.l.b16 %v115
    %v2407 = vunpack.c.h.b16 %v115
    %v2408 = vunpack.c.l.b16 %v116
    %v2409 = vunpack.c.h.b16 %v116
    %v2410 = vunpack.c.l.b16 %v117
    %v2411 = vunpack.c.h.b16 %v117
    %v2412 = vunpack.c.l.b16 %v118
    %v2413 = vunpack.c.h.b16 %v118
    %v2414 = vunpack.c.l.b16 %v119
    %v2415 = vunpack.c.h.b16 %v119
    %v2416 = vunpack.c.l.b16 %v120
    %v2417 = vunpack.c.h.b16 %v120
    %v2418 = vunpack.c.l.b16 %v121
    %v2419 = vunpack.c.h.b16 %v121
    %v2420 = vunpack.c.l.b16 %v122
    %v2421 = vunpack.c.h.b16 %v122
    %v2422 = vunpack.c.l.b16 %v123
    %v2423 = vunpack.c.h.b16 %v123
    %v2424 = vunpack.c.l.b16 %v124
    %v2425 = vunpack.c.h.b16 %v124
    %v2426 = vunpack.c.l.b16 %v125
    %v2427 = vunpack.c.h.b16 %v125
    %v2428 = vunpack.c.l.b16 %v126
    %v2429 = vunpack.c.h.b16 %v126
    %v2430 = vunpack.c.l.b16 %v127
    %v2431 = vunpack.c.h.b16 %v127
    %v2432 = vunpack.c.l.b16 %v128
    %v2433 = vunpack.c.h.b16 %v128
    %v2434 = vunpack.c.l.b16 %v129
    %v2435 = vunpack.c.h.b16 %v129
    %v2436 = vunpack.c.l.b16 %v130
    %v2437 = vunpack.c.h.b16 %v130
    %v2438 = vunpack.c.l.b16 %v131
    %v2439 = vunpack.c.h.b16 %v131
    %v2440 = vunpack.c.l.b16 %v132
    %v2441 = vunpack.c.h.b16 %v132
    %v2442 = vunpack.c.l.b16 %v133
    %v2443 = vunpack.c.h.b16 %v133
    %v2444 = vunpack.c.l.b16 %v134
    %v2445 = vunpack.c.h.b16 %v134
    %v2446 = vunpack.c.l.b16 %v135
    %v2447 = vunpack.c.h.b16 %v135
    %v2448 = vunpack.c.l.b16 %v136
    %v2449 = vunpack.c.h.b16 %v136
    %v2450 = vunpack.c.l.b16 %v137
    %v2451 = vunpack.c.h.b16 %v137
    %v2452 = vunpack.c.l.b16 %v138
    %v2453 = vunpack.c.h.b16 %v138
    %v2454 = vunpack.c.l.b16 %v139
    %v2455 = vunpack.c.h.b16 %v139
    %v2456 = vunpack.c.l.b16 %v140
    %v2457 = vunpack.c.h.b16 %v140
    %v2458 = vunpack.c.l.b16 %v141
    %v2459 = vunpack.c.h.b16 %v141
    %v2460 = vunpack.c.l.b16 %v142
    %v2461 = vunpack.c.h.b16 %v142
    %v2462 = vunpack.c.l.b16 %v143
    %v2463 = vunpack.c.h.b16 %v143
    %v2464 = vunpack.c.l.b16 %v144
    %v2465 = vunpack.c.h.b16 %v144
    %v2466 = vunpack.c.l.b16 %v145
    %v2467 = vunpack.c.h.b16 %v145
    %v2468 = vunpack.c.l.b16 %v146
    %v2469 = vunpack.c.h.b16 %v146
    %v2470 = vunpack.c.l.b16 %v147
    %v2471 = vunpack.c.h.b16 %v147
    %v2472 = vunpack.c.l.b16 %v148
    %v2473 = vunpack.c.h.b16 %v148
    %v2474 = vunpack.c.l.b16 %v149
    %v2475 = vunpack.c.h.b16 %v149
    %v2476 = vunpack.c.l.b16 %v150
    %v2477 = vunpack.c.h.b16 %v150
    %v2478 = vunpack.c.l.b16 %v151
    %v2479 = vunpack.c.h.b16 %v151
    %v2480 = vunpack.c.l.b16 %v152
    %v2481 = vunpack.c.h.b16 %v152
    %v2482 = vunpack.c.l.b16 %v153
    %v2483 = vunpack.c.h.b16 %v153
    %v2484 = vunpack.c.l.b16 %v154
    %v2485 = vunpack.c.h.b16 %v154
    %v2486 = vunpack.c.l.b16 %v155
    %v2487 = vunpack.c.h.b16 %v155
    %v2488 = vunpack.c.l.b16 %v156
    %v2489 = vunpack.c.h.b16 %v156
    %v2490 = vunpack.c.l.b16 %v157
    %v2491 = vunpack.c.h.b16 %v157
    %v2492 = vunpack.c.l.b16 %v158
    %v2493 = vunpack.c.h.b16 %v158
    %v2494 = vunpack.c.l.b16 %v159
    %v2495 = vunpack.c.h.b16 %v159
    %v2496 = vunpack.c.l.b16 %v160
    %v2497 = vunpack.c.h.b16 %v160
    %v2498 = vunpack.c.l.b16 %v161
    %v2499 = vunpack.c.h.b16 %v161
    %v2500 = vunpack.c.l.b16 %v162
    %v2501 = vunpack.c.h.b16 %v162
    %v2502 = vunpack.c.l.b16 %v163
    %v2503 = vunpack.c.h.b16 %v163
    %v2504 = vunpack.c.l.b16 %v164
    %v2505 = vunpack.c.h.b16 %v164
    %v2506 = vunpack.c.l.b16 %v165
    %v2507 = vunpack.c.h.b16 %v165
    %v2508 = vunpack.c.l.b16 %v166
    %v2509 = vunpack.c.h.b16 %v166
    %v2510 = vunpack.c.l.b16 %v167
    %v2511 = vunpack.c.h.b16 %v167
    %v2512 = vunpack.c.l.b16 %v168
    %v2513 = vunpack.c.h.b16 %v168
    %v2514 = vunpack.c.l.b16 %v169
    %v2515 = vunpack.c.h.b16 %v169
    %v2516 = vunpack.c.l.b16 %v170
    %v2517 = vunpack.c.h.b16 %v170
    %v2518 = vunpack.c.l.b16 %v171
    %v2519 = vunpack.c.h.b16 %v171
    %v2520 = vunpack.c.l.b16 %v172
    %v2521 = vunpack.c.h.b16 %v172
    %v2522 = vunpack.c.l.b16 %v173
    %v2523 = vunpack.c.h.b16 %v173
    %v2524 = vunpack.c.l.b16 %v174
    %v2525 = vunpack.c.h.b16 %v174
    %v2526 = vunpack.c.l.b16 %v175
    %v2527 = vunpack.c.h.b16 %v175
    %v2528 = vunpack.c.l.b16 %v176
    %v2529 = vunpack.c.h.b16 %v176
    %v2530 = vunpack.c.l.b16 %v177
    %v2531 = vunpack.c.h.b16 %v177
    %v2532 = vunpack.c.l.b16 %v178
    %v2533 = vunpack.c.h.b16 %v178
    %v2534 = vunpack.c.l.b16 %v179
    %v2535 = vunpack.c.h.b16 %v179
    %v2536 = vunpack.c.l.b16 %v180
    %v2537 = vunpack.c.h.b16 %v180
    %v2538 = vunpack.c.l.b16 %v181
    %v2539 = vunpack.c.h.b16 %v181
    %v2540 = vunpack.c.l.b16 %v182
    %v2541 = vunpack.c.h.b16 %v182
    %v2542 = vunpack.c.l.b16 %v183
    %v2543 = vunpack.c.h.b16 %v183
    %v2544 = vunpack.c.l.b16 %v184
    %v2545 = vunpack.c.h.b16 %v184
    %v2546 = vunpack.c.l.b16 %v185
    %v2547 = vunpack.c.h.b16 %v185
    %v2548 = vunpack.c.l.b16 %v186
    %v2549 = vunpack.c.h.b16 %v186
    %v2550 = vunpack.c.l.b16 %v187
    %v2551 = vunpack.c.h.b16 %v187
    %v2552 = vunpack.c.l.b16 %v188
    %v2553 = vunpack.c.h.b16 %v188
    %v2554 = vunpack.c.l.b16 %v189
    %v2555 = vunpack.c.h.b16 %v189
    %v2556 = vunpack.c.l.b16 %v190
    %v2557 = vunpack.c.h.b16 %v190
    %v2558 = vunpack.c.l.b16 %v191
    %v2559 = vunpack.c.h.b16 %v191
    %v2560 = vunpack.c.l.b16 %v192
    %v2561 = vunpack.c.h.b16 %v192
    %v2562 = vunpack.c.l.b16 %v193
    %v2563 = vunpack.c.h.b16 %v193
    %v2564 = vunpack.c.l.b16 %v194
    %v2565 = vunpack.c.h.b16 %v194
    %v2566 = vunpack.c.l.b16 %v195
    %v2567 = vunpack.c.h.b16 %v195
    %v2568 = vunpack.c.l.b16 %v196
    %v2569 = vunpack.c.h.b16 %v196
    %v2570 = vunpack.c.l.b16 %v197
    %v2571 = vunpack.c.h.b16 %v197
    %v2572 = vunpack.c.l.b16 %v198
    %v2573 = vunpack.c.h.b16 %v198
    %v2574 = vunpack.c.l.b16 %v199
    %v2575 = vunpack.c.h.b16 %v199
    %v2576 = vunpack.c.l.b16 %v200
    %v2577 = vunpack.c.h.b16 %v200
    %v2578 = vunpack.c.l.b16 %v201
    %v2579 = vunpack.c.h.b16 %v201
    %v2580 = vunpack.c.l.b16 %v202
    %v2581 = vunpack.c.h.b16 %v202
    %v2582 = vunpack.c.l.b16 %v203
    %v2583 = vunpack.c.h.b16 %v203
    %v2584 = vunpack.c.l.b16 %v204
    %v2585 = vunpack.c.h.b16 %v204
    %v2586 = vunpack.c.l.b16 %v205
    %v2587 = vunpack.c.h.b16 %v205
    %v2588 = vunpack.c.l.b16 %v206
    %v2589 = vunpack.c.h.b16 %v206
    %v2590 = vunpack.c.l.b16 %v207
    %v2591 = vunpack.c.h.b16 %v207
    %v2592 = vunpack.c.l.b16 %v208
    %v2593 = vunpack.c.h.b16 %v208
    %v2594 = vunpack.c.l.b16 %v209
    %v2595 = vunpack.c.h.b16 %v209
    %v2596 = vunpack.c.l.b16 %v210
    %v2597 = vunpack.c.h.b16 %v210
    %v2598 = vunpack.c.l.b16 %v211
    %v2599 = vunpack.c.h.b16 %v211
    %v2600 = vunpack.c.l.b16 %v212
    %v2601 = vunpack.c.h.b16 %v212
    %v2602 = vunpack.c.l.b16 %v213
    %v2603 = vunpack.c.h.b16 %v213
    %v2604 = vunpack.c.l.b16 %v214
    %v2605 = vunpack.c.h.b16 %v214
    %v2606 = vunpack.c.l.b16 %v215
    %v2607 = vunpack.c.h.b16 %v215
    %v2608 = vunpack.c.l.b16 %v216
    %v2609 = vunpack.c.h.b16 %v216
    %v2610 = vunpack.c.l.b16 %v217
    %v2611 = vunpack.c.h.b16 %v217
    %v2612 = vunpack.c.l.b16 %v218
    %v2613 = vunpack.c.h.b16 %v218
    %v2614 = vunpack.c.l.b16 %v219
    %v2615 = vunpack.c.h.b16 %v219
    %v2616 = vunpack.c.l.b16 %v220
    %v2617 = vunpack.c.h.b16 %v220
    %v2618 = vunpack.c.l.b16 %v221
    %v2619 = vunpack.c.h.b16 %v221
    %v2620 = vunpack.c.l.b16 %v222
    %v2621 = vunpack.c.h.b16 %v222
    %v2622 = vunpack.c.l.b16 %v223
    %v2623 = vunpack.c.h.b16 %v223
    %v2624 = vunpack.c.l.b16 %v224
    %v2625 = vunpack.c.h.b16 %v224
    %v2626 = vunpack.c.l.b16 %v225
    %v2627 = vunpack.c.h.b16 %v225
    %v2628 = vunpack.c.l.b16 %v226
    %v2629 = vunpack.c.h.b16 %v226
    %v2630 = vunpack.c.l.b16 %v227
    %v2631 = vunpack.c.h.b16 %v227
    %v2632 = vunpack.c.l.b16 %v228
    %v2633 = vunpack.c.h.b16 %v228
    %v2634 = vunpack.c.l.b16 %v229
    %v2635 = vunpack.c.h.b16 %v229
    %v2636 = vunpack.c.l.b16 %v230
    %v2637 = vunpack.c.h.b16 %v230
    %v2638 = vunpack.c.l.b16 %v231
    %v2639 = vunpack.c.h.b16 %v231
    %v2640 = vunpack.c.l.b16 %v232
    %v2641 = vunpack.c.h.b16 %v232
    %v2642 = vunpack.c.l.b16 %v233
    %v2643 = vunpack.c.h.b16 %v233
    %v2644 = vunpack.c.l.b16 %v234
    %v2645 = vunpack.c.h.b16 %v234
    %v2646 = vunpack.c.l.b16 %v235
    %v2647 = vunpack.c.h.b16 %v235
    %v2648 = vunpack.c.l.b16 %v236
    %v2649 = vunpack.c.h.b16 %v236
    %v2650 = vunpack.c.l.b16 %v237
    %v2651 = vunpack.c.h.b16 %v237
    %v2652 = vunpack.c.l.b16 %v238
    %v2653 = vunpack.c.h.b16 %v238
    %v2654 = vunpack.c.l.b16 %v239
    %v2655 = vunpack.c.h.b16 %v239
    %v2656 = vunpack.c.l.b16 %v240
    %v2657 = vunpack.c.h.b16 %v240
    %v2658 = vunpack.c.l.b16 %v241
    %v2659 = vunpack.c.h.b16 %v241
    %v2660 = vunpack.c.l.b16 %v242
    %v2661 = vunpack.c.h.b16 %v242
    %v2662 = vunpack.c.l.b16 %v243
    %v2663 = vunpack.c.h.b16 %v243
    %v2664 = vunpack.c.l.b16 %v244
    %v2665 = vunpack.c.h.b16 %v244
    %v2666 = vunpack.c.l.b16 %v245
    %v2667 = vunpack.c.h.b16 %v245
    %v2668 = vunpack.c.l.b16 %v246
    %v2669 = vunpack.c.h.b16 %v246
    %v2670 = vunpack.c.l.b16 %v247
    %v2671 = vunpack.c.h.b16 %v247
    %v2672 = vunpack.c.l.b16 %v248
    %v2673 = vunpack.c.h.b16 %v248
    %v2674 = vunpack.c.l.b16 %v249
    %v2675 = vunpack.c.h.b16 %v249
    %v2676 = vunpack.c.l.b16 %v250
    %v2677 = vunpack.c.h.b16 %v250
    %v2678 = vunpack.c.l.b16 %v251
    %v2679 = vunpack.c.h.b16 %v251
    %v2680 = vunpack.c.l.b16 %v252
    %v2681 = vunpack.c.h.b16 %v252
    %v2682 = vunpack.c.l.b16 %v253
    %v2683 = vunpack.c.h.b16 %v253
    %v2684 = vunpack.c.l.b16 %v254
    %v2685 = vunpack.c.h.b16 %v254
    %v2686 = vunpack.c.l.b16 %v255
    %v2687 = vunpack.c.h.b16 %v255
    %v2688 = vunpack.c.l.b16 %v256
    %v2689 = vunpack.c.h.b16 %v256
    %v2690 = vunpack.c.l.b16 %v257
    %v2691 = vunpack.c.h.b16 %v257
    %v2692 = vunpack.c.l.b16 %v258
    %v2693 = vunpack.c.h.b16 %v258
    %v2694 = vunpack.c.l.b16 %v259
    %v2695 = vunpack.c.h.b16 %v259
    %v2696 = vunpack.c.l.b16 %v260
    %v2697 = vunpack.c.h.b16 %v260
    %v2698 = vunpack.c.l.b16 %v261
    %v2699 = vunpack.c.h.b16 %v261
    %v2700 = vunpack.c.l.b16 %v262
    %v2701 = vunpack.c.h.b16 %v262
    %v2702 = vunpack.c.l.b16 %v263
    %v2703 = vunpack.c.h.b16 %v263
    %v2704 = vunpack.c.l.b16 %v264
    %v2705 = vunpack.c.h.b16 %v264
    %v2706 = vunpack.c.l.b16 %v265
    %v2707 = vunpack.c.h.b16 %v265
    %v2708 = vunpack.c.l.b16 %v266
    %v2709 = vunpack.c.h.b16 %v266
    %v2710 = vunpack.c.l.b16 %v267
    %v2711 = vunpack.c.h.b16 %v267
    %v2712 = vunpack.c.l.b16 %v268
    %v2713 = vunpack.c.h.b16 %v268
    %v2714 = vunpack.c.l.b16 %v269
    %v2715 = vunpack.c.h.b16 %v269
    %v2716 = vunpack.c.l.b16 %v270
    %v2717 = vunpack.c.h.b16 %v270
    %v2718 = vunpack.c.l.b16 %v271
    %v2719 = vunpack.c.h.b16 %v271
    %v2720 = vunpack.c.l.b16 %v272
    %v2721 = vunpack.c.h.b16 %v272
    %v2722 = vunpack.c.l.b16 %v273
    %v2723 = vunpack.c.h.b16 %v273
    %v2724 = vunpack.c.l.b16 %v274
    %v2725 = vunpack.c.h.b16 %v274
    %v2726 = vunpack.c.l.b16 %v275
    %v2727 = vunpack.c.h.b16 %v275
    %v2728 = vunpack.c.l.b16 %v276
    %v2729 = vunpack.c.h.b16 %v276
    %v2730 = vunpack.c.l.b16 %v277
    %v2731 = vunpack.c.h.b16 %v277
    %v2732 = vunpack.c.l.b16 %v278
    %v2733 = vunpack.c.h.b16 %v278
    %v2734 = vunpack.c.l.b16 %v279
    %v2735 = vunpack.c.h.b16 %v279
    %v2736 = vunpack.c.l.b16 %v280
    %v2737 = vunpack.c.h.b16 %v280
    %v2738 = vunpack.c.l.b16 %v281
    %v2739 = vunpack.c.h.b16 %v281
    %v2740 = vunpack.c.l.b16 %v282
    %v2741 = vunpack.c.h.b16 %v282
    %v2742 = vunpack.c.l.b16 %v283
    %v2743 = vunpack.c.h.b16 %v283
    %v2744 = vunpack.c.l.b16 %v284
    %v2745 = vunpack.c.h.b16 %v284
    %v2746 = vunpack.c.l.b16 %v285
    %v2747 = vunpack.c.h.b16 %v285
    %v2748 = vunpack.c.l.b16 %v286
    %v2749 = vunpack.c.h.b16 %v286
    %v2750 = vunpack.c.l.b16 %v287
    %v2751 = vunpack.c.h.b16 %v287
    %v2752 = vunpack.c.l.b16 %v288
    %v2753 = vunpack.c.h.b16 %v288
    %v2754 = vunpack.c.l.b16 %v289
    %v2755 = vunpack.c.h.b16 %v289
    %v2756 = vunpack.c.l.b16 %v290
    %v2757 = vunpack.c.h.b16 %v290
    %v2758 = vunpack.c.l.b16 %v291
    %v2759 = vunpack.c.h.b16 %v291
    %v2760 = vunpack.c.l.b16 %v292
    %v2761 = vunpack.c.h.b16 %v292
    %v2762 = vunpack.c.l.b16 %v293
    %v2763 = vunpack.c.h.b16 %v293
    %v2764 = vunpack.c.l.b16 %v294
    %v2765 = vunpack.c.h.b16 %v294
    %v2766 = vunpack.c.l.b16 %v295
    %v2767 = vunpack.c.h.b16 %v295
    %v2768 = vunpack.c.l.b16 %v296
    %v2769 = vunpack.c.h.b16 %v296
    %v2770 = vunpack.c.l.b16 %v297
    %v2771 = vunpack.c.h.b16 %v297
    %v2772 = vunpack.c.l.b16 %v298
    %v2773 = vunpack.c.h.b16 %v298
    %v2774 = vunpack.c.l.b16 %v299
    %v2775 = vunpack.c.h.b16 %v299
    %v2776 = vunpack.c.l.b16 %v300
    %v2777 = vunpack.c.h.b16 %v300
    %v2778 = vunpack.c.l.b16 %v301
    %v2779 = vunpack.c.h.b16 %v301
    %v2780 = vunpack.c.l.b16 %v302
    %v2781 = vunpack.c.h.b16 %v302
    %v2782 = vunpack.c.l.b16 %v303
    %v2783 = vunpack.c.h.b16 %v303
    %v2784 = vunpack.c.l.b16 %v304
    %v2785 = vunpack.c.h.b16 %v304
    %v2786 = vunpack.c.l.b16 %v305
    %v2787 = vunpack.c.h.b16 %v305
    %v2788 = vunpack.c.l.b16 %v306
    %v2789 = vunpack.c.h.b16 %v306
    %v2790 = vunpack.c.l.b16 %v307
    %v2791 = vunpack.c.h.b16 %v307
    %v2792 = vunpack.c.l.b16 %v308
    %v2793 = vunpack.c.h.b16 %v308
    %v2794 = vunpack.c.l.b16 %v309
    %v2795 = vunpack.c.h.b16 %v309
    %v2796 = vunpack.c.l.b16 %v310
    %v2797 = vunpack.c.h.b16 %v310
    %v2798 = vunpack.c.l.b16 %v311
    %v2799 = vunpack.c.h.b16 %v311
    %v2800 = vunpack.c.l.b16 %v312
    %v2801 = vunpack.c.h.b16 %v312
    %v2802 = vunpack.c.l.b16 %v313
    %v2803 = vunpack.c.h.b16 %v313
    %v2804 = vunpack.c.l.b16 %v314
    %v2805 = vunpack.c.h.b16 %v314
    %v2806 = vunpack.c.l.b16 %v315
    %v2807 = vunpack.c.h.b16 %v315
    %v2808 = vunpack.c.l.b16 %v316
    %v2809 = vunpack.c.h.b16 %v316
    %v2810 = vunpack.c.l.b16 %v317
    %v2811 = vunpack.c.h.b16 %v317
    %v2812 = vunpack.c.l.b16 %v318
    %v2813 = vunpack.c.h.b16 %v318
    %v2814 = vunpack.c.l.b16 %v319
    %v2815 = vunpack.c.h.b16 %v319
    %v2816 = vunpack.c.l.b16 %v320
    %v2817 = vunpack.c.h.b16 %v320
    %v2818 = vunpack.c.l.b16 %v321
    %v2819 = vunpack.c.h.b16 %v321
    %v2820 = vunpack.c.l.b16 %v322
    %v2821 = vunpack.c.h.b16 %v322
    %v2822 = vunpack.c.l.b16 %v323
    %v2823 = vunpack.c.h.b16 %v323
    %v2824 = vunpack.c.l.b16 %v324
    %v2825 = vunpack.c.h.b16 %v324
    %v2826 = vunpack.c.l.b16 %v325
    %v2827 = vunpack.c.h.b16 %v325
    %v2828 = vunpack.c.l.b16 %v326
    %v2829 = vunpack.c.h.b16 %v326
    %v2830 = vunpack.c.l.b16 %v327
    %v2831 = vunpack.c.h.b16 %v327
    %v2832 = vunpack.c.l.b16 %v328
    %v2833 = vunpack.c.h.b16 %v328
    %v2834 = vunpack.c.l.b16 %v329
    %v2835 = vunpack.c.h.b16 %v329
    %v2836 = vunpack.c.l.b16 %v330
    %v2837 = vunpack.c.h.b16 %v330
    %v2838 = vunpack.c.l.b16 %v331
    %v2839 = vunpack.c.h.b16 %v331
    %v2840 = vunpack.c.l.b16 %v332
    %v2841 = vunpack.c.h.b16 %v332
    %v2842 = vunpack.c.l.b16 %v333
    %v2843 = vunpack.c.h.b16 %v333
    %v2844 = vunpack.c.l.b16 %v334
    %v2845 = vunpack.c.h.b16 %v334
    %v2846 = vunpack.c.l.b16 %v335
    %v2847 = vunpack.c.h.b16 %v335
    %v2848 = vunpack.c.l.b16 %v336
    %v2849 = vunpack.c.h.b16 %v336
    %v2850 = vunpack.c.l.b16 %v337
    %v2851 = vunpack.c.h.b16 %v337
    %v2852 = vunpack.c.l.b16 %v338
    %v2853 = vunpack.c.h.b16 %v338
    %v2854 = vunpack.c.l.b16 %v339
    %v2855 = vunpack.c.h.b16 %v339
    %v2856 = vunpack.c.l.b16 %v340
    %v2857 = vunpack.c.h.b16 %v340
    %v2858 = vunpack.c.l.b16 %v341
    %v2859 = vunpack.c.h.b16 %v341
    %v2860 = vunpack.c.l.b16 %v342
    %v2861 = vunpack.c.h.b16 %v342
    %v2862 = vunpack.c.l.b16 %v343
    %v2863 = vunpack.c.h.b16 %v343
    %v2864 = vunpack.c.l.b16 %v344
    %v2865 = vunpack.c.h.b16 %v344
    %v2866 = vunpack.c.l.b16 %v345
    %v2867 = vunpack.c.h.b16 %v345
    %v2868 = vunpack.c.l.b16 %v346
    %v2869 = vunpack.c.h.b16 %v346
    %v2870 = vunpack.c.l.b16 %v347
    %v2871 = vunpack.c.h.b16 %v347
    %v2872 = vunpack.c.l.b16 %v348
    %v2873 = vunpack.c.h.b16 %v348
    %v2874 = vunpack.c.l.b16 %v349
    %v2875 = vunpack.c.h.b16 %v349
    %v2876 = vunpack.c.l.b16 %v350
    %v2877 = vunpack.c.h.b16 %v350
    %v2878 = vunpack.c.l.b16 %v351
    %v2879 = vunpack.c.h.b16 %v351
    %v2880 = vunpack.c.l.b16 %v352
    %v2881 = vunpack.c.h.b16 %v352
    %v2882 = vunpack.c.l.b16 %v353
    %v2883 = vunpack.c.h.b16 %v353
    %v2884 = vunpack.c.l.b16 %v354
    %v2885 = vunpack.c.h.b16 %v354
    %v2886 = vunpack.c.l.b16 %v355
    %v2887 = vunpack.c.h.b16 %v355
    %v2888 = vunpack.c.l.b16 %v356
    %v2889 = vunpack.c.h.b16 %v356
    %v2890 = vunpack.c.l.b16 %v357
    %v2891 = vunpack.c.h.b16 %v357
    %v2892 = vunpack.c.l.b16 %v358
    %v2893 = vunpack.c.h.b16 %v358
    %v2894 = vunpack.c.l.b16 %v359
    %v2895 = vunpack.c.h.b16 %v359
    %v2896 = vunpack.c.l.b16 %v360
    %v2897 = vunpack.c.h.b16 %v360
    %v2898 = vunpack.c.l.b16 %v361
    %v2899 = vunpack.c.h.b16 %v361
    %v2900 = vunpack.c.l.b16 %v362
    %v2901 = vunpack.c.h.b16 %v362
    %v2902 = vunpack.c.l.b16 %v363
    %v2903 = vunpack.c.h.b16 %v363
    %v2904 = vunpack.c.l.b16 %v364
    %v2905 = vunpack.c.h.b16 %v364
    %v2906 = vunpack.c.l.b16 %v365
    %v2907 = vunpack.c.h.b16 %v365
    %v2908 = vunpack.c.l.b16 %v366
    %v2909 = vunpack.c.h.b16 %v366
    %v2910 = vunpack.c.l.b16 %v367
    %v2911 = vunpack.c.h.b16 %v367
    %v2912 = vunpack.c.l.b16 %v368
    %v2913 = vunpack.c.h.b16 %v368
    %v2914 = vunpack.c.l.b16 %v369
    %v2915 = vunpack.c.h.b16 %v369
    %v2916 = vunpack.c.l.b16 %v370
    %v2917 = vunpack.c.h.b16 %v370
    %v2918 = vunpack.c.l.b16 %v371
    %v2919 = vunpack.c.h.b16 %v371
    %v2920 = vunpack.c.l.b16 %v372
    %v2921 = vunpack.c.h.b16 %v372
    %v2922 = vunpack.c.l.b16 %v373
    %v2923 = vunpack.c.h.b16 %v373
    %v2924 = vunpack.c.l.b16 %v374
    %v2925 = vunpack.c.h.b16 %v374
    %v2926 = vunpack.c.l.b16 %v375
    %v2927 = vunpack.c.h.b16 %v375
    %v2928 = vunpack.c.l.b16 %v376
    %v2929 = vunpack.c.h.b16 %v376
    %v2930 = vunpack.c.l.b16 %v377
    %v2931 = vunpack.c.h.b16 %v377
    %v2932 = vunpack.c.l.b16 %v378
    %v2933 = vunpack.c.h.b16 %v378
    %v2934 = vunpack.c.l.b16 %v379
    %v2935 = vunpack.c.h.b16 %v379
    %v2936 = vunpack.c.l.b16 %v380
    %v2937 = vunpack.c.h.b16 %v380
    %v2938 = vunpack.c.l.b16 %v381
    %v2939 = vunpack.c.h.b16 %v381
    %v2940 = vunpack.c.l.b16 %v382
    %v2941 = vunpack.c.h.b16 %v382
    %v2942 = vunpack.c.l.b16 %v383
    %v2943 = vunpack.c.h.b16 %v383
    %v2944 = vunpack.c.l.b16 %v384
    %v2945 = vunpack.c.h.b16 %v384
    %v2946 = vunpack.c.l.b16 %v385
    %v2947 = vunpack.c.h.b16 %v385
    %v2948 = vunpack.c.l.b16 %v386
    %v2949 = vunpack.c.h.b16 %v386
    %v2950 = vunpack.c.l.b16 %v387
    %v2951 = vunpack.c.h.b16 %v387
    %v2952 = vunpack.c.l.b16 %v388
    %v2953 = vunpack.c.h.b16 %v388
    %v2954 = vunpack.c.l.b16 %v389
    %v2955 = vunpack.c.h.b16 %v389
    %v2956 = vunpack.c.l.b16 %v390
    %v2957 = vunpack.c.h.b16 %v390
    %v2958 = vunpack.c.l.b16 %v391
    %v2959 = vunpack.c.h.b16 %v391
    %v2960 = vunpack.c.l.b16 %v392
    %v2961 = vunpack.c.h.b16 %v392
    %v2962 = vunpack.c.l.b16 %v393
    %v2963 = vunpack.c.h.b16 %v393
    %v2964 = vunpack.c.l.b16 %v394
    %v2965 = vunpack.c.h.b16 %v394
    %v2966 = vunpack.c.l.b16 %v395
    %v2967 = vunpack.c.h.b16 %v395
    %v2968 = vunpack.c.l.b16 %v396
    %v2969 = vunpack.c.h.b16 %v396
    %v2970 = vunpack.c.l.b16 %v397
    %v2971 = vunpack.c.h.b16 %v397
    %v2972 = vunpack.c.l.b16 %v398
    %v2973 = vunpack.c.h.b16 %v398
    %v2974 = vunpack.c.l.b16 %v399
    %v2975 = vunpack.c.h.b16 %v399
    %v2976 = vunpack.c.l.b16 %v400
    %v2977 = vunpack.c.h.b16 %v400
    %v2978 = vunpack.c.l.b16 %v401
    %v2979 = vunpack.c.h.b16 %v401
    %v2980 = vunpack.c.l.b16 %v402
    %v2981 = vunpack.c.h.b16 %v402
    %v2982 = vunpack.c.l.b16 %v403
    %v2983 = vunpack.c.h.b16 %v403
    %v2984 = vunpack.c.l.b16 %v404
    %v2985 = vunpack.c.h.b16 %v404
    %v2986 = vunpack.c.l.b16 %v405
    %v2987 = vunpack.c.h.b16 %v405
    %v2988 = vunpack.c.l.b16 %v406
    %v2989 = vunpack.c.h.b16 %v406
    %v2990 = vunpack.c.l.b16 %v407
    %v2991 = vunpack.c.h.b16 %v407
    %v2992 = vunpack.c.l.b16 %v408
    %v2993 = vunpack.c.h.b16 %v408
    %v2994 = vunpack.c.l.b16 %v409
    %v2995 = vunpack.c.h.b16 %v409
    %v2996 = vunpack.c.l.b16 %v410
    %v2997 = vunpack.c.h.b16 %v410
    %v2998 = vunpack.c.l.b16 %v411
    %v2999 = vunpack.c.h.b16 %v411
    %v3000 = vunpack.c.l.b16 %v412
    %v3001 = vunpack.c.h.b16 %v412
    %v3002 = vunpack.c.l.b16 %v413
    %v3003 = vunpack.c.h.b16 %v413
    %v3004 = vunpack.c.l.b16 %v414
    %v3005 = vunpack.c.h.b16 %v414
    %v3006 = vunpack.c.l.b16 %v415
    %v3007 = vunpack.c.h.b16 %v415
    %v3008 = vunpack.c.l.b16 %v416
    %v3009 = vunpack.c.h.b16 %v416
    %v3010 = vunpack.c.l.b16 %v417
    %v3011 = vunpack.c.h.b16 %v417
    %v3012 = vunpack.c.l.b16 %v418
    %v3013 = vunpack.c.h.b16 %v418
    %v3014 = vunpack.c.l.b16 %v419
    %v3015 = vunpack.c.h.b16 %v419
    %v3016 = vunpack.c.l.b16 %v420
    %v3017 = vunpack.c.h.b16 %v420
    %v3018 = vunpack.c.l.b16 %v421
    %v3019 = vunpack.c.h.b16 %v421
    %v3020 = vunpack.c.l.b16 %v422
    %v3021 = vunpack.c.h.b16 %v422
    %v3022 = vunpack.c.l.b16 %v423
    %v3023 = vunpack.c.h.b16 %v423
    %v3024 = vunpack.c.l.b16 %v424
    %v3025 = vunpack.c.h.b16 %v424
    %v3026 = vunpack.c.l.b16 %v425
    %v3027 = vunpack.c.h.b16 %v425
    %v3028 = vunpack.c.l.b16 %v426
    %v3029 = vunpack.c.h.b16 %v426
    %v3030 = vunpack.c.l.b16 %v427
    %v3031 = vunpack.c.h.b16 %v427
    %v3032 = vunpack.c.l.b16 %v428
    %v3033 = vunpack.c.h.b16 %v428
    %v3034 = vunpack.c.l.b16 %v429
    %v3035 = vunpack.c.h.b16 %v429
    %v3036 = vunpack.c.l.b16 %v430
    %v3037 = vunpack.c.h.b16 %v430
    %v3038 = vunpack.c.l.b16 %v431
    %v3039 = vunpack.c.h.b16 %v431
    %v3040 = vunpack.c.l.b16 %v432
    %v3041 = vunpack.c.h.b16 %v432
    %v3042 = vunpack.c.l.b16 %v433
    %v3043 = vunpack.c.h.b16 %v433
    %v3044 = vunpack.c.l.b16 %v434
    %v3045 = vunpack.c.h.b16 %v434
    %v3046 = vunpack.c.l.b16 %v435
    %v3047 = vunpack.c.h.b16 %v435
    %v3048 = vunpack.c.l.b16 %v436
    %v3049 = vunpack.c.h.b16 %v436
    %v3050 = vunpack.c.l.b16 %v437
    %v3051 = vunpack.c.h.b16 %v437
    %v3052 = vunpack.c.l.b16 %v438
    %v3053 = vunpack.c.h.b16 %v438
    %v3054 = vunpack.c.l.b16 %v439
    %v3055 = vunpack.c.h.b16 %v439
    %v3056 = vunpack.c.l.b16 %v440
    %v3057 = vunpack.c.h.b16 %v440
    %v3058 = vunpack.c.l.b16 %v441
    %v3059 = vunpack.c.h.b16 %v441
    %v3060 = vunpack.c.l.b16 %v442
    %v3061 = vunpack.c.h.b16 %v442
    %v3062 = vunpack.c.l.b16 %v443
    %v3063 = vunpack.c.h.b16 %v443
    %v3064 = vunpack.c.l.b16 %v444
    %v3065 = vunpack.c.h.b16 %v444
    %v3066 = vunpack.c.l.b16 %v445
    %v3067 = vunpack.c.h.b16 %v445
    %v3068 = vunpack.c.l.b16 %v446
    %v3069 = vunpack.c.h.b16 %v446
    %v3070 = vunpack.c.l.b16 %v447
    %v3071 = vunpack.c.h.b16 %v447
    %v3072 = vunpack.c.l.b16 %v448
    %v3073 = vunpack.c.h.b16 %v448
    %v3074 = vunpack.c.l.b16 %v449
    %v3075 = vunpack.c.h.b16 %v449
    %v3076 = vunpack.c.l.b16 %v450
    %v3077 = vunpack.c.h.b16 %v450
    %v3078 = vunpack.c.l.b16 %v451
    %v3079 = vunpack.c.h.b16 %v451
    %v3080 = vunpack.c.l.b16 %v452
    %v3081 = vunpack.c.h.b16 %v452
    %v3082 = vunpack.c.l.b16 %v453
    %v3083 = vunpack.c.h.b16 %v453
    %v3084 = vunpack.c.l.b16 %v454
    %v3085 = vunpack.c.h.b16 %v454
    %v3086 = vunpack.c.l.b16 %v455
    %v3087 = vunpack.c.h.b16 %v455
    %v3088 = vunpack.c.l.b16 %v456
    %v3089 = vunpack.c.h.b16 %v456
    %v3090 = vunpack.c.l.b16 %v457
    %v3091 = vunpack.c.h.b16 %v457
    %v3092 = vunpack.c.l.b16 %v458
    %v3093 = vunpack.c.h.b16 %v458
    %v3094 = vunpack.c.l.b16 %v459
    %v3095 = vunpack.c.h.b16 %v459
    %v3096 = vunpack.c.l.b16 %v460
    %v3097 = vunpack.c.h.b16 %v460
    %v3098 = vunpack.c.l.b16 %v461
    %v3099 = vunpack.c.h.b16 %v461
    %v3100 = vunpack.c.l.b16 %v462
    %v3101 = vunpack.c.h.b16 %v462
    %v3102 = vunpack.c.l.b16 %v463
    %v3103 = vunpack.c.h.b16 %v463
    %v3104 = vunpack.c.l.b16 %v464
    %v3105 = vunpack.c.h.b16 %v464
    %v3106 = vunpack.c.l.b16 %v465
    %v3107 = vunpack.c.h.b16 %v465
    %v3108 = vunpack.c.l.b16 %v466
    %v3109 = vunpack.c.h.b16 %v466
    %v3110 = vunpack.c.l.b16 %v467
    %v3111 = vunpack.c.h.b16 %v467
    %v3112 = vunpack.c.l.b16 %v468
    %v3113 = vunpack.c.h.b16 %v468
    %v3114 = vunpack.c.l.b16 %v469
    %v3115 = vunpack.c.h.b16 %v469
    %v3116 = vunpack.c.l.b16 %v470
    %v3117 = vunpack.c.h.b16 %v470
    %v3118 = vunpack.c.l.b16 %v471
    %v3119 = vunpack.c.h.b16 %v471
    %v3120 = vunpack.c.l.b16 %v472
    %v3121 = vunpack.c.h.b16 %v472
    %v3122 = vunpack.c.l.b16 %v473
    %v3123 = vunpack.c.h.b16 %v473
    %v3124 = vunpack.c.l.b16 %v474
    %v3125 = vunpack.c.h.b16 %v474
    %v3126 = vunpack.c.l.b16 %v475
    %v3127 = vunpack.c.h.b16 %v475
    %v3128 = vunpack.c.l.b16 %v476
    %v3129 = vunpack.c.h.b16 %v476
    %v3130 = vunpack.c.l.b16 %v477
    %v3131 = vunpack.c.h.b16 %v477
    %v3132 = vunpack.c.l.b16 %v478
    %v3133 = vunpack.c.h.b16 %v478
    %v3134 = vunpack.c.l.b16 %v479
    %v3135 = vunpack.c.h.b16 %v479
    %v3136 = vunpack.c.l.b16 %v480
    %v3137 = vunpack.c.h.b16 %v480
    %v3138 = vunpack.c.l.b16 %v481
    %v3139 = vunpack.c.h.b16 %v481
    %v3140 = vunpack.c.l.b16 %v482
    %v3141 = vunpack.c.h.b16 %v482
    %v3142 = vunpack.c.l.b16 %v483
    %v3143 = vunpack.c.h.b16 %v483
    %v3144 = vunpack.c.l.b16 %v484
    %v3145 = vunpack.c.h.b16 %v484
    %v3146 = vunpack.c.l.b16 %v485
    %v3147 = vunpack.c.h.b16 %v485
    %v3148 = vunpack.c.l.b16 %v486
    %v3149 = vunpack.c.h.b16 %v486
    %v3150 = vunpack.c.l.b16 %v487
    %v3151 = vunpack.c.h.b16 %v487
    %v3152 = vunpack.c.l.b16 %v488
    %v3153 = vunpack.c.h.b16 %v488
    %v3154 = vunpack.c.l.b16 %v489
    %v3155 = vunpack.c.h.b16 %v489
    %v3156 = vunpack.c.l.b16 %v490
    %v3157 = vunpack.c.h.b16 %v490
    %v3158 = vunpack.c.l.b16 %v491
    %v3159 = vunpack.c.h.b16 %v491
    %v3160 = vunpack.c.l.b16 %v492
    %v3161 = vunpack.c.h.b16 %v492
    %v3162 = vunpack.c.l.b16 %v493
    %v3163 = vunpack.c.h.b16 %v493
    %v3164 = vunpack.c.l.b16 %v494
    %v3165 = vunpack.c.h.b16 %v494
    %v3166 = vunpack.c.l.b16 %v495
    %v3167 = vunpack.c.h.b16 %v495
    %v3168 = vunpack.c.l.b16 %v496
    %v3169 = vunpack.c.h.b16 %v496
    %v3170 = vunpack.c.l.b16 %v497
    %v3171 = vunpack.c.h.b16 %v497
    %v3172 = vunpack.c.l.b16 %v498
    %v3173 = vunpack.c.h.b16 %v498
    %v3174 = vunpack.c.l.b16 %v499
    %v3175 = vunpack.c.h.b16 %v499
    %v3176 = vunpack.c.l.b16 %v500
    %v3177 = vunpack.c.h.b16 %v500
    %v3178 = vunpack.c.l.b16 %v501
    %v3179 = vunpack.c.h.b16 %v501
    %v3180 = vunpack.c.l.b16 %v502
    %v3181 = vunpack.c.h.b16 %v502
    %v3182 = vunpack.c.l.b16 %v503
    %v3183 = vunpack.c.h.b16 %v503
    %v3184 = vunpack.c.l.b16 %v504
    %v3185 = vunpack.c.h.b16 %v504
    %v3186 = vunpack.c.l.b16 %v505
    %v3187 = vunpack.c.h.b16 %v505
    %v3188 = vunpack.c.l.b16 %v506
    %v3189 = vunpack.c.h.b16 %v506
    %v3190 = vunpack.c.l.b16 %v507
    %v3191 = vunpack.c.h.b16 %v507
    %v3192 = vunpack.c.l.b16 %v508
    %v3193 = vunpack.c.h.b16 %v508
    %v3194 = vunpack.c.l.b16 %v509
    %v3195 = vunpack.c.h.b16 %v509
    %v3196 = vunpack.c.l.b16 %v510
    %v3197 = vunpack.c.h.b16 %v510
    %v3198 = vunpack.c.l.b16 %v511
    %v3199 = vunpack.c.h.b16 %v511
    %v3200 = vunpack.c.l.b16 %v512
    %v3201 = vunpack.c.h.b16 %v512
    %v3202 = vunpack.c.l.b16 %v513
    %v3203 = vunpack.c.h.b16 %v513
    %v3204 = vunpack.c.l.b16 %v514
    %v3205 = vunpack.c.h.b16 %v514
    %v3206 = vunpack.c.l.b16 %v515
    %v3207 = vunpack.c.h.b16 %v515
    %v3208 = vunpack.c.l.b16 %v516
    %v3209 = vunpack.c.h.b16 %v516
    %v3210 = vunpack.c.l.b16 %v517
    %v3211 = vunpack.c.h.b16 %v517
    %v3212 = vunpack.c.l.b16 %v518
    %v3213 = vunpack.c.h.b16 %v518
    %v3214 = vunpack.c.l.b16 %v519
    %v3215 = vunpack.c.h.b16 %v519
    %v3216 = vunpack.c.l.b16 %v520
    %v3217 = vunpack.c.h.b16 %v520
    %v3218 = vunpack.c.l.b16 %v521
    %v3219 = vunpack.c.h.b16 %v521
    %v3220 = vunpack.c.l.b16 %v522
    %v3221 = vunpack.c.h.b16 %v522
    %v3222 = vunpack.c.l.b16 %v523
    %v3223 = vunpack.c.h.b16 %v523
    %v3224 = vunpack.c.l.b16 %v524
    %v3225 = vunpack.c.h.b16 %v524
    %v3226 = vunpack.c.l.b16 %v525
    %v3227 = vunpack.c.h.b16 %v525
    %v3228 = vunpack.c.l.b16 %v526
    %v3229 = vunpack.c.h.b16 %v526
    %v3230 = vunpack.c.l.b16 %v527
    %v3231 = vunpack.c.h.b16 %v527
    %v3232 = vunpack.c.l.b16 %v528
    %v3233 = vunpack.c.h.b16 %v528
    %v3234 = vunpack.c.l.b16 %v529
    %v3235 = vunpack.c.h.b16 %v529
    %v3236 = vunpack.c.l.b16 %v530
    %v3237 = vunpack.c.h.b16 %v530
    %v3238 = vunpack.c.l.b16 %v531
    %v3239 = vunpack.c.h.b16 %v531
    %v3240 = vunpack.c.l.b16 %v532
    %v3241 = vunpack.c.h.b16 %v532
    %v3242 = vunpack.c.l.b16 %v533
    %v3243 = vunpack.c.h.b16 %v533
    %v3244 = vunpack.c.l.b16 %v534
    %v3245 = vunpack.c.h.b16 %v534
    %v3246 = vunpack.c.l.b16 %v535
    %v3247 = vunpack.c.h.b16 %v535
    %v3248 = vunpack.c.l.b16 %v536
    %v3249 = vunpack.c.h.b16 %v536
    %v3250 = vunpack.c.l.b16 %v537
    %v3251 = vunpack.c.h.b16 %v537
    %v3252 = vunpack.c.l.b16 %v538
    %v3253 = vunpack.c.h.b16 %v538
    %v3254 = vunpack.c.l.b16 %v539
    %v3255 = vunpack.c.h.b16 %v539
    %v3256 = vunpack.c.l.b16 %v540
    %v3257 = vunpack.c.h.b16 %v540
    %v3258 = vunpack.c.l.b16 %v541
    %v3259 = vunpack.c.h.b16 %v541
    %v3260 = vunpack.c.l.b16 %v542
    %v3261 = vunpack.c.h.b16 %v542
    %v3262 = vunpack.c.l.b16 %v543
    %v3263 = vunpack.c.h.b16 %v543
    %v3264 = vunpack.c.l.b16 %v544
    %v3265 = vunpack.c.h.b16 %v544
    %v3266 = vunpack.c.l.b16 %v545
    %v3267 = vunpack.c.h.b16 %v545
    %v3268 = vunpack.c.l.b16 %v546
    %v3269 = vunpack.c.h.b16 %v546
    %v3270 = vunpack.c.l.b16 %v547
    %v3271 = vunpack.c.h.b16 %v547
    %v3272 = vunpack.c.l.b16 %v548
    %v3273 = vunpack.c.h.b16 %v548
    %v3274 = vunpack.c.l.b16 %v549
    %v3275 = vunpack.c.h.b16 %v549
    %v3276 = vunpack.c.l.b16 %v550
    %v3277 = vunpack.c.h.b16 %v550
    %v3278 = vunpack.c.l.b16 %v551
    %v3279 = vunpack.c.h.b16 %v551
    %v3280 = vunpack.c.l.b16 %v552
    %v3281 = vunpack.c.h.b16 %v552
    %v3282 = vunpack.c.l.b16 %v553
    %v3283 = vunpack.c.h.b16 %v553
    %v3284 = vunpack.c.l.b16 %v554
    %v3285 = vunpack.c.h.b16 %v554
    %v3286 = vunpack.c.l.b16 %v555
    %v3287 = vunpack.c.h.b16 %v555
    %v3288 = vunpack.c.l.b16 %v556
    %v3289 = vunpack.c.h.b16 %v556
    %v3290 = vunpack.c.l.b16 %v557
    %v3291 = vunpack.c.h.b16 %v557
    %v3292 = vunpack.c.l.b16 %v558
    %v3293 = vunpack.c.h.b16 %v558
    %v3294 = vunpack.c.l.b16 %v559
    %v3295 = vunpack.c.h.b16 %v559
    %v3296 = vunpack.c.l.b16 %v560
    %v3297 = vunpack.c.h.b16 %v560
    %v3298 = vunpack.c.l.b16 %v561
    %v3299 = vunpack.c.h.b16 %v561
    %v3300 = vunpack.c.l.b16 %v562
    %v3301 = vunpack.c.h.b16 %v562
    %v3302 = vunpack.c.l.b16 %v563
    %v3303 = vunpack.c.h.b16 %v563
    %v3304 = vunpack.c.l.b16 %v564
    %v3305 = vunpack.c.h.b16 %v564
    %v3306 = vunpack.c.l.b16 %v565
    %v3307 = vunpack.c.h.b16 %v565
    %v3308 = vunpack.c.l.b16 %v566
    %v3309 = vunpack.c.h.b16 %v566
    %v3310 = vunpack.c.l.b16 %v567
    %v3311 = vunpack.c.h.b16 %v567
    %v3312 = vunpack.c.l.b16 %v568
    %v3313 = vunpack.c.h.b16 %v568
    %v3314 = vunpack.c.l.b16 %v569
    %v3315 = vunpack.c.h.b16 %v569
    %v3316 = vunpack.c.l.b16 %v570
    %v3317 = vunpack.c.h.b16 %v570
    %v3318 = vunpack.c.l.b16 %v571
    %v3319 = vunpack.c.h.b16 %v571
    %v3320 = vunpack.c.l.b16 %v572
    %v3321 = vunpack.c.h.b16 %v572
    %v3322 = vunpack.c.l.b16 %v573
    %v3323 = vunpack.c.h.b16 %v573
    %v3324 = vunpack.c.l.b16 %v574
    %v3325 = vunpack.c.h.b16 %v574
    %v3326 = vunpack.c.l.b16 %v575
    %v3327 = vunpack.c.h.b16 %v575
    %v3328 = vunpack.c.l.b16 %v576
    %v3329 = vunpack.c.h.b16 %v576
    %v3330 = vunpack.c.l.b16 %v577
    %v3331 = vunpack.c.h.b16 %v577
    %v3332 = vunpack.c.l.b16 %v578
    %v3333 = vunpack.c.h.b16 %v578
    %v3334 = vunpack.c.l.b16 %v579
    %v3335 = vunpack.c.h.b16 %v579
    %v3336 = vunpack.c.l.b16 %v580
    %v3337 = vunpack.c.h.b16 %v580
    %v3338 = vunpack.c.l.b16 %v581
    %v3339 = vunpack.c.h.b16 %v581
    %v3340 = vunpack.c.l.b16 %v582
    %v3341 = vunpack.c.h.b16 %v582
    %v3342 = vunpack.c.l.b16 %v583
    %v3343 = vunpack.c.h.b16 %v583
    %v3344 = vunpack.c.l.b16 %v584
    %v3345 = vunpack.c.h.b16 %v584
    %v3346 = vunpack.c.l.b16 %v585
    %v3347 = vunpack.c.h.b16 %v585
    %v3348 = vunpack.c.l.b16 %v586
    %v3349 = vunpack.c.h.b16 %v586
    %v3350 = vunpack.c.l.b16 %v587
    %v3351 = vunpack.c.h.b16 %v587
    %v3352 = vunpack.c.l.b16 %v588
    %v3353 = vunpack.c.h.b16 %v588
    %v3354 = vunpack.c.l.b16 %v589
    %v3355 = vunpack.c.h.b16 %v589
    %v3356 = vunpack.c.l.b16 %v590
    %v3357 = vunpack.c.h.b16 %v590
    %v3358 = vunpack.c.l.b16 %v591
    %v3359 = vunpack.c.h.b16 %v591
    %v3360 = vunpack.c.l.b16 %v592
    %v3361 = vunpack.c.h.b16 %v592
    %v3362 = vunpack.c.l.b16 %v593
    %v3363 = vunpack.c.h.b16 %v593
    %v3364 = vunpack.c.l.b16 %v594
    %v3365 = vunpack.c.h.b16 %v594
    %v3366 = vunpack.c.l.b16 %v595
    %v3367 = vunpack.c.h.b16 %v595
    %v3368 = vunpack.c.l.b16 %v596
    %v3369 = vunpack.c.h.b16 %v596
    %v3370 = vunpack.c.l.b16 %v597
    %v3371 = vunpack.c.h.b16 %v597
    %v3372 = vunpack.c.l.b16 %v598
    %v3373 = vunpack.c.h.b16 %v598
    %v3374 = vunpack.c.l.b16 %v599
    %v3375 = vunpack.c.h.b16 %v599
    %v3376 = vunpack.c.l.b16 %v600
    %v3377 = vunpack.c.h.b16 %v600
    %v3378 = vunpack.c.l.b16 %v601
    %v3379 = vunpack.c.h.b16 %v601
    %v3380 = vunpack.c.l.b16 %v602
    %v3381 = vunpack.c.h.b16 %v602
    %v3382 = vunpack.c.l.b16 %v603
    %v3383 = vunpack.c.h.b16 %v603
    %v3384 = vunpack.c.l.b16 %v604
    %v3385 = vunpack.c.h.b16 %v604
    %v3386 = vunpack.c.l.b16 %v605
    %v3387 = vunpack.c.h.b16 %v605
    %v3388 = vunpack.c.l.b16 %v606
    %v3389 = vunpack.c.h.b16 %v606
    %v3390 = vunpack.c.l.b16 %v607
    %v3391 = vunpack.c.h.b16 %v607
    %v3392 = vunpack.c.l.b16 %v608
    %v3393 = vunpack.c.h.b16 %v608
    %v3394 = vunpack.c.l.b16 %v609
    %v3395 = vunpack.c.h.b16 %v609
    %v3396 = vunpack.c.l.b16 %v610
    %v3397 = vunpack.c.h.b16 %v610
    %v3398 = vunpack.c.l.b16 %v611
    %v3399 = vunpack.c.h.b16 %v611
    %v3400 = vunpack.c.l.b16 %v612
    %v3401 = vunpack.c.h.b16 %v612
    %v3402 = vunpack.c.l.b16 %v613
    %v3403 = vunpack.c.h.b16 %v613
    %v3404 = vunpack.c.l.b16 %v614
    %v3405 = vunpack.c.h.b16 %v614
    %v3406 = vunpack.c.l.b16 %v615
    %v3407 = vunpack.c.h.b16 %v615
    %v3408 = vunpack.c.l.b16 %v616
    %v3409 = vunpack.c.h.b16 %v616
    %v3410 = vunpack.c.l.b16 %v617
    %v3411 = vunpack.c.h.b16 %v617
    %v3412 = vunpack.c.l.b16 %v618
    %v3413 = vunpack.c.h.b16 %v618
    %v3414 = vunpack.c.l.b16 %v619
    %v3415 = vunpack.c.h.b16 %v619
    %v3416 = vunpack.c.l.b16 %v620
    %v3417 = vunpack.c.h.b16 %v620
    %v3418 = vunpack.c.l.b16 %v621
    %v3419 = vunpack.c.h.b16 %v621
    %v3420 = vunpack.c.l.b16 %v622
    %v3421 = vunpack.c.h.b16 %v622
    %v3422 = vunpack.c.l.b16 %v623
    %v3423 = vunpack.c.h.b16 %v623
    %v3424 = vunpack.c.l.b16 %v624
    %v3425 = vunpack.c.h.b16 %v624
    %v3426 = vunpack.c.l.b16 %v625
    %v3427 = vunpack.c.h.b16 %v625
    %v3428 = vunpack.c.l.b16 %v626
    %v3429 = vunpack.c.h.b16 %v626
    %v3430 = vunpack.c.l.b16 %v627
    %v3431 = vunpack.c.h.b16 %v627
    %v3432 = vunpack.c.l.b16 %v628
    %v3433 = vunpack.c.h.b16 %v628
    %v3434 = vunpack.c.l.b16 %v629
    %v3435 = vunpack.c.h.b16 %v629
    %v3436 = vunpack.c.l.b16 %v630
    %v3437 = vunpack.c.h.b16 %v630
    %v3438 = vunpack.c.l.b16 %v631
    %v3439 = vunpack.c.h.b16 %v631
    %v3440 = vunpack.c.l.b16 %v632
    %v3441 = vunpack.c.h.b16 %v632
    %v3442 = vunpack.c.l.b16 %v633
    %v3443 = vunpack.c.h.b16 %v633
    %v3444 = vunpack.c.l.b16 %v634
    %v3445 = vunpack.c.h.b16 %v634
    %v3446 = vunpack.c.l.b16 %v635
    %v3447 = vunpack.c.h.b16 %v635
    %v3448 = vunpack.c.l.b16 %v636
    %v3449 = vunpack.c.h.b16 %v636
    %v3450 = vunpack.c.l.b16 %v637
    %v3451 = vunpack.c.h.b16 %v637
    %v3452 = vunpack.c.l.b16 %v638
    %v3453 = vunpack.c.h.b16 %v638
    %v3454 = vunpack.c.l.b16 %v639
    %v3455 = vunpack.c.h.b16 %v639
    %v3456 = vunpack.c.l.b16 %v640
    %v3457 = vunpack.c.h.b16 %v640
    %v3458 = vunpack.c.l.b16 %v641
    %v3459 = vunpack.c.h.b16 %v641
    %v3460 = vunpack.c.l.b16 %v642
    %v3461 = vunpack.c.h.b16 %v642
    %v3462 = vunpack.c.l.b16 %v643
    %v3463 = vunpack.c.h.b16 %v643
    %v3464 = vunpack.c.l.b16 %v644
    %v3465 = vunpack.c.h.b16 %v644
    %v3466 = vunpack.c.l.b16 %v645
    %v3467 = vunpack.c.h.b16 %v645
    %v3468 = vunpack.c.l.b16 %v646
    %v3469 = vunpack.c.h.b16 %v646
    %v3470 = vunpack.c.l.b16 %v647
    %v3471 = vunpack.c.h.b16 %v647
    %v3472 = vunpack.c.l.b16 %v648
    %v3473 = vunpack.c.h.b16 %v648
    %v3474 = vunpack.c.l.b16 %v649
    %v3475 = vunpack.c.h.b16 %v649
    %v3476 = vunpack.c.l.b16 %v650
    %v3477 = vunpack.c.h.b16 %v650
    %v3478 = vunpack.c.l.b16 %v651
    %v3479 = vunpack.c.h.b16 %v651
    %v3480 = vunpack.c.l.b16 %v652
    %v3481 = vunpack.c.h.b16 %v652
    %v3482 = vunpack.c.l.b16 %v653
    %v3483 = vunpack.c.h.b16 %v653
    %v3484 = vunpack.c.l.b16 %v654
    %v3485 = vunpack.c.h.b16 %v654
    %v3486 = vunpack.c.l.b16 %v655
    %v3487 = vunpack.c.h.b16 %v655
    %v3488 = vunpack.c.l.b16 %v656
    %v3489 = vunpack.c.h.b16 %v656
    %v3490 = vunpack.c.l.b16 %v657
    %v3491 = vunpack.c.h.b16 %v657
    %v3492 = vunpack.c.l.b16 %v658
    %v3493 = vunpack.c.h.b16 %v658
    %v3494 = vunpack.c.l.b16 %v659
    %v3495 = vunpack.c.h.b16 %v659
    %v3496 = vunpack.c.l.b16 %v660
    %v3497 = vunpack.c.h.b16 %v660
    %v3498 = vunpack.c.l.b16 %v661
    %v3499 = vunpack.c.h.b16 %v661
    %v3500 = vunpack.c.l.b16 %v662
    %v3501 = vunpack.c.h.b16 %v662
    %v3502 = vunpack.c.l.b16 %v663
    %v3503 = vunpack.c.h.b16 %v663
    %v3504 = vunpack.c.l.b16 %v664
    %v3505 = vunpack.c.h.b16 %v664
    %v3506 = vunpack.c.l.b16 %v665
    %v3507 = vunpack.c.h.b16 %v665
    %v3508 = vunpack.c.l.b16 %v666
    %v3509 = vunpack.c.h.b16 %v666
    %v3510 = vunpack.c.l.b16 %v667
    %v3511 = vunpack.c.h.b16 %v667
    %v3512 = vunpack.c.l.b16 %v668
    %v3513 = vunpack.c.h.b16 %v668
    %v3514 = vunpack.c.l.b16 %v669
    %v3515 = vunpack.c.h.b16 %v669
    %v3516 = vunpack.c.l.b16 %v670
    %v3517 = vunpack.c.h.b16 %v670
    %v3518 = vunpack.c.l.b16 %v671
    %v3519 = vunpack.c.h.b16 %v671
    %v3520 = vunpack.c.l.b16 %v672
    %v3521 = vunpack.c.h.b16 %v672
    %v3522 = vunpack.c.l.b16 %v673
    %v3523 = vunpack.c.h.b16 %v673
    %v3524 = vunpack.c.l.b16 %v674
    %v3525 = vunpack.c.h.b16 %v674
    %v3526 = vunpack.c.l.b16 %v675
    %v3527 = vunpack.c.h.b16 %v675
    %v3528 = vunpack.c.l.b16 %v676
    %v3529 = vunpack.c.h.b16 %v676
    %v3530 = vunpack.c.l.b16 %v677
    %v3531 = vunpack.c.h.b16 %v677
    %v3532 = vunpack.c.l.b16 %v678
    %v3533 = vunpack.c.h.b16 %v678
    %v3534 = vunpack.c.l.b16 %v679
    %v3535 = vunpack.c.h.b16 %v679
    %v3536 = vunpack.c.l.b16 %v680
    %v3537 = vunpack.c.h.b16 %v680
    %v3538 = vunpack.c.l.b16 %v681
    %v3539 = vunpack.c.h.b16 %v681
    %v3540 = vunpack.c.l.b16 %v682
    %v3541 = vunpack.c.h.b16 %v682
    %v3542 = vunpack.c.l.b16 %v683
    %v3543 = vunpack.c.h.b16 %v683
    %v3544 = vunpack.c.l.b16 %v684
    %v3545 = vunpack.c.h.b16 %v684
    %v3546 = vunpack.c.l.b16 %v685
    %v3547 = vunpack.c.h.b16 %v685
    %v3548 = vunpack.c.l.b16 %v686
    %v3549 = vunpack.c.h.b16 %v686
    %v3550 = vunpack.c.l.b16 %v687
    %v3551 = vunpack.c.h.b16 %v687
    %v3552 = vunpack.c.l.b16 %v688
    %v3553 = vunpack.c.h.b16 %v688
    %v3554 = vunpack.c.l.b16 %v689
    %v3555 = vunpack.c.h.b16 %v689
    %v3556 = vunpack.c.l.b16 %v690
    %v3557 = vunpack.c.h.b16 %v690
    %v3558 = vunpack.c.l.b16 %v691
    %v3559 = vunpack.c.h.b16 %v691
    %v3560 = vunpack.c.l.b16 %v692
    %v3561 = vunpack.c.h.b16 %v692
    %v3562 = vunpack.c.l.b16 %v693
    %v3563 = vunpack.c.h.b16 %v693
    %v3564 = vunpack.c.l.b16 %v694
    %v3565 = vunpack.c.h.b16 %v694
    %v3566 = vunpack.c.l.b16 %v695
    %v3567 = vunpack.c.h.b16 %v695
    %v3568 = vunpack.c.l.b16 %v696
    %v3569 = vunpack.c.h.b16 %v696
    %v3570 = vunpack.c.l.b16 %v697
    %v3571 = vunpack.c.h.b16 %v697
    %v3572 = vunpack.c.l.b16 %v698
    %v3573 = vunpack.c.h.b16 %v698
    %v3574 = vunpack.c.l.b16 %v699
    %v3575 = vunpack.c.h.b16 %v699
    %v3576 = vunpack.c.l.b16 %v700
    %v3577 = vunpack.c.h.b16 %v700
    %v3578 = vunpack.c.l.b16 %v701
    %v3579 = vunpack.c.h.b16 %v701
    %v3580 = vunpack.c.l.b16 %v702
    %v3581 = vunpack.c.h.b16 %v702
    %v3582 = vunpack.c.l.b16 %v703
    %v3583 = vunpack.c.h.b16 %v703
    %v3584 = vunpack.c.l.b16 %v704
    %v3585 = vunpack.c.h.b16 %v704
    %v3586 = vunpack.c.l.b16 %v705
    %v3587 = vunpack.c.h.b16 %v705
    %v3588 = vunpack.c.l.b16 %v706
    %v3589 = vunpack.c.h.b16 %v706
    %v3590 = vunpack.c.l.b16 %v707
    %v3591 = vunpack.c.h.b16 %v707
    %v3592 = vunpack.c.l.b16 %v708
    %v3593 = vunpack.c.h.b16 %v708
    %v3594 = vunpack.c.l.b16 %v709
    %v3595 = vunpack.c.h.b16 %v709
    %v3596 = vunpack.c.l.b16 %v710
    %v3597 = vunpack.c.h.b16 %v710
    %v3598 = vunpack.c.l.b16 %v711
    %v3599 = vunpack.c.h.b16 %v711
    %v3600 = vunpack.c.l.b16 %v712
    %v3601 = vunpack.c.h.b16 %v712
    %v3602 = vunpack.c.l.b16 %v713
    %v3603 = vunpack.c.h.b16 %v713
    %v3604 = vunpack.c.l.b16 %v714
    %v3605 = vunpack.c.h.b16 %v714
    %v3606 = vunpack.c.l.b16 %v715
    %v3607 = vunpack.c.h.b16 %v715
    %v3608 = vunpack.c.l.b16 %v716
    %v3609 = vunpack.c.h.b16 %v716
    %v3610 = vunpack.c.l.b16 %v717
    %v3611 = vunpack.c.h.b16 %v717
    %v3612 = vunpack.c.l.b16 %v718
    %v3613 = vunpack.c.h.b16 %v718
    %v3614 = vunpack.c.l.b16 %v719
    %v3615 = vunpack.c.h.b16 %v719
    %v3616 = vunpack.c.l.b16 %v720
    %v3617 = vunpack.c.h.b16 %v720
    %v3618 = vunpack.c.l.b16 %v721
    %v3619 = vunpack.c.h.b16 %v721
    %v3620 = vunpack.c.l.b16 %v722
    %v3621 = vunpack.c.h.b16 %v722
    %v3622 = vunpack.c.l.b16 %v723
    %v3623 = vunpack.c.h.b16 %v723
    %v3624 = vunpack.c.l.b16 %v724
    %v3625 = vunpack.c.h.b16 %v724
    %v3626 = vunpack.c.l.b16 %v725
    %v3627 = vunpack.c.h.b16 %v725
    %v3628 = vunpack.c.l.b16 %v726
    %v3629 = vunpack.c.h.b16 %v726
    %v3630 = vunpack.c.l.b16 %v727
    %v3631 = vunpack.c.h.b16 %v727
    %v3632 = vunpack.c.l.b16 %v728
    %v3633 = vunpack.c.h.b16 %v728
    %v3634 = vunpack.c.l.b16 %v729
    %v3635 = vunpack.c.h.b16 %v729
    %v3636 = vunpack.c.l.b16 %v730
    %v3637 = vunpack.c.h.b16 %v730
    %v3638 = vunpack.c.l.b16 %v731
    %v3639 = vunpack.c.h.b16 %v731
    %v3640 = vunpack.c.l.b16 %v732
    %v3641 = vunpack.c.h.b16 %v732
    %v3642 = vunpack.c.l.b16 %v733
    %v3643 = vunpack.c.h.b16 %v733
    %v3644 = vunpack.c.l.b16 %v734
    %v3645 = vunpack.c.h.b16 %v734
    %v3646 = vunpack.c.l.b16 %v735
    %v3647 = vunpack.c.h.b16 %v735
    %v3648 = vunpack.c.l.b16 %v736
    %v3649 = vunpack.c.h.b16 %v736
    %v3650 = vunpack.c.l.b16 %v737
    %v3651 = vunpack.c.h.b16 %v737
    %v3652 = vunpack.c.l.b16 %v738
    %v3653 = vunpack.c.h.b16 %v738
    %v3654 = vunpack.c.l.b16 %v739
    %v3655 = vunpack.c.h.b16 %v739
    %v3656 = vunpack.c.l.b16 %v740
    %v3657 = vunpack.c.h.b16 %v740
    %v3658 = vunpack.c.l.b16 %v741
    %v3659 = vunpack.c.h.b16 %v741
    %v3660 = vunpack.c.l.b16 %v742
    %v3661 = vunpack.c.h.b16 %v742
    %v3662 = vunpack.c.l.b16 %v743
    %v3663 = vunpack.c.h.b16 %v743
    %v3664 = vunpack.c.l.b16 %v744
    %v3665 = vunpack.c.h.b16 %v744
    %v3666 = vunpack.c.l.b16 %v745
    %v3667 = vunpack.c.h.b16 %v745
    %v3668 = vunpack.c.l.b16 %v746
    %v3669 = vunpack.c.h.b16 %v746
    %v3670 = vunpack.c.l.b16 %v747
    %v3671 = vunpack.c.h.b16 %v747
    %v3672 = vunpack.c.l.b16 %v748
    %v3673 = vunpack.c.h.b16 %v748
    %v3674 = vunpack.c.l.b16 %v749
    %v3675 = vunpack.c.h.b16 %v749
    %v3676 = vunpack.c.l.b16 %v750
    %v3677 = vunpack.c.h.b16 %v750
    %v3678 = vunpack.c.l.b16 %v751
    %v3679 = vunpack.c.h.b16 %v751
    %v3680 = vunpack.c.l.b16 %v752
    %v3681 = vunpack.c.h.b16 %v752
    %v3682 = vunpack.c.l.b16 %v753
    %v3683 = vunpack.c.h.b16 %v753
    %v3684 = vunpack.c.l.b16 %v754
    %v3685 = vunpack.c.h.b16 %v754
    %v3686 = vunpack.c.l.b16 %v755
    %v3687 = vunpack.c.h.b16 %v755
    %v3688 = vunpack.c.l.b16 %v756
    %v3689 = vunpack.c.h.b16 %v756
    %v3690 = vunpack.c.l.b16 %v757
    %v3691 = vunpack.c.h.b16 %v757
    %v3692 = vunpack.c.l.b16 %v758
    %v3693 = vunpack.c.h.b16 %v758
    %v3694 = vunpack.c.l.b16 %v759
    %v3695 = vunpack.c.h.b16 %v759
    %v3696 = vunpack.c.l.b16 %v760
    %v3697 = vunpack.c.h.b16 %v760
    %v3698 = vunpack.c.l.b16 %v761
    %v3699 = vunpack.c.h.b16 %v761
    %v3700 = vunpack.c.l.b16 %v762
    %v3701 = vunpack.c.h.b16 %v762
    %v3702 = vunpack.c.l.b16 %v763
    %v3703 = vunpack.c.h.b16 %v763
    %v3704 = vunpack.c.l.b16 %v764
    %v3705 = vunpack.c.h.b16 %v764
    %v3706 = vunpack.c.l.b16 %v765
    %v3707 = vunpack.c.h.b16 %v765
    %v3708 = vunpack.c.l.b16 %v766
    %v3709 = vunpack.c.h.b16 %v766
    %v3710 = vunpack.c.l.b16 %v767
    %v3711 = vunpack.c.h.b16 %v767
    %v3712 = vunpack.c.l.b16 %v768
    %v3713 = vunpack.c.h.b16 %v768
    %v3714 = vunpack.c.l.b16 %v769
    %v3715 = vunpack.c.h.b16 %v769
    %v3716 = vunpack.c.l.b16 %v770
    %v3717 = vunpack.c.h.b16 %v770
    %v3718 = vunpack.c.l.b16 %v771
    %v3719 = vunpack.c.h.b16 %v771
    %v3720 = vunpack.c.l.b16 %v772
    %v3721 = vunpack.c.h.b16 %v772
    %v3722 = vunpack.c.l.b16 %v773
    %v3723 = vunpack.c.h.b16 %v773
    %v3724 = vunpack.c.l.b16 %v774
    %v3725 = vunpack.c.h.b16 %v774
    %v3726 = vunpack.c.l.b16 %v775
    %v3727 = vunpack.c.h.b16 %v775
    %v3728 = vunpack.c.l.b16 %v776
    %v3729 = vunpack.c.h.b16 %v776
    %v3730 = vunpack.c.l.b16 %v777
    %v3731 = vunpack.c.h.b16 %v777
    %v3732 = vunpack.c.l.b16 %v778
    %v3733 = vunpack.c.h.b16 %v778
    %v3734 = vunpack.c.l.b16 %v779
    %v3735 = vunpack.c.h.b16 %v779
    %v3736 = vunpack.c.l.b16 %v780
    %v3737 = vunpack.c.h.b16 %v780
    %v3738 = vunpack.c.l.b16 %v781
    %v3739 = vunpack.c.h.b16 %v781
    %v3740 = vunpack.c.l.b16 %v782
    %v3741 = vunpack.c.h.b16 %v782
    %v3742 = vunpack.c.l.b16 %v783
    %v3743 = vunpack.c.h.b16 %v783
    %v3744 = vunpack.c.l.b16 %v784
    %v3745 = vunpack.c.h.b16 %v784
    %v3746 = vunpack.c.l.b16 %v785
    %v3747 = vunpack.c.h.b16 %v785
    %v3748 = vunpack.c.l.b16 %v786
    %v3749 = vunpack.c.h.b16 %v786
    %v3750 = vunpack.c.l.b16 %v787
    %v3751 = vunpack.c.h.b16 %v787
    %v3752 = vunpack.c.l.b16 %v788
    %v3753 = vunpack.c.h.b16 %v788
    %v3754 = vunpack.c.l.b16 %v789
    %v3755 = vunpack.c.h.b16 %v789
    %v3756 = vunpack.c.l.b16 %v790
    %v3757 = vunpack.c.h.b16 %v790
    %v3758 = vunpack.c.l.b16 %v791
    %v3759 = vunpack.c.h.b16 %v791
    %v3760 = vunpack.c.l.b16 %v792
    %v3761 = vunpack.c.h.b16 %v792
    %v3762 = vunpack.c.l.b16 %v793
    %v3763 = vunpack.c.h.b16 %v793
    %v3764 = vunpack.c.l.b16 %v794
    %v3765 = vunpack.c.h.b16 %v794
    %v3766 = vunpack.c.l.b16 %v795
    %v3767 = vunpack.c.h.b16 %v795
    %v3768 = vunpack.c.l.b16 %v796
    %v3769 = vunpack.c.h.b16 %v796
    %v3770 = vunpack.c.l.b16 %v797
    %v3771 = vunpack.c.h.b16 %v797
    %v3772 = vunpack.c.l.b16 %v798
    %v3773 = vunpack.c.h.b16 %v798
    %v3774 = vunpack.c.l.b16 %v799
    %v3775 = vunpack.c.h.b16 %v799
    %v3776 = vunpack.c.l.b16 %v800
    %v3777 = vunpack.c.h.b16 %v800
    %v3778 = vunpack.c.l.b16 %v801
    %v3779 = vunpack.c.h.b16 %v801
    %v3780 = vunpack.c.l.b16 %v802
    %v3781 = vunpack.c.h.b16 %v802
    %v3782 = vunpack.c.l.b16 %v803
    %v3783 = vunpack.c.h.b16 %v803
    %v3784 = vunpack.c.l.b16 %v804
    %v3785 = vunpack.c.h.b16 %v804
    %v3786 = vunpack.c.l.b16 %v805
    %v3787 = vunpack.c.h.b16 %v805
    %v3788 = vunpack.c.l.b16 %v806
    %v3789 = vunpack.c.h.b16 %v806
    %v3790 = vunpack.c.l.b16 %v807
    %v3791 = vunpack.c.h.b16 %v807
    %v3792 = vunpack.c.l.b16 %v808
    %v3793 = vunpack.c.h.b16 %v808
    %v3794 = vunpack.c.l.b16 %v809
    %v3795 = vunpack.c.h.b16 %v809
    %v3796 = vunpack.c.l.b16 %v810
    %v3797 = vunpack.c.h.b16 %v810
    %v3798 = vunpack.c.l.b16 %v811
    %v3799 = vunpack.c.h.b16 %v811
    %v3800 = vunpack.c.l.b16 %v812
    %v3801 = vunpack.c.h.b16 %v812
    %v3802 = vunpack.c.l.b16 %v813
    %v3803 = vunpack.c.h.b16 %v813
    %v3804 = vunpack.c.l.b16 %v814
    %v3805 = vunpack.c.h.b16 %v814
    %v3806 = vunpack.c.l.b16 %v815
    %v3807 = vunpack.c.h.b16 %v815
    %v3808 = vunpack.c.l.b16 %v816
    %v3809 = vunpack.c.h.b16 %v816
    %v3810 = vunpack.c.l.b16 %v817
    %v3811 = vunpack.c.h.b16 %v817
    %v3812 = vunpack.c.l.b16 %v818
    %v3813 = vunpack.c.h.b16 %v818
    %v3814 = vunpack.c.l.b16 %v819
    %v3815 = vunpack.c.h.b16 %v819
    %v3816 = vunpack.c.l.b16 %v820
    %v3817 = vunpack.c.h.b16 %v820
    %v3818 = vunpack.c.l.b16 %v821
    %v3819 = vunpack.c.h.b16 %v821
    %v3820 = vunpack.c.l.b16 %v822
    %v3821 = vunpack.c.h.b16 %v822
    %v3822 = vunpack.c.l.b16 %v823
    %v3823 = vunpack.c.h.b16 %v823
    %v3824 = vunpack.c.l.b16 %v824
    %v3825 = vunpack.c.h.b16 %v824
    %v3826 = vunpack.c.l.b16 %v825
    %v3827 = vunpack.c.h.b16 %v825
    %v3828 = vunpack.c.l.b16 %v826
    %v3829 = vunpack.c.h.b16 %v826
    %v3830 = vunpack.c.l.b16 %v827
    %v3831 = vunpack.c.h.b16 %v827
    %v3832 = vunpack.c.l.b16 %v828
    %v3833 = vunpack.c.h.b16 %v828
    %v3834 = vunpack.c.l.b16 %v829
    %v3835 = vunpack.c.h.b16 %v829
    %v3836 = vunpack.c.l.b16 %v830
    %v3837 = vunpack.c.h.b16 %v830
    %v3838 = vunpack.c.l.b16 %v831
    %v3839 = vunpack.c.h.b16 %v831
    %v3840 = vunpack.c.l.b16 %v832
    %v3841 = vunpack.c.h.b16 %v832
    %v3842 = vunpack.c.l.b16 %v833
    %v3843 = vunpack.c.h.b16 %v833
    %v3844 = vunpack.c.l.b16 %v834
    %v3845 = vunpack.c.h.b16 %v834
    %v3846 = vunpack.c.l.b16 %v835
    %v3847 = vunpack.c.h.b16 %v835
    %v3848 = vunpack.c.l.b16 %v836
    %v3849 = vunpack.c.h.b16 %v836
    %v3850 = vunpack.c.l.b16 %v837
    %v3851 = vunpack.c.h.b16 %v837
    %v3852 = vunpack.c.l.b16 %v838
    %v3853 = vunpack.c.h.b16 %v838
    %v3854 = vunpack.c.l.b16 %v839
    %v3855 = vunpack.c.h.b16 %v839
    %v3856 = vunpack.c.l.b16 %v840
    %v3857 = vunpack.c.h.b16 %v840
    %v3858 = vunpack.c.l.b16 %v841
    %v3859 = vunpack.c.h.b16 %v841
    %v3860 = vunpack.c.l.b16 %v842
    %v3861 = vunpack.c.h.b16 %v842
    %v3862 = vunpack.c.l.b16 %v843
    %v3863 = vunpack.c.h.b16 %v843
    %v3864 = vunpack.c.l.b16 %v844
    %v3865 = vunpack.c.h.b16 %v844
    %v3866 = vunpack.c.l.b16 %v845
    %v3867 = vunpack.c.h.b16 %v845
    %v3868 = vunpack.c.l.b16 %v846
    %v3869 = vunpack.c.h.b16 %v846
    %v3870 = vunpack.c.l.b16 %v847
    %v3871 = vunpack.c.h.b16 %v847
    %v3872 = vunpack.c.l.b16 %v848
    %v3873 = vunpack.c.h.b16 %v848
    %v3874 = vunpack.c.l.b16 %v849
    %v3875 = vunpack.c.h.b16 %v849
    %v3876 = vunpack.c.l.b16 %v850
    %v3877 = vunpack.c.h.b16 %v850
    %v3878 = vunpack.c.l.b16 %v851
    %v3879 = vunpack.c.h.b16 %v851
    %v3880 = vunpack.c.l.b16 %v852
    %v3881 = vunpack.c.h.b16 %v852
    %v3882 = vunpack.c.l.b16 %v853
    %v3883 = vunpack.c.h.b16 %v853
    %v3884 = vunpack.c.l.b16 %v854
    %v3885 = vunpack.c.h.b16 %v854
    %v3886 = vunpack.c.l.b16 %v855
    %v3887 = vunpack.c.h.b16 %v855
    %v3888 = vunpack.c.l.b16 %v856
    %v3889 = vunpack.c.h.b16 %v856
    %v3890 = vunpack.c.l.b16 %v857
    %v3891 = vunpack.c.h.b16 %v857
    %v3892 = vunpack.c.l.b16 %v858
    %v3893 = vunpack.c.h.b16 %v858
    %v3894 = vunpack.c.l.b16 %v859
    %v3895 = vunpack.c.h.b16 %v859
    %v3896 = vunpack.c.l.b16 %v860
    %v3897 = vunpack.c.h.b16 %v860
    %v3898 = vunpack.c.l.b16 %v861
    %v3899 = vunpack.c.h.b16 %v861
    %v3900 = vunpack.c.l.b16 %v862
    %v3901 = vunpack.c.h.b16 %v862
    %v3902 = vunpack.c.l.b16 %v863
    %v3903 = vunpack.c.h.b16 %v863
    %v3904 = vunpack.c.l.b16 %v864
    %v3905 = vunpack.c.h.b16 %v864
    %v3906 = vunpack.c.l.b16 %v865
    %v3907 = vunpack.c.h.b16 %v865
    %v3908 = vunpack.c.l.b16 %v866
    %v3909 = vunpack.c.h.b16 %v866
    %v3910 = vunpack.c.l.b16 %v867
    %v3911 = vunpack.c.h.b16 %v867
    %v3912 = vunpack.c.l.b16 %v868
    %v3913 = vunpack.c.h.b16 %v868
    %v3914 = vunpack.c.l.b16 %v869
    %v3915 = vunpack.c.h.b16 %v869
    %v3916 = vunpack.c.l.b16 %v870
    %v3917 = vunpack.c.h.b16 %v870
    %v3918 = vunpack.c.l.b16 %v871
    %v3919 = vunpack.c.h.b16 %v871
    %v3920 = vunpack.c.l.b16 %v872
    %v3921 = vunpack.c.h.b16 %v872
    %v3922 = vunpack.c.l.b16 %v873
    %v3923 = vunpack.c.h.b16 %v873
    %v3924 = vunpack.c.l.b16 %v874
    %v3925 = vunpack.c.h.b16 %v874
    %v3926 = vunpack.c.l.b16 %v875
    %v3927 = vunpack.c.h.b16 %v875
    %v3928 = vunpack.c.l.b16 %v876
    %v3929 = vunpack.c.h.b16 %v876
    %v3930 = vunpack.c.l.b16 %v877
    %v3931 = vunpack.c.h.b16 %v877
    %v3932 = vunpack.c.l.b16 %v878
    %v3933 = vunpack.c.h.b16 %v878
    %v3934 = vunpack.c.l.b16 %v879
    %v3935 = vunpack.c.h.b16 %v879
    %v3936 = vunpack.c.l.b16 %v880
    %v3937 = vunpack.c.h.b16 %v880
    %v3938 = vunpack.c.l.b16 %v881
    %v3939 = vunpack.c.h.b16 %v881
    %v3940 = vunpack.c.l.b16 %v882
    %v3941 = vunpack.c.h.b16 %v882
    %v3942 = vunpack.c.l.b16 %v883
    %v3943 = vunpack.c.h.b16 %v883
    %v3944 = vunpack.c.l.b16 %v884
    %v3945 = vunpack.c.h.b16 %v884
    %v3946 = vunpack.c.l.b16 %v885
    %v3947 = vunpack.c.h.b16 %v885
    %v3948 = vunpack.c.l.b16 %v886
    %v3949 = vunpack.c.h.b16 %v886
    %v3950 = vunpack.c.l.b16 %v887
    %v3951 = vunpack.c.h.b16 %v887
    %v3952 = vunpack.c.l.b16 %v888
    %v3953 = vunpack.c.h.b16 %v888
    %v3954 = vunpack.c.l.b16 %v889
    %v3955 = vunpack.c.h.b16 %v889
    %v3956 = vunpack.c.l.b16 %v890
    %v3957 = vunpack.c.h.b16 %v890
    %v3958 = vunpack.c.l.b16 %v891
    %v3959 = vunpack.c.h.b16 %v891
    %v3960 = vunpack.c.l.b16 %v892
    %v3961 = vunpack.c.h.b16 %v892
    %v3962 = vunpack.c.l.b16 %v893
    %v3963 = vunpack.c.h.b16 %v893
    %v3964 = vunpack.c.l.b16 %v894
    %v3965 = vunpack.c.h.b16 %v894
    %v3966 = vunpack.c.l.b16 %v895
    %v3967 = vunpack.c.h.b16 %v895
    %v3968 = vunpack.c.l.b16 %v896
    %v3969 = vunpack.c.h.b16 %v896
    %v3970 = vunpack.c.l.b16 %v897
    %v3971 = vunpack.c.h.b16 %v897
    %v3972 = vunpack.c.l.b16 %v898
    %v3973 = vunpack.c.h.b16 %v898
    %v3974 = vunpack.c.l.b16 %v899
    %v3975 = vunpack.c.h.b16 %v899
    %v3976 = vunpack.c.l.b16 %v900
    %v3977 = vunpack.c.h.b16 %v900
    %v3978 = vunpack.c.l.b16 %v901
    %v3979 = vunpack.c.h.b16 %v901
    %v3980 = vunpack.c.l.b16 %v902
    %v3981 = vunpack.c.h.b16 %v902
    %v3982 = vunpack.c.l.b16 %v903
    %v3983 = vunpack.c.h.b16 %v903
    %v3984 = vunpack.c.l.b16 %v904
    %v3985 = vunpack.c.h.b16 %v904
    %v3986 = vunpack.c.l.b16 %v905
    %v3987 = vunpack.c.h.b16 %v905
    %v3988 = vunpack.c.l.b16 %v906
    %v3989 = vunpack.c.h.b16 %v906
    %v3990 = vunpack.c.l.b16 %v907
    %v3991 = vunpack.c.h.b16 %v907
    %v3992 = vunpack.c.l.b16 %v908
    %v3993 = vunpack.c.h.b16 %v908
    %v3994 = vunpack.c.l.b16 %v909
    %v3995 = vunpack.c.h.b16 %v909
    %v3996 = vunpack.c.l.b16 %v910
    %v3997 = vunpack.c.h.b16 %v910
    %v3998 = vunpack.c.l.b16 %v911
    %v3999 = vunpack.c.h.b16 %v911
    %v4000 = vunpack.c.l.b16 %v912
    %v4001 = vunpack.c.h.b16 %v912
    %v4002 = vunpack.c.l.b16 %v913
    %v4003 = vunpack.c.h.b16 %v913
    %v4004 = vunpack.c.l.b16 %v914
    %v4005 = vunpack.c.h.b16 %v914
    %v4006 = vunpack.c.l.b16 %v915
    %v4007 = vunpack.c.h.b16 %v915
    %v4008 = vunpack.c.l.b16 %v916
    %v4009 = vunpack.c.h.b16 %v916
    %v4010 = vunpack.c.l.b16 %v917
    %v4011 = vunpack.c.h.b16 %v917
    %v4012 = vunpack.c.l.b16 %v918
    %v4013 = vunpack.c.h.b16 %v918
    %v4014 = vunpack.c.l.b16 %v919
    %v4015 = vunpack.c.h.b16 %v919
    %v4016 = vunpack.c.l.b16 %v920
    %v4017 = vunpack.c.h.b16 %v920
    %v4018 = vunpack.c.l.b16 %v921
    %v4019 = vunpack.c.h.b16 %v921
    %v4020 = vunpack.c.l.b16 %v922
    %v4021 = vunpack.c.h.b16 %v922
    %v4022 = vunpack.c.l.b16 %v923
    %v4023 = vunpack.c.h.b16 %v923
    %v4024 = vunpack.c.l.b16 %v924
    %v4025 = vunpack.c.h.b16 %v924
    %v4026 = vunpack.c.l.b16 %v925
    %v4027 = vunpack.c.h.b16 %v925
    %v4028 = vunpack.c.l.b16 %v926
    %v4029 = vunpack.c.h.b16 %v926
    %v4030 = vunpack.c.l.b16 %v927
    %v4031 = vunpack.c.h.b16 %v927
    %v4032 = vunpack.c.l.b16 %v928
    %v4033 = vunpack.c.h.b16 %v928
    %v4034 = vunpack.c.l.b16 %v929
    %v4035 = vunpack.c.h.b16 %v929
    %v4036 = vunpack.c.l.b16 %v930
    %v4037 = vunpack.c.h.b16 %v930
    %v4038 = vunpack.c.l.b16 %v931
    %v4039 = vunpack.c.h.b16 %v931
    %v4040 = vunpack.c.l.b16 %v932
    %v4041 = vunpack.c.h.b16 %v932
    %v4042 = vunpack.c.l.b16 %v933
    %v4043 = vunpack.c.h.b16 %v933
    %v4044 = vunpack.c.l.b16 %v934
    %v4045 = vunpack.c.h.b16 %v934
    %v4046 = vunpack.c.l.b16 %v935
    %v4047 = vunpack.c.h.b16 %v935
    %v4048 = vunpack.c.l.b16 %v936
    %v4049 = vunpack.c.h.b16 %v936
    %v4050 = vunpack.c.l.b16 %v937
    %v4051 = vunpack.c.h.b16 %v937
    %v4052 = vunpack.c.l.b16 %v938
    %v4053 = vunpack.c.h.b16 %v938
    %v4054 = vunpack.c.l.b16 %v939
    %v4055 = vunpack.c.h.b16 %v939
    %v4056 = vunpack.c.l.b16 %v940
    %v4057 = vunpack.c.h.b16 %v940
    %v4058 = vunpack.c.l.b16 %v941
    %v4059 = vunpack.c.h.b16 %v941
    %v4060 = vunpack.c.l.b16 %v942
    %v4061 = vunpack.c.h.b16 %v942
    %v4062 = vunpack.c.l.b16 %v943
    %v4063 = vunpack.c.h.b16 %v943
    %v4064 = vunpack.c.l.b16 %v944
    %v4065 = vunpack.c.h.b16 %v944
    %v4066 = vunpack.c.l.b16 %v945
    %v4067 = vunpack.c.h.b16 %v945
    %v4068 = vunpack.c.l.b16 %v946
    %v4069 = vunpack.c.h.b16 %v946
    %v4070 = vunpack.c.l.b16 %v947
    %v4071 = vunpack.c.h.b16 %v947
    %v4072 = vunpack.c.l.b16 %v948
    %v4073 = vunpack.c.h.b16 %v948
    %v4074 = vunpack.c.l.b16 %v949
    %v4075 = vunpack.c.h.b16 %v949
    %v4076 = vunpack.c.l.b16 %v950
    %v4077 = vunpack.c.h.b16 %v950
    %v4078 = vunpack.c.l.b16 %v951
    %v4079 = vunpack.c.h.b16 %v951
    %v4080 = vunpack.c.l.b16 %v952
    %v4081 = vunpack.c.h.b16 %v952
    %v4082 = vunpack.c.l.b16 %v953
    %v4083 = vunpack.c.h.b16 %v953
    %v4084 = vunpack.c.l.b16 %v954
    %v4085 = vunpack.c.h.b16 %v954
    %v4086 = vunpack.c.l.b16 %v955
    %v4087 = vunpack.c.h.b16 %v955
    %v4088 = vunpack.c.l.b16 %v956
    %v4089 = vunpack.c.h.b16 %v956
    %v4090 = vunpack.c.l.b16 %v957
    %v4091 = vunpack.c.h.b16 %v957
    %v4092 = vunpack.c.l.b16 %v958
    %v4093 = vunpack.c.h.b16 %v958
    %v4094 = vunpack.c.l.b16 %v959
    %v4095 = vunpack.c.h.b16 %v959
    %v4096 = vunpack.c.l.b16 %v960
    %v4097 = vunpack.c.h.b16 %v960
    %v4098 = vunpack.c.l.b16 %v961
    %v4099 = vunpack.c.h.b16 %v961
    %v4100 = vunpack.c.l.b16 %v962
    %v4101 = vunpack.c.h.b16 %v962
    %v4102 = vunpack.c.l.b16 %v963
    %v4103 = vunpack.c.h.b16 %v963
    %v4104 = vunpack.c.l.b16 %v964
    %v4105 = vunpack.c.h.b16 %v964
    %v4106 = vunpack.c.l.b16 %v965
    %v4107 = vunpack.c.h.b16 %v965
    %v4108 = vunpack.c.l.b16 %v966
    %v4109 = vunpack.c.h.b16 %v966
    %v4110 = vunpack.c.l.b16 %v967
    %v4111 = vunpack.c.h.b16 %v967
    %v4112 = vunpack.c.l.b16 %v968
    %v4113 = vunpack.c.h.b16 %v968
    %v4114 = vunpack.c.l.b16 %v969
    %v4115 = vunpack.c.h.b16 %v969
    %v4116 = vunpack.c.l.b16 %v970
    %v4117 = vunpack.c.h.b16 %v970
    %v4118 = vunpack.c.l.b16 %v971
    %v4119 = vunpack.c.h.b16 %v971
    %v4120 = vunpack.c.l.b16 %v972
    %v4121 = vunpack.c.h.b16 %v972
    %v4122 = vunpack.c.l.b16 %v973
    %v4123 = vunpack.c.h.b16 %v973
    %v4124 = vunpack.c.l.b16 %v974
    %v4125 = vunpack.c.h.b16 %v974
    %v4126 = vunpack.c.l.b16 %v975
    %v4127 = vunpack.c.h.b16 %v975
    %v4128 = vunpack.c.l.b16 %v976
    %v4129 = vunpack.c.h.b16 %v976
    %v4130 = vunpack.c.l.b16 %v977
    %v4131 = vunpack.c.h.b16 %v977
    %v4132 = vunpack.c.l.b16 %v978
    %v4133 = vunpack.c.h.b16 %v978
    %v4134 = vunpack.c.l.b16 %v979
    %v4135 = vunpack.c.h.b16 %v979
    %v4136 = vunpack.c.l.b16 %v980
    %v4137 = vunpack.c.h.b16 %v980
    %v4138 = vunpack.c.l.b16 %v981
    %v4139 = vunpack.c.h.b16 %v981
    %v4140 = vunpack.c.l.b16 %v982
    %v4141 = vunpack.c.h.b16 %v982
    %v4142 = vunpack.c.l.b16 %v983
    %v4143 = vunpack.c.h.b16 %v983
    %v4144 = vunpack.c.l.b16 %v984
    %v4145 = vunpack.c.h.b16 %v984
    %v4146 = vunpack.c.l.b16 %v985
    %v4147 = vunpack.c.h.b16 %v985
    %v4148 = vunpack.c.l.b16 %v986
    %v4149 = vunpack.c.h.b16 %v986
    %v4150 = vunpack.c.l.b16 %v987
    %v4151 = vunpack.c.h.b16 %v987
    %v4152 = vunpack.c.l.b16 %v988
    %v4153 = vunpack.c.h.b16 %v988
    %v4154 = vunpack.c.l.b16 %v989
    %v4155 = vunpack.c.h.b16 %v989
    %v4156 = vunpack.c.l.b16 %v990
    %v4157 = vunpack.c.h.b16 %v990
    %v4158 = vunpack.c.l.b16 %v991
    %v4159 = vunpack.c.h.b16 %v991
    %v4160 = vunpack.c.l.b16 %v992
    %v4161 = vunpack.c.h.b16 %v992
    %v4162 = vunpack.c.l.b16 %v993
    %v4163 = vunpack.c.h.b16 %v993
    %v4164 = vunpack.c.l.b16 %v994
    %v4165 = vunpack.c.h.b16 %v994
    %v4166 = vunpack.c.l.b16 %v995
    %v4167 = vunpack.c.h.b16 %v995
    %v4168 = vunpack.c.l.b16 %v996
    %v4169 = vunpack.c.h.b16 %v996
    %v4170 = vunpack.c.l.b16 %v997
    %v4171 = vunpack.c.h.b16 %v997
    %v4172 = vunpack.c.l.b16 %v998
    %v4173 = vunpack.c.h.b16 %v998
    %v4174 = vunpack.c.l.b16 %v999
    %v4175 = vunpack.c.h.b16 %v999
    %v4176 = vunpack.c.l.b16 %v1000
    %v4177 = vunpack.c.h.b16 %v1000
    %v4178 = vunpack.c.l.b16 %v1001
    %v4179 = vunpack.c.h.b16 %v1001
    %v4180 = vunpack.c.l.b16 %v1002
    %v4181 = vunpack.c.h.b16 %v1002
    %v4182 = vunpack.c.l.b16 %v1003
    %v4183 = vunpack.c.h.b16 %v1003
    %v4184 = vunpack.c.l.b16 %v1004
    %v4185 = vunpack.c.h.b16 %v1004
    %v4186 = vunpack.c.l.b16 %v1005
    %v4187 = vunpack.c.h.b16 %v1005
    %v4188 = vunpack.c.l.b16 %v1006
    %v4189 = vunpack.c.h.b16 %v1006
    %v4190 = vunpack.c.l.b16 %v1007
    %v4191 = vunpack.c.h.b16 %v1007
    %v4192 = vunpack.c.l.b16 %v1008
    %v4193 = vunpack.c.h.b16 %v1008
    %v4194 = vunpack.c.l.b16 %v1009
    %v4195 = vunpack.c.h.b16 %v1009
    %v4196 = vunpack.c.l.b16 %v1010
    %v4197 = vunpack.c.h.b16 %v1010
    %v4198 = vunpack.c.l.b16 %v1011
    %v4199 = vunpack.c.h.b16 %v1011
    %v4200 = vunpack.c.l.b16 %v1012
    %v4201 = vunpack.c.h.b16 %v1012
    %v4202 = vunpack.c.l.b16 %v1013
    %v4203 = vunpack.c.h.b16 %v1013
    %v4204 = vunpack.c.l.b16 %v1014
    %v4205 = vunpack.c.h.b16 %v1014
    %v4206 = vunpack.c.l.b16 %v1015
    %v4207 = vunpack.c.h.b16 %v1015
    %v4208 = vunpack.c.l.b16 %v1016
    %v4209 = vunpack.c.h.b16 %v1016
    %v4210 = vunpack.c.l.b16 %v1017
    %v4211 = vunpack.c.h.b16 %v1017
    %v4212 = vunpack.c.l.b16 %v1018
    %v4213 = vunpack.c.h.b16 %v1018
    %v4214 = vunpack.c.l.b16 %v1019
    %v4215 = vunpack.c.h.b16 %v1019
    %v4216 = vunpack.c.l.b16 %v1020
    %v4217 = vunpack.c.h.b16 %v1020
    %v4218 = vunpack.c.l.b16 %v1021
    %v4219 = vunpack.c.h.b16 %v1021
    %v4220 = vunpack.c.l.b16 %v1022
    %v4221 = vunpack.c.h.b16 %v1022
    %v4222 = vunpack.c.l.b16 %v1023
    %v4223 = vunpack.c.h.b16 %v1023
    %v4224 = vunpack.c.l.b16 %v1024
    %v4225 = vunpack.c.h.b16 %v1024
    %v4226 = vunpack.c.l.b16 %v1025
    %v4227 = vunpack.c.h.b16 %v1025
    %v4228 = vunpack.c.l.b16 %v1026
    %v4229 = vunpack.c.h.b16 %v1026
    %v4230 = vunpack.c.l.b16 %v1027
    %v4231 = vunpack.c.h.b16 %v1027
    %v4232 = vunpack.c.l.b16 %v1028
    %v4233 = vunpack.c.h.b16 %v1028
    %v4234 = vunpack.c.l.b16 %v1029
    %v4235 = vunpack.c.h.b16 %v1029
    %v4236 = vunpack.c.l.b16 %v1030
    %v4237 = vunpack.c.h.b16 %v1030
    %v4238 = vunpack.c.l.b16 %v1031
    %v4239 = vunpack.c.h.b16 %v1031
    %v4240 = vunpack.c.l.b16 %v1032
    %v4241 = vunpack.c.h.b16 %v1032
    %v4242 = vunpack.c.l.b16 %v1033
    %v4243 = vunpack.c.h.b16 %v1033
    %v4244 = vunpack.c.l.b16 %v1034
    %v4245 = vunpack.c.h.b16 %v1034
    %v4246 = vunpack.c.l.b16 %v1035
    %v4247 = vunpack.c.h.b16 %v1035
    %v4248 = vunpack.c.l.b16 %v1036
    %v4249 = vunpack.c.h.b16 %v1036
    %v4250 = vunpack.c.l.b16 %v1037
    %v4251 = vunpack.c.h.b16 %v1037
    %v4252 = vunpack.c.l.b16 %v1038
    %v4253 = vunpack.c.h.b16 %v1038
    %v4254 = vunpack.c.l.b16 %v1039
    %v4255 = vunpack.c.h.b16 %v1039
    %v4256 = vunpack.c.l.b16 %v1040
    %v4257 = vunpack.c.h.b16 %v1040
    %v4258 = vunpack.c.l.b16 %v1041
    %v4259 = vunpack.c.h.b16 %v1041
    %v4260 = vunpack.c.l.b16 %v1042
    %v4261 = vunpack.c.h.b16 %v1042
    %v4262 = vunpack.c.l.b16 %v1043
    %v4263 = vunpack.c.h.b16 %v1043
    %v4264 = vunpack.c.l.b16 %v1044
    %v4265 = vunpack.c.h.b16 %v1044
    %v4266 = vunpack.c.l.b16 %v1045
    %v4267 = vunpack.c.h.b16 %v1045
    %v4268 = vunpack.c.l.b16 %v1046
    %v4269 = vunpack.c.h.b16 %v1046
    %v4270 = vunpack.c.l.b16 %v1047
    %v4271 = vunpack.c.h.b16 %v1047
    %v4272 = vunpack.c.l.b16 %v1048
    %v4273 = vunpack.c.h.b16 %v1048
    %v4274 = vunpack.c.l.b16 %v1049
    %v4275 = vunpack.c.h.b16 %v1049
    %v4276 = vunpack.c.l.b16 %v1050
    %v4277 = vunpack.c.h.b16 %v1050
    %v4278 = vunpack.c.l.b16 %v1051
    %v4279 = vunpack.c.h.b16 %v1051
    %v4280 = vunpack.c.l.b16 %v1052
    %v4281 = vunpack.c.h.b16 %v1052
    %v4282 = vunpack.c.l.b16 %v1053
    %v4283 = vunpack.c.h.b16 %v1053
    %v4284 = vpack.c.b16 %v2244, %v2236
    %v4285 = vpack.c.b16 %v2245, %v2237
    %v4286 = vpack.c.b16 %v2246, %v2238
    %v4287 = vpack.c.b16 %v2247, %v2239
    %v4288 = vpack.c.b16 %v2248, %v2240
    %v4289 = vpack.c.b16 %v2249, %v2241
    %v4290 = vpack.c.b16 %v2250, %v2242
    %v4291 = vpack.c.b16 %v2251, %v2243
    %v4292 = vpack.c.b16 %v2260, %v2252
    %v4293 = vpack.c.b16 %v2261, %v2253
    %v4294 = vpack.c.b16 %v2262, %v2254
    %v4295 = vpack.c.b16 %v2263, %v2255
    %v4296 = vpack.c.b16 %v2264, %v2256
    %v4297 = vpack.c.b16 %v2265, %v2257
    %v4298 = vpack.c.b16 %v2266, %v2258
    %v4299 = vpack.c.b16 %v2267, %v2259
    %v4300 = vpack.c.b16 %v2276, %v2268
    %v4301 = vpack.c.b16 %v2277, %v2269
    %v4302 = vpack.c.b16 %v2278, %v2270
    %v4303 = vpack.c.b16 %v2279, %v2271
    %v4304 = vpack.c.b16 %v2280, %v2272
    %v4305 = vpack.c.b16 %v2281, %v2273
    %v4306 = vpack.c.b16 %v2282, %v2274
    %v4307 = vpack.c.b16 %v2283, %v2275
    %v4308 = vpack.c.b16 %v2292, %v2284
    %v4309 = vpack.c.b16 %v2293, %v2285
    %v4310 = vpack.c.b16 %v2294, %v2286
    %v4311 = vpack.c.b16 %v2295, %v2287
    %v4312 = vpack.c.b16 %v2296, %v2288
    %v4313 = vpack.c.b16 %v2297, %v2289
    %v4314 = vpack.c.b16 %v2298, %v2290
    %v4315 = vpack.c.b16 %v2299, %v2291
    %v4316 = vpack.c.b16 %v2308, %v2300
    %v4317 = vpack.c.b16 %v2309, %v2301
    %v4318 = vpack.c.b16 %v2310, %v2302
    %v4319 = vpack.c.b16 %v2311, %v2303
    %v4320 = vpack.c.b16 %v2312, %v2304
    %v4321 = vpack.c.b16 %v2313, %v2305
    %v4322 = vpack.c.b16 %v2314, %v2306
    %v4323 = vpack.c.b16 %v2315, %v2307
    %v4324 = vpack.c.b16 %v2324, %v2316
    %v4325 = vpack.c.b16 %v2325, %v2317
    %v4326 = vpack.c.b16 %v2326, %v2318
    %v4327 = vpack.c.b16 %v2327, %v2319
    %v4328 = vpack.c.b16 %v2328, %v2320
    %v4329 = vpack.c.b16 %v2329, %v2321
    %v4330 = vpack.c.b16 %v2330, %v2322
    %v4331 = vpack.c.b16 %v2331, %v2323
    %v4332 = vpack.c.b16 %v2340, %v2332
    %v4333 = vpack.c.b16 %v2341, %v2333
    %v4334 = vpack.c.b16 %v2342, %v2334
    %v4335 = vpack.c.b16 %v2343, %v2335
    %v4336 = vpack.c.b16 %v2344, %v2336
    %v4337 = vpack.c.b16 %v2345, %v2337
    %v4338 = vpack.c.b16 %v2346, %v2338
    %v4339 = vpack.c.b16 %v2347, %v2339
    %v4340 = vpack.c.b16 %v2356, %v2348
    %v4341 = vpack.c.b16 %v2357, %v2349
    %v4342 = vpack.c.b16 %v2358, %v2350
    %v4343 = vpack.c.b16 %v2359, %v2351
    %v4344 = vpack.c.b16 %v2360, %v2352
    %v4345 = vpack.c.b16 %v2361, %v2353
    %v4346 = vpack.c.b16 %v2362, %v2354
    %v4347 = vpack.c.b16 %v2363, %v2355
    %v4348 = vpack.c.b16 %v2372, %v2364
    %v4349 = vpack.c.b16 %v2373, %v2365
    %v4350 = vpack.c.b16 %v2374, %v2366
    %v4351 = vpack.c.b16 %v2375, %v2367
    %v4352 = vpack.c.b16 %v2376, %v2368
    %v4353 = vpack.c.b16 %v2377, %v2369
    %v4354 = vpack.c.b16 %v2378, %v2370
    %v4355 = vpack.c.b16 %v2379, %v2371
    %v4356 = vpack.c.b16 %v2388, %v2380
    %v4357 = vpack.c.b16 %v2389, %v2381
    %v4358 = vpack.c.b16 %v2390, %v2382
    %v4359 = vpack.c.b16 %v2391, %v2383
    %v4360 = vpack.c.b16 %v2392, %v2384
    %v4361 = vpack.c.b16 %v2393, %v2385
    %v4362 = vpack.c.b16 %v2394, %v2386
    %v4363 = vpack.c.b16 %v2395, %v2387
    %v4364 = vpack.c.b16 %v2404, %v2396
    %v4365 = vpack.c.b16 %v2405, %v2397
    %v4366 = vpack.c.b16 %v2406, %v2398
    %v4367 = vpack.c.b16 %v2407, %v2399
    %v4368 = vpack.c.b16 %v2408, %v2400
    %v4369 = vpack.c.b16 %v2409, %v2401
    %v4370 = vpack.c.b16 %v2410, %v2402
    %v4371 = vpack.c.b16 %v2411, %v2403
    %v4372 = vpack.c.b16 %v2420, %v2412
    %v4373 = vpack.c.b16 %v2421, %v2413
    %v4374 = vpack.c.b16 %v2422, %v2414
    %v4375 = vpack.c.b16 %v2423, %v2415
    %v4376 = vpack.c.b16 %v2424, %v2416
    %v4377 = vpack.c.b16 %v2425, %v2417
    %v4378 = vpack.c.b16 %v2426, %v2418
    %v4379 = vpack.c.b16 %v2427, %v2419
    %v4380 = vpack.c.b16 %v2436, %v2428
    %v4381 = vpack.c.b16 %v2437, %v2429
    %v4382 = vpack.c.b16 %v2438, %v2430
    %v4383 = vpack.c.b16 %v2439, %v2431
    %v4384 = vpack.c.b16 %v2440, %v2432
    %v4385 = vpack.c.b16 %v2441, %v2433
    %v4386 = vpack.c.b16 %v2442, %v2434
    %v4387 = vpack.c.b16 %v2443, %v2435
    %v4388 = vpack.c.b16 %v2452, %v2444
    %v4389 = vpack.c.b16 %v2453, %v2445
    %v4390 = vpack.c.b16 %v2454, %v2446
    %v4391 = vpack.c.b16 %v2455, %v2447
    %v4392 = vpack.c.b16 %v2456, %v2448
    %v4393 = vpack.c.b16 %v2457, %v2449
    %v4394 = vpack.c.b16 %v2458, %v2450
    %v4395 = vpack.c.b16 %v2459, %v2451
    %v4396 = vpack.c.b16 %v2468, %v2460
    %v4397 = vpack.c.b16 %v2469, %v2461
    %v4398 = vpack.c.b16 %v2470, %v2462
    %v4399 = vpack.c.b16 %v2471, %v2463
    %v4400 = vpack.c.b16 %v2472, %v2464
    %v4401 = vpack.c.b16 %v2473, %v2465
    %v4402 = vpack.c.b16 %v2474, %v2466
    %v4403 = vpack.c.b16 %v2475, %v2467
    %v4404 = vpack.c.b16 %v2484, %v2476
    %v4405 = vpack.c.b16 %v2485, %v2477
    %v4406 = vpack.c.b16 %v2486, %v2478
    %v4407 = vpack.c.b16 %v2487, %v2479
    %v4408 = vpack.c.b16 %v2488, %v2480
    %v4409 = vpack.c.b16 %v2489, %v2481
    %v4410 = vpack.c.b16 %v2490, %v2482
    %v4411 = vpack.c.b16 %v2491, %v2483
    %v4412 = vpack.c.b16 %v2500, %v2492
    %v4413 = vpack.c.b16 %v2501, %v2493
    %v4414 = vpack.c.b16 %v2502, %v2494
    %v4415 = vpack.c.b16 %v2503, %v2495
    %v4416 = vpack.c.b16 %v2504, %v2496
    %v4417 = vpack.c.b16 %v2505, %v2497
    %v4418 = vpack.c.b16 %v2506, %v2498
    %v4419 = vpack.c.b16 %v2507, %v2499
    %v4420 = vpack.c.b16 %v2516, %v2508
    %v4421 = vpack.c.b16 %v2517, %v2509
    %v4422 = vpack.c.b16 %v2518, %v2510
    %v4423 = vpack.c.b16 %v2519, %v2511
    %v4424 = vpack.c.b16 %v2520, %v2512
    %v4425 = vpack.c.b16 %v2521, %v2513
    %v4426 = vpack.c.b16 %v2522, %v2514
    %v4427 = vpack.c.b16 %v2523, %v2515
    %v4428 = vpack.c.b16 %v2532, %v2524
    %v4429 = vpack.c.b16 %v2533, %v2525
    %v4430 = vpack.c.b16 %v2534, %v2526
    %v4431 = vpack.c.b16 %v2535, %v2527
    %v4432 = vpack.c.b16 %v2536, %v2528
    %v4433 = vpack.c.b16 %v2537, %v2529
    %v4434 = vpack.c.b16 %v2538, %v2530
    %v4435 = vpack.c.b16 %v2539, %v2531
    %v4436 = vpack.c.b16 %v2548, %v2540
    %v4437 = vpack.c.b16 %v2549, %v2541
    %v4438 = vpack.c.b16 %v2550, %v2542
    %v4439 = vpack.c.b16 %v2551, %v2543
    %v4440 = vpack.c.b16 %v2552, %v2544
    %v4441 = vpack.c.b16 %v2553, %v2545
    %v4442 = vpack.c.b16 %v2554, %v2546
    %v4443 = vpack.c.b16 %v2555, %v2547
    %v4444 = vpack.c.b16 %v2564, %v2556
    %v4445 = vpack.c.b16 %v2565, %v2557
    %v4446 = vpack.c.b16 %v2566, %v2558
    %v4447 = vpack.c.b16 %v2567, %v2559
    %v4448 = vpack.c.b16 %v2568, %v2560
    %v4449 = vpack.c.b16 %v2569, %v2561
    %v4450 = vpack.c.b16 %v2570, %v2562
    %v4451 = vpack.c.b16 %v2571, %v2563
    %v4452 = vpack.c.b16 %v2580, %v2572
    %v4453 = vpack.c.b16 %v2581, %v2573
    %v4454 = vpack.c.b16 %v2582, %v2574
    %v4455 = vpack.c.b16 %v2583, %v2575
    %v4456 = vpack.c.b16 %v2584, %v2576
    %v4457 = vpack.c.b16 %v2585, %v2577
    %v4458 = vpack.c.b16 %v2586, %v2578
    %v4459 = vpack.c.b16 %v2587, %v2579
    %v4460 = vpack.c.b16 %v2596, %v2588
    %v4461 = vpack.c.b16 %v2597, %v2589
    %v4462 = vpack.c.b16 %v2598, %v2590
    %v4463 = vpack.c.b16 %v2599, %v2591
    %v4464 = vpack.c.b16 %v2600, %v2592
    %v4465 = vpack.c.b16 %v2601, %v2593
    %v4466 = vpack.c.b16 %v2602, %v2594
    %v4467 = vpack.c.b16 %v2603, %v2595
    %v4468 = vpack.c.b16 %v2612, %v2604
    %v4469 = vpack.c.b16 %v2613, %v2605
    %v4470 = vpack.c.b16 %v2614, %v2606
    %v4471 = vpack.c.b16 %v2615, %v2607
    %v4472 = vpack.c.b16 %v2616, %v2608
    %v4473 = vpack.c.b16 %v2617, %v2609
    %v4474 = vpack.c.b16 %v2618, %v2610
    %v4475 = vpack.c.b16 %v2619, %v2611
    %v4476 = vpack.c.b16 %v2628, %v2620
    %v4477 = vpack.c.b16 %v2629, %v2621
    %v4478 = vpack.c.b16 %v2630, %v2622
    %v4479 = vpack.c.b16 %v2631, %v2623
    %v4480 = vpack.c.b16 %v2632, %v2624
    %v4481 = vpack.c.b16 %v2633, %v2625
    %v4482 = vpack.c.b16 %v2634, %v2626
    %v4483 = vpack.c.b16 %v2635, %v2627
    %v4484 = vpack.c.b16 %v2644, %v2636
    %v4485 = vpack.c.b16 %v2645, %v2637
    %v4486 = vpack.c.b16 %v2646, %v2638
    %v4487 = vpack.c.b16 %v2647, %v2639
    %v4488 = vpack.c.b16 %v2648, %v2640
    %v4489 = vpack.c.b16 %v2649, %v2641
    %v4490 = vpack.c.b16 %v2650, %v2642
    %v4491 = vpack.c.b16 %v2651, %v2643
    %v4492 = vpack.c.b16 %v2660, %v2652
    %v4493 = vpack.c.b16 %v2661, %v2653
    %v4494 = vpack.c.b16 %v2662, %v2654
    %v4495 = vpack.c.b16 %v2663, %v2655
    %v4496 = vpack.c.b16 %v2664, %v2656
    %v4497 = vpack.c.b16 %v2665, %v2657
    %v4498 = vpack.c.b16 %v2666, %v2658
    %v4499 = vpack.c.b16 %v2667, %v2659
    %v4500 = vpack.c.b16 %v2676, %v2668
    %v4501 = vpack.c.b16 %v2677, %v2669
    %v4502 = vpack.c.b16 %v2678, %v2670
    %v4503 = vpack.c.b16 %v2679, %v2671
    %v4504 = vpack.c.b16 %v2680, %v2672
    %v4505 = vpack.c.b16 %v2681, %v2673
    %v4506 = vpack.c.b16 %v2682, %v2674
    %v4507 = vpack.c.b16 %v2683, %v2675
    %v4508 = vpack.c.b16 %v2692, %v2684
    %v4509 = vpack.c.b16 %v2693, %v2685
    %v4510 = vpack.c.b16 %v2694, %v2686
    %v4511 = vpack.c.b16 %v2695, %v2687
    %v4512 = vpack.c.b16 %v2696, %v2688
    %v4513 = vpack.c.b16 %v2697, %v2689
    %v4514 = vpack.c.b16 %v2698, %v2690
    %v4515 = vpack.c.b16 %v2699, %v2691
    %v4516 = vpack.c.b16 %v2708, %v2700
    %v4517 = vpack.c.b16 %v2709, %v2701
    %v4518 = vpack.c.b16 %v2710, %v2702
    %v4519 = vpack.c.b16 %v2711, %v2703
    %v4520 = vpack.c.b16 %v2712, %v2704
    %v4521 = vpack.c.b16 %v2713, %v2705
    %v4522 = vpack.c.b16 %v2714, %v2706
    %v4523 = vpack.c.b16 %v2715, %v2707
    %v4524 = vpack.c.b16 %v2724, %v2716
    %v4525 = vpack.c.b16 %v2725, %v2717
    %v4526 = vpack.c.b16 %v2726, %v2718
    %v4527 = vpack.c.b16 %v2727, %v2719
    %v4528 = vpack.c.b16 %v2728, %v2720
    %v4529 = vpack.c.b16 %v2729, %v2721
    %v4530 = vpack.c.b16 %v2730, %v2722
    %v4531 = vpack.c.b16 %v2731, %v2723
    %v4532 = vpack.c.b16 %v2740, %v2732
    %v4533 = vpack.c.b16 %v2741, %v2733
    %v4534 = vpack.c.b16 %v2742, %v2734
    %v4535 = vpack.c.b16 %v2743, %v2735
    %v4536 = vpack.c.b16 %v2744, %v2736
    %v4537 = vpack.c.b16 %v2745, %v2737
    %v4538 = vpack.c.b16 %v2746, %v2738
    %v4539 = vpack.c.b16 %v2747, %v2739
    %v4540 = vpack.c.b16 %v2756, %v2748
    %v4541 = vpack.c.b16 %v2757, %v2749
    %v4542 = vpack.c.b16 %v2758, %v2750
    %v4543 = vpack.c.b16 %v2759, %v2751
    %v4544 = vpack.c.b16 %v2760, %v2752
    %v4545 = vpack.c.b16 %v2761, %v2753
    %v4546 = vpack.c.b16 %v2762, %v2754
    %v4547 = vpack.c.b16 %v2763, %v2755
    %v4548 = vpack.c.b16 %v2772, %v2764
    %v4549 = vpack.c.b16 %v2773, %v2765
    %v4550 = vpack.c.b16 %v2774, %v2766
    %v4551 = vpack.c.b16 %v2775, %v2767
    %v4552 = vpack.c.b16 %v2776, %v2768
    %v4553 = vpack.c.b16 %v2777, %v2769
    %v4554 = vpack.c.b16 %v2778, %v2770
    %v4555 = vpack.c.b16 %v2779, %v2771
    %v4556 = vpack.c.b16 %v2788, %v2780
    %v4557 = vpack.c.b16 %v2789, %v2781
    %v4558 = vpack.c.b16 %v2790, %v2782
    %v4559 = vpack.c.b16 %v2791, %v2783
    %v4560 = vpack.c.b16 %v2792, %v2784
    %v4561 = vpack.c.b16 %v2793, %v2785
    %v4562 = vpack.c.b16 %v2794, %v2786
    %v4563 = vpack.c.b16 %v2795, %v2787
    %v4564 = vpack.c.b16 %v2804, %v2796
    %v4565 = vpack.c.b16 %v2805, %v2797
    %v4566 = vpack.c.b16 %v2806, %v2798
    %v4567 = vpack.c.b16 %v2807, %v2799
    %v4568 = vpack.c.b16 %v2808, %v2800
    %v4569 = vpack.c.b16 %v2809, %v2801
    %v4570 = vpack.c.b16 %v2810, %v2802
    %v4571 = vpack.c.b16 %v2811, %v2803
    %v4572 = vpack.c.b16 %v2820, %v2812
    %v4573 = vpack.c.b16 %v2821, %v2813
    %v4574 = vpack.c.b16 %v2822, %v2814
    %v4575 = vpack.c.b16 %v2823, %v2815
    %v4576 = vpack.c.b16 %v2824, %v2816
    %v4577 = vpack.c.b16 %v2825, %v2817
    %v4578 = vpack.c.b16 %v2826, %v2818
    %v4579 = vpack.c.b16 %v2827, %v2819
    %v4580 = vpack.c.b16 %v2836, %v2828
    %v4581 = vpack.c.b16 %v2837, %v2829
    %v4582 = vpack.c.b16 %v2838, %v2830
    %v4583 = vpack.c.b16 %v2839, %v2831
    %v4584 = vpack.c.b16 %v2840, %v2832
    %v4585 = vpack.c.b16 %v2841, %v2833
    %v4586 = vpack.c.b16 %v2842, %v2834
    %v4587 = vpack.c.b16 %v2843, %v2835
    %v4588 = vpack.c.b16 %v2852, %v2844
    %v4589 = vpack.c.b16 %v2853, %v2845
    %v4590 = vpack.c.b16 %v2854, %v2846
    %v4591 = vpack.c.b16 %v2855, %v2847
    %v4592 = vpack.c.b16 %v2856, %v2848
    %v4593 = vpack.c.b16 %v2857, %v2849
    %v4594 = vpack.c.b16 %v2858, %v2850
    %v4595 = vpack.c.b16 %v2859, %v2851
    %v4596 = vpack.c.b16 %v2868, %v2860
    %v4597 = vpack.c.b16 %v2869, %v2861
    %v4598 = vpack.c.b16 %v2870, %v2862
    %v4599 = vpack.c.b16 %v2871, %v2863
    %v4600 = vpack.c.b16 %v2872, %v2864
    %v4601 = vpack.c.b16 %v2873, %v2865
    %v4602 = vpack.c.b16 %v2874, %v2866
    %v4603 = vpack.c.b16 %v2875, %v2867
    %v4604 = vpack.c.b16 %v2884, %v2876
    %v4605 = vpack.c.b16 %v2885, %v2877
    %v4606 = vpack.c.b16 %v2886, %v2878
    %v4607 = vpack.c.b16 %v2887, %v2879
    %v4608 = vpack.c.b16 %v2888, %v2880
    %v4609 = vpack.c.b16 %v2889, %v2881
    %v4610 = vpack.c.b16 %v2890, %v2882
    %v4611 = vpack.c.b16 %v2891, %v2883
    %v4612 = vpack.c.b16 %v2900, %v2892
    %v4613 = vpack.c.b16 %v2901, %v2893
    %v4614 = vpack.c.b16 %v2902, %v2894
    %v4615 = vpack.c.b16 %v2903, %v2895
    %v4616 = vpack.c.b16 %v2904, %v2896
    %v4617 = vpack.c.b16 %v2905, %v2897
    %v4618 = vpack.c.b16 %v2906, %v2898
    %v4619 = vpack.c.b16 %v2907, %v2899
    %v4620 = vpack.c.b16 %v2916, %v2908
    %v4621 = vpack.c.b16 %v2917, %v2909
    %v4622 = vpack.c.b16 %v2918, %v2910
    %v4623 = vpack.c.b16 %v2919, %v2911
    %v4624 = vpack.c.b16 %v2920, %v2912
    %v4625 = vpack.c.b16 %v2921, %v2913
    %v4626 = vpack.c.b16 %v2922, %v2914
    %v4627 = vpack.c.b16 %v2923, %v2915
    %v4628 = vpack.c.b16 %v2932, %v2924
    %v4629 = vpack.c.b16 %v2933, %v2925
    %v4630 = vpack.c.b16 %v2934, %v2926
    %v4631 = vpack.c.b16 %v2935, %v2927
    %v4632 = vpack.c.b16 %v2936, %v2928
    %v4633 = vpack.c.b16 %v2937, %v2929
    %v4634 = vpack.c.b16 %v2938, %v2930
    %v4635 = vpack.c.b16 %v2939, %v2931
    %v4636 = vpack.c.b16 %v2948, %v2940
    %v4637 = vpack.c.b16 %v2949, %v2941
    %v4638 = vpack.c.b16 %v2950, %v2942
    %v4639 = vpack.c.b16 %v2951, %v2943
    %v4640 = vpack.c.b16 %v2952, %v2944
    %v4641 = vpack.c.b16 %v2953, %v2945
    %v4642 = vpack.c.b16 %v2954, %v2946
    %v4643 = vpack.c.b16 %v2955, %v2947
    %v4644 = vpack.c.b16 %v2964, %v2956
    %v4645 = vpack.c.b16 %v2965, %v2957
    %v4646 = vpack.c.b16 %v2966, %v2958
    %v4647 = vpack.c.b16 %v2967, %v2959
    %v4648 = vpack.c.b16 %v2968, %v2960
    %v4649 = vpack.c.b16 %v2969, %v2961
    %v4650 = vpack.c.b16 %v2970, %v2962
    %v4651 = vpack.c.b16 %v2971, %v2963
    %v4652 = vpack.c.b16 %v2980, %v2972
    %v4653 = vpack.c.b16 %v2981, %v2973
    %v4654 = vpack.c.b16 %v2982, %v2974
    %v4655 = vpack.c.b16 %v2983, %v2975
    %v4656 = vpack.c.b16 %v2984, %v2976
    %v4657 = vpack.c.b16 %v2985, %v2977
    %v4658 = vpack.c.b16 %v2986, %v2978
    %v4659 = vpack.c.b16 %v2987, %v2979
    %v4660 = vpack.c.b16 %v2996, %v2988
    %v4661 = vpack.c.b16 %v2997, %v2989
    %v4662 = vpack.c.b16 %v2998, %v2990
    %v4663 = vpack.c.b16 %v2999, %v2991
    %v4664 = vpack.c.b16 %v3000, %v2992
    %v4665 = vpack.c.b16 %v3001, %v2993
    %v4666 = vpack.c.b16 %v3002, %v2994
    %v4667 = vpack.c.b16 %v3003, %v2995
    %v4668 = vpack.c.b16 %v3012, %v3004
    %v4669 = vpack.c.b16 %v3013, %v3005
    %v4670 = vpack.c.b16 %v3014, %v3006
    %v4671 = vpack.c.b16 %v3015, %v3007
    %v4672 = vpack.c.b16 %v3016, %v3008
    %v4673 = vpack.c.b16 %v3017, %v3009
    %v4674 = vpack.c.b16 %v3018, %v3010
    %v4675 = vpack.c.b16 %v3019, %v3011
    %v4676 = vpack.c.b16 %v3028, %v3020
    %v4677 = vpack.c.b16 %v3029, %v3021
    %v4678 = vpack.c.b16 %v3030, %v3022
    %v4679 = vpack.c.b16 %v3031, %v3023
    %v4680 = vpack.c.b16 %v3032, %v3024
    %v4681 = vpack.c.b16 %v3033, %v3025
    %v4682 = vpack.c.b16 %v3034, %v3026
    %v4683 = vpack.c.b16 %v3035, %v3027
    %v4684 = vpack.c.b16 %v3044, %v3036
    %v4685 = vpack.c.b16 %v3045, %v3037
    %v4686 = vpack.c.b16 %v3046, %v3038
    %v4687 = vpack.c.b16 %v3047, %v3039
    %v4688 = vpack.c.b16 %v3048, %v3040
    %v4689 = vpack.c.b16 %v3049, %v3041
    %v4690 = vpack.c.b16 %v3050, %v3042
    %v4691 = vpack.c.b16 %v3051, %v3043
    %v4692 = vpack.c.b16 %v3060, %v3052
    %v4693 = vpack.c.b16 %v3061, %v3053
    %v4694 = vpack.c.b16 %v3062, %v3054
    %v4695 = vpack.c.b16 %v3063, %v3055
    %v4696 = vpack.c.b16 %v3064, %v3056
    %v4697 = vpack.c.b16 %v3065, %v3057
    %v4698 = vpack.c.b16 %v3066, %v3058
    %v4699 = vpack.c.b16 %v3067, %v3059
    %v4700 = vpack.c.b16 %v3076, %v3068
    %v4701 = vpack.c.b16 %v3077, %v3069
    %v4702 = vpack.c.b16 %v3078, %v3070
    %v4703 = vpack.c.b16 %v3079, %v3071
    %v4704 = vpack.c.b16 %v3080, %v3072
    %v4705 = vpack.c.b16 %v3081, %v3073
    %v4706 = vpack.c.b16 %v3082, %v3074
    %v4707 = vpack.c.b16 %v3083, %v3075
    %v4708 = vpack.c.b16 %v3092, %v3084
    %v4709 = vpack.c.b16 %v3093, %v3085
    %v4710 = vpack.c.b16 %v3094, %v3086
    %v4711 = vpack.c.b16 %v3095, %v3087
    %v4712 = vpack.c.b16 %v3096, %v3088
    %v4713 = vpack.c.b16 %v3097, %v3089
    %v4714 = vpack.c.b16 %v3098, %v3090
    %v4715 = vpack.c.b16 %v3099, %v3091
    %v4716 = vpack.c.b16 %v3108, %v3100
    %v4717 = vpack.c.b16 %v3109, %v3101
    %v4718 = vpack.c.b16 %v3110, %v3102
    %v4719 = vpack.c.b16 %v3111, %v3103
    %v4720 = vpack.c.b16 %v3112, %v3104
    %v4721 = vpack.c.b16 %v3113, %v3105
    %v4722 = vpack.c.b16 %v3114, %v3106
    %v4723 = vpack.c.b16 %v3115, %v3107
    %v4724 = vpack.c.b16 %v3124, %v3116
    %v4725 = vpack.c.b16 %v3125, %v3117
    %v4726 = vpack.c.b16 %v3126, %v3118
    %v4727 = vpack.c.b16 %v3127, %v3119
    %v4728 = vpack.c.b16 %v3128, %v3120
    %v4729 = vpack.c.b16 %v3129, %v3121
    %v4730 = vpack.c.b16 %v3130, %v3122
    %v4731 = vpack.c.b16 %v3131, %v3123
    %v4732 = vpack.c.b16 %v3140, %v3132
    %v4733 = vpack.c.b16 %v3141, %v3133
    %v4734 = vpack.c.b16 %v3142, %v3134
    %v4735 = vpack.c.b16 %v3143, %v3135
    %v4736 = vpack.c.b16 %v3144, %v3136
    %v4737 = vpack.c.b16 %v3145, %v3137
    %v4738 = vpack.c.b16 %v3146, %v3138
    %v4739 = vpack.c.b16 %v3147, %v3139
    %v4740 = vpack.c.b16 %v3156, %v3148
    %v4741 = vpack.c.b16 %v3157, %v3149
    %v4742 = vpack.c.b16 %v3158, %v3150
    %v4743 = vpack.c.b16 %v3159, %v3151
    %v4744 = vpack.c.b16 %v3160, %v3152
    %v4745 = vpack.c.b16 %v3161, %v3153
    %v4746 = vpack.c.b16 %v3162, %v3154
    %v4747 = vpack.c.b16 %v3163, %v3155
    %v4748 = vpack.c.b16 %v3172, %v3164
    %v4749 = vpack.c.b16 %v3173, %v3165
    %v4750 = vpack.c.b16 %v3174, %v3166
    %v4751 = vpack.c.b16 %v3175, %v3167
    %v4752 = vpack.c.b16 %v3176, %v3168
    %v4753 = vpack.c.b16 %v3177, %v3169
    %v4754 = vpack.c.b16 %v3178, %v3170
    %v4755 = vpack.c.b16 %v3179, %v3171
    %v4756 = vpack.c.b16 %v3188, %v3180
    %v4757 = vpack.c.b16 %v3189, %v3181
    %v4758 = vpack.c.b16 %v3190, %v3182
    %v4759 = vpack.c.b16 %v3191, %v3183
    %v4760 = vpack.c.b16 %v3192, %v3184
    %v4761 = vpack.c.b16 %v3193, %v3185
    %v4762 = vpack.c.b16 %v3194, %v3186
    %v4763 = vpack.c.b16 %v3195, %v3187
    %v4764 = vpack.c.b16 %v3204, %v3196
    %v4765 = vpack.c.b16 %v3205, %v3197
    %v4766 = vpack.c.b16 %v3206, %v3198
    %v4767 = vpack.c.b16 %v3207, %v3199
    %v4768 = vpack.c.b16 %v3208, %v3200
    %v4769 = vpack.c.b16 %v3209, %v3201
    %v4770 = vpack.c.b16 %v3210, %v3202
    %v4771 = vpack.c.b16 %v3211, %v3203
    %v4772 = vpack.c.b16 %v3220, %v3212
    %v4773 = vpack.c.b16 %v3221, %v3213
    %v4774 = vpack.c.b16 %v3222, %v3214
    %v4775 = vpack.c.b16 %v3223, %v3215
    %v4776 = vpack.c.b16 %v3224, %v3216
    %v4777 = vpack.c.b16 %v3225, %v3217
    %v4778 = vpack.c.b16 %v3226, %v3218
    %v4779 = vpack.c.b16 %v3227, %v3219
    %v4780 = vpack.c.b16 %v3236, %v3228
    %v4781 = vpack.c.b16 %v3237, %v3229
    %v4782 = vpack.c.b16 %v3238, %v3230
    %v4783 = vpack.c.b16 %v3239, %v3231
    %v4784 = vpack.c.b16 %v3240, %v3232
    %v4785 = vpack.c.b16 %v3241, %v3233
    %v4786 = vpack.c.b16 %v3242, %v3234
    %v4787 = vpack.c.b16 %v3243, %v3235
    %v4788 = vpack.c.b16 %v3252, %v3244
    %v4789 = vpack.c.b16 %v3253, %v3245
    %v4790 = vpack.c.b16 %v3254, %v3246
    %v4791 = vpack.c.b16 %v3255, %v3247
    %v4792 = vpack.c.b16 %v3256, %v3248
    %v4793 = vpack.c.b16 %v3257, %v3249
    %v4794 = vpack.c.b16 %v3258, %v3250
    %v4795 = vpack.c.b16 %v3259, %v3251
    %v4796 = vpack.c.b16 %v3268, %v3260
    %v4797 = vpack.c.b16 %v3269, %v3261
    %v4798 = vpack.c.b16 %v3270, %v3262
    %v4799 = vpack.c.b16 %v3271, %v3263
    %v4800 = vpack.c.b16 %v3272, %v3264
    %v4801 = vpack.c.b16 %v3273, %v3265
    %v4802 = vpack.c.b16 %v3274, %v3266
    %v4803 = vpack.c.b16 %v3275, %v3267
    %v4804 = vpack.c.b16 %v3284, %v3276
    %v4805 = vpack.c.b16 %v3285, %v3277
    %v4806 = vpack.c.b16 %v3286, %v3278
    %v4807 = vpack.c.b16 %v3287, %v3279
    %v4808 = vpack.c.b16 %v3288, %v3280
    %v4809 = vpack.c.b16 %v3289, %v3281
    %v4810 = vpack.c.b16 %v3290, %v3282
    %v4811 = vpack.c.b16 %v3291, %v3283
    %v4812 = vpack.c.b16 %v3300, %v3292
    %v4813 = vpack.c.b16 %v3301, %v3293
    %v4814 = vpack.c.b16 %v3302, %v3294
    %v4815 = vpack.c.b16 %v3303, %v3295
    %v4816 = vpack.c.b16 %v3304, %v3296
    %v4817 = vpack.c.b16 %v3305, %v3297
    %v4818 = vpack.c.b16 %v3306, %v3298
    %v4819 = vpack.c.b16 %v3307, %v3299
    %v4820 = vpack.c.b16 %v3316, %v3308
    %v4821 = vpack.c.b16 %v3317, %v3309
    %v4822 = vpack.c.b16 %v3318, %v3310
    %v4823 = vpack.c.b16 %v3319, %v3311
    %v4824 = vpack.c.b16 %v3320, %v3312
    %v4825 = vpack.c.b16 %v3321, %v3313
    %v4826 = vpack.c.b16 %v3322, %v3314
    %v4827 = vpack.c.b16 %v3323, %v3315
    %v4828 = vpack.c.b16 %v3332, %v3324
    %v4829 = vpack.c.b16 %v3333, %v3325
    %v4830 = vpack.c.b16 %v3334, %v3326
    %v4831 = vpack.c.b16 %v3335, %v3327
    %v4832 = vpack.c.b16 %v3336, %v3328
    %v4833 = vpack.c.b16 %v3337, %v3329
    %v4834 = vpack.c.b16 %v3338, %v3330
    %v4835 = vpack.c.b16 %v3339, %v3331
    %v4836 = vpack.c.b16 %v3348, %v3340
    %v4837 = vpack.c.b16 %v3349, %v3341
    %v4838 = vpack.c.b16 %v3350, %v3342
    %v4839 = vpack.c.b16 %v3351, %v3343
    %v4840 = vpack.c.b16 %v3352, %v3344
    %v4841 = vpack.c.b16 %v3353, %v3345
    %v4842 = vpack.c.b16 %v3354, %v3346
    %v4843 = vpack.c.b16 %v3355, %v3347
    %v4844 = vpack.c.b16 %v3364, %v3356
    %v4845 = vpack.c.b16 %v3365, %v3357
    %v4846 = vpack.c.b16 %v3366, %v3358
    %v4847 = vpack.c.b16 %v3367, %v3359
    %v4848 = vpack.c.b16 %v3368, %v3360
    %v4849 = vpack.c.b16 %v3369, %v3361
    %v4850 = vpack.c.b16 %v3370, %v3362
    %v4851 = vpack.c.b16 %v3371, %v3363
    %v4852 = vpack.c.b16 %v3380, %v3372
    %v4853 = vpack.c.b16 %v3381, %v3373
    %v4854 = vpack.c.b16 %v3382, %v3374
    %v4855 = vpack.c.b16 %v3383, %v3375
    %v4856 = vpack.c.b16 %v3384, %v3376
    %v4857 = vpack.c.b16 %v3385, %v3377
    %v4858 = vpack.c.b16 %v3386, %v3378
    %v4859 = vpack.c.b16 %v3387, %v3379
    %v4860 = vpack.c.b16 %v3396, %v3388
    %v4861 = vpack.c.b16 %v3397, %v3389
    %v4862 = vpack.c.b16 %v3398, %v3390
    %v4863 = vpack.c.b16 %v3399, %v3391
    %v4864 = vpack.c.b16 %v3400, %v3392
    %v4865 = vpack.c.b16 %v3401, %v3393
    %v4866 = vpack.c.b16 %v3402, %v3394
    %v4867 = vpack.c.b16 %v3403, %v3395
    %v4868 = vpack.c.b16 %v3412, %v3404
    %v4869 = vpack.c.b16 %v3413, %v3405
    %v4870 = vpack.c.b16 %v3414, %v3406
    %v4871 = vpack.c.b16 %v3415, %v3407
    %v4872 = vpack.c.b16 %v3416, %v3408
    %v4873 = vpack.c.b16 %v3417, %v3409
    %v4874 = vpack.c.b16 %v3418, %v3410
    %v4875 = vpack.c.b16 %v3419, %v3411
    %v4876 = vpack.c.b16 %v3428, %v3420
    %v4877 = vpack.c.b16 %v3429, %v3421
    %v4878 = vpack.c.b16 %v3430, %v3422
    %v4879 = vpack.c.b16 %v3431, %v3423
    %v4880 = vpack.c.b16 %v3432, %v3424
    %v4881 = vpack.c.b16 %v3433, %v3425
    %v4882 = vpack.c.b16 %v3434, %v3426
    %v4883 = vpack.c.b16 %v3435, %v3427
    %v4884 = vpack.c.b16 %v3444, %v3436
    %v4885 = vpack.c.b16 %v3445, %v3437
    %v4886 = vpack.c.b16 %v3446, %v3438
    %v4887 = vpack.c.b16 %v3447, %v3439
    %v4888 = vpack.c.b16 %v3448, %v3440
    %v4889 = vpack.c.b16 %v3449, %v3441
    %v4890 = vpack.c.b16 %v3450, %v3442
    %v4891 = vpack.c.b16 %v3451, %v3443
    %v4892 = vpack.c.b16 %v3460, %v3452
    %v4893 = vpack.c.b16 %v3461, %v3453
    %v4894 = vpack.c.b16 %v3462, %v3454
    %v4895 = vpack.c.b16 %v3463, %v3455
    %v4896 = vpack.c.b16 %v3464, %v3456
    %v4897 = vpack.c.b16 %v3465, %v3457
    %v4898 = vpack.c.b16 %v3466, %v3458
    %v4899 = vpack.c.b16 %v3467, %v3459
    %v4900 = vpack.c.b16 %v3476, %v3468
    %v4901 = vpack.c.b16 %v3477, %v3469
    %v4902 = vpack.c.b16 %v3478, %v3470
    %v4903 = vpack.c.b16 %v3479, %v3471
    %v4904 = vpack.c.b16 %v3480, %v3472
    %v4905 = vpack.c.b16 %v3481, %v3473
    %v4906 = vpack.c.b16 %v3482, %v3474
    %v4907 = vpack.c.b16 %v3483, %v3475
    %v4908 = vpack.c.b16 %v3492, %v3484
    %v4909 = vpack.c.b16 %v3493, %v3485
    %v4910 = vpack.c.b16 %v3494, %v3486
    %v4911 = vpack.c.b16 %v3495, %v3487
    %v4912 = vpack.c.b16 %v3496, %v3488
    %v4913 = vpack.c.b16 %v3497, %v3489
    %v4914 = vpack.c.b16 %v3498, %v3490
    %v4915 = vpack.c.b16 %v3499, %v3491
    %v4916 = vpack.c.b16 %v3508, %v3500
    %v4917 = vpack.c.b16 %v3509, %v3501
    %v4918 = vpack.c.b16 %v3510, %v3502
    %v4919 = vpack.c.b16 %v3511, %v3503
    %v4920 = vpack.c.b16 %v3512, %v3504
    %v4921 = vpack.c.b16 %v3513, %v3505
    %v4922 = vpack.c.b16 %v3514, %v3506
    %v4923 = vpack.c.b16 %v3515, %v3507
    %v4924 = vpack.c.b16 %v3524, %v3516
    %v4925 = vpack.c.b16 %v3525, %v3517
    %v4926 = vpack.c.b16 %v3526, %v3518
    %v4927 = vpack.c.b16 %v3527, %v3519
    %v4928 = vpack.c.b16 %v3528, %v3520
    %v4929 = vpack.c.b16 %v3529, %v3521
    %v4930 = vpack.c.b16 %v3530, %v3522
    %v4931 = vpack.c.b16 %v3531, %v3523
    %v4932 = vpack.c.b16 %v3540, %v3532
    %v4933 = vpack.c.b16 %v3541, %v3533
    %v4934 = vpack.c.b16 %v3542, %v3534
    %v4935 = vpack.c.b16 %v3543, %v3535
    %v4936 = vpack.c.b16 %v3544, %v3536
    %v4937 = vpack.c.b16 %v3545, %v3537
    %v4938 = vpack.c.b16 %v3546, %v3538
    %v4939 = vpack.c.b16 %v3547, %v3539
    %v4940 = vpack.c.b16 %v3556, %v3548
    %v4941 = vpack.c.b16 %v3557, %v3549
    %v4942 = vpack.c.b16 %v3558, %v3550
    %v4943 = vpack.c.b16 %v3559, %v3551
    %v4944 = vpack.c.b16 %v3560, %v3552
    %v4945 = vpack.c.b16 %v3561, %v3553
    %v4946 = vpack.c.b16 %v3562, %v3554
    %v4947 = vpack.c.b16 %v3563, %v3555
    %v4948 = vpack.c.b16 %v3572, %v3564
    %v4949 = vpack.c.b16 %v3573, %v3565
    %v4950 = vpack.c.b16 %v3574, %v3566
    %v4951 = vpack.c.b16 %v3575, %v3567
    %v4952 = vpack.c.b16 %v3576, %v3568
    %v4953 = vpack.c.b16 %v3577, %v3569
    %v4954 = vpack.c.b16 %v3578, %v3570
    %v4955 = vpack.c.b16 %v3579, %v3571
    %v4956 = vpack.c.b16 %v3588, %v3580
    %v4957 = vpack.c.b16 %v3589, %v3581
    %v4958 = vpack.c.b16 %v3590, %v3582
    %v4959 = vpack.c.b16 %v3591, %v3583
    %v4960 = vpack.c.b16 %v3592, %v3584
    %v4961 = vpack.c.b16 %v3593, %v3585
    %v4962 = vpack.c.b16 %v3594, %v3586
    %v4963 = vpack.c.b16 %v3595, %v3587
    %v4964 = vpack.c.b16 %v3604, %v3596
    %v4965 = vpack.c.b16 %v3605, %v3597
    %v4966 = vpack.c.b16 %v3606, %v3598
    %v4967 = vpack.c.b16 %v3607, %v3599
    %v4968 = vpack.c.b16 %v3608, %v3600
    %v4969 = vpack.c.b16 %v3609, %v3601
    %v4970 = vpack.c.b16 %v3610, %v3602
    %v4971 = vpack.c.b16 %v3611, %v3603
    %v4972 = vpack.c.b16 %v3620, %v3612
    %v4973 = vpack.c.b16 %v3621, %v3613
    %v4974 = vpack.c.b16 %v3622, %v3614
    %v4975 = vpack.c.b16 %v3623, %v3615
    %v4976 = vpack.c.b16 %v3624, %v3616
    %v4977 = vpack.c.b16 %v3625, %v3617
    %v4978 = vpack.c.b16 %v3626, %v3618
    %v4979 = vpack.c.b16 %v3627, %v3619
    %v4980 = vpack.c.b16 %v3636, %v3628
    %v4981 = vpack.c.b16 %v3637, %v3629
    %v4982 = vpack.c.b16 %v3638, %v3630
    %v4983 = vpack.c.b16 %v3639, %v3631
    %v4984 = vpack.c.b16 %v3640, %v3632
    %v4985 = vpack.c.b16 %v3641, %v3633
    %v4986 = vpack.c.b16 %v3642, %v3634
    %v4987 = vpack.c.b16 %v3643, %v3635
    %v4988 = vpack.c.b16 %v3652, %v3644
    %v4989 = vpack.c.b16 %v3653, %v3645
    %v4990 = vpack.c.b16 %v3654, %v3646
    %v4991 = vpack.c.b16 %v3655, %v3647
    %v4992 = vpack.c.b16 %v3656, %v3648
    %v4993 = vpack.c.b16 %v3657, %v3649
    %v4994 = vpack.c.b16 %v3658, %v3650
    %v4995 = vpack.c.b16 %v3659, %v3651
    %v4996 = vpack.c.b16 %v3668, %v3660
    %v4997 = vpack.c.b16 %v3669, %v3661
    %v4998 = vpack.c.b16 %v3670, %v3662
    %v4999 = vpack.c.b16 %v3671, %v3663
    %v5000 = vpack.c.b16 %v3672, %v3664
    %v5001 = vpack.c.b16 %v3673, %v3665
    %v5002 = vpack.c.b16 %v3674, %v3666
    %v5003 = vpack.c.b16 %v3675, %v3667
    %v5004 = vpack.c.b16 %v3684, %v3676
    %v5005 = vpack.c.b16 %v3685, %v3677
    %v5006 = vpack.c.b16 %v3686, %v3678
    %v5007 = vpack.c.b16 %v3687, %v3679
    %v5008 = vpack.c.b16 %v3688, %v3680
    %v5009 = vpack.c.b16 %v3689, %v3681
    %v5010 = vpack.c.b16 %v3690, %v3682
    %v5011 = vpack.c.b16 %v3691, %v3683
    %v5012 = vpack.c.b16 %v3700, %v3692
    %v5013 = vpack.c.b16 %v3701, %v3693
    %v5014 = vpack.c.b16 %v3702, %v3694
    %v5015 = vpack.c.b16 %v3703, %v3695
    %v5016 = vpack.c.b16 %v3704, %v3696
    %v5017 = vpack.c.b16 %v3705, %v3697
    %v5018 = vpack.c.b16 %v3706, %v3698
    %v5019 = vpack.c.b16 %v3707, %v3699
    %v5020 = vpack.c.b16 %v3716, %v3708
    %v5021 = vpack.c.b16 %v3717, %v3709
    %v5022 = vpack.c.b16 %v3718, %v3710
    %v5023 = vpack.c.b16 %v3719, %v3711
    %v5024 = vpack.c.b16 %v3720, %v3712
    %v5025 = vpack.c.b16 %v3721, %v3713
    %v5026 = vpack.c.b16 %v3722, %v3714
    %v5027 = vpack.c.b16 %v3723, %v3715
    %v5028 = vpack.c.b16 %v3732, %v3724
    %v5029 = vpack.c.b16 %v3733, %v3725
    %v5030 = vpack.c.b16 %v3734, %v3726
    %v5031 = vpack.c.b16 %v3735, %v3727
    %v5032 = vpack.c.b16 %v3736, %v3728
    %v5033 = vpack.c.b16 %v3737, %v3729
    %v5034 = vpack.c.b16 %v3738, %v3730
    %v5035 = vpack.c.b16 %v3739, %v3731
    %v5036 = vpack.c.b16 %v3748, %v3740
    %v5037 = vpack.c.b16 %v3749, %v3741
    %v5038 = vpack.c.b16 %v3750, %v3742
    %v5039 = vpack.c.b16 %v3751, %v3743
    %v5040 = vpack.c.b16 %v3752, %v3744
    %v5041 = vpack.c.b16 %v3753, %v3745
    %v5042 = vpack.c.b16 %v3754, %v3746
    %v5043 = vpack.c.b16 %v3755, %v3747
    %v5044 = vpack.c.b16 %v3764, %v3756
    %v5045 = vpack.c.b16 %v3765, %v3757
    %v5046 = vpack.c.b16 %v3766, %v3758
    %v5047 = vpack.c.b16 %v3767, %v3759
    %v5048 = vpack.c.b16 %v3768, %v3760
    %v5049 = vpack.c.b16 %v3769, %v3761
    %v5050 = vpack.c.b16 %v3770, %v3762
    %v5051 = vpack.c.b16 %v3771, %v3763
    %v5052 = vpack.c.b16 %v3780, %v3772
    %v5053 = vpack.c.b16 %v3781, %v3773
    %v5054 = vpack.c.b16 %v3782, %v3774
    %v5055 = vpack.c.b16 %v3783, %v3775
    %v5056 = vpack.c.b16 %v3784, %v3776
    %v5057 = vpack.c.b16 %v3785, %v3777
    %v5058 = vpack.c.b16 %v3786, %v3778
    %v5059 = vpack.c.b16 %v3787, %v3779
    %v5060 = vpack.c.b16 %v3796, %v3788
    %v5061 = vpack.c.b16 %v3797, %v3789
    %v5062 = vpack.c.b16 %v3798, %v3790
    %v5063 = vpack.c.b16 %v3799, %v3791
    %v5064 = vpack.c.b16 %v3800, %v3792
    %v5065 = vpack.c.b16 %v3801, %v3793
    %v5066 = vpack.c.b16 %v3802, %v3794
    %v5067 = vpack.c.b16 %v3803, %v3795
    %v5068 = vpack.c.b16 %v3812, %v3804
    %v5069 = vpack.c.b16 %v3813, %v3805
    %v5070 = vpack.c.b16 %v3814, %v3806
    %v5071 = vpack.c.b16 %v3815, %v3807
    %v5072 = vpack.c.b16 %v3816, %v3808
    %v5073 = vpack.c.b16 %v3817, %v3809
    %v5074 = vpack.c.b16 %v3818, %v3810
    %v5075 = vpack.c.b16 %v3819, %v3811
    %v5076 = vpack.c.b16 %v3828, %v3820
    %v5077 = vpack.c.b16 %v3829, %v3821
    %v5078 = vpack.c.b16 %v3830, %v3822
    %v5079 = vpack.c.b16 %v3831, %v3823
    %v5080 = vpack.c.b16 %v3832, %v3824
    %v5081 = vpack.c.b16 %v3833, %v3825
    %v5082 = vpack.c.b16 %v3834, %v3826
    %v5083 = vpack.c.b16 %v3835, %v3827
    %v5084 = vpack.c.b16 %v3844, %v3836
    %v5085 = vpack.c.b16 %v3845, %v3837
    %v5086 = vpack.c.b16 %v3846, %v3838
    %v5087 = vpack.c.b16 %v3847, %v3839
    %v5088 = vpack.c.b16 %v3848, %v3840
    %v5089 = vpack.c.b16 %v3849, %v3841
    %v5090 = vpack.c.b16 %v3850, %v3842
    %v5091 = vpack.c.b16 %v3851, %v3843
    %v5092 = vpack.c.b16 %v3860, %v3852
    %v5093 = vpack.c.b16 %v3861, %v3853
    %v5094 = vpack.c.b16 %v3862, %v3854
    %v5095 = vpack.c.b16 %v3863, %v3855
    %v5096 = vpack.c.b16 %v3864, %v3856
    %v5097 = vpack.c.b16 %v3865, %v3857
    %v5098 = vpack.c.b16 %v3866, %v3858
    %v5099 = vpack.c.b16 %v3867, %v3859
    %v5100 = vpack.c.b16 %v3876, %v3868
    %v5101 = vpack.c.b16 %v3877, %v3869
    %v5102 = vpack.c.b16 %v3878, %v3870
    %v5103 = vpack.c.b16 %v3879, %v3871
    %v5104 = vpack.c.b16 %v3880, %v3872
    %v5105 = vpack.c.b16 %v3881, %v3873
    %v5106 = vpack.c.b16 %v3882, %v3874
    %v5107 = vpack.c.b16 %v3883, %v3875
    %v5108 = vpack.c.b16 %v3892, %v3884
    %v5109 = vpack.c.b16 %v3893, %v3885
    %v5110 = vpack.c.b16 %v3894, %v3886
    %v5111 = vpack.c.b16 %v3895, %v3887
    %v5112 = vpack.c.b16 %v3896, %v3888
    %v5113 = vpack.c.b16 %v3897, %v3889
    %v5114 = vpack.c.b16 %v3898, %v3890
    %v5115 = vpack.c.b16 %v3899, %v3891
    %v5116 = vpack.c.b16 %v3908, %v3900
    %v5117 = vpack.c.b16 %v3909, %v3901
    %v5118 = vpack.c.b16 %v3910, %v3902
    %v5119 = vpack.c.b16 %v3911, %v3903
    %v5120 = vpack.c.b16 %v3912, %v3904
    %v5121 = vpack.c.b16 %v3913, %v3905
    %v5122 = vpack.c.b16 %v3914, %v3906
    %v5123 = vpack.c.b16 %v3915, %v3907
    %v5124 = vpack.c.b16 %v3924, %v3916
    %v5125 = vpack.c.b16 %v3925, %v3917
    %v5126 = vpack.c.b16 %v3926, %v3918
    %v5127 = vpack.c.b16 %v3927, %v3919
    %v5128 = vpack.c.b16 %v3928, %v3920
    %v5129 = vpack.c.b16 %v3929, %v3921
    %v5130 = vpack.c.b16 %v3930, %v3922
    %v5131 = vpack.c.b16 %v3931, %v3923
    %v5132 = vpack.c.b16 %v3940, %v3932
    %v5133 = vpack.c.b16 %v3941, %v3933
    %v5134 = vpack.c.b16 %v3942, %v3934
    %v5135 = vpack.c.b16 %v3943, %v3935
    %v5136 = vpack.c.b16 %v3944, %v3936
    %v5137 = vpack.c.b16 %v3945, %v3937
    %v5138 = vpack.c.b16 %v3946, %v3938
    %v5139 = vpack.c.b16 %v3947, %v3939
    %v5140 = vpack.c.b16 %v3956, %v3948
    %v5141 = vpack.c.b16 %v3957, %v3949
    %v5142 = vpack.c.b16 %v3958, %v3950
    %v5143 = vpack.c.b16 %v3959, %v3951
    %v5144 = vpack.c.b16 %v3960, %v3952
    %v5145 = vpack.c.b16 %v3961, %v3953
    %v5146 = vpack.c.b16 %v3962, %v3954
    %v5147 = vpack.c.b16 %v3963, %v3955
    %v5148 = vpack.c.b16 %v3972, %v3964
    %v5149 = vpack.c.b16 %v3973, %v3965
    %v5150 = vpack.c.b16 %v3974, %v3966
    %v5151 = vpack.c.b16 %v3975, %v3967
    %v5152 = vpack.c.b16 %v3976, %v3968
    %v5153 = vpack.c.b16 %v3977, %v3969
    %v5154 = vpack.c.b16 %v3978, %v3970
    %v5155 = vpack.c.b16 %v3979, %v3971
    %v5156 = vpack.c.b16 %v3988, %v3980
    %v5157 = vpack.c.b16 %v3989, %v3981
    %v5158 = vpack.c.b16 %v3990, %v3982
    %v5159 = vpack.c.b16 %v3991, %v3983
    %v5160 = vpack.c.b16 %v3992, %v3984
    %v5161 = vpack.c.b16 %v3993, %v3985
    %v5162 = vpack.c.b16 %v3994, %v3986
    %v5163 = vpack.c.b16 %v3995, %v3987
    %v5164 = vpack.c.b16 %v4004, %v3996
    %v5165 = vpack.c.b16 %v4005, %v3997
    %v5166 = vpack.c.b16 %v4006, %v3998
    %v5167 = vpack.c.b16 %v4007, %v3999
    %v5168 = vpack.c.b16 %v4008, %v4000
    %v5169 = vpack.c.b16 %v4009, %v4001
    %v5170 = vpack.c.b16 %v4010, %v4002
    %v5171 = vpack.c.b16 %v4011, %v4003
    %v5172 = vpack.c.b16 %v4020, %v4012
    %v5173 = vpack.c.b16 %v4021, %v4013
    %v5174 = vpack.c.b16 %v4022, %v4014
    %v5175 = vpack.c.b16 %v4023, %v4015
    %v5176 = vpack.c.b16 %v4024, %v4016
    %v5177 = vpack.c.b16 %v4025, %v4017
    %v5178 = vpack.c.b16 %v4026, %v4018
    %v5179 = vpack.c.b16 %v4027, %v4019
    %v5180 = vpack.c.b16 %v4036, %v4028
    %v5181 = vpack.c.b16 %v4037, %v4029
    %v5182 = vpack.c.b16 %v4038, %v4030
    %v5183 = vpack.c.b16 %v4039, %v4031
    %v5184 = vpack.c.b16 %v4040, %v4032
    %v5185 = vpack.c.b16 %v4041, %v4033
    %v5186 = vpack.c.b16 %v4042, %v4034
    %v5187 = vpack.c.b16 %v4043, %v4035
    %v5188 = vpack.c.b16 %v4052, %v4044
    %v5189 = vpack.c.b16 %v4053, %v4045
    %v5190 = vpack.c.b16 %v4054, %v4046
    %v5191 = vpack.c.b16 %v4055, %v4047
    %v5192 = vpack.c.b16 %v4056, %v4048
    %v5193 = vpack.c.b16 %v4057, %v4049
    %v5194 = vpack.c.b16 %v4058, %v4050
    %v5195 = vpack.c.b16 %v4059, %v4051
    %v5196 = vpack.c.b16 %v4068, %v4060
    %v5197 = vpack.c.b16 %v4069, %v4061
    %v5198 = vpack.c.b16 %v4070, %v4062
    %v5199 = vpack.c.b16 %v4071, %v4063
    %v5200 = vpack.c.b16 %v4072, %v4064
    %v5201 = vpack.c.b16 %v4073, %v4065
    %v5202 = vpack.c.b16 %v4074, %v4066
    %v5203 = vpack.c.b16 %v4075, %v4067
    %v5204 = vpack.c.b16 %v4084, %v4076
    %v5205 = vpack.c.b16 %v4085, %v4077
    %v5206 = vpack.c.b16 %v4086, %v4078
    %v5207 = vpack.c.b16 %v4087, %v4079
    %v5208 = vpack.c.b16 %v4088, %v4080
    %v5209 = vpack.c.b16 %v4089, %v4081
    %v5210 = vpack.c.b16 %v4090, %v4082
    %v5211 = vpack.c.b16 %v4091, %v4083
    %v5212 = vpack.c.b16 %v4100, %v4092
    %v5213 = vpack.c.b16 %v4101, %v4093
    %v5214 = vpack.c.b16 %v4102, %v4094
    %v5215 = vpack.c.b16 %v4103, %v4095
    %v5216 = vpack.c.b16 %v4104, %v4096
    %v5217 = vpack.c.b16 %v4105, %v4097
    %v5218 = vpack.c.b16 %v4106, %v4098
    %v5219 = vpack.c.b16 %v4107, %v4099
    %v5220 = vpack.c.b16 %v4116, %v4108
    %v5221 = vpack.c.b16 %v4117, %v4109
    %v5222 = vpack.c.b16 %v4118, %v4110
    %v5223 = vpack.c.b16 %v4119, %v4111
    %v5224 = vpack.c.b16 %v4120, %v4112
    %v5225 = vpack.c.b16 %v4121, %v4113
    %v5226 = vpack.c.b16 %v4122, %v4114
    %v5227 = vpack.c.b16 %v4123, %v4115
    %v5228 = vpack.c.b16 %v4132, %v4124
    %v5229 = vpack.c.b16 %v4133, %v4125
    %v5230 = vpack.c.b16 %v4134, %v4126
    %v5231 = vpack.c.b16 %v4135, %v4127
    %v5232 = vpack.c.b16 %v4136, %v4128
    %v5233 = vpack.c.b16 %v4137, %v4129
    %v5234 = vpack.c.b16 %v4138, %v4130
    %v5235 = vpack.c.b16 %v4139, %v4131
    %v5236 = vpack.c.b16 %v4148, %v4140
    %v5237 = vpack.c.b16 %v4149, %v4141
    %v5238 = vpack.c.b16 %v4150, %v4142
    %v5239 = vpack.c.b16 %v4151, %v4143
    %v5240 = vpack.c.b16 %v4152, %v4144
    %v5241 = vpack.c.b16 %v4153, %v4145
    %v5242 = vpack.c.b16 %v4154, %v4146
    %v5243 = vpack.c.b16 %v4155, %v4147
    %v5244 = vpack.c.b16 %v4164, %v4156
    %v5245 = vpack.c.b16 %v4165, %v4157
    %v5246 = vpack.c.b16 %v4166, %v4158
    %v5247 = vpack.c.b16 %v4167, %v4159
    %v5248 = vpack.c.b16 %v4168, %v4160
    %v5249 = vpack.c.b16 %v4169, %v4161
    %v5250 = vpack.c.b16 %v4170, %v4162
    %v5251 = vpack.c.b16 %v4171, %v4163
    %v5252 = vpack.c.b16 %v4180, %v4172
    %v5253 = vpack.c.b16 %v4181, %v4173
    %v5254 = vpack.c.b16 %v4182, %v4174
    %v5255 = vpack.c.b16 %v4183, %v4175
    %v5256 = vpack.c.b16 %v4184, %v4176
    %v5257 = vpack.c.b16 %v4185, %v4177
    %v5258 = vpack.c.b16 %v4186, %v4178
    %v5259 = vpack.c.b16 %v4187, %v4179
    %v5260 = vpack.c.b16 %v4196, %v4188
    %v5261 = vpack.c.b16 %v4197, %v4189
    %v5262 = vpack.c.b16 %v4198, %v4190
    %v5263 = vpack.c.b16 %v4199, %v4191
    %v5264 = vpack.c.b16 %v4200, %v4192
    %v5265 = vpack.c.b16 %v4201, %v4193
    %v5266 = vpack.c.b16 %v4202, %v4194
    %v5267 = vpack.c.b16 %v4203, %v4195
    %v5268 = vpack.c.b16 %v4212, %v4204
    %v5269 = vpack.c.b16 %v4213, %v4205
    %v5270 = vpack.c.b16 %v4214, %v4206
    %v5271 = vpack.c.b16 %v4215, %v4207
    %v5272 = vpack.c.b16 %v4216, %v4208
    %v5273 = vpack.c.b16 %v4217, %v4209
    %v5274 = vpack.c.b16 %v4218, %v4210
    %v5275 = vpack.c.b16 %v4219, %v4211
    %v5276 = vpack.c.b16 %v4228, %v4220
    %v5277 = vpack.c.b16 %v4229, %v4221
    %v5278 = vpack.c.b16 %v4230, %v4222
    %v5279 = vpack.c.b16 %v4231, %v4223
    %v5280 = vpack.c.b16 %v4232, %v4224
    %v5281 = vpack.c.b16 %v4233, %v4225
    %v5282 = vpack.c.b16 %v4234, %v4226
    %v5283 = vpack.c.b16 %v4235, %v4227
    %v5284 = vpack.c.b16 %v4244, %v4236
    %v5285 = vpack.c.b16 %v4245, %v4237
    %v5286 = vpack.c.b16 %v4246, %v4238
    %v5287 = vpack.c.b16 %v4247, %v4239
    %v5288 = vpack.c.b16 %v4248, %v4240
    %v5289 = vpack.c.b16 %v4249, %v4241
    %v5290 = vpack.c.b16 %v4250, %v4242
    %v5291 = vpack.c.b16 %v4251, %v4243
    %v5292 = vpack.c.b16 %v4260, %v4252
    %v5293 = vpack.c.b16 %v4261, %v4253
    %v5294 = vpack.c.b16 %v4262, %v4254
    %v5295 = vpack.c.b16 %v4263, %v4255
    %v5296 = vpack.c.b16 %v4264, %v4256
    %v5297 = vpack.c.b16 %v4265, %v4257
    %v5298 = vpack.c.b16 %v4266, %v4258
    %v5299 = vpack.c.b16 %v4267, %v4259
    %v5300 = vpack.c.b16 %v4276, %v4268
    %v5301 = vpack.c.b16 %v4277, %v4269
    %v5302 = vpack.c.b16 %v4278, %v4270
    %v5303 = vpack.c.b16 %v4279, %v4271
    %v5304 = vpack.c.b16 %v4280, %v4272
    %v5305 = vpack.c.b16 %v4281, %v4273
    %v5306 = vpack.c.b16 %v4282, %v4274
    %v5307 = vpack.c.b16 %v4283, %v4275
    %6332 = vmatprep.subr.bf16.mxu0 %v4285
    %6333 = vmatpush1.bf16.msra.mxu0 %v4284
    %6334 = vmatprep.subr.bf16.mxu0 %v4293
    %6335 = vmatpush1.bf16.msra.mxu0 %v4292
    %6336 = vmatprep.subr.bf16.mxu0 %v4301
    %6337 = vmatpush1.bf16.msra.mxu0 %v4300
    %6338 = vmatprep.subr.bf16.mxu0 %v4309
    %6339 = vmatpush1.bf16.msra.mxu0 %v4308
    %6340 = vmatprep.subr.bf16.mxu0 %v4317
    %6341 = vmatpush1.bf16.msra.mxu0 %v4316
    %6342 = vmatprep.subr.bf16.mxu0 %v4325
    %6343 = vmatpush1.bf16.msra.mxu0 %v4324
    %6344 = vmatprep.subr.bf16.mxu0 %v4333
    %6345 = vmatpush1.bf16.msra.mxu0 %v4332
    %6346 = vmatprep.subr.bf16.mxu0 %v4341
    %6347 = vmatpush1.bf16.msra.mxu0 %v4340
    %6348 = vmatprep.subr.bf16.mxu0 %v4349
    %6349 = vmatpush1.bf16.msra.mxu0 %v4348
    %6350 = vmatprep.subr.bf16.mxu0 %v4357
    %6351 = vmatpush1.bf16.msra.mxu0 %v4356
    %6352 = vmatprep.subr.bf16.mxu0 %v4365
    %6353 = vmatpush1.bf16.msra.mxu0 %v4364
    %6354 = vmatprep.subr.bf16.mxu0 %v4373
    %6355 = vmatpush1.bf16.msra.mxu0 %v4372
    %6356 = vmatprep.subr.bf16.mxu0 %v4381
    %6357 = vmatpush1.bf16.msra.mxu0 %v4380
    %6358 = vmatprep.subr.bf16.mxu0 %v4389
    %6359 = vmatpush1.bf16.msra.mxu0 %v4388
    %6360 = vmatprep.subr.bf16.mxu0 %v4397
    %6361 = vmatpush1.bf16.msra.mxu0 %v4396
    %6362 = vmatprep.subr.bf16.mxu0 %v4405
    %6363 = vmatpush1.bf16.msra.mxu0 %v4404
    %6364 = vmatprep.mubr.bf16.mxu0 %v1135
    %6365 = vmatmul.mubr.bf16.gmra.mrb[0].mxu0 %v1121
    %v6366 = vpop.f32.mrb[0].mxu0
    %v6367 = vadd.f32 %v1059, %v6366
    %v6368 = vpop.f32.mrb[0].mxu0
    %v6369 = vadd.f32 %v1063, %v6368
    %v6370 = vpop.f32.mrb[0].mxu0
    %v6371 = vpop.f32.mrb[0].mxu0
    %6372 = vdwg.mxu0
    %6373 = vmatprep.subr.bf16.mxu0 %v4413
    %6374 = vmatpush1.bf16.msra.mxu0 %v4412
    %6375 = vmatprep.subr.bf16.mxu0 %v4421
    %6376 = vmatpush1.bf16.msra.mxu0 %v4420
    %6377 = vmatprep.subr.bf16.mxu0 %v4429
    %6378 = vmatpush1.bf16.msra.mxu0 %v4428
    %6379 = vmatprep.subr.bf16.mxu0 %v4437
    %6380 = vmatpush1.bf16.msra.mxu0 %v4436
    %6381 = vmatprep.subr.bf16.mxu0 %v4445
    %6382 = vmatpush1.bf16.msra.mxu0 %v4444
    %6383 = vmatprep.subr.bf16.mxu0 %v4453
    %6384 = vmatpush1.bf16.msra.mxu0 %v4452
    %6385 = vmatprep.subr.bf16.mxu0 %v4461
    %6386 = vmatpush1.bf16.msra.mxu0 %v4460
    %6387 = vmatprep.subr.bf16.mxu0 %v4469
    %6388 = vmatpush1.bf16.msra.mxu0 %v4468
    %6389 = vmatprep.subr.bf16.mxu0 %v4477
    %6390 = vmatpush1.bf16.msra.mxu0 %v4476
    %6391 = vmatprep.subr.bf16.mxu0 %v4485
    %6392 = vmatpush1.bf16.msra.mxu0 %v4484
    %6393 = vmatprep.subr.bf16.mxu0 %v4493
    %6394 = vmatpush1.bf16.msra.mxu0 %v4492
    %6395 = vmatprep.subr.bf16.mxu0 %v4501
    %6396 = vmatpush1.bf16.msra.mxu0 %v4500
    %6397 = vmatprep.subr.bf16.mxu0 %v4509
    %6398 = vmatpush1.bf16.msra.mxu0 %v4508
    %6399 = vmatprep.subr.bf16.mxu0 %v4517
    %6400 = vmatpush1.bf16.msra.mxu0 %v4516
    %6401 = vmatprep.subr.bf16.mxu0 %v4525
    %6402 = vmatpush1.bf16.msra.mxu0 %v4524
    %6403 = vmatprep.subr.bf16.mxu0 %v4533
    %6404 = vmatpush1.bf16.msra.mxu0 %v4532
    %6405 = vmatprep.mubr.bf16.mxu0 %v1145
    %6406 = vmatmul.mubr.bf16.gmra.mrb[0].mxu0 %v1143
    %v6407 = vpop.f32.mrb[0].mxu0
    %v6408 = vadd.f32 %v6367, %v6407
    %v6409 = vpop.f32.mrb[0].mxu0
    %v6410 = vadd.f32 %v6369, %v6409
    %v6411 = vpop.f32.mrb[0].mxu0
    %v6412 = vpop.f32.mrb[0].mxu0
    %6413 = vdwg.mxu0
    %6414 = vmatprep.subr.bf16.mxu0 %v4541
    %6415 = vmatpush1.bf16.msra.mxu0 %v4540
    %6416 = vmatprep.subr.bf16.mxu0 %v4549
    %6417 = vmatpush1.bf16.msra.mxu0 %v4548
    %6418 = vmatprep.subr.bf16.mxu0 %v4557
    %6419 = vmatpush1.bf16.msra.mxu0 %v4556
    %6420 = vmatprep.subr.bf16.mxu0 %v4565
    %6421 = vmatpush1.bf16.msra.mxu0 %v4564
    %6422 = vmatprep.subr.bf16.mxu0 %v4573
    %6423 = vmatpush1.bf16.msra.mxu0 %v4572
    %6424 = vmatprep.subr.bf16.mxu0 %v4581
    %6425 = vmatpush1.bf16.msra.mxu0 %v4580
    %6426 = vmatprep.subr.bf16.mxu0 %v4589
    %6427 = vmatpush1.bf16.msra.mxu0 %v4588
    %6428 = vmatprep.subr.bf16.mxu0 %v4597
    %6429 = vmatpush1.bf16.msra.mxu0 %v4596
    %6430 = vmatprep.subr.bf16.mxu0 %v4605
    %6431 = vmatpush1.bf16.msra.mxu0 %v4604
    %6432 = vmatprep.subr.bf16.mxu0 %v4613
    %6433 = vmatpush1.bf16.msra.mxu0 %v4612
    %6434 = vmatprep.subr.bf16.mxu0 %v4621
    %6435 = vmatpush1.bf16.msra.mxu0 %v4620
    %6436 = vmatprep.subr.bf16.mxu0 %v4629
    %6437 = vmatpush1.bf16.msra.mxu0 %v4628
    %6438 = vmatprep.subr.bf16.mxu0 %v4637
    %6439 = vmatpush1.bf16.msra.mxu0 %v4636
    %6440 = vmatprep.subr.bf16.mxu0 %v4645
    %6441 = vmatpush1.bf16.msra.mxu0 %v4644
    %6442 = vmatprep.subr.bf16.mxu0 %v4653
    %6443 = vmatpush1.bf16.msra.mxu0 %v4652
    %6444 = vmatprep.subr.bf16.mxu0 %v4661
    %6445 = vmatpush1.bf16.msra.mxu0 %v4660
    %6446 = vmatprep.mubr.bf16.mxu0 %v1142
    %6447 = vmatmul.mubr.bf16.gmra.mrb[0].mxu0 %v1128
    %v6448 = vpop.f32.mrb[0].mxu0
    %v6449 = vadd.f32 %v6408, %v6448
    %v6450 = vpop.f32.mrb[0].mxu0
    %v6451 = vadd.f32 %v6410, %v6450
    %v6452 = vpop.f32.mrb[0].mxu0
    %v6453 = vpop.f32.mrb[0].mxu0
    %6454 = vdwg.mxu0
    %6455 = vmatprep.subr.bf16.mxu0 %v4669
    %6456 = vmatpush1.bf16.msra.mxu0 %v4668
    %6457 = vmatprep.subr.bf16.mxu0 %v4677
    %6458 = vmatpush1.bf16.msra.mxu0 %v4676
    %6459 = vmatprep.subr.bf16.mxu0 %v4685
    %6460 = vmatpush1.bf16.msra.mxu0 %v4684
    %6461 = vmatprep.subr.bf16.mxu0 %v4693
    %6462 = vmatpush1.bf16.msra.mxu0 %v4692
    %6463 = vmatprep.subr.bf16.mxu0 %v4701
    %6464 = vmatpush1.bf16.msra.mxu0 %v4700
    %6465 = vmatprep.subr.bf16.mxu0 %v4709
    %6466 = vmatpush1.bf16.msra.mxu0 %v4708
    %6467 = vmatprep.subr.bf16.mxu0 %v4717
    %6468 = vmatpush1.bf16.msra.mxu0 %v4716
    %6469 = vmatprep.subr.bf16.mxu0 %v4725
    %6470 = vmatpush1.bf16.msra.mxu0 %v4724
    %6471 = vmatprep.subr.bf16.mxu0 %v4733
    %6472 = vmatpush1.bf16.msra.mxu0 %v4732
    %6473 = vmatprep.subr.bf16.mxu0 %v4741
    %6474 = vmatpush1.bf16.msra.mxu0 %v4740
    %6475 = vmatprep.subr.bf16.mxu0 %v4749
    %6476 = vmatpush1.bf16.msra.mxu0 %v4748
    %6477 = vmatprep.subr.bf16.mxu0 %v4757
    %6478 = vmatpush1.bf16.msra.mxu0 %v4756
    %6479 = vmatprep.subr.bf16.mxu0 %v4765
    %6480 = vmatpush1.bf16.msra.mxu0 %v4764
    %6481 = vmatprep.subr.bf16.mxu0 %v4773
    %6482 = vmatpush1.bf16.msra.mxu0 %v4772
    %6483 = vmatprep.subr.bf16.mxu0 %v4781
    %6484 = vmatpush1.bf16.msra.mxu0 %v4780
    %6485 = vmatprep.subr.bf16.mxu0 %v4789
    %6486 = vmatpush1.bf16.msra.mxu0 %v4788
    %6487 = vmatprep.mubr.bf16.mxu0 %v1146
    %6488 = vmatmul.mubr.bf16.gmra.mrb[0].mxu0 %v1144
    %v6489 = vpop.f32.mrb[0].mxu0
    %v6490 = vadd.f32 %v6449, %v6489
    %v6491 = vpop.f32.mrb[0].mxu0
    %v6492 = vadd.f32 %v6451, %v6491
    %v6493 = vpop.f32.mrb[0].mxu0
    %v6494 = vpop.f32.mrb[0].mxu0
    %6495 = vdwg.mxu0
    %6496 = vmatprep.subr.bf16.mxu0 %v4797
    %6497 = vmatpush1.bf16.msra.mxu0 %v4796
    %6498 = vmatprep.subr.bf16.mxu0 %v4805
    %6499 = vmatpush1.bf16.msra.mxu0 %v4804
    %6500 = vmatprep.subr.bf16.mxu0 %v4813
    %6501 = vmatpush1.bf16.msra.mxu0 %v4812
    %6502 = vmatprep.subr.bf16.mxu0 %v4821
    %6503 = vmatpush1.bf16.msra.mxu0 %v4820
    %6504 = vmatprep.subr.bf16.mxu0 %v4829
    %6505 = vmatpush1.bf16.msra.mxu0 %v4828
    %6506 = vmatprep.subr.bf16.mxu0 %v4837
    %6507 = vmatpush1.bf16.msra.mxu0 %v4836
    %6508 = vmatprep.subr.bf16.mxu0 %v4845
    %6509 = vmatpush1.bf16.msra.mxu0 %v4844
    %6510 = vmatprep.subr.bf16.mxu0 %v4853
    %6511 = vmatpush1.bf16.msra.mxu0 %v4852
    %6512 = vmatprep.subr.bf16.mxu0 %v4861
    %6513 = vmatpush1.bf16.msra.mxu0 %v4860
    %6514 = vmatprep.subr.bf16.mxu0 %v4869
    %6515 = vmatpush1.bf16.msra.mxu0 %v4868
    %6516 = vmatprep.subr.bf16.mxu0 %v4877
    %6517 = vmatpush1.bf16.msra.mxu0 %v4876
    %6518 = vmatprep.subr.bf16.mxu0 %v4885
    %6519 = vmatpush1.bf16.msra.mxu0 %v4884
    %6520 = vmatprep.subr.bf16.mxu0 %v4893
    %6521 = vmatpush1.bf16.msra.mxu0 %v4892
    %6522 = vmatprep.subr.bf16.mxu0 %v4901
    %6523 = vmatpush1.bf16.msra.mxu0 %v4900
    %6524 = vmatprep.subr.bf16.mxu0 %v4909
    %6525 = vmatpush1.bf16.msra.mxu0 %v4908
    %6526 = vmatprep.subr.bf16.mxu0 %v4917
    %6527 = vmatpush1.bf16.msra.mxu0 %v4916
    %6528 = vmatprep.mubr.bf16.mxu0 %v1184
    %6529 = vmatmul.mubr.bf16.gmra.mrb[0].mxu0 %v1170
    %v6530 = vpop.f32.mrb[0].mxu0
    %v6531 = vadd.f32 %v6490, %v6530
    %v6532 = vpop.f32.mrb[0].mxu0
    %v6533 = vadd.f32 %v6492, %v6532
    %v6534 = vpop.f32.mrb[0].mxu0
    %v6535 = vpop.f32.mrb[0].mxu0
    %6536 = vdwg.mxu0
    %6537 = vmatprep.subr.bf16.mxu0 %v4925
    %6538 = vmatpush1.bf16.msra.mxu0 %v4924
    %6539 = vmatprep.subr.bf16.mxu0 %v4933
    %6540 = vmatpush1.bf16.msra.mxu0 %v4932
    %6541 = vmatprep.subr.bf16.mxu0 %v4941
    %6542 = vmatpush1.bf16.msra.mxu0 %v4940
    %6543 = vmatprep.subr.bf16.mxu0 %v4949
    %6544 = vmatpush1.bf16.msra.mxu0 %v4948
    %6545 = vmatprep.subr.bf16.mxu0 %v4957
    %6546 = vmatpush1.bf16.msra.mxu0 %v4956
    %6547 = vmatprep.subr.bf16.mxu0 %v4965
    %6548 = vmatpush1.bf16.msra.mxu0 %v4964
    %6549 = vmatprep.subr.bf16.mxu0 %v4973
    %6550 = vmatpush1.bf16.msra.mxu0 %v4972
    %6551 = vmatprep.subr.bf16.mxu0 %v4981
    %6552 = vmatpush1.bf16.msra.mxu0 %v4980
    %6553 = vmatprep.subr.bf16.mxu0 %v4989
    %6554 = vmatpush1.bf16.msra.mxu0 %v4988
    %6555 = vmatprep.subr.bf16.mxu0 %v4997
    %6556 = vmatpush1.bf16.msra.mxu0 %v4996
    %6557 = vmatprep.subr.bf16.mxu0 %v5005
    %6558 = vmatpush1.bf16.msra.mxu0 %v5004
    %6559 = vmatprep.subr.bf16.mxu0 %v5013
    %6560 = vmatpush1.bf16.msra.mxu0 %v5012
    %6561 = vmatprep.subr.bf16.mxu0 %v5021
    %6562 = vmatpush1.bf16.msra.mxu0 %v5020
    %6563 = vmatprep.subr.bf16.mxu0 %v5029
    %6564 = vmatpush1.bf16.msra.mxu0 %v5028
    %6565 = vmatprep.subr.bf16.mxu0 %v5037
    %6566 = vmatpush1.bf16.msra.mxu0 %v5036
    %6567 = vmatprep.subr.bf16.mxu0 %v5045
    %6568 = vmatpush1.bf16.msra.mxu0 %v5044
    %6569 = vmatprep.mubr.bf16.mxu0 %v1194
    %6570 = vmatmul.mubr.bf16.gmra.mrb[0].mxu0 %v1192
    %v6571 = vpop.f32.mrb[0].mxu0
    %v6572 = vadd.f32 %v6531, %v6571
    %v6573 = vpop.f32.mrb[0].mxu0
    %v6574 = vadd.f32 %v6533, %v6573
    %v6575 = vpop.f32.mrb[0].mxu0
    %v6576 = vpop.f32.mrb[0].mxu0
    %6577 = vdwg.mxu0
    %6578 = vmatprep.subr.bf16.mxu0 %v5053
    %6579 = vmatpush1.bf16.msra.mxu0 %v5052
    %6580 = vmatprep.subr.bf16.mxu0 %v5061
    %6581 = vmatpush1.bf16.msra.mxu0 %v5060
    %6582 = vmatprep.subr.bf16.mxu0 %v5069
    %6583 = vmatpush1.bf16.msra.mxu0 %v5068
    %6584 = vmatprep.subr.bf16.mxu0 %v5077
    %6585 = vmatpush1.bf16.msra.mxu0 %v5076
    %6586 = vmatprep.subr.bf16.mxu0 %v5085
    %6587 = vmatpush1.bf16.msra.mxu0 %v5084
    %6588 = vmatprep.subr.bf16.mxu0 %v5093
    %6589 = vmatpush1.bf16.msra.mxu0 %v5092
    %6590 = vmatprep.subr.bf16.mxu0 %v5101
    %6591 = vmatpush1.bf16.msra.mxu0 %v5100
    %6592 = vmatprep.subr.bf16.mxu0 %v5109
    %6593 = vmatpush1.bf16.msra.mxu0 %v5108
    %6594 = vmatprep.subr.bf16.mxu0 %v5117
    %6595 = vmatpush1.bf16.msra.mxu0 %v5116
    %6596 = vmatprep.subr.bf16.mxu0 %v5125
    %6597 = vmatpush1.bf16.msra.mxu0 %v5124
    %6598 = vmatprep.subr.bf16.mxu0 %v5133
    %6599 = vmatpush1.bf16.msra.mxu0 %v5132
    %6600 = vmatprep.subr.bf16.mxu0 %v5141
    %6601 = vmatpush1.bf16.msra.mxu0 %v5140
    %6602 = vmatprep.subr.bf16.mxu0 %v5149
    %6603 = vmatpush1.bf16.msra.mxu0 %v5148
    %6604 = vmatprep.subr.bf16.mxu0 %v5157
    %6605 = vmatpush1.bf16.msra.mxu0 %v5156
    %6606 = vmatprep.subr.bf16.mxu0 %v5165
    %6607 = vmatpush1.bf16.msra.mxu0 %v5164
    %6608 = vmatprep.subr.bf16.mxu0 %v5173
    %6609 = vmatpush1.bf16.msra.mxu0 %v5172
    %6610 = vmatprep.mubr.bf16.mxu0 %v1191
    %6611 = vmatmul.mubr.bf16.gmra.mrb[0].mxu0 %v1177
    %v6612 = vpop.f32.mrb[0].mxu0
    %v6613 = vadd.f32 %v6572, %v6612
    %v6614 = vpop.f32.mrb[0].mxu0
    %v6615 = vadd.f32 %v6574, %v6614
    %v6616 = vpop.f32.mrb[0].mxu0
    %v6617 = vpop.f32.mrb[0].mxu0
    %6618 = vdwg.mxu0
    %6619 = vmatprep.subr.bf16.mxu0 %v5181
    %6620 = vmatpush1.bf16.msra.mxu0 %v5180
    %6621 = vmatprep.subr.bf16.mxu0 %v5189
    %6622 = vmatpush1.bf16.msra.mxu0 %v5188
    %6623 = vmatprep.subr.bf16.mxu0 %v5197
    %6624 = vmatpush1.bf16.msra.mxu0 %v5196
    %6625 = vmatprep.subr.bf16.mxu0 %v5205
    %6626 = vmatpush1.bf16.msra.mxu0 %v5204
    %6627 = vmatprep.subr.bf16.mxu0 %v5213
    %6628 = vmatpush1.bf16.msra.mxu0 %v5212
    %6629 = vmatprep.subr.bf16.mxu0 %v5221
    %6630 = vmatpush1.bf16.msra.mxu0 %v5220
    %6631 = vmatprep.subr.bf16.mxu0 %v5229
    %6632 = vmatpush1.bf16.msra.mxu0 %v5228
    %6633 = vmatprep.subr.bf16.mxu0 %v5237
    %6634 = vmatpush1.bf16.msra.mxu0 %v5236
    %6635 = vmatprep.subr.bf16.mxu0 %v5245
    %6636 = vmatpush1.bf16.msra.mxu0 %v5244
    %6637 = vmatprep.subr.bf16.mxu0 %v5253
    %6638 = vmatpush1.bf16.msra.mxu0 %v5252
    %6639 = vmatprep.subr.bf16.mxu0 %v5261
    %6640 = vmatpush1.bf16.msra.mxu0 %v5260
    %6641 = vmatprep.subr.bf16.mxu0 %v5269
    %6642 = vmatpush1.bf16.msra.mxu0 %v5268
    %6643 = vmatprep.subr.bf16.mxu0 %v5277
    %6644 = vmatpush1.bf16.msra.mxu0 %v5276
    %6645 = vmatprep.subr.bf16.mxu0 %v5285
    %6646 = vmatpush1.bf16.msra.mxu0 %v5284
    %6647 = vmatprep.subr.bf16.mxu0 %v5293
    %6648 = vmatpush1.bf16.msra.mxu0 %v5292
    %6649 = vmatprep.subr.bf16.mxu0 %v5301
    %6650 = vmatpush1.bf16.msra.mxu0 %v5300
    %6651 = vmatprep.mubr.bf16.mxu0 %v1195
    %6652 = vmatmul.mubr.bf16.gmra.mrb[0].mxu0 %v1193
    %v6653 = vpop.f32.mrb[0].mxu0
    %v6654 = vadd.f32 %v6613, %v6653
    %v6655 = vpop.f32.mrb[0].mxu0
    %v6656 = vadd.f32 %v6615, %v6655
    %v6657 = vpop.f32.mrb[0].mxu0
    %v6658 = vpop.f32.mrb[0].mxu0
    %6659 = vdwg.mxu0
    %6660 = vmatprep.subr.bf16.mxu0 %v4287
    %6661 = vmatpush1.bf16.msra.mxu0 %v4286
    %6662 = vmatprep.subr.bf16.mxu0 %v4295
    %6663 = vmatpush1.bf16.msra.mxu0 %v4294
    %6664 = vmatprep.subr.bf16.mxu0 %v4303
    %6665 = vmatpush1.bf16.msra.mxu0 %v4302
    %6666 = vmatprep.subr.bf16.mxu0 %v4311
    %6667 = vmatpush1.bf16.msra.mxu0 %v4310
    %6668 = vmatprep.subr.bf16.mxu0 %v4319
    %6669 = vmatpush1.bf16.msra.mxu0 %v4318
    %6670 = vmatprep.subr.bf16.mxu0 %v4327
    %6671 = vmatpush1.bf16.msra.mxu0 %v4326
    %6672 = vmatprep.subr.bf16.mxu0 %v4335
    %6673 = vmatpush1.bf16.msra.mxu0 %v4334
    %6674 = vmatprep.subr.bf16.mxu0 %v4343
    %6675 = vmatpush1.bf16.msra.mxu0 %v4342
    %6676 = vmatprep.subr.bf16.mxu0 %v4351
    %6677 = vmatpush1.bf16.msra.mxu0 %v4350
    %6678 = vmatprep.subr.bf16.mxu0 %v4359
    %6679 = vmatpush1.bf16.msra.mxu0 %v4358
    %6680 = vmatprep.subr.bf16.mxu0 %v4367
    %6681 = vmatpush1.bf16.msra.mxu0 %v4366
    %6682 = vmatprep.subr.bf16.mxu0 %v4375
    %6683 = vmatpush1.bf16.msra.mxu0 %v4374
    %6684 = vmatprep.subr.bf16.mxu0 %v4383
    %6685 = vmatpush1.bf16.msra.mxu0 %v4382
    %6686 = vmatprep.subr.bf16.mxu0 %v4391
    %6687 = vmatpush1.bf16.msra.mxu0 %v4390
    %6688 = vmatprep.subr.bf16.mxu0 %v4399
    %6689 = vmatpush1.bf16.msra.mxu0 %v4398
    %6690 = vmatprep.subr.bf16.mxu0 %v4407
    %6691 = vmatpush1.bf16.msra.mxu0 %v4406
    %6692 = vmatprep.mubr.bf16.mxu0 %v1135
    %6693 = vmatmul.mubr.bf16.gmra.mrb[0].mxu0 %v1121
    %v6694 = vpop.f32.mrb[0].mxu0
    %v6695 = vadd.f32 %v1067, %v6694
    %v6696 = vpop.f32.mrb[0].mxu0
    %v6697 = vadd.f32 %v1071, %v6696
    %v6698 = vpop.f32.mrb[0].mxu0
    %v6699 = vpop.f32.mrb[0].mxu0
    %6700 = vdwg.mxu0
    %6701 = vmatprep.subr.bf16.mxu0 %v4415
    %6702 = vmatpush1.bf16.msra.mxu0 %v4414
    %6703 = vmatprep.subr.bf16.mxu0 %v4423
    %6704 = vmatpush1.bf16.msra.mxu0 %v4422
    %6705 = vmatprep.subr.bf16.mxu0 %v4431
    %6706 = vmatpush1.bf16.msra.mxu0 %v4430
    %6707 = vmatprep.subr.bf16.mxu0 %v4439
    %6708 = vmatpush1.bf16.msra.mxu0 %v4438
    %6709 = vmatprep.subr.bf16.mxu0 %v4447
    %6710 = vmatpush1.bf16.msra.mxu0 %v4446
    %6711 = vmatprep.subr.bf16.mxu0 %v4455
    %6712 = vmatpush1.bf16.msra.mxu0 %v4454
    %6713 = vmatprep.subr.bf16.mxu0 %v4463
    %6714 = vmatpush1.bf16.msra.mxu0 %v4462
    %6715 = vmatprep.subr.bf16.mxu0 %v4471
    %6716 = vmatpush1.bf16.msra.mxu0 %v4470
    %6717 = vmatprep.subr.bf16.mxu0 %v4479
    %6718 = vmatpush1.bf16.msra.mxu0 %v4478
    %6719 = vmatprep.subr.bf16.mxu0 %v4487
    %6720 = vmatpush1.bf16.msra.mxu0 %v4486
    %6721 = vmatprep.subr.bf16.mxu0 %v4495
    %6722 = vmatpush1.bf16.msra.mxu0 %v4494
    %6723 = vmatprep.subr.bf16.mxu0 %v4503
    %6724 = vmatpush1.bf16.msra.mxu0 %v4502
    %6725 = vmatprep.subr.bf16.mxu0 %v4511
    %6726 = vmatpush1.bf16.msra.mxu0 %v4510
    %6727 = vmatprep.subr.bf16.mxu0 %v4519
    %6728 = vmatpush1.bf16.msra.mxu0 %v4518
    %6729 = vmatprep.subr.bf16.mxu0 %v4527
    %6730 = vmatpush1.bf16.msra.mxu0 %v4526
    %6731 = vmatprep.subr.bf16.mxu0 %v4535
    %6732 = vmatpush1.bf16.msra.mxu0 %v4534
    %6733 = vmatprep.mubr.bf16.mxu0 %v1145
    %6734 = vmatmul.mubr.bf16.gmra.mrb[0].mxu0 %v1143
    %v6735 = vpop.f32.mrb[0].mxu0
    %v6736 = vadd.f32 %v6695, %v6735
    %v6737 = vpop.f32.mrb[0].mxu0
    %v6738 = vadd.f32 %v6697, %v6737
    %v6739 = vpop.f32.mrb[0].mxu0
    %v6740 = vpop.f32.mrb[0].mxu0
    %6741 = vdwg.mxu0
    %6742 = vmatprep.subr.bf16.mxu0 %v4543
    %6743 = vmatpush1.bf16.msra.mxu0 %v4542
    %6744 = vmatprep.subr.bf16.mxu0 %v4551
    %6745 = vmatpush1.bf16.msra.mxu0 %v4550
    %6746 = vmatprep.subr.bf16.mxu0 %v4559
    %6747 = vmatpush1.bf16.msra.mxu0 %v4558
    %6748 = vmatprep.subr.bf16.mxu0 %v4567
    %6749 = vmatpush1.bf16.msra.mxu0 %v4566
    %6750 = vmatprep.subr.bf16.mxu0 %v4575
    %6751 = vmatpush1.bf16.msra.mxu0 %v4574
    %6752 = vmatprep.subr.bf16.mxu0 %v4583
    %6753 = vmatpush1.bf16.msra.mxu0 %v4582
    %6754 = vmatprep.subr.bf16.mxu0 %v4591
    %6755 = vmatpush1.bf16.msra.mxu0 %v4590
    %6756 = vmatprep.subr.bf16.mxu0 %v4599
    %6757 = vmatpush1.bf16.msra.mxu0 %v4598
    %6758 = vmatprep.subr.bf16.mxu0 %v4607
    %6759 = vmatpush1.bf16.msra.mxu0 %v4606
    %6760 = vmatprep.subr.bf16.mxu0 %v4615
    %6761 = vmatpush1.bf16.msra.mxu0 %v4614
    %6762 = vmatprep.subr.bf16.mxu0 %v4623
    %6763 = vmatpush1.bf16.msra.mxu0 %v4622
    %6764 = vmatprep.subr.bf16.mxu0 %v4631
    %6765 = vmatpush1.bf16.msra.mxu0 %v4630
    %6766 = vmatprep.subr.bf16.mxu0 %v4639
    %6767 = vmatpush1.bf16.msra.mxu0 %v4638
    %6768 = vmatprep.subr.bf16.mxu0 %v4647
    %6769 = vmatpush1.bf16.msra.mxu0 %v4646
    %6770 = vmatprep.subr.bf16.mxu0 %v4655
    %6771 = vmatpush1.bf16.msra.mxu0 %v4654
    %6772 = vmatprep.subr.bf16.mxu0 %v4663
    %6773 = vmatpush1.bf16.msra.mxu0 %v4662
    %6774 = vmatprep.mubr.bf16.mxu0 %v1142
    %6775 = vmatmul.mubr.bf16.gmra.mrb[0].mxu0 %v1128
    %v6776 = vpop.f32.mrb[0].mxu0
    %v6777 = vadd.f32 %v6736, %v6776
    %v6778 = vpop.f32.mrb[0].mxu0
    %v6779 = vadd.f32 %v6738, %v6778
    %v6780 = vpop.f32.mrb[0].mxu0
    %v6781 = vpop.f32.mrb[0].mxu0
    %6782 = vdwg.mxu0
    %6783 = vmatprep.subr.bf16.mxu0 %v4671
    %6784 = vmatpush1.bf16.msra.mxu0 %v4670
    %6785 = vmatprep.subr.bf16.mxu0 %v4679
    %6786 = vmatpush1.bf16.msra.mxu0 %v4678
    %6787 = vmatprep.subr.bf16.mxu0 %v4687
    %6788 = vmatpush1.bf16.msra.mxu0 %v4686
    %6789 = vmatprep.subr.bf16.mxu0 %v4695
    %6790 = vmatpush1.bf16.msra.mxu0 %v4694
    %6791 = vmatprep.subr.bf16.mxu0 %v4703
    %6792 = vmatpush1.bf16.msra.mxu0 %v4702
    %6793 = vmatprep.subr.bf16.mxu0 %v4711
    %6794 = vmatpush1.bf16.msra.mxu0 %v4710
    %6795 = vmatprep.subr.bf16.mxu0 %v4719
    %6796 = vmatpush1.bf16.msra.mxu0 %v4718
    %6797 = vmatprep.subr.bf16.mxu0 %v4727
    %6798 = vmatpush1.bf16.msra.mxu0 %v4726
    %6799 = vmatprep.subr.bf16.mxu0 %v4735
    %6800 = vmatpush1.bf16.msra.mxu0 %v4734
    %6801 = vmatprep.subr.bf16.mxu0 %v4743
    %6802 = vmatpush1.bf16.msra.mxu0 %v4742
    %6803 = vmatprep.subr.bf16.mxu0 %v4751
    %6804 = vmatpush1.bf16.msra.mxu0 %v4750
    %6805 = vmatprep.subr.bf16.mxu0 %v4759
    %6806 = vmatpush1.bf16.msra.mxu0 %v4758
    %6807 = vmatprep.subr.bf16.mxu0 %v4767
    %6808 = vmatpush1.bf16.msra.mxu0 %v4766
    %6809 = vmatprep.subr.bf16.mxu0 %v4775
    %6810 = vmatpush1.bf16.msra.mxu0 %v4774
    %6811 = vmatprep.subr.bf16.mxu0 %v4783
    %6812 = vmatpush1.bf16.msra.mxu0 %v4782
    %6813 = vmatprep.subr.bf16.mxu0 %v4791
    %6814 = vmatpush1.bf16.msra.mxu0 %v4790
    %6815 = vmatprep.mubr.bf16.mxu0 %v1146
    %6816 = vmatmul.mubr.bf16.gmra.mrb[0].mxu0 %v1144
    %v6817 = vpop.f32.mrb[0].mxu0
    %v6818 = vadd.f32 %v6777, %v6817
    %v6819 = vpop.f32.mrb[0].mxu0
    %v6820 = vadd.f32 %v6779, %v6819
    %v6821 = vpop.f32.mrb[0].mxu0
    %v6822 = vpop.f32.mrb[0].mxu0
    %6823 = vdwg.mxu0
    %6824 = vmatprep.subr.bf16.mxu0 %v4799
    %6825 = vmatpush1.bf16.msra.mxu0 %v4798
    %6826 = vmatprep.subr.bf16.mxu0 %v4807
    %6827 = vmatpush1.bf16.msra.mxu0 %v4806
    %6828 = vmatprep.subr.bf16.mxu0 %v4815
    %6829 = vmatpush1.bf16.msra.mxu0 %v4814
    %6830 = vmatprep.subr.bf16.mxu0 %v4823
    %6831 = vmatpush1.bf16.msra.mxu0 %v4822
    %6832 = vmatprep.subr.bf16.mxu0 %v4831
    %6833 = vmatpush1.bf16.msra.mxu0 %v4830
    %6834 = vmatprep.subr.bf16.mxu0 %v4839
    %6835 = vmatpush1.bf16.msra.mxu0 %v4838
    %6836 = vmatprep.subr.bf16.mxu0 %v4847
    %6837 = vmatpush1.bf16.msra.mxu0 %v4846
    %6838 = vmatprep.subr.bf16.mxu0 %v4855
    %6839 = vmatpush1.bf16.msra.mxu0 %v4854
    %6840 = vmatprep.subr.bf16.mxu0 %v4863
    %6841 = vmatpush1.bf16.msra.mxu0 %v4862
    %6842 = vmatprep.subr.bf16.mxu0 %v4871
    %6843 = vmatpush1.bf16.msra.mxu0 %v4870
    %6844 = vmatprep.subr.bf16.mxu0 %v4879
    %6845 = vmatpush1.bf16.msra.mxu0 %v4878
    %6846 = vmatprep.subr.bf16.mxu0 %v4887
    %6847 = vmatpush1.bf16.msra.mxu0 %v4886
    %6848 = vmatprep.subr.bf16.mxu0 %v4895
    %6849 = vmatpush1.bf16.msra.mxu0 %v4894
    %6850 = vmatprep.subr.bf16.mxu0 %v4903
    %6851 = vmatpush1.bf16.msra.mxu0 %v4902
    %6852 = vmatprep.subr.bf16.mxu0 %v4911
    %6853 = vmatpush1.bf16.msra.mxu0 %v4910
    %6854 = vmatprep.subr.bf16.mxu0 %v4919
    %6855 = vmatpush1.bf16.msra.mxu0 %v4918
    %6856 = vmatprep.mubr.bf16.mxu0 %v1184
    %6857 = vmatmul.mubr.bf16.gmra.mrb[0].mxu0 %v1170
    %v6858 = vpop.f32.mrb[0].mxu0
    %v6859 = vadd.f32 %v6818, %v6858
    %v6860 = vpop.f32.mrb[0].mxu0
    %v6861 = vadd.f32 %v6820, %v6860
    %v6862 = vpop.f32.mrb[0].mxu0
    %v6863 = vpop.f32.mrb[0].mxu0
    %6864 = vdwg.mxu0
    %6865 = vmatprep.subr.bf16.mxu0 %v4927
    %6866 = vmatpush1.bf16.msra.mxu0 %v4926
    %6867 = vmatprep.subr.bf16.mxu0 %v4935
    %6868 = vmatpush1.bf16.msra.mxu0 %v4934
    %6869 = vmatprep.subr.bf16.mxu0 %v4943
    %6870 = vmatpush1.bf16.msra.mxu0 %v4942
    %6871 = vmatprep.subr.bf16.mxu0 %v4951
    %6872 = vmatpush1.bf16.msra.mxu0 %v4950
    %6873 = vmatprep.subr.bf16.mxu0 %v4959
    %6874 = vmatpush1.bf16.msra.mxu0 %v4958
    %6875 = vmatprep.subr.bf16.mxu0 %v4967
    %6876 = vmatpush1.bf16.msra.mxu0 %v4966
    %6877 = vmatprep.subr.bf16.mxu0 %v4975
    %6878 = vmatpush1.bf16.msra.mxu0 %v4974
    %6879 = vmatprep.subr.bf16.mxu0 %v4983
    %6880 = vmatpush1.bf16.msra.mxu0 %v4982
    %6881 = vmatprep.subr.bf16.mxu0 %v4991
    %6882 = vmatpush1.bf16.msra.mxu0 %v4990
    %6883 = vmatprep.subr.bf16.mxu0 %v4999
    %6884 = vmatpush1.bf16.msra.mxu0 %v4998
    %6885 = vmatprep.subr.bf16.mxu0 %v5007
    %6886 = vmatpush1.bf16.msra.mxu0 %v5006
    %6887 = vmatprep.subr.bf16.mxu0 %v5015
    %6888 = vmatpush1.bf16.msra.mxu0 %v5014
    %6889 = vmatprep.subr.bf16.mxu0 %v5023
    %6890 = vmatpush1.bf16.msra.mxu0 %v5022
    %6891 = vmatprep.subr.bf16.mxu0 %v5031
    %6892 = vmatpush1.bf16.msra.mxu0 %v5030
    %6893 = vmatprep.subr.bf16.mxu0 %v5039
    %6894 = vmatpush1.bf16.msra.mxu0 %v5038
    %6895 = vmatprep.subr.bf16.mxu0 %v5047
    %6896 = vmatpush1.bf16.msra.mxu0 %v5046
    %6897 = vmatprep.mubr.bf16.mxu0 %v1194
    %6898 = vmatmul.mubr.bf16.gmra.mrb[0].mxu0 %v1192
    %v6899 = vpop.f32.mrb[0].mxu0
    %v6900 = vadd.f32 %v6859, %v6899
    %v6901 = vpop.f32.mrb[0].mxu0
    %v6902 = vadd.f32 %v6861, %v6901
    %v6903 = vpop.f32.mrb[0].mxu0
    %v6904 = vpop.f32.mrb[0].mxu0
    %6905 = vdwg.mxu0
    %6906 = vmatprep.subr.bf16.mxu0 %v5055
    %6907 = vmatpush1.bf16.msra.mxu0 %v5054
    %6908 = vmatprep.subr.bf16.mxu0 %v5063
    %6909 = vmatpush1.bf16.msra.mxu0 %v5062
    %6910 = vmatprep.subr.bf16.mxu0 %v5071
    %6911 = vmatpush1.bf16.msra.mxu0 %v5070
    %6912 = vmatprep.subr.bf16.mxu0 %v5079
    %6913 = vmatpush1.bf16.msra.mxu0 %v5078
    %6914 = vmatprep.subr.bf16.mxu0 %v5087
    %6915 = vmatpush1.bf16.msra.mxu0 %v5086
    %6916 = vmatprep.subr.bf16.mxu0 %v5095
    %6917 = vmatpush1.bf16.msra.mxu0 %v5094
    %6918 = vmatprep.subr.bf16.mxu0 %v5103
    %6919 = vmatpush1.bf16.msra.mxu0 %v5102
    %6920 = vmatprep.subr.bf16.mxu0 %v5111
    %6921 = vmatpush1.bf16.msra.mxu0 %v5110
    %6922 = vmatprep.subr.bf16.mxu0 %v5119
    %6923 = vmatpush1.bf16.msra.mxu0 %v5118
    %6924 = vmatprep.subr.bf16.mxu0 %v5127
    %6925 = vmatpush1.bf16.msra.mxu0 %v5126
    %6926 = vmatprep.subr.bf16.mxu0 %v5135
    %6927 = vmatpush1.bf16.msra.mxu0 %v5134
    %6928 = vmatprep.subr.bf16.mxu0 %v5143
    %6929 = vmatpush1.bf16.msra.mxu0 %v5142
    %6930 = vmatprep.subr.bf16.mxu0 %v5151
    %6931 = vmatpush1.bf16.msra.mxu0 %v5150
    %6932 = vmatprep.subr.bf16.mxu0 %v5159
    %6933 = vmatpush1.bf16.msra.mxu0 %v5158
    %6934 = vmatprep.subr.bf16.mxu0 %v5167
    %6935 = vmatpush1.bf16.msra.mxu0 %v5166
    %6936 = vmatprep.subr.bf16.mxu0 %v5175
    %6937 = vmatpush1.bf16.msra.mxu0 %v5174
    %6938 = vmatprep.mubr.bf16.mxu0 %v1191
    %6939 = vmatmul.mubr.bf16.gmra.mrb[0].mxu0 %v1177
    %v6940 = vpop.f32.mrb[0].mxu0
    %v6941 = vadd.f32 %v6900, %v6940
    %v6942 = vpop.f32.mrb[0].mxu0
    %v6943 = vadd.f32 %v6902, %v6942
    %v6944 = vpop.f32.mrb[0].mxu0
    %v6945 = vpop.f32.mrb[0].mxu0
    %6946 = vdwg.mxu0
    %6947 = vmatprep.subr.bf16.mxu0 %v5183
    %6948 = vmatpush1.bf16.msra.mxu0 %v5182
    %6949 = vmatprep.subr.bf16.mxu0 %v5191
    %6950 = vmatpush1.bf16.msra.mxu0 %v5190
    %6951 = vmatprep.subr.bf16.mxu0 %v5199
    %6952 = vmatpush1.bf16.msra.mxu0 %v5198
    %6953 = vmatprep.subr.bf16.mxu0 %v5207
    %6954 = vmatpush1.bf16.msra.mxu0 %v5206
    %6955 = vmatprep.subr.bf16.mxu0 %v5215
    %6956 = vmatpush1.bf16.msra.mxu0 %v5214
    %6957 = vmatprep.subr.bf16.mxu0 %v5223
    %6958 = vmatpush1.bf16.msra.mxu0 %v5222
    %6959 = vmatprep.subr.bf16.mxu0 %v5231
    %6960 = vmatpush1.bf16.msra.mxu0 %v5230
    %6961 = vmatprep.subr.bf16.mxu0 %v5239
    %6962 = vmatpush1.bf16.msra.mxu0 %v5238
    %6963 = vmatprep.subr.bf16.mxu0 %v5247
    %6964 = vmatpush1.bf16.msra.mxu0 %v5246
    %6965 = vmatprep.subr.bf16.mxu0 %v5255
    %6966 = vmatpush1.bf16.msra.mxu0 %v5254
    %6967 = vmatprep.subr.bf16.mxu0 %v5263
    %6968 = vmatpush1.bf16.msra.mxu0 %v5262
    %6969 = vmatprep.subr.bf16.mxu0 %v5271
    %6970 = vmatpush1.bf16.msra.mxu0 %v5270
    %6971 = vmatprep.subr.bf16.mxu0 %v5279
    %6972 = vmatpush1.bf16.msra.mxu0 %v5278
    %6973 = vmatprep.subr.bf16.mxu0 %v5287
    %6974 = vmatpush1.bf16.msra.mxu0 %v5286
    %6975 = vmatprep.subr.bf16.mxu0 %v5295
    %6976 = vmatpush1.bf16.msra.mxu0 %v5294
    %6977 = vmatprep.subr.bf16.mxu0 %v5303
    %6978 = vmatpush1.bf16.msra.mxu0 %v5302
    %6979 = vmatprep.mubr.bf16.mxu0 %v1195
    %6980 = vmatmul.mubr.bf16.gmra.mrb[0].mxu0 %v1193
    %v6981 = vpop.f32.mrb[0].mxu0
    %v6982 = vadd.f32 %v6941, %v6981
    %v6983 = vpop.f32.mrb[0].mxu0
    %v6984 = vadd.f32 %v6943, %v6983
    %v6985 = vpop.f32.mrb[0].mxu0
    %v6986 = vpop.f32.mrb[0].mxu0
    %6987 = vdwg.mxu0
    %6988 = vmatprep.subr.bf16.mxu0 %v4289
    %6989 = vmatpush1.bf16.msra.mxu0 %v4288
    %6990 = vmatprep.subr.bf16.mxu0 %v4297
    %6991 = vmatpush1.bf16.msra.mxu0 %v4296
    %6992 = vmatprep.subr.bf16.mxu0 %v4305
    %6993 = vmatpush1.bf16.msra.mxu0 %v4304
    %6994 = vmatprep.subr.bf16.mxu0 %v4313
    %6995 = vmatpush1.bf16.msra.mxu0 %v4312
    %6996 = vmatprep.subr.bf16.mxu0 %v4321
    %6997 = vmatpush1.bf16.msra.mxu0 %v4320
    %6998 = vmatprep.subr.bf16.mxu0 %v4329
    %6999 = vmatpush1.bf16.msra.mxu0 %v4328
    %7000 = vmatprep.subr.bf16.mxu0 %v4337
    %7001 = vmatpush1.bf16.msra.mxu0 %v4336
    %7002 = vmatprep.subr.bf16.mxu0 %v4345
    %7003 = vmatpush1.bf16.msra.mxu0 %v4344
    %7004 = vmatprep.subr.bf16.mxu0 %v4353
    %7005 = vmatpush1.bf16.msra.mxu0 %v4352
    %7006 = vmatprep.subr.bf16.mxu0 %v4361
    %7007 = vmatpush1.bf16.msra.mxu0 %v4360
    %7008 = vmatprep.subr.bf16.mxu0 %v4369
    %7009 = vmatpush1.bf16.msra.mxu0 %v4368
    %7010 = vmatprep.subr.bf16.mxu0 %v4377
    %7011 = vmatpush1.bf16.msra.mxu0 %v4376
    %7012 = vmatprep.subr.bf16.mxu0 %v4385
    %7013 = vmatpush1.bf16.msra.mxu0 %v4384
    %7014 = vmatprep.subr.bf16.mxu0 %v4393
    %7015 = vmatpush1.bf16.msra.mxu0 %v4392
    %7016 = vmatprep.subr.bf16.mxu0 %v4401
    %7017 = vmatpush1.bf16.msra.mxu0 %v4400
    %7018 = vmatprep.subr.bf16.mxu0 %v4409
    %7019 = vmatpush1.bf16.msra.mxu0 %v4408
    %7020 = vmatprep.mubr.bf16.mxu0 %v1135
    %7021 = vmatmul.mubr.bf16.gmra.mrb[0].mxu0 %v1121
    %v7022 = vpop.f32.mrb[0].mxu0
    %v7023 = vadd.f32 %v1075, %v7022
    %v7024 = vpop.f32.mrb[0].mxu0
    %v7025 = vadd.f32 %v1079, %v7024
    %v7026 = vpop.f32.mrb[0].mxu0
    %v7027 = vpop.f32.mrb[0].mxu0
    %7028 = vdwg.mxu0
    %7029 = vmatprep.subr.bf16.mxu0 %v4417
    %7030 = vmatpush1.bf16.msra.mxu0 %v4416
    %7031 = vmatprep.subr.bf16.mxu0 %v4425
    %7032 = vmatpush1.bf16.msra.mxu0 %v4424
    %7033 = vmatprep.subr.bf16.mxu0 %v4433
    %7034 = vmatpush1.bf16.msra.mxu0 %v4432
    %7035 = vmatprep.subr.bf16.mxu0 %v4441
    %7036 = vmatpush1.bf16.msra.mxu0 %v4440
    %7037 = vmatprep.subr.bf16.mxu0 %v4449
    %7038 = vmatpush1.bf16.msra.mxu0 %v4448
    %7039 = vmatprep.subr.bf16.mxu0 %v4457
    %7040 = vmatpush1.bf16.msra.mxu0 %v4456
    %7041 = vmatprep.subr.bf16.mxu0 %v4465
    %7042 = vmatpush1.bf16.msra.mxu0 %v4464
    %7043 = vmatprep.subr.bf16.mxu0 %v4473
    %7044 = vmatpush1.bf16.msra.mxu0 %v4472
    %7045 = vmatprep.subr.bf16.mxu0 %v4481
    %7046 = vmatpush1.bf16.msra.mxu0 %v4480
    %7047 = vmatprep.subr.bf16.mxu0 %v4489
    %7048 = vmatpush1.bf16.msra.mxu0 %v4488
    %7049 = vmatprep.subr.bf16.mxu0 %v4497
    %7050 = vmatpush1.bf16.msra.mxu0 %v4496
    %7051 = vmatprep.subr.bf16.mxu0 %v4505
    %7052 = vmatpush1.bf16.msra.mxu0 %v4504
    %7053 = vmatprep.subr.bf16.mxu0 %v4513
    %7054 = vmatpush1.bf16.msra.mxu0 %v4512
    %7055 = vmatprep.subr.bf16.mxu0 %v4521
    %7056 = vmatpush1.bf16.msra.mxu0 %v4520
    %7057 = vmatprep.subr.bf16.mxu0 %v4529
    %7058 = vmatpush1.bf16.msra.mxu0 %v4528
    %7059 = vmatprep.subr.bf16.mxu0 %v4537
    %7060 = vmatpush1.bf16.msra.mxu0 %v4536
    %7061 = vmatprep.mubr.bf16.mxu0 %v1145
    %7062 = vmatmul.mubr.bf16.gmra.mrb[0].mxu0 %v1143
    %v7063 = vpop.f32.mrb[0].mxu0
    %v7064 = vadd.f32 %v7023, %v7063
    %v7065 = vpop.f32.mrb[0].mxu0
    %v7066 = vadd.f32 %v7025, %v7065
    %v7067 = vpop.f32.mrb[0].mxu0
    %v7068 = vpop.f32.mrb[0].mxu0
    %7069 = vdwg.mxu0
    %7070 = vmatprep.subr.bf16.mxu0 %v4545
    %7071 = vmatpush1.bf16.msra.mxu0 %v4544
    %7072 = vmatprep.subr.bf16.mxu0 %v4553
    %7073 = vmatpush1.bf16.msra.mxu0 %v4552
    %7074 = vmatprep.subr.bf16.mxu0 %v4561
    %7075 = vmatpush1.bf16.msra.mxu0 %v4560
    %7076 = vmatprep.subr.bf16.mxu0 %v4569
    %7077 = vmatpush1.bf16.msra.mxu0 %v4568
    %7078 = vmatprep.subr.bf16.mxu0 %v4577
    %7079 = vmatpush1.bf16.msra.mxu0 %v4576
    %7080 = vmatprep.subr.bf16.mxu0 %v4585
    %7081 = vmatpush1.bf16.msra.mxu0 %v4584
    %7082 = vmatprep.subr.bf16.mxu0 %v4593
    %7083 = vmatpush1.bf16.msra.mxu0 %v4592
    %7084 = vmatprep.subr.bf16.mxu0 %v4601
    %7085 = vmatpush1.bf16.msra.mxu0 %v4600
    %7086 = vmatprep.subr.bf16.mxu0 %v4609
    %7087 = vmatpush1.bf16.msra.mxu0 %v4608
    %7088 = vmatprep.subr.bf16.mxu0 %v4617
    %7089 = vmatpush1.bf16.msra.mxu0 %v4616
    %7090 = vmatprep.subr.bf16.mxu0 %v4625
    %7091 = vmatpush1.bf16.msra.mxu0 %v4624
    %7092 = vmatprep.subr.bf16.mxu0 %v4633
    %7093 = vmatpush1.bf16.msra.mxu0 %v4632
    %7094 = vmatprep.subr.bf16.mxu0 %v4641
    %7095 = vmatpush1.bf16.msra.mxu0 %v4640
    %7096 = vmatprep.subr.bf16.mxu0 %v4649
    %7097 = vmatpush1.bf16.msra.mxu0 %v4648
    %7098 = vmatprep.subr.bf16.mxu0 %v4657
    %7099 = vmatpush1.bf16.msra.mxu0 %v4656
    %7100 = vmatprep.subr.bf16.mxu0 %v4665
    %7101 = vmatpush1.bf16.msra.mxu0 %v4664
    %7102 = vmatprep.mubr.bf16.mxu0 %v1142
    %7103 = vmatmul.mubr.bf16.gmra.mrb[0].mxu0 %v1128
    %v7104 = vpop.f32.mrb[0].mxu0
    %v7105 = vadd.f32 %v7064, %v7104
    %v7106 = vpop.f32.mrb[0].mxu0
    %v7107 = vadd.f32 %v7066, %v7106
    %v7108 = vpop.f32.mrb[0].mxu0
    %v7109 = vpop.f32.mrb[0].mxu0
    %7110 = vdwg.mxu0
    %7111 = vmatprep.subr.bf16.mxu0 %v4673
    %7112 = vmatpush1.bf16.msra.mxu0 %v4672
    %7113 = vmatprep.subr.bf16.mxu0 %v4681
    %7114 = vmatpush1.bf16.msra.mxu0 %v4680
    %7115 = vmatprep.subr.bf16.mxu0 %v4689
    %7116 = vmatpush1.bf16.msra.mxu0 %v4688
    %7117 = vmatprep.subr.bf16.mxu0 %v4697
    %7118 = vmatpush1.bf16.msra.mxu0 %v4696
    %7119 = vmatprep.subr.bf16.mxu0 %v4705
    %7120 = vmatpush1.bf16.msra.mxu0 %v4704
    %7121 = vmatprep.subr.bf16.mxu0 %v4713
    %7122 = vmatpush1.bf16.msra.mxu0 %v4712
    %7123 = vmatprep.subr.bf16.mxu0 %v4721
    %7124 = vmatpush1.bf16.msra.mxu0 %v4720
    %7125 = vmatprep.subr.bf16.mxu0 %v4729
    %7126 = vmatpush1.bf16.msra.mxu0 %v4728
    %7127 = vmatprep.subr.bf16.mxu0 %v4737
    %7128 = vmatpush1.bf16.msra.mxu0 %v4736
    %7129 = vmatprep.subr.bf16.mxu0 %v4745
    %7130 = vmatpush1.bf16.msra.mxu0 %v4744
    %7131 = vmatprep.subr.bf16.mxu0 %v4753
    %7132 = vmatpush1.bf16.msra.mxu0 %v4752
    %7133 = vmatprep.subr.bf16.mxu0 %v4761
    %7134 = vmatpush1.bf16.msra.mxu0 %v4760
    %7135 = vmatprep.subr.bf16.mxu0 %v4769
    %7136 = vmatpush1.bf16.msra.mxu0 %v4768
    %7137 = vmatprep.subr.bf16.mxu0 %v4777
    %7138 = vmatpush1.bf16.msra.mxu0 %v4776
    %7139 = vmatprep.subr.bf16.mxu0 %v4785
    %7140 = vmatpush1.bf16.msra.mxu0 %v4784
    %7141 = vmatprep.subr.bf16.mxu0 %v4793
    %7142 = vmatpush1.bf16.msra.mxu0 %v4792
    %7143 = vmatprep.mubr.bf16.mxu0 %v1146
    %7144 = vmatmul.mubr.bf16.gmra.mrb[0].mxu0 %v1144
    %v7145 = vpop.f32.mrb[0].mxu0
    %v7146 = vadd.f32 %v7105, %v7145
    %v7147 = vpop.f32.mrb[0].mxu0
    %v7148 = vadd.f32 %v7107, %v7147
    %v7149 = vpop.f32.mrb[0].mxu0
    %v7150 = vpop.f32.mrb[0].mxu0
    %7151 = vdwg.mxu0
    %7152 = vmatprep.subr.bf16.mxu0 %v4801
    %7153 = vmatpush1.bf16.msra.mxu0 %v4800
    %7154 = vmatprep.subr.bf16.mxu0 %v4809
    %7155 = vmatpush1.bf16.msra.mxu0 %v4808
    %7156 = vmatprep.subr.bf16.mxu0 %v4817
    %7157 = vmatpush1.bf16.msra.mxu0 %v4816
    %7158 = vmatprep.subr.bf16.mxu0 %v4825
    %7159 = vmatpush1.bf16.msra.mxu0 %v4824
    %7160 = vmatprep.subr.bf16.mxu0 %v4833
    %7161 = vmatpush1.bf16.msra.mxu0 %v4832
    %7162 = vmatprep.subr.bf16.mxu0 %v4841
    %7163 = vmatpush1.bf16.msra.mxu0 %v4840
    %7164 = vmatprep.subr.bf16.mxu0 %v4849
    %7165 = vmatpush1.bf16.msra.mxu0 %v4848
    %7166 = vmatprep.subr.bf16.mxu0 %v4857
    %7167 = vmatpush1.bf16.msra.mxu0 %v4856
    %7168 = vmatprep.subr.bf16.mxu0 %v4865
    %7169 = vmatpush1.bf16.msra.mxu0 %v4864
    %7170 = vmatprep.subr.bf16.mxu0 %v4873
    %7171 = vmatpush1.bf16.msra.mxu0 %v4872
    %7172 = vmatprep.subr.bf16.mxu0 %v4881
    %7173 = vmatpush1.bf16.msra.mxu0 %v4880
    %7174 = vmatprep.subr.bf16.mxu0 %v4889
    %7175 = vmatpush1.bf16.msra.mxu0 %v4888
    %7176 = vmatprep.subr.bf16.mxu0 %v4897
    %7177 = vmatpush1.bf16.msra.mxu0 %v4896
    %7178 = vmatprep.subr.bf16.mxu0 %v4905
    %7179 = vmatpush1.bf16.msra.mxu0 %v4904
    %7180 = vmatprep.subr.bf16.mxu0 %v4913
    %7181 = vmatpush1.bf16.msra.mxu0 %v4912
    %7182 = vmatprep.subr.bf16.mxu0 %v4921
    %7183 = vmatpush1.bf16.msra.mxu0 %v4920
    %7184 = vmatprep.mubr.bf16.mxu0 %v1184
    %7185 = vmatmul.mubr.bf16.gmra.mrb[0].mxu0 %v1170
    %v7186 = vpop.f32.mrb[0].mxu0
    %v7187 = vadd.f32 %v7146, %v7186
    %v7188 = vpop.f32.mrb[0].mxu0
    %v7189 = vadd.f32 %v7148, %v7188
    %v7190 = vpop.f32.mrb[0].mxu0
    %v7191 = vpop.f32.mrb[0].mxu0
    %7192 = vdwg.mxu0
    %7193 = vmatprep.subr.bf16.mxu0 %v4929
    %7194 = vmatpush1.bf16.msra.mxu0 %v4928
    %7195 = vmatprep.subr.bf16.mxu0 %v4937
    %7196 = vmatpush1.bf16.msra.mxu0 %v4936
    %7197 = vmatprep.subr.bf16.mxu0 %v4945
    %7198 = vmatpush1.bf16.msra.mxu0 %v4944
    %7199 = vmatprep.subr.bf16.mxu0 %v4953
    %7200 = vmatpush1.bf16.msra.mxu0 %v4952
    %7201 = vmatprep.subr.bf16.mxu0 %v4961
    %7202 = vmatpush1.bf16.msra.mxu0 %v4960
    %7203 = vmatprep.subr.bf16.mxu0 %v4969
    %7204 = vmatpush1.bf16.msra.mxu0 %v4968
    %7205 = vmatprep.subr.bf16.mxu0 %v4977
    %7206 = vmatpush1.bf16.msra.mxu0 %v4976
    %7207 = vmatprep.subr.bf16.mxu0 %v4985
    %7208 = vmatpush1.bf16.msra.mxu0 %v4984
    %7209 = vmatprep.subr.bf16.mxu0 %v4993
    %7210 = vmatpush1.bf16.msra.mxu0 %v4992
    %7211 = vmatprep.subr.bf16.mxu0 %v5001
    %7212 = vmatpush1.bf16.msra.mxu0 %v5000
    %7213 = vmatprep.subr.bf16.mxu0 %v5009
    %7214 = vmatpush1.bf16.msra.mxu0 %v5008
    %7215 = vmatprep.subr.bf16.mxu0 %v5017
    %7216 = vmatpush1.bf16.msra.mxu0 %v5016
    %7217 = vmatprep.subr.bf16.mxu0 %v5025
    %7218 = vmatpush1.bf16.msra.mxu0 %v5024
    %7219 = vmatprep.subr.bf16.mxu0 %v5033
    %7220 = vmatpush1.bf16.msra.mxu0 %v5032
    %7221 = vmatprep.subr.bf16.mxu0 %v5041
    %7222 = vmatpush1.bf16.msra.mxu0 %v5040
    %7223 = vmatprep.subr.bf16.mxu0 %v5049
    %7224 = vmatpush1.bf16.msra.mxu0 %v5048
    %7225 = vmatprep.mubr.bf16.mxu0 %v1194
    %7226 = vmatmul.mubr.bf16.gmra.mrb[0].mxu0 %v1192
    %v7227 = vpop.f32.mrb[0].mxu0
    %v7228 = vadd.f32 %v7187, %v7227
    %v7229 = vpop.f32.mrb[0].mxu0
    %v7230 = vadd.f32 %v7189, %v7229
    %v7231 = vpop.f32.mrb[0].mxu0
    %v7232 = vpop.f32.mrb[0].mxu0
    %7233 = vdwg.mxu0
    %7234 = vmatprep.subr.bf16.mxu0 %v5057
    %7235 = vmatpush1.bf16.msra.mxu0 %v5056
    %7236 = vmatprep.subr.bf16.mxu0 %v5065
    %7237 = vmatpush1.bf16.msra.mxu0 %v5064
    %7238 = vmatprep.subr.bf16.mxu0 %v5073
    %7239 = vmatpush1.bf16.msra.mxu0 %v5072
    %7240 = vmatprep.subr.bf16.mxu0 %v5081
    %7241 = vmatpush1.bf16.msra.mxu0 %v5080
    %7242 = vmatprep.subr.bf16.mxu0 %v5089
    %7243 = vmatpush1.bf16.msra.mxu0 %v5088
    %7244 = vmatprep.subr.bf16.mxu0 %v5097
    %7245 = vmatpush1.bf16.msra.mxu0 %v5096
    %7246 = vmatprep.subr.bf16.mxu0 %v5105
    %7247 = vmatpush1.bf16.msra.mxu0 %v5104
    %7248 = vmatprep.subr.bf16.mxu0 %v5113
    %7249 = vmatpush1.bf16.msra.mxu0 %v5112
    %7250 = vmatprep.subr.bf16.mxu0 %v5121
    %7251 = vmatpush1.bf16.msra.mxu0 %v5120
    %7252 = vmatprep.subr.bf16.mxu0 %v5129
    %7253 = vmatpush1.bf16.msra.mxu0 %v5128
    %7254 = vmatprep.subr.bf16.mxu0 %v5137
    %7255 = vmatpush1.bf16.msra.mxu0 %v5136
    %7256 = vmatprep.subr.bf16.mxu0 %v5145
    %7257 = vmatpush1.bf16.msra.mxu0 %v5144
    %7258 = vmatprep.subr.bf16.mxu0 %v5153
    %7259 = vmatpush1.bf16.msra.mxu0 %v5152
    %7260 = vmatprep.subr.bf16.mxu0 %v5161
    %7261 = vmatpush1.bf16.msra.mxu0 %v5160
    %7262 = vmatprep.subr.bf16.mxu0 %v5169
    %7263 = vmatpush1.bf16.msra.mxu0 %v5168
    %7264 = vmatprep.subr.bf16.mxu0 %v5177
    %7265 = vmatpush1.bf16.msra.mxu0 %v5176
    %7266 = vmatprep.mubr.bf16.mxu0 %v1191
    %7267 = vmatmul.mubr.bf16.gmra.mrb[0].mxu0 %v1177
    %v7268 = vpop.f32.mrb[0].mxu0
    %v7269 = vadd.f32 %v7228, %v7268
    %v7270 = vpop.f32.mrb[0].mxu0
    %v7271 = vadd.f32 %v7230, %v7270
    %v7272 = vpop.f32.mrb[0].mxu0
    %v7273 = vpop.f32.mrb[0].mxu0
    %7274 = vdwg.mxu0
    %7275 = vmatprep.subr.bf16.mxu0 %v5185
    %7276 = vmatpush1.bf16.msra.mxu0 %v5184
    %7277 = vmatprep.subr.bf16.mxu0 %v5193
    %7278 = vmatpush1.bf16.msra.mxu0 %v5192
    %7279 = vmatprep.subr.bf16.mxu0 %v5201
    %7280 = vmatpush1.bf16.msra.mxu0 %v5200
    %7281 = vmatprep.subr.bf16.mxu0 %v5209
    %7282 = vmatpush1.bf16.msra.mxu0 %v5208
    %7283 = vmatprep.subr.bf16.mxu0 %v5217
    %7284 = vmatpush1.bf16.msra.mxu0 %v5216
    %7285 = vmatprep.subr.bf16.mxu0 %v5225
    %7286 = vmatpush1.bf16.msra.mxu0 %v5224
    %7287 = vmatprep.subr.bf16.mxu0 %v5233
    %7288 = vmatpush1.bf16.msra.mxu0 %v5232
    %7289 = vmatprep.subr.bf16.mxu0 %v5241
    %7290 = vmatpush1.bf16.msra.mxu0 %v5240
    %7291 = vmatprep.subr.bf16.mxu0 %v5249
    %7292 = vmatpush1.bf16.msra.mxu0 %v5248
    %7293 = vmatprep.subr.bf16.mxu0 %v5257
    %7294 = vmatpush1.bf16.msra.mxu0 %v5256
    %7295 = vmatprep.subr.bf16.mxu0 %v5265
    %7296 = vmatpush1.bf16.msra.mxu0 %v5264
    %7297 = vmatprep.subr.bf16.mxu0 %v5273
    %7298 = vmatpush1.bf16.msra.mxu0 %v5272
    %7299 = vmatprep.subr.bf16.mxu0 %v5281
    %7300 = vmatpush1.bf16.msra.mxu0 %v5280
    %7301 = vmatprep.subr.bf16.mxu0 %v5289
    %7302 = vmatpush1.bf16.msra.mxu0 %v5288
    %7303 = vmatprep.subr.bf16.mxu0 %v5297
    %7304 = vmatpush1.bf16.msra.mxu0 %v5296
    %7305 = vmatprep.subr.bf16.mxu0 %v5305
    %7306 = vmatpush1.bf16.msra.mxu0 %v5304
    %7307 = vmatprep.mubr.bf16.mxu0 %v1195
    %7308 = vmatmul.mubr.bf16.gmra.mrb[0].mxu0 %v1193
    %v7309 = vpop.f32.mrb[0].mxu0
    %v7310 = vadd.f32 %v7269, %v7309
    %v7311 = vpop.f32.mrb[0].mxu0
    %v7312 = vadd.f32 %v7271, %v7311
    %v7313 = vpop.f32.mrb[0].mxu0
    %v7314 = vpop.f32.mrb[0].mxu0
    %7315 = vdwg.mxu0
    %7316 = vmatprep.subr.bf16.mxu0 %v4291
    %7317 = vmatpush1.bf16.msra.mxu0 %v4290
    %7318 = vmatprep.subr.bf16.mxu0 %v4299
    %7319 = vmatpush1.bf16.msra.mxu0 %v4298
    %7320 = vmatprep.subr.bf16.mxu0 %v4307
    %7321 = vmatpush1.bf16.msra.mxu0 %v4306
    %7322 = vmatprep.subr.bf16.mxu0 %v4315
    %7323 = vmatpush1.bf16.msra.mxu0 %v4314
    %7324 = vmatprep.subr.bf16.mxu0 %v4323
    %7325 = vmatpush1.bf16.msra.mxu0 %v4322
    %7326 = vmatprep.subr.bf16.mxu0 %v4331
    %7327 = vmatpush1.bf16.msra.mxu0 %v4330
    %7328 = vmatprep.subr.bf16.mxu0 %v4339
    %7329 = vmatpush1.bf16.msra.mxu0 %v4338
    %7330 = vmatprep.subr.bf16.mxu0 %v4347
    %7331 = vmatpush1.bf16.msra.mxu0 %v4346
    %7332 = vmatprep.subr.bf16.mxu0 %v4355
    %7333 = vmatpush1.bf16.msra.mxu0 %v4354
    %7334 = vmatprep.subr.bf16.mxu0 %v4363
    %7335 = vmatpush1.bf16.msra.mxu0 %v4362
    %7336 = vmatprep.subr.bf16.mxu0 %v4371
    %7337 = vmatpush1.bf16.msra.mxu0 %v4370
    %7338 = vmatprep.subr.bf16.mxu0 %v4379
    %7339 = vmatpush1.bf16.msra.mxu0 %v4378
    %7340 = vmatprep.subr.bf16.mxu0 %v4387
    %7341 = vmatpush1.bf16.msra.mxu0 %v4386
    %7342 = vmatprep.subr.bf16.mxu0 %v4395
    %7343 = vmatpush1.bf16.msra.mxu0 %v4394
    %7344 = vmatprep.subr.bf16.mxu0 %v4403
    %7345 = vmatpush1.bf16.msra.mxu0 %v4402
    %7346 = vmatprep.subr.bf16.mxu0 %v4411
    %7347 = vmatpush1.bf16.msra.mxu0 %v4410
    %7348 = vmatprep.mubr.bf16.mxu0 %v1135
    %7349 = vmatmul.mubr.bf16.gmra.mrb[0].mxu0 %v1121
    %v7350 = vpop.f32.mrb[0].mxu0
    %v7351 = vadd.f32 %v1083, %v7350
    %v7352 = vpop.f32.mrb[0].mxu0
    %v7353 = vadd.f32 %v1087, %v7352
    %v7354 = vpop.f32.mrb[0].mxu0
    %v7355 = vpop.f32.mrb[0].mxu0
    %7356 = vdwg.mxu0
    %7357 = vmatprep.subr.bf16.mxu0 %v4419
    %7358 = vmatpush1.bf16.msra.mxu0 %v4418
    %7359 = vmatprep.subr.bf16.mxu0 %v4427
    %7360 = vmatpush1.bf16.msra.mxu0 %v4426
    %7361 = vmatprep.subr.bf16.mxu0 %v4435
    %7362 = vmatpush1.bf16.msra.mxu0 %v4434
    %7363 = vmatprep.subr.bf16.mxu0 %v4443
    %7364 = vmatpush1.bf16.msra.mxu0 %v4442
    %7365 = vmatprep.subr.bf16.mxu0 %v4451
    %7366 = vmatpush1.bf16.msra.mxu0 %v4450
    %7367 = vmatprep.subr.bf16.mxu0 %v4459
    %7368 = vmatpush1.bf16.msra.mxu0 %v4458
    %7369 = vmatprep.subr.bf16.mxu0 %v4467
    %7370 = vmatpush1.bf16.msra.mxu0 %v4466
    %7371 = vmatprep.subr.bf16.mxu0 %v4475
    %7372 = vmatpush1.bf16.msra.mxu0 %v4474
    %7373 = vmatprep.subr.bf16.mxu0 %v4483
    %7374 = vmatpush1.bf16.msra.mxu0 %v4482
    %7375 = vmatprep.subr.bf16.mxu0 %v4491
    %7376 = vmatpush1.bf16.msra.mxu0 %v4490
    %7377 = vmatprep.subr.bf16.mxu0 %v4499
    %7378 = vmatpush1.bf16.msra.mxu0 %v4498
    %7379 = vmatprep.subr.bf16.mxu0 %v4507
    %7380 = vmatpush1.bf16.msra.mxu0 %v4506
    %7381 = vmatprep.subr.bf16.mxu0 %v4515
    %7382 = vmatpush1.bf16.msra.mxu0 %v4514
    %7383 = vmatprep.subr.bf16.mxu0 %v4523
    %7384 = vmatpush1.bf16.msra.mxu0 %v4522
    %7385 = vmatprep.subr.bf16.mxu0 %v4531
    %7386 = vmatpush1.bf16.msra.mxu0 %v4530
    %7387 = vmatprep.subr.bf16.mxu0 %v4539
    %7388 = vmatpush1.bf16.msra.mxu0 %v4538
    %7389 = vmatprep.mubr.bf16.mxu0 %v1145
    %7390 = vmatmul.mubr.bf16.gmra.mrb[0].mxu0 %v1143
    %v7391 = vpop.f32.mrb[0].mxu0
    %v7392 = vadd.f32 %v7351, %v7391
    %v7393 = vpop.f32.mrb[0].mxu0
    %v7394 = vadd.f32 %v7353, %v7393
    %v7395 = vpop.f32.mrb[0].mxu0
    %v7396 = vpop.f32.mrb[0].mxu0
    %7397 = vdwg.mxu0
    %7398 = vmatprep.subr.bf16.mxu0 %v4547
    %7399 = vmatpush1.bf16.msra.mxu0 %v4546
    %7400 = vmatprep.subr.bf16.mxu0 %v4555
    %7401 = vmatpush1.bf16.msra.mxu0 %v4554
    %7402 = vmatprep.subr.bf16.mxu0 %v4563
    %7403 = vmatpush1.bf16.msra.mxu0 %v4562
    %7404 = vmatprep.subr.bf16.mxu0 %v4571
    %7405 = vmatpush1.bf16.msra.mxu0 %v4570
    %7406 = vmatprep.subr.bf16.mxu0 %v4579
    %7407 = vmatpush1.bf16.msra.mxu0 %v4578
    %7408 = vmatprep.subr.bf16.mxu0 %v4587
    %7409 = vmatpush1.bf16.msra.mxu0 %v4586
    %7410 = vmatprep.subr.bf16.mxu0 %v4595
    %7411 = vmatpush1.bf16.msra.mxu0 %v4594
    %7412 = vmatprep.subr.bf16.mxu0 %v4603
    %7413 = vmatpush1.bf16.msra.mxu0 %v4602
    %7414 = vmatprep.subr.bf16.mxu0 %v4611
    %7415 = vmatpush1.bf16.msra.mxu0 %v4610
    %7416 = vmatprep.subr.bf16.mxu0 %v4619
    %7417 = vmatpush1.bf16.msra.mxu0 %v4618
    %7418 = vmatprep.subr.bf16.mxu0 %v4627
    %7419 = vmatpush1.bf16.msra.mxu0 %v4626
    %7420 = vmatprep.subr.bf16.mxu0 %v4635
    %7421 = vmatpush1.bf16.msra.mxu0 %v4634
    %7422 = vmatprep.subr.bf16.mxu0 %v4643
    %7423 = vmatpush1.bf16.msra.mxu0 %v4642
    %7424 = vmatprep.subr.bf16.mxu0 %v4651
    %7425 = vmatpush1.bf16.msra.mxu0 %v4650
    %7426 = vmatprep.subr.bf16.mxu0 %v4659
    %7427 = vmatpush1.bf16.msra.mxu0 %v4658
    %7428 = vmatprep.subr.bf16.mxu0 %v4667
    %7429 = vmatpush1.bf16.msra.mxu0 %v4666
    %7430 = vmatprep.mubr.bf16.mxu0 %v1142
    %7431 = vmatmul.mubr.bf16.gmra.mrb[0].mxu0 %v1128
    %v7432 = vpop.f32.mrb[0].mxu0
    %v7433 = vadd.f32 %v7392, %v7432
    %v7434 = vpop.f32.mrb[0].mxu0
    %v7435 = vadd.f32 %v7394, %v7434
    %v7436 = vpop.f32.mrb[0].mxu0
    %v7437 = vpop.f32.mrb[0].mxu0
    %7438 = vdwg.mxu0
    %7439 = vmatprep.subr.bf16.mxu0 %v4675
    %7440 = vmatpush1.bf16.msra.mxu0 %v4674
    %7441 = vmatprep.subr.bf16.mxu0 %v4683
    %7442 = vmatpush1.bf16.msra.mxu0 %v4682
    %7443 = vmatprep.subr.bf16.mxu0 %v4691
    %7444 = vmatpush1.bf16.msra.mxu0 %v4690
    %7445 = vmatprep.subr.bf16.mxu0 %v4699
    %7446 = vmatpush1.bf16.msra.mxu0 %v4698
    %7447 = vmatprep.subr.bf16.mxu0 %v4707
    %7448 = vmatpush1.bf16.msra.mxu0 %v4706
    %7449 = vmatprep.subr.bf16.mxu0 %v4715
    %7450 = vmatpush1.bf16.msra.mxu0 %v4714
    %7451 = vmatprep.subr.bf16.mxu0 %v4723
    %7452 = vmatpush1.bf16.msra.mxu0 %v4722
    %7453 = vmatprep.subr.bf16.mxu0 %v4731
    %7454 = vmatpush1.bf16.msra.mxu0 %v4730
    %7455 = vmatprep.subr.bf16.mxu0 %v4739
    %7456 = vmatpush1.bf16.msra.mxu0 %v4738
    %7457 = vmatprep.subr.bf16.mxu0 %v4747
    %7458 = vmatpush1.bf16.msra.mxu0 %v4746
    %7459 = vmatprep.subr.bf16.mxu0 %v4755
    %7460 = vmatpush1.bf16.msra.mxu0 %v4754
    %7461 = vmatprep.subr.bf16.mxu0 %v4763
    %7462 = vmatpush1.bf16.msra.mxu0 %v4762
    %7463 = vmatprep.subr.bf16.mxu0 %v4771
    %7464 = vmatpush1.bf16.msra.mxu0 %v4770
    %7465 = vmatprep.subr.bf16.mxu0 %v4779
    %7466 = vmatpush1.bf16.msra.mxu0 %v4778
    %7467 = vmatprep.subr.bf16.mxu0 %v4787
    %7468 = vmatpush1.bf16.msra.mxu0 %v4786
    %7469 = vmatprep.subr.bf16.mxu0 %v4795
    %7470 = vmatpush1.bf16.msra.mxu0 %v4794
    %7471 = vmatprep.mubr.bf16.mxu0 %v1146
    %7472 = vmatmul.mubr.bf16.gmra.mrb[0].mxu0 %v1144
    %v7473 = vpop.f32.mrb[0].mxu0
    %v7474 = vadd.f32 %v7433, %v7473
    %v7475 = vpop.f32.mrb[0].mxu0
    %v7476 = vadd.f32 %v7435, %v7475
    %v7477 = vpop.f32.mrb[0].mxu0
    %v7478 = vpop.f32.mrb[0].mxu0
    %7479 = vdwg.mxu0
    %7480 = vmatprep.subr.bf16.mxu0 %v4803
    %7481 = vmatpush1.bf16.msra.mxu0 %v4802
    %7482 = vmatprep.subr.bf16.mxu0 %v4811
    %7483 = vmatpush1.bf16.msra.mxu0 %v4810
    %7484 = vmatprep.subr.bf16.mxu0 %v4819
    %7485 = vmatpush1.bf16.msra.mxu0 %v4818
    %7486 = vmatprep.subr.bf16.mxu0 %v4827
    %7487 = vmatpush1.bf16.msra.mxu0 %v4826
    %7488 = vmatprep.subr.bf16.mxu0 %v4835
    %7489 = vmatpush1.bf16.msra.mxu0 %v4834
    %7490 = vmatprep.subr.bf16.mxu0 %v4843
    %7491 = vmatpush1.bf16.msra.mxu0 %v4842
    %7492 = vmatprep.subr.bf16.mxu0 %v4851
    %7493 = vmatpush1.bf16.msra.mxu0 %v4850
    %7494 = vmatprep.subr.bf16.mxu0 %v4859
    %7495 = vmatpush1.bf16.msra.mxu0 %v4858
    %7496 = vmatprep.subr.bf16.mxu0 %v4867
    %7497 = vmatpush1.bf16.msra.mxu0 %v4866
    %7498 = vmatprep.subr.bf16.mxu0 %v4875
    %7499 = vmatpush1.bf16.msra.mxu0 %v4874
    %7500 = vmatprep.subr.bf16.mxu0 %v4883
    %7501 = vmatpush1.bf16.msra.mxu0 %v4882
    %7502 = vmatprep.subr.bf16.mxu0 %v4891
    %7503 = vmatpush1.bf16.msra.mxu0 %v4890
    %7504 = vmatprep.subr.bf16.mxu0 %v4899
    %7505 = vmatpush1.bf16.msra.mxu0 %v4898
    %7506 = vmatprep.subr.bf16.mxu0 %v4907
    %7507 = vmatpush1.bf16.msra.mxu0 %v4906
    %7508 = vmatprep.subr.bf16.mxu0 %v4915
    %7509 = vmatpush1.bf16.msra.mxu0 %v4914
    %7510 = vmatprep.subr.bf16.mxu0 %v4923
    %7511 = vmatpush1.bf16.msra.mxu0 %v4922
    %7512 = vmatprep.mubr.bf16.mxu0 %v1184
    %7513 = vmatmul.mubr.bf16.gmra.mrb[0].mxu0 %v1170
    %v7514 = vpop.f32.mrb[0].mxu0
    %v7515 = vadd.f32 %v7474, %v7514
    %v7516 = vpop.f32.mrb[0].mxu0
    %v7517 = vadd.f32 %v7476, %v7516
    %v7518 = vpop.f32.mrb[0].mxu0
    %v7519 = vpop.f32.mrb[0].mxu0
    %7520 = vdwg.mxu0
    %7521 = vmatprep.subr.bf16.mxu0 %v4931
    %7522 = vmatpush1.bf16.msra.mxu0 %v4930
    %7523 = vmatprep.subr.bf16.mxu0 %v4939
    %7524 = vmatpush1.bf16.msra.mxu0 %v4938
    %7525 = vmatprep.subr.bf16.mxu0 %v4947
    %7526 = vmatpush1.bf16.msra.mxu0 %v4946
    %7527 = vmatprep.subr.bf16.mxu0 %v4955
    %7528 = vmatpush1.bf16.msra.mxu0 %v4954
    %7529 = vmatprep.subr.bf16.mxu0 %v4963
    %7530 = vmatpush1.bf16.msra.mxu0 %v4962
    %7531 = vmatprep.subr.bf16.mxu0 %v4971
    %7532 = vmatpush1.bf16.msra.mxu0 %v4970
    %7533 = vmatprep.subr.bf16.mxu0 %v4979
    %7534 = vmatpush1.bf16.msra.mxu0 %v4978
    %7535 = vmatprep.subr.bf16.mxu0 %v4987
    %7536 = vmatpush1.bf16.msra.mxu0 %v4986
    %7537 = vmatprep.subr.bf16.mxu0 %v4995
    %7538 = vmatpush1.bf16.msra.mxu0 %v4994
    %7539 = vmatprep.subr.bf16.mxu0 %v5003
    %7540 = vmatpush1.bf16.msra.mxu0 %v5002
    %7541 = vmatprep.subr.bf16.mxu0 %v5011
    %7542 = vmatpush1.bf16.msra.mxu0 %v5010
    %7543 = vmatprep.subr.bf16.mxu0 %v5019
    %7544 = vmatpush1.bf16.msra.mxu0 %v5018
    %7545 = vmatprep.subr.bf16.mxu0 %v5027
    %7546 = vmatpush1.bf16.msra.mxu0 %v5026
    %7547 = vmatprep.subr.bf16.mxu0 %v5035
    %7548 = vmatpush1.bf16.msra.mxu0 %v5034
    %7549 = vmatprep.subr.bf16.mxu0 %v5043
    %7550 = vmatpush1.bf16.msra.mxu0 %v5042
    %7551 = vmatprep.subr.bf16.mxu0 %v5051
    %7552 = vmatpush1.bf16.msra.mxu0 %v5050
    %7553 = vmatprep.mubr.bf16.mxu0 %v1194
    %7554 = vmatmul.mubr.bf16.gmra.mrb[0].mxu0 %v1192
    %v7555 = vpop.f32.mrb[0].mxu0
    %v7556 = vadd.f32 %v7515, %v7555
    %v7557 = vpop.f32.mrb[0].mxu0
    %v7558 = vadd.f32 %v7517, %v7557
    %v7559 = vpop.f32.mrb[0].mxu0
    %v7560 = vpop.f32.mrb[0].mxu0
    %7561 = vdwg.mxu0
    %7562 = vmatprep.subr.bf16.mxu0 %v5059
    %7563 = vmatpush1.bf16.msra.mxu0 %v5058
    %7564 = vmatprep.subr.bf16.mxu0 %v5067
    %7565 = vmatpush1.bf16.msra.mxu0 %v5066
    %7566 = vmatprep.subr.bf16.mxu0 %v5075
    %7567 = vmatpush1.bf16.msra.mxu0 %v5074
    %7568 = vmatprep.subr.bf16.mxu0 %v5083
    %7569 = vmatpush1.bf16.msra.mxu0 %v5082
    %7570 = vmatprep.subr.bf16.mxu0 %v5091
    %7571 = vmatpush1.bf16.msra.mxu0 %v5090
    %7572 = vmatprep.subr.bf16.mxu0 %v5099
    %7573 = vmatpush1.bf16.msra.mxu0 %v5098
    %7574 = vmatprep.subr.bf16.mxu0 %v5107
    %7575 = vmatpush1.bf16.msra.mxu0 %v5106
    %7576 = vmatprep.subr.bf16.mxu0 %v5115
    %7577 = vmatpush1.bf16.msra.mxu0 %v5114
    %7578 = vmatprep.subr.bf16.mxu0 %v5123
    %7579 = vmatpush1.bf16.msra.mxu0 %v5122
    %7580 = vmatprep.subr.bf16.mxu0 %v5131
    %7581 = vmatpush1.bf16.msra.mxu0 %v5130
    %7582 = vmatprep.subr.bf16.mxu0 %v5139
    %7583 = vmatpush1.bf16.msra.mxu0 %v5138
    %7584 = vmatprep.subr.bf16.mxu0 %v5147
    %7585 = vmatpush1.bf16.msra.mxu0 %v5146
    %7586 = vmatprep.subr.bf16.mxu0 %v5155
    %7587 = vmatpush1.bf16.msra.mxu0 %v5154
    %7588 = vmatprep.subr.bf16.mxu0 %v5163
    %7589 = vmatpush1.bf16.msra.mxu0 %v5162
    %7590 = vmatprep.subr.bf16.mxu0 %v5171
    %7591 = vmatpush1.bf16.msra.mxu0 %v5170
    %7592 = vmatprep.subr.bf16.mxu0 %v5179
    %7593 = vmatpush1.bf16.msra.mxu0 %v5178
    %7594 = vmatprep.mubr.bf16.mxu0 %v1191
    %7595 = vmatmul.mubr.bf16.gmra.mrb[0].mxu0 %v1177
    %v7596 = vpop.f32.mrb[0].mxu0
    %v7597 = vadd.f32 %v7556, %v7596
    %v7598 = vpop.f32.mrb[0].mxu0
    %v7599 = vadd.f32 %v7558, %v7598
    %v7600 = vpop.f32.mrb[0].mxu0
    %v7601 = vpop.f32.mrb[0].mxu0
    %7602 = vdwg.mxu0
    %7603 = vmatprep.subr.bf16.mxu0 %v5187
    %7604 = vmatpush1.bf16.msra.mxu0 %v5186
    %7605 = vmatprep.subr.bf16.mxu0 %v5195
    %7606 = vmatpush1.bf16.msra.mxu0 %v5194
    %7607 = vmatprep.subr.bf16.mxu0 %v5203
    %7608 = vmatpush1.bf16.msra.mxu0 %v5202
    %7609 = vmatprep.subr.bf16.mxu0 %v5211
    %7610 = vmatpush1.bf16.msra.mxu0 %v5210
    %7611 = vmatprep.subr.bf16.mxu0 %v5219
    %7612 = vmatpush1.bf16.msra.mxu0 %v5218
    %7613 = vmatprep.subr.bf16.mxu0 %v5227
    %7614 = vmatpush1.bf16.msra.mxu0 %v5226
    %7615 = vmatprep.subr.bf16.mxu0 %v5235
    %7616 = vmatpush1.bf16.msra.mxu0 %v5234
    %7617 = vmatprep.subr.bf16.mxu0 %v5243
    %7618 = vmatpush1.bf16.msra.mxu0 %v5242
    %7619 = vmatprep.subr.bf16.mxu0 %v5251
    %7620 = vmatpush1.bf16.msra.mxu0 %v5250
    %7621 = vmatprep.subr.bf16.mxu0 %v5259
    %7622 = vmatpush1.bf16.msra.mxu0 %v5258
    %7623 = vmatprep.subr.bf16.mxu0 %v5267
    %7624 = vmatpush1.bf16.msra.mxu0 %v5266
    %7625 = vmatprep.subr.bf16.mxu0 %v5275
    %7626 = vmatpush1.bf16.msra.mxu0 %v5274
    %7627 = vmatprep.subr.bf16.mxu0 %v5283
    %7628 = vmatpush1.bf16.msra.mxu0 %v5282
    %7629 = vmatprep.subr.bf16.mxu0 %v5291
    %7630 = vmatpush1.bf16.msra.mxu0 %v5290
    %7631 = vmatprep.subr.bf16.mxu0 %v5299
    %7632 = vmatpush1.bf16.msra.mxu0 %v5298
    %7633 = vmatprep.subr.bf16.mxu0 %v5307
    %7634 = vmatpush1.bf16.msra.mxu0 %v5306
    %7635 = vmatprep.mubr.bf16.mxu0 %v1195
    %7636 = vmatmul.mubr.bf16.gmra.mrb[0].mxu0 %v1193
    %v7637 = vpop.f32.mrb[0].mxu0
    %v7638 = vadd.f32 %v7597, %v7637
    %v7639 = vpop.f32.mrb[0].mxu0
    %v7640 = vadd.f32 %v7599, %v7639
    %v7641 = vpop.f32.mrb[0].mxu0
    %v7642 = vpop.f32.mrb[0].mxu0
    %7643 = vdwg.mxu0
    %v7644 = vmax.f32 %v6654, 0.0
    %v7645 = vmax.f32 %v6656, 0.0
    %v7646 = vmax.f32 %v6982, 0.0
    %v7647 = vmax.f32 %v6984, 0.0
    %v7648 = vmax.f32 %v7310, 0.0
    %v7649 = vmax.f32 %v7312, 0.0
    %v7650 = vmax.f32 %v7638, 0.0
    %v7651 = vmax.f32 %v7640, 0.0
    %v7652 = vpack.c.bf16 %v7644, %v7644
    %v7653 = vpack.c.bf16 %v7645, %v7645
    %v7654 = vpack.c.bf16 %v7646, %v7646
    %v7655 = vpack.c.bf16 %v7647, %v7647
    %v7656 = vpack.c.bf16 %v7648, %v7648
    %v7657 = vpack.c.bf16 %v7649, %v7649
    %v7658 = vpack.c.bf16 %v7650, %v7650
    %v7659 = vpack.c.bf16 %v7651, %v7651
    %v7660 = vld [vmem:[%s3] sm:$0xf]
    %v7661 = vld [vmem:[%s3 + $0x4] sm:$0xf]
    %v7662 = vld [vmem:[%s3 + $0x8] sm:$0xf]
    %v7663 = vld [vmem:[%s3 + $0xc] sm:$0xf]
    %v7664 = vld [vmem:[%s3 + $0x10] sm:$0xf]
    %v7665 = vld [vmem:[%s3 + $0x14] sm:$0xf]
    %v7666 = vld [vmem:[%s3 + $0x18] sm:$0xf]
    %v7667 = vld [vmem:[%s3 + $0x1c] sm:$0xf]
    %v7668 = vld [vmem:[%s3 + $0x20] sm:$0xf]
    %v7669 = vld [vmem:[%s3 + $0x24] sm:$0xf]
    %v7670 = vld [vmem:[%s3 + $0x28] sm:$0xf]
    %v7671 = vld [vmem:[%s3 + $0x2c] sm:$0xf]
    %v7672 = vld [vmem:[%s3 + $0x30] sm:$0xf]
    %v7673 = vld [vmem:[%s3 + $0x34] sm:$0xf]
    %v7674 = vld [vmem:[%s3 + $0x38] sm:$0xf]
    %v7675 = vld [vmem:[%s3 + $0x3c] sm:$0xf]
    %v7676 = vld [vmem:[%s3 + $0x40] sm:$0xf]
    %v7677 = vld [vmem:[%s3 + $0x44] sm:$0xf]
    %v7678 = vld [vmem:[%s3 + $0x48] sm:$0xf]
    %v7679 = vld [vmem:[%s3 + $0x4c] sm:$0xf]
    %v7680 = vld [vmem:[%s3 + $0x50] sm:$0xf]
    %v7681 = vld [vmem:[%s3 + $0x54] sm:$0xf]
    %v7682 = vld [vmem:[%s3 + $0x58] sm:$0xf]
    %v7683 = vld [vmem:[%s3 + $0x5c] sm:$0xf]
    %v7684 = vld [vmem:[%s3 + $0x60] sm:$0xf]
    %v7685 = vld [vmem:[%s3 + $0x64] sm:$0xf]
    %v7686 = vld [vmem:[%s3 + $0x68] sm:$0xf]
    %v7687 = vld [vmem:[%s3 + $0x6c] sm:$0xf]
    %v7688 = vld [vmem:[%s3 + $0x70] sm:$0xf]
    %v7689 = vld [vmem:[%s3 + $0x74] sm:$0xf]
    %v7690 = vld [vmem:[%s3 + $0x78] sm:$0xf]
    %v7691 = vld [vmem:[%s3 + $0x7c] sm:$0xf]
    %v7692 = vld [vmem:[%s3 + $0x80] sm:$0xf]
    %v7693 = vld [vmem:[%s3 + $0x84] sm:$0xf]
    %v7694 = vld [vmem:[%s3 + $0x88] sm:$0xf]
    %v7695 = vld [vmem:[%s3 + $0x8c] sm:$0xf]
    %v7696 = vld [vmem:[%s3 + $0x90] sm:$0xf]
    %v7697 = vld [vmem:[%s3 + $0x94] sm:$0xf]
    %v7698 = vld [vmem:[%s3 + $0x98] sm:$0xf]
    %v7699 = vld [vmem:[%s3 + $0x9c] sm:$0xf]
    %v7700 = vld [vmem:[%s3 + $0xa0] sm:$0xf]
    %v7701 = vld [vmem:[%s3 + $0xa4] sm:$0xf]
    %v7702 = vld [vmem:[%s3 + $0xa8] sm:$0xf]
    %v7703 = vld [vmem:[%s3 + $0xac] sm:$0xf]
    %v7704 = vld [vmem:[%s3 + $0xb0] sm:$0xf]
    %v7705 = vld [vmem:[%s3 + $0xb4] sm:$0xf]
    %v7706 = vld [vmem:[%s3 + $0xb8] sm:$0xf]
    %v7707 = vld [vmem:[%s3 + $0xbc] sm:$0xf]
    %v7708 = vld [vmem:[%s3 + $0xc0] sm:$0xf]
    %v7709 = vld [vmem:[%s3 + $0xc4] sm:$0xf]
    %v7710 = vld [vmem:[%s3 + $0xc8] sm:$0xf]
    %v7711 = vld [vmem:[%s3 + $0xcc] sm:$0xf]
    %v7712 = vld [vmem:[%s3 + $0xd0] sm:$0xf]
    %v7713 = vld [vmem:[%s3 + $0xd4] sm:$0xf]
    %v7714 = vld [vmem:[%s3 + $0xd8] sm:$0xf]
    %v7715 = vld [vmem:[%s3 + $0xdc] sm:$0xf]
    %v7716 = vld [vmem:[%s3 + $0xe0] sm:$0xf]
    %v7717 = vld [vmem:[%s3 + $0xe4] sm:$0xf]
    %v7718 = vld [vmem:[%s3 + $0xe8] sm:$0xf]
    %v7719 = vld [vmem:[%s3 + $0xec] sm:$0xf]
    %v7720 = vld [vmem:[%s3 + $0xf0] sm:$0xf]
    %v7721 = vld [vmem:[%s3 + $0xf4] sm:$0xf]
    %v7722 = vld [vmem:[%s3 + $0xf8] sm:$0xf]
    %v7723 = vld [vmem:[%s3 + $0xfc] sm:$0xf]
    %v7724 = vld [vmem:[%s3 + $0x100] sm:$0xf]
    %v7725 = vld [vmem:[%s3 + $0x104] sm:$0xf]
    %v7726 = vld [vmem:[%s3 + $0x108] sm:$0xf]
    %v7727 = vld [vmem:[%s3 + $0x10c] sm:$0xf]
    %v7728 = vld [vmem:[%s3 + $0x110] sm:$0xf]
    %v7729 = vld [vmem:[%s3 + $0x114] sm:$0xf]
    %v7730 = vld [vmem:[%s3 + $0x118] sm:$0xf]
    %v7731 = vld [vmem:[%s3 + $0x11c] sm:$0xf]
    %v7732 = vld [vmem:[%s3 + $0x120] sm:$0xf]
    %v7733 = vld [vmem:[%s3 + $0x124] sm:$0xf]
    %v7734 = vld [vmem:[%s3 + $0x128] sm:$0xf]
    %v7735 = vld [vmem:[%s3 + $0x12c] sm:$0xf]
    %v7736 = vld [vmem:[%s3 + $0x130] sm:$0xf]
    %v7737 = vld [vmem:[%s3 + $0x134] sm:$0xf]
    %v7738 = vld [vmem:[%s3 + $0x138] sm:$0xf]
    %v7739 = vld [vmem:[%s3 + $0x13c] sm:$0xf]
    %v7740 = vld [vmem:[%s3 + $0x140] sm:$0xf]
    %v7741 = vld [vmem:[%s3 + $0x144] sm:$0xf]
    %v7742 = vld [vmem:[%s3 + $0x148] sm:$0xf]
    %v7743 = vld [vmem:[%s3 + $0x14c] sm:$0xf]
    %v7744 = vld [vmem:[%s3 + $0x150] sm:$0xf]
    %v7745 = vld [vmem:[%s3 + $0x154] sm:$0xf]
    %v7746 = vld [vmem:[%s3 + $0x158] sm:$0xf]
    %v7747 = vld [vmem:[%s3 + $0x15c] sm:$0xf]
    %v7748 = vld [vmem:[%s3 + $0x160] sm:$0xf]
    %v7749 = vld [vmem:[%s3 + $0x164] sm:$0xf]
    %v7750 = vld [vmem:[%s3 + $0x168] sm:$0xf]
    %v7751 = vld [vmem:[%s3 + $0x16c] sm:$0xf]
    %v7752 = vld [vmem:[%s3 + $0x170] sm:$0xf]
    %v7753 = vld [vmem:[%s3 + $0x174] sm:$0xf]
    %v7754 = vld [vmem:[%s3 + $0x178] sm:$0xf]
    %v7755 = vld [vmem:[%s3 + $0x17c] sm:$0xf]
    %v7756 = vld [vmem:[%s3 + $0x180] sm:$0xf]
    %v7757 = vld [vmem:[%s3 + $0x184] sm:$0xf]
    %v7758 = vld [vmem:[%s3 + $0x188] sm:$0xf]
    %v7759 = vld [vmem:[%s3 + $0x18c] sm:$0xf]
    %v7760 = vld [vmem:[%s3 + $0x190] sm:$0xf]
    %v7761 = vld [vmem:[%s3 + $0x194] sm:$0xf]
    %v7762 = vld [vmem:[%s3 + $0x198] sm:$0xf]
    %v7763 = vld [vmem:[%s3 + $0x19c] sm:$0xf]
    %v7764 = vld [vmem:[%s3 + $0x1a0] sm:$0xf]
    %v7765 = vld [vmem:[%s3 + $0x1a4] sm:$0xf]
    %v7766 = vld [vmem:[%s3 + $0x1a8] sm:$0xf]
    %v7767 = vld [vmem:[%s3 + $0x1ac] sm:$0xf]
    %v7768 = vld [vmem:[%s3 + $0x1b0] sm:$0xf]
    %v7769 = vld [vmem:[%s3 + $0x1b4] sm:$0xf]
    %v7770 = vld [vmem:[%s3 + $0x1b8] sm:$0xf]
    %v7771 = vld [vmem:[%s3 + $0x1bc] sm:$0xf]
    %v7772 = vld [vmem:[%s3 + $0x1c0] sm:$0xf]
    %v7773 = vld [vmem:[%s3 + $0x1c4] sm:$0xf]
    %v7774 = vld [vmem:[%s3 + $0x1c8] sm:$0xf]
    %v7775 = vld [vmem:[%s3 + $0x1cc] sm:$0xf]
    %v7776 = vld [vmem:[%s3 + $0x1d0] sm:$0xf]
    %v7777 = vld [vmem:[%s3 + $0x1d4] sm:$0xf]
    %v7778 = vld [vmem:[%s3 + $0x1d8] sm:$0xf]
    %v7779 = vld [vmem:[%s3 + $0x1dc] sm:$0xf]
    %v7780 = vld [vmem:[%s3 + $0x1e0] sm:$0xf]
    %v7781 = vld [vmem:[%s3 + $0x1e4] sm:$0xf]
    %v7782 = vld [vmem:[%s3 + $0x1e8] sm:$0xf]
    %v7783 = vld [vmem:[%s3 + $0x1ec] sm:$0xf]
    %v7784 = vld [vmem:[%s3 + $0x1f0] sm:$0xf]
    %v7785 = vld [vmem:[%s3 + $0x1f4] sm:$0xf]
    %v7786 = vld [vmem:[%s3 + $0x1f8] sm:$0xf]
    %v7787 = vld [vmem:[%s3 + $0x1fc] sm:$0xf]
    %v7788 = vld [vmem:[%s4] sm:$0x1]
    %v7790 = vlaneseq
    %v7791 = vshrl.u32 %v7790, 7
    %v7792 = vsub.s32 0, %v7791
    %v7793 = vrot.slane %v7788, %v7792
    %v7923 = vunpack.c.l.b16 %v7660
    %v7924 = vunpack.c.l.b16 %v7661
    %v7925 = vunpack.c.l.b16 %v7662
    %v7926 = vunpack.c.l.b16 %v7663
    %v7927 = vunpack.c.l.b16 %v7664
    %v7928 = vunpack.c.l.b16 %v7665
    %v7929 = vunpack.c.l.b16 %v7666
    %v7930 = vunpack.c.l.b16 %v7667
    %v7931 = vunpack.c.l.b16 %v7668
    %v7932 = vunpack.c.l.b16 %v7669
    %v7933 = vunpack.c.l.b16 %v7670
    %v7934 = vunpack.c.l.b16 %v7671
    %v7935 = vunpack.c.l.b16 %v7672
    %v7936 = vunpack.c.l.b16 %v7673
    %v7937 = vunpack.c.l.b16 %v7674
    %v7938 = vunpack.c.l.b16 %v7675
    %v7939 = vunpack.c.l.b16 %v7676
    %v7940 = vunpack.c.l.b16 %v7677
    %v7941 = vunpack.c.l.b16 %v7678
    %v7942 = vunpack.c.l.b16 %v7679
    %v7943 = vunpack.c.l.b16 %v7680
    %v7944 = vunpack.c.l.b16 %v7681
    %v7945 = vunpack.c.l.b16 %v7682
    %v7946 = vunpack.c.l.b16 %v7683
    %v7947 = vunpack.c.l.b16 %v7684
    %v7948 = vunpack.c.l.b16 %v7685
    %v7949 = vunpack.c.l.b16 %v7686
    %v7950 = vunpack.c.l.b16 %v7687
    %v7951 = vunpack.c.l.b16 %v7688
    %v7952 = vunpack.c.l.b16 %v7689
    %v7953 = vunpack.c.l.b16 %v7690
    %v7954 = vunpack.c.l.b16 %v7691
    %v7955 = vunpack.c.l.b16 %v7692
    %v7956 = vunpack.c.l.b16 %v7693
    %v7957 = vunpack.c.l.b16 %v7694
    %v7958 = vunpack.c.l.b16 %v7695
    %v7959 = vunpack.c.l.b16 %v7696
    %v7960 = vunpack.c.l.b16 %v7697
    %v7961 = vunpack.c.l.b16 %v7698
    %v7962 = vunpack.c.l.b16 %v7699
    %v7963 = vunpack.c.l.b16 %v7700
    %v7964 = vunpack.c.l.b16 %v7701
    %v7965 = vunpack.c.l.b16 %v7702
    %v7966 = vunpack.c.l.b16 %v7703
    %v7967 = vunpack.c.l.b16 %v7704
    %v7968 = vunpack.c.l.b16 %v7705
    %v7969 = vunpack.c.l.b16 %v7706
    %v7970 = vunpack.c.l.b16 %v7707
    %v7971 = vunpack.c.l.b16 %v7708
    %v7972 = vunpack.c.l.b16 %v7709
    %v7973 = vunpack.c.l.b16 %v7710
    %v7974 = vunpack.c.l.b16 %v7711
    %v7975 = vunpack.c.l.b16 %v7712
    %v7976 = vunpack.c.l.b16 %v7713
    %v7977 = vunpack.c.l.b16 %v7714
    %v7978 = vunpack.c.l.b16 %v7715
    %v7979 = vunpack.c.l.b16 %v7716
    %v7980 = vunpack.c.l.b16 %v7717
    %v7981 = vunpack.c.l.b16 %v7718
    %v7982 = vunpack.c.l.b16 %v7719
    %v7983 = vunpack.c.l.b16 %v7720
    %v7984 = vunpack.c.l.b16 %v7721
    %v7985 = vunpack.c.l.b16 %v7722
    %v7986 = vunpack.c.l.b16 %v7723
    %v7987 = vunpack.c.l.b16 %v7724
    %v7988 = vunpack.c.l.b16 %v7725
    %v7989 = vunpack.c.l.b16 %v7726
    %v7990 = vunpack.c.l.b16 %v7727
    %v7991 = vunpack.c.l.b16 %v7728
    %v7992 = vunpack.c.l.b16 %v7729
    %v7993 = vunpack.c.l.b16 %v7730
    %v7994 = vunpack.c.l.b16 %v7731
    %v7995 = vunpack.c.l.b16 %v7732
    %v7996 = vunpack.c.l.b16 %v7733
    %v7997 = vunpack.c.l.b16 %v7734
    %v7998 = vunpack.c.l.b16 %v7735
    %v7999 = vunpack.c.l.b16 %v7736
    %v8000 = vunpack.c.l.b16 %v7737
    %v8001 = vunpack.c.l.b16 %v7738
    %v8002 = vunpack.c.l.b16 %v7739
    %v8003 = vunpack.c.l.b16 %v7740
    %v8004 = vunpack.c.l.b16 %v7741
    %v8005 = vunpack.c.l.b16 %v7742
    %v8006 = vunpack.c.l.b16 %v7743
    %v8007 = vunpack.c.l.b16 %v7744
    %v8008 = vunpack.c.l.b16 %v7745
    %v8009 = vunpack.c.l.b16 %v7746
    %v8010 = vunpack.c.l.b16 %v7747
    %v8011 = vunpack.c.l.b16 %v7748
    %v8012 = vunpack.c.l.b16 %v7749
    %v8013 = vunpack.c.l.b16 %v7750
    %v8014 = vunpack.c.l.b16 %v7751
    %v8015 = vunpack.c.l.b16 %v7752
    %v8016 = vunpack.c.l.b16 %v7753
    %v8017 = vunpack.c.l.b16 %v7754
    %v8018 = vunpack.c.l.b16 %v7755
    %v8019 = vunpack.c.l.b16 %v7756
    %v8020 = vunpack.c.l.b16 %v7757
    %v8021 = vunpack.c.l.b16 %v7758
    %v8022 = vunpack.c.l.b16 %v7759
    %v8023 = vunpack.c.l.b16 %v7760
    %v8024 = vunpack.c.l.b16 %v7761
    %v8025 = vunpack.c.l.b16 %v7762
    %v8026 = vunpack.c.l.b16 %v7763
    %v8027 = vunpack.c.l.b16 %v7764
    %v8028 = vunpack.c.l.b16 %v7765
    %v8029 = vunpack.c.l.b16 %v7766
    %v8030 = vunpack.c.l.b16 %v7767
    %v8031 = vunpack.c.l.b16 %v7768
    %v8032 = vunpack.c.l.b16 %v7769
    %v8033 = vunpack.c.l.b16 %v7770
    %v8034 = vunpack.c.l.b16 %v7771
    %v8035 = vunpack.c.l.b16 %v7772
    %v8036 = vunpack.c.l.b16 %v7773
    %v8037 = vunpack.c.l.b16 %v7774
    %v8038 = vunpack.c.l.b16 %v7775
    %v8039 = vunpack.c.l.b16 %v7776
    %v8040 = vunpack.c.l.b16 %v7777
    %v8041 = vunpack.c.l.b16 %v7778
    %v8042 = vunpack.c.l.b16 %v7779
    %v8043 = vunpack.c.l.b16 %v7780
    %v8044 = vunpack.c.l.b16 %v7781
    %v8045 = vunpack.c.l.b16 %v7782
    %v8046 = vunpack.c.l.b16 %v7783
    %v8047 = vunpack.c.l.b16 %v7784
    %v8048 = vunpack.c.l.b16 %v7785
    %v8049 = vunpack.c.l.b16 %v7786
    %v8050 = vunpack.c.l.b16 %v7787
    %v8051 = vpack.c.b16 %v7924, %v7923
    %v8052 = vpack.c.b16 %v7926, %v7925
    %v8053 = vpack.c.b16 %v7928, %v7927
    %v8054 = vpack.c.b16 %v7930, %v7929
    %v8055 = vpack.c.b16 %v7932, %v7931
    %v8056 = vpack.c.b16 %v7934, %v7933
    %v8057 = vpack.c.b16 %v7936, %v7935
    %v8058 = vpack.c.b16 %v7938, %v7937
    %v8059 = vpack.c.b16 %v7940, %v7939
    %v8060 = vpack.c.b16 %v7942, %v7941
    %v8061 = vpack.c.b16 %v7944, %v7943
    %v8062 = vpack.c.b16 %v7946, %v7945
    %v8063 = vpack.c.b16 %v7948, %v7947
    %v8064 = vpack.c.b16 %v7950, %v7949
    %v8065 = vpack.c.b16 %v7952, %v7951
    %v8066 = vpack.c.b16 %v7954, %v7953
    %v8067 = vpack.c.b16 %v7956, %v7955
    %v8068 = vpack.c.b16 %v7958, %v7957
    %v8069 = vpack.c.b16 %v7960, %v7959
    %v8070 = vpack.c.b16 %v7962, %v7961
    %v8071 = vpack.c.b16 %v7964, %v7963
    %v8072 = vpack.c.b16 %v7966, %v7965
    %v8073 = vpack.c.b16 %v7968, %v7967
    %v8074 = vpack.c.b16 %v7970, %v7969
    %v8075 = vpack.c.b16 %v7972, %v7971
    %v8076 = vpack.c.b16 %v7974, %v7973
    %v8077 = vpack.c.b16 %v7976, %v7975
    %v8078 = vpack.c.b16 %v7978, %v7977
    %v8079 = vpack.c.b16 %v7980, %v7979
    %v8080 = vpack.c.b16 %v7982, %v7981
    %v8081 = vpack.c.b16 %v7984, %v7983
    %v8082 = vpack.c.b16 %v7986, %v7985
    %v8083 = vpack.c.b16 %v7988, %v7987
    %v8084 = vpack.c.b16 %v7990, %v7989
    %v8085 = vpack.c.b16 %v7992, %v7991
    %v8086 = vpack.c.b16 %v7994, %v7993
    %v8087 = vpack.c.b16 %v7996, %v7995
    %v8088 = vpack.c.b16 %v7998, %v7997
    %v8089 = vpack.c.b16 %v8000, %v7999
    %v8090 = vpack.c.b16 %v8002, %v8001
    %v8091 = vpack.c.b16 %v8004, %v8003
    %v8092 = vpack.c.b16 %v8006, %v8005
    %v8093 = vpack.c.b16 %v8008, %v8007
    %v8094 = vpack.c.b16 %v8010, %v8009
    %v8095 = vpack.c.b16 %v8012, %v8011
    %v8096 = vpack.c.b16 %v8014, %v8013
    %v8097 = vpack.c.b16 %v8016, %v8015
    %v8098 = vpack.c.b16 %v8018, %v8017
    %v8099 = vpack.c.b16 %v8020, %v8019
    %v8100 = vpack.c.b16 %v8022, %v8021
    %v8101 = vpack.c.b16 %v8024, %v8023
    %v8102 = vpack.c.b16 %v8026, %v8025
    %v8103 = vpack.c.b16 %v8028, %v8027
    %v8104 = vpack.c.b16 %v8030, %v8029
    %v8105 = vpack.c.b16 %v8032, %v8031
    %v8106 = vpack.c.b16 %v8034, %v8033
    %v8107 = vpack.c.b16 %v8036, %v8035
    %v8108 = vpack.c.b16 %v8038, %v8037
    %v8109 = vpack.c.b16 %v8040, %v8039
    %v8110 = vpack.c.b16 %v8042, %v8041
    %v8111 = vpack.c.b16 %v8044, %v8043
    %v8112 = vpack.c.b16 %v8046, %v8045
    %v8113 = vpack.c.b16 %v8048, %v8047
    %v8114 = vpack.c.b16 %v8050, %v8049
    %8179 = vmatprep.subr.bf16.mxu0 0
    %8180 = vmatpush1.bf16.msra.mxu0 %v8051
    %8181 = vmatprep.subr.bf16.mxu0 0
    %8182 = vmatpush1.bf16.msra.mxu0 %v8052
    %8183 = vmatprep.subr.bf16.mxu0 0
    %8184 = vmatpush1.bf16.msra.mxu0 %v8053
    %8185 = vmatprep.subr.bf16.mxu0 0
    %8186 = vmatpush1.bf16.msra.mxu0 %v8054
    %8187 = vmatprep.subr.bf16.mxu0 0
    %8188 = vmatpush1.bf16.msra.mxu0 %v8055
    %8189 = vmatprep.subr.bf16.mxu0 0
    %8190 = vmatpush1.bf16.msra.mxu0 %v8056
    %8191 = vmatprep.subr.bf16.mxu0 0
    %8192 = vmatpush1.bf16.msra.mxu0 %v8057
    %8193 = vmatprep.subr.bf16.mxu0 0
    %8194 = vmatpush1.bf16.msra.mxu0 %v8058
    %8195 = vmatprep.subr.bf16.mxu0 0
    %8196 = vmatpush1.bf16.msra.mxu0 %v8059
    %8197 = vmatprep.subr.bf16.mxu0 0
    %8198 = vmatpush1.bf16.msra.mxu0 %v8060
    %8199 = vmatprep.subr.bf16.mxu0 0
    %8200 = vmatpush1.bf16.msra.mxu0 %v8061
    %8201 = vmatprep.subr.bf16.mxu0 0
    %8202 = vmatpush1.bf16.msra.mxu0 %v8062
    %8203 = vmatprep.subr.bf16.mxu0 0
    %8204 = vmatpush1.bf16.msra.mxu0 %v8063
    %8205 = vmatprep.subr.bf16.mxu0 0
    %8206 = vmatpush1.bf16.msra.mxu0 %v8064
    %8207 = vmatprep.subr.bf16.mxu0 0
    %8208 = vmatpush1.bf16.msra.mxu0 %v8065
    %8209 = vmatprep.subr.bf16.mxu0 0
    %8210 = vmatpush1.bf16.msra.mxu0 %v8066
    %8211 = vmatprep.mubr.bf16.mxu0 %v7653
    %8212 = vmatmul.mubr.bf16.gmra.mrb[0].mxu0 %v7652
    %v8213 = vpop.f32.mrb[0].mxu0
    %v8214 = vadd.f32 %v7793, %v8213
    %v8215 = vpop.f32.mrb[0].mxu0
    %v8216 = vpop.f32.mrb[0].mxu0
    %v8217 = vpop.f32.mrb[0].mxu0
    %8218 = vdwg.mxu0
    %8219 = vmatprep.subr.bf16.mxu0 0
    %8220 = vmatpush1.bf16.msra.mxu0 %v8067
    %8221 = vmatprep.subr.bf16.mxu0 0
    %8222 = vmatpush1.bf16.msra.mxu0 %v8068
    %8223 = vmatprep.subr.bf16.mxu0 0
    %8224 = vmatpush1.bf16.msra.mxu0 %v8069
    %8225 = vmatprep.subr.bf16.mxu0 0
    %8226 = vmatpush1.bf16.msra.mxu0 %v8070
    %8227 = vmatprep.subr.bf16.mxu0 0
    %8228 = vmatpush1.bf16.msra.mxu0 %v8071
    %8229 = vmatprep.subr.bf16.mxu0 0
    %8230 = vmatpush1.bf16.msra.mxu0 %v8072
    %8231 = vmatprep.subr.bf16.mxu0 0
    %8232 = vmatpush1.bf16.msra.mxu0 %v8073
    %8233 = vmatprep.subr.bf16.mxu0 0
    %8234 = vmatpush1.bf16.msra.mxu0 %v8074
    %8235 = vmatprep.subr.bf16.mxu0 0
    %8236 = vmatpush1.bf16.msra.mxu0 %v8075
    %8237 = vmatprep.subr.bf16.mxu0 0
    %8238 = vmatpush1.bf16.msra.mxu0 %v8076
    %8239 = vmatprep.subr.bf16.mxu0 0
    %8240 = vmatpush1.bf16.msra.mxu0 %v8077
    %8241 = vmatprep.subr.bf16.mxu0 0
    %8242 = vmatpush1.bf16.msra.mxu0 %v8078
    %8243 = vmatprep.subr.bf16.mxu0 0
    %8244 = vmatpush1.bf16.msra.mxu0 %v8079
    %8245 = vmatprep.subr.bf16.mxu0 0
    %8246 = vmatpush1.bf16.msra.mxu0 %v8080
    %8247 = vmatprep.subr.bf16.mxu0 0
    %8248 = vmatpush1.bf16.msra.mxu0 %v8081
    %8249 = vmatprep.subr.bf16.mxu0 0
    %8250 = vmatpush1.bf16.msra.mxu0 %v8082
    %8251 = vmatprep.mubr.bf16.mxu0 %v7655
    %8252 = vmatmul.mubr.bf16.gmra.mrb[0].mxu0 %v7654
    %v8253 = vpop.f32.mrb[0].mxu0
    %v8254 = vadd.f32 %v8214, %v8253
    %v8255 = vpop.f32.mrb[0].mxu0
    %v8256 = vpop.f32.mrb[0].mxu0
    %v8257 = vpop.f32.mrb[0].mxu0
    %8258 = vdwg.mxu0
    %8259 = vmatprep.subr.bf16.mxu0 0
    %8260 = vmatpush1.bf16.msra.mxu0 %v8083
    %8261 = vmatprep.subr.bf16.mxu0 0
    %8262 = vmatpush1.bf16.msra.mxu0 %v8084
    %8263 = vmatprep.subr.bf16.mxu0 0
    %8264 = vmatpush1.bf16.msra.mxu0 %v8085
    %8265 = vmatprep.subr.bf16.mxu0 0
    %8266 = vmatpush1.bf16.msra.mxu0 %v8086
    %8267 = vmatprep.subr.bf16.mxu0 0
    %8268 = vmatpush1.bf16.msra.mxu0 %v8087
    %8269 = vmatprep.subr.bf16.mxu0 0
    %8270 = vmatpush1.bf16.msra.mxu0 %v8088
    %8271 = vmatprep.subr.bf16.mxu0 0
    %8272 = vmatpush1.bf16.msra.mxu0 %v8089
    %8273 = vmatprep.subr.bf16.mxu0 0
    %8274 = vmatpush1.bf16.msra.mxu0 %v8090
    %8275 = vmatprep.subr.bf16.mxu0 0
    %8276 = vmatpush1.bf16.msra.mxu0 %v8091
    %8277 = vmatprep.subr.bf16.mxu0 0
    %8278 = vmatpush1.bf16.msra.mxu0 %v8092
    %8279 = vmatprep.subr.bf16.mxu0 0
    %8280 = vmatpush1.bf16.msra.mxu0 %v8093
    %8281 = vmatprep.subr.bf16.mxu0 0
    %8282 = vmatpush1.bf16.msra.mxu0 %v8094
    %8283 = vmatprep.subr.bf16.mxu0 0
    %8284 = vmatpush1.bf16.msra.mxu0 %v8095
    %8285 = vmatprep.subr.bf16.mxu0 0
    %8286 = vmatpush1.bf16.msra.mxu0 %v8096
    %8287 = vmatprep.subr.bf16.mxu0 0
    %8288 = vmatpush1.bf16.msra.mxu0 %v8097
    %8289 = vmatprep.subr.bf16.mxu0 0
    %8290 = vmatpush1.bf16.msra.mxu0 %v8098
    %8291 = vmatprep.mubr.bf16.mxu0 %v7657
    %8292 = vmatmul.mubr.bf16.gmra.mrb[0].mxu0 %v7656
    %v8293 = vpop.f32.mrb[0].mxu0
    %v8294 = vadd.f32 %v8254, %v8293
    %v8295 = vpop.f32.mrb[0].mxu0
    %v8296 = vpop.f32.mrb[0].mxu0
    %v8297 = vpop.f32.mrb[0].mxu0
    %8298 = vdwg.mxu0
    %8299 = vmatprep.subr.bf16.mxu0 0
    %8300 = vmatpush1.bf16.msra.mxu0 %v8099
    %8301 = vmatprep.subr.bf16.mxu0 0
    %8302 = vmatpush1.bf16.msra.mxu0 %v8100
    %8303 = vmatprep.subr.bf16.mxu0 0
    %8304 = vmatpush1.bf16.msra.mxu0 %v8101
    %8305 = vmatprep.subr.bf16.mxu0 0
    %8306 = vmatpush1.bf16.msra.mxu0 %v8102
    %8307 = vmatprep.subr.bf16.mxu0 0
    %8308 = vmatpush1.bf16.msra.mxu0 %v8103
    %8309 = vmatprep.subr.bf16.mxu0 0
    %8310 = vmatpush1.bf16.msra.mxu0 %v8104
    %8311 = vmatprep.subr.bf16.mxu0 0
    %8312 = vmatpush1.bf16.msra.mxu0 %v8105
    %8313 = vmatprep.subr.bf16.mxu0 0
    %8314 = vmatpush1.bf16.msra.mxu0 %v8106
    %8315 = vmatprep.subr.bf16.mxu0 0
    %8316 = vmatpush1.bf16.msra.mxu0 %v8107
    %8317 = vmatprep.subr.bf16.mxu0 0
    %8318 = vmatpush1.bf16.msra.mxu0 %v8108
    %8319 = vmatprep.subr.bf16.mxu0 0
    %8320 = vmatpush1.bf16.msra.mxu0 %v8109
    %8321 = vmatprep.subr.bf16.mxu0 0
    %8322 = vmatpush1.bf16.msra.mxu0 %v8110
    %8323 = vmatprep.subr.bf16.mxu0 0
    %8324 = vmatpush1.bf16.msra.mxu0 %v8111
    %8325 = vmatprep.subr.bf16.mxu0 0
    %8326 = vmatpush1.bf16.msra.mxu0 %v8112
    %8327 = vmatprep.subr.bf16.mxu0 0
    %8328 = vmatpush1.bf16.msra.mxu0 %v8113
    %8329 = vmatprep.subr.bf16.mxu0 0
    %8330 = vmatpush1.bf16.msra.mxu0 %v8114
    %8331 = vmatprep.mubr.bf16.mxu0 %v7659
    %8332 = vmatmul.mubr.bf16.gmra.mrb[0].mxu0 %v7658
    %v8333 = vpop.f32.mrb[0].mxu0
    %v8334 = vadd.f32 %v8294, %v8333
    %v8335 = vpop.f32.mrb[0].mxu0
    %v8336 = vpop.f32.mrb[0].mxu0
    %v8337 = vpop.f32.mrb[0].mxu0
    %8338 = vdwg.mxu0
    %v8339 = vmax.f32 %v8334, 0.0
    %v8340 = vpack.c.bf16 %v8339, %v8339
    %v8341 = vld [vmem:[%s5] sm:$0xf]
    %v8342 = vld [vmem:[%s5 + $0x4] sm:$0xf]
    %v8343 = vld [vmem:[%s5 + $0x8] sm:$0xf]
    %v8344 = vld [vmem:[%s5 + $0xc] sm:$0xf]
    %v8345 = vld [vmem:[%s5 + $0x10] sm:$0xf]
    %v8346 = vld [vmem:[%s5 + $0x14] sm:$0xf]
    %v8347 = vld [vmem:[%s5 + $0x18] sm:$0xf]
    %v8348 = vld [vmem:[%s5 + $0x1c] sm:$0xf]
    %v8349 = vld [vmem:[%s5 + $0x20] sm:$0xf]
    %v8350 = vld [vmem:[%s5 + $0x24] sm:$0xf]
    %v8351 = vld [vmem:[%s5 + $0x28] sm:$0xf]
    %v8352 = vld [vmem:[%s5 + $0x2c] sm:$0xf]
    %v8353 = vld [vmem:[%s5 + $0x30] sm:$0xf]
    %v8354 = vld [vmem:[%s5 + $0x34] sm:$0xf]
    %v8355 = vld [vmem:[%s5 + $0x38] sm:$0xf]
    %v8356 = vld [vmem:[%s5 + $0x3c] sm:$0xf]
    %v8357 = vld [vmem:[%s6] sm:$0x1]
    %v8359 = vlaneseq
    %v8360 = vshrl.u32 %v8359, 7
    %v8361 = vsub.s32 0, %v8360
    %v8362 = vrot.slane %v8357, %v8361
    %v8380 = vunpack.c.l.b16 %v8341
    %v8381 = vunpack.c.l.b16 %v8342
    %v8382 = vunpack.c.l.b16 %v8343
    %v8383 = vunpack.c.l.b16 %v8344
    %v8384 = vunpack.c.l.b16 %v8345
    %v8385 = vunpack.c.l.b16 %v8346
    %v8386 = vunpack.c.l.b16 %v8347
    %v8387 = vunpack.c.l.b16 %v8348
    %v8388 = vunpack.c.l.b16 %v8349
    %v8389 = vunpack.c.l.b16 %v8350
    %v8390 = vunpack.c.l.b16 %v8351
    %v8391 = vunpack.c.l.b16 %v8352
    %v8392 = vunpack.c.l.b16 %v8353
    %v8393 = vunpack.c.l.b16 %v8354
    %v8394 = vunpack.c.l.b16 %v8355
    %v8395 = vunpack.c.l.b16 %v8356
    %v8396 = vpack.c.b16 %v8381, %v8380
    %v8397 = vpack.c.b16 %v8383, %v8382
    %v8398 = vpack.c.b16 %v8385, %v8384
    %v8399 = vpack.c.b16 %v8387, %v8386
    %v8400 = vpack.c.b16 %v8389, %v8388
    %v8401 = vpack.c.b16 %v8391, %v8390
    %v8402 = vpack.c.b16 %v8393, %v8392
    %v8403 = vpack.c.b16 %v8395, %v8394
    %8412 = vmatprep.subr.bf16.mxu0 0
    %8413 = vmatpush1.bf16.msra.mxu0 %v8396
    %8414 = vmatprep.subr.bf16.mxu0 0
    %8415 = vmatpush1.bf16.msra.mxu0 %v8397
    %8416 = vmatprep.subr.bf16.mxu0 0
    %8417 = vmatpush1.bf16.msra.mxu0 %v8398
    %8418 = vmatprep.subr.bf16.mxu0 0
    %8419 = vmatpush1.bf16.msra.mxu0 %v8399
    %8420 = vmatprep.subr.bf16.mxu0 0
    %8421 = vmatpush1.bf16.msra.mxu0 %v8400
    %8422 = vmatprep.subr.bf16.mxu0 0
    %8423 = vmatpush1.bf16.msra.mxu0 %v8401
    %8424 = vmatprep.subr.bf16.mxu0 0
    %8425 = vmatpush1.bf16.msra.mxu0 %v8402
    %8426 = vmatprep.subr.bf16.mxu0 0
    %8427 = vmatpush1.bf16.msra.mxu0 %v8403
    %8428 = vmatprep.subr.bf16.mxu0 0
    %8429 = vmatpush1.bf16.msra.mxu0 0
    %8430 = vmatprep.subr.bf16.mxu0 0
    %8431 = vmatpush1.bf16.msra.mxu0 0
    %8432 = vmatprep.subr.bf16.mxu0 0
    %8433 = vmatpush1.bf16.msra.mxu0 0
    %8434 = vmatprep.subr.bf16.mxu0 0
    %8435 = vmatpush1.bf16.msra.mxu0 0
    %8436 = vmatprep.subr.bf16.mxu0 0
    %8437 = vmatpush1.bf16.msra.mxu0 0
    %8438 = vmatprep.subr.bf16.mxu0 0
    %8439 = vmatpush1.bf16.msra.mxu0 0
    %8440 = vmatprep.subr.bf16.mxu0 0
    %8441 = vmatpush1.bf16.msra.mxu0 0
    %8442 = vmatprep.subr.bf16.mxu0 0
    %8443 = vmatpush1.bf16.msra.mxu0 0
    %8444 = vmatprep.mubr.bf16.mxu0 0
    %8445 = vmatmul.mubr.bf16.gmra.mrb[0].mxu0 %v8340
    %v8446 = vpop.f32.mrb[0].mxu0
    %v8447 = vadd.f32 %v8362, %v8446
    %v8448 = vpop.f32.mrb[0].mxu0
    %v8449 = vpop.f32.mrb[0].mxu0
    %v8450 = vpop.f32.mrb[0].mxu0
    %8451 = vdwg.mxu0
    %vm8452 = vcmask 74752
    %8453 = vst.msk [vmem:[#allocation2] sm:$0x3] %vm8452, %v8447
    // Predicated region
    $region30: #{dcnn_forward.9} parent=1 // pred_check
      _
    $region31: #{dcnn_forward.9} parent=1 // pred_check_branch
      %8455 = sbr.rel (0) target = $region33
    $region32: #{dcnn_forward.9} parent=1 // pred_region
      %s8457 = ssub.s32 32, 32
      %8458 = vsyncadd [#allocation3], %s8457
      %s8460 = sshll.u32 [#allocation2], 4
      %s8461 = int_to_ptr.vmem [resolvable:$true] %s8460
      %8463 = dma.vmem_to_hbm [thread:$0]  %s8461, 32, %s7, [#allocation3]
    $region33: #{dcnn_forward.9} parent=1 // pred_fallthru
      _
    // Predicated region
    $region34: #{dcnn_forward.9} parent=1 // pred_check
      _
    $region35: #{dcnn_forward.9} parent=1 // pred_check_branch
      %8465 = sbr.rel (0) target = $region37
    $region36: #{dcnn_forward.9} parent=1 // pred_region
      %8466 = dma.done [#allocation3], 32
    $region37: #{dcnn_forward.9} parent=1 // pred_fallthru
      _
    %8467 = vsyncpa [#allocation3], 1

</llo_original>
